<compile_context>
chip_gen: v6e
topology: v6e:2x2x1
jax: 0.10.0
libtpu: 0.0.40
codegen_flags: <defaults>
</compile_context>

<pallas_src>
import functools

import jax
import jax.numpy as jnp
from jax.experimental import pallas as pl
from jax.experimental.pallas import tpu as pltpu


# ----------------------------------------------------------------------------
# Fused kernel: ConvTranspose2d(k2,s2) + (Conv3x3 + BN + ReLU) x2, one batch
# element per grid step.
# ----------------------------------------------------------------------------
def _up_block_kernel(x_ref, wup_ref, bup_ref, w1_ref, s1_ref, t1_ref,
                     w2t_ref, s2_ref, t2_ref, o_ref, u_pad, y1_pad,
                     *, H, W, Cmid, Cout):
    # x_ref   : [1, H*W, Cin]     input image, NHWC flattened over space (bf16)
    # wup_ref : [Cin, 4*Cmid]     ConvTranspose weights, columns ordered (di,dj,c)
    # bup_ref : [1, 4*Cmid]       ConvTranspose bias tiled over the 4 phases (f32)
    # w1_ref  : [9, Cmid, Cout]   conv1 weights, tap-major (dy*3+dx), [ci, co]
    # s1/t1   : [1, Cout]         folded BN1 scale / shift (conv bias included)
    # w2t_ref : [9, Cout, Cout]   conv2 weights, tap-major, TRANSPOSED: [co, ci]
    # s2/t2   : [Cout, 1]         folded BN2 scale / shift (channel-major)
    # o_ref   : [1, Cout, Ho*Wo]  channel-major output (lane-dense stores)
    # scratch : u_pad  [Ho+2, Wo+2, Cmid] bf16, y1_pad [Ho+2, Wo+2, Cout] bf16
    Ho, Wo = 2 * H, 2 * W
    f32 = jnp.float32

    # ---- zero ONLY the 1-pixel borders (interior fully overwritten below) ----
    # Done every step (cheap: a few KiB) so it is correct even when the
    # "parallel" batch axis is split across TensorCores (per-core scratch).
    for pad_ref, c in ((u_pad, Cmid), (y1_pad, Cout)):
        zrow = jnp.zeros((1, Wo + 2, c), pad_ref.dtype)
        pad_ref[0:1, :, :] = zrow
        pad_ref[Ho + 1:Ho + 2, :, :] = zrow
        zcol = jnp.zeros((Ho + 2, 1, c), pad_ref.dtype)
        pad_ref[:, 0:1, :] = zcol
        pad_ref[:, Wo + 1:Wo + 2, :] = zcol

    # ---- ConvTranspose2d(k=2, s=2): ONE wide matmul over all 4 phases -------
    x = x_ref[0]                                               # [H*W, Cin] bf16
    u = jnp.dot(x, wup_ref[...], preferred_element_type=f32) + bup_ref[...]
    # Columns are ordered (di, dj, c), so:
    #   u[:, :2C]  -> even output rows with dj already interleaved along W
    #   u[:, 2C:]  -> odd  output rows
    ue = u[:, :2 * Cmid].reshape(H, Wo * Cmid)                 # di = 0 rows
    uo = u[:, 2 * Cmid:].reshape(H, Wo * Cmid)                 # di = 1 rows
    u_full = jnp.concatenate([ue, uo], axis=-1).reshape(Ho, Wo, Cmid)
    u_pad[1:Ho + 1, 1:Wo + 1, :] = u_full.astype(u_pad.dtype)

    # ---- Conv3x3(pad=1) + BN + ReLU #1: 9 shifted-view matmuls, f32 acc -----
    acc = jnp.zeros((Ho * Wo, Cout), f32)
    for t in range(9):
        dy, dx = divmod(t, 3)
        patch = u_pad[dy:dy + Ho, dx:dx + Wo, :].reshape(Ho * Wo, Cmid)  # bf16
        acc = acc + jnp.dot(patch, w1_ref[t], preferred_element_type=f32)
    y1 = jnp.maximum(acc * s1_ref[...] + t1_ref[...], 0.0)
    y1_pad[1:Ho + 1, 1:Wo + 1, :] = y1.astype(y1_pad.dtype).reshape(Ho, Wo, Cout)

    # ---- Conv3x3(pad=1) + BN + ReLU #2, computed CHANNEL-MAJOR --------------
    # accT[co, p] += sum_ci w2t[t][co, ci] * patch[p, ci]  (A @ B.T on the MXU)
    # -> MXU N dim = Ho*Wo (multiple of 128) and the output store is lane-dense.
    accT = jnp.zeros((Cout, Ho * Wo), f32)
    for t in range(9):
        dy, dx = divmod(t, 3)
        patch = y1_pad[dy:dy + Ho, dx:dx + Wo, :].reshape(Ho * Wo, Cout)  # bf16
        accT = accT + jax.lax.dot_general(
            w2t_ref[t], patch,
            dimension_numbers=(((1,), (1,)), ((), ())),
            preferred_element_type=f32)
    y2 = jnp.maximum(accT * s2_ref[...] + t2_ref[...], 0.0)   # [Cout, Ho*Wo]

    o_ref[0] = y2.astype(o_ref.dtype)                         # unmasked vst


def _fold_bn(conv_b, gamma, beta, mean, var, eps=1e-5):
    scale = gamma / jnp.sqrt(var + eps)
    shift = beta + (conv_b - mean) * scale
    return scale.reshape(1, -1).astype(jnp.float32), shift.reshape(1, -1).astype(jnp.float32)


def up_block_forward(x_nchw, params, eps=1e-5):
    """Forward of Up_ (ConvTranspose2d k2 s2 + DoubleConv). NCHW in/out."""
    N, Cin, H, W = x_nchw.shape
    w_up = params["up_w"]                                  # [Cin, Cmid, 2, 2]
    Cmid = w_up.shape[1]
    Cout = params["c1_w"].shape[0]
    Ho, Wo = 2 * H, 2 * W
    bf16 = jnp.bfloat16

    # NCHW -> NHWC -> [N, H*W, Cin], bf16 matmul operands.
    x_flat = jnp.transpose(x_nchw, (0, 2, 3, 1)).reshape(N, H * W, Cin).astype(bf16)

    # ConvTranspose weights -> [Cin, 4*Cmid] with columns ordered (di, dj, c);
    # bias tiled once over the 4 phases.
    wup = jnp.transpose(w_up, (0, 2, 3, 1)).reshape(Cin, 4 * Cmid).astype(bf16)
    bup = jnp.tile(params["up_b"].reshape(1, Cmid), (1, 4)).astype(jnp.float32)

    # Conv1 weights, tap-major [9, Cin, Cout]; BN folded to scale/shift.
    w1 = jnp.transpose(params["c1_w"], (2, 3, 1, 0)).reshape(9, Cmid, Cout).astype(bf16)
    s1, t1 = _fold_bn(params["c1_b"], params["bn1_g"], params["bn1_b"],
                      params["bn1_m"], params["bn1_v"], eps)          # [1, Cout]

    # Conv2 weights, tap-major TRANSPOSED [9, Cout, Cin2] (for the A @ B.T form);
    # BN2 scale/shift channel-major [Cout, 1].
    w2t = jnp.transpose(params["c2_w"], (2, 3, 0, 1)).reshape(9, Cout, Cout).astype(bf16)
    s2_, t2_ = _fold_bn(params["c2_b"], params["bn2_g"], params["bn2_b"],
                        params["bn2_m"], params["bn2_v"], eps)
    s2 = s2_.reshape(Cout, 1)
    t2 = t2_.reshape(Cout, 1)

    kernel = functools.partial(_up_block_kernel, H=H, W=W, Cmid=Cmid, Cout=Cout)

    out_cm = pl.pallas_call(
        kernel,
        out_shape=jax.ShapeDtypeStruct((N, Cout, Ho * Wo), x_nchw.dtype),
        grid_spec=pltpu.PrefetchScalarGridSpec(
            num_scalar_prefetch=0,
            grid=(N,),
            in_specs=[
                pl.BlockSpec((1, H * W, Cin), lambda n: (n, 0, 0)),     # x
                pl.BlockSpec((Cin, 4 * Cmid), lambda n: (0, 0)),        # up weights
                pl.BlockSpec((1, 4 * Cmid), lambda n: (0, 0)),          # up bias
                pl.BlockSpec((9, Cmid, Cout), lambda n: (0, 0, 0)),     # conv1 w
                pl.BlockSpec((1, Cout), lambda n: (0, 0)),              # s1
                pl.BlockSpec((1, Cout), lambda n: (0, 0)),              # t1
                pl.BlockSpec((9, Cout, Cout), lambda n: (0, 0, 0)),     # conv2 w^T
                pl.BlockSpec((Cout, 1), lambda n: (0, 0)),              # s2
                pl.BlockSpec((Cout, 1), lambda n: (0, 0)),              # t2
            ],
            out_specs=pl.BlockSpec((1, Cout, Ho * Wo), lambda n: (n, 0, 0)),
            scratch_shapes=[
                pltpu.VMEM((Ho + 2, Wo + 2, Cmid), jnp.bfloat16),   # padded upsample
                pltpu.VMEM((Ho + 2, Wo + 2, Cout), jnp.bfloat16),   # padded conv1 out
            ]),
        compiler_params=pltpu.CompilerParams(
            dimension_semantics=("parallel",),
            vmem_limit_bytes=48 * 1024 * 1024),
    )(x_flat, wup, bup, w1, s1, t1, w2t, s2, t2)

    # Channel-major kernel output reshapes straight to NCHW (no HBM transpose).
    return out_cm.reshape(N, Cout, Ho, Wo)


# ----------------------------------------------------------------------------
# Pure-JAX reference (eval-mode BN), for correctness check.
# ----------------------------------------------------------------------------
def _ref_up_forward(x_nchw, p, eps=1e-5):
    x = jnp.transpose(x_nchw, (0, 2, 3, 1))                # NHWC
    N, H, W, _ = x.shape
    Cmid = p["up_w"].shape[1]
    y = jnp.einsum('nijc,codk->nidjko', x, p["up_w"]).reshape(N, 2 * H, 2 * W, Cmid)
    x = y + p["up_b"]

    def conv_bn_relu(x, w, b, g, be, m, v):
        wk = jnp.transpose(w, (2, 3, 1, 0))                # HWIO
        y = jax.lax.conv_general_dilated(
            x, wk, window_strides=(1, 1), padding="SAME",
            dimension_numbers=("NHWC", "HWIO", "NHWC")) + b
        y = (y - m) / jnp.sqrt(v + eps) * g + be
        return jnp.maximum(y, 0.0)

    x = conv_bn_relu(x, p["c1_w"], p["c1_b"], p["bn1_g"], p["bn1_b"], p["bn1_m"], p["bn1_v"])
    x = conv_bn_relu(x, p["c2_w"], p["c2_b"], p["bn2_g"], p["bn2_b"], p["bn2_m"], p["bn2_v"])
    return jnp.transpose(x, (0, 3, 1, 2))


def _round_bf16(a):
    """Snap to bf16-representable values (kernel uses bf16 matmul operands)."""
    return a.astype(jnp.bfloat16).astype(jnp.float32)


def make_params(key, cin, cmid, cout):
    ks = jax.random.split(key, 8)
    f32 = jnp.float32
    return {
        # ConvTranspose2d(cin, cmid, 2, 2): weight [Cin, Cmid, 2, 2]
        "up_w": _round_bf16(0.1 * jax.random.normal(ks[0], (cin, cmid, 2, 2), f32)),
        "up_b": 0.1 * jax.random.normal(ks[1], (cmid,), f32),
        # Conv2d(cmid, cout, 3, padding=1)
        "c1_w": _round_bf16(0.1 * jax.random.normal(ks[2], (cout, cmid, 3, 3), f32)),
        "c1_b": 0.1 * jax.random.normal(ks[3], (cout,), f32),
        "bn1_g": 1.0 + 0.05 * jax.random.normal(ks[4], (cout,), f32),
        "bn1_b": 0.05 * jax.random.normal(ks[5], (cout,), f32),
        "bn1_m": jnp.zeros((cout,), f32),
        "bn1_v": jnp.ones((cout,), f32),
        # Conv2d(cout, cout, 3, padding=1)
        "c2_w": _round_bf16(0.1 * jax.random.normal(ks[6], (cout, cout, 3, 3), f32)),
        "c2_b": 0.1 * jax.random.normal(ks[7], (cout,), f32),
        "bn2_g": jnp.ones((cout,), f32),
        "bn2_b": jnp.zeros((cout,), f32),
        "bn2_m": jnp.zeros((cout,), f32),
        "bn2_v": jnp.ones((cout,), f32),
    }


def _max_rel_err(a, b):
    return jnp.max(jnp.abs(a - b)) / (jnp.max(jnp.abs(b)) + 1e-6)


if __name__ == "__main__":
    key = jax.random.PRNGKey(0)
    k1, k2, k3, k4 = jax.random.split(key, 4)

    # Stage `up1` of UNetHalf8to100: Up_(128, 64, bilinear=True) at the model's
    # native 8x8 spatial size -> 16x16 output.  Batch 4 to give the software
    # pipeline (and a megacore split) more than two grid steps.
    N, Cin, H, W = 4, 128, 8, 8
    Cmid, Cout = Cin, 64                        # bilinear=True: ConvT(Cin -> Cin)
    x = _round_bf16(jax.random.normal(k1, (N, Cin, H, W), jnp.float32))
    params = make_params(k2, Cin, Cmid, Cout)
    out = jax.block_until_ready(jax.jit(up_block_forward)(x, params))
    ref = _ref_up_forward(x, params)
    assert out.shape == (N, Cout, 2 * H, 2 * W)
    # bf16 matmul operands + f32 accumulation -> small numeric wobble allowed.
    assert _max_rel_err(out, ref) < 3e-2, "mismatch vs reference (up1 config)"

    # `up4`-style block (bilinear=False branch): Up_(16, 8) = ConvT(16 -> 8) +
    # DoubleConv(8, 8), at a reduced 8x8 spatial size.
    N2, Cin2, H2, W2 = 4, 16, 8, 8
    Cmid2, Cout2 = Cin2 // 2, 8
    x2 = _round_bf16(jax.random.normal(k3, (N2, Cin2, H2, W2), jnp.float32))
    params2 = make_params(k4, Cin2, Cmid2, Cout2)
    out2 = jax.block_until_ready(jax.jit(up_block_forward)(x2, params2))
    ref2 = _ref_up_forward(x2, params2)
    assert out2.shape == (N2, Cout2, 2 * H2, 2 * W2)
    assert _max_rel_err(out2, ref2) < 3e-2, "mismatch vs reference (up4 config)"

    print("KERNEL_OK")
</pallas_src>

<mosaic_0001>
module attributes {stable_mosaic.version = 11 : i64} {
  func.func @_up_block_kernel(%arg0: i32, %arg1: memref<1x64x128xbf16, #tpu.memory_space<vmem>>, %arg2: memref<128x512xbf16, #tpu.memory_space<vmem>>, %arg3: memref<1x512xf32, #tpu.memory_space<vmem>>, %arg4: memref<9x128x64xbf16, #tpu.memory_space<vmem>>, %arg5: memref<1x64xf32, #tpu.memory_space<vmem>>, %arg6: memref<1x64xf32, #tpu.memory_space<vmem>>, %arg7: memref<9x64x64xbf16, #tpu.memory_space<vmem>>, %arg8: memref<64x1xf32, #tpu.memory_space<vmem>>, %arg9: memref<64x1xf32, #tpu.memory_space<vmem>>, %arg10: memref<1x64x256xf32, #tpu.memory_space<vmem>>, %arg11: memref<18x18x128xbf16, #tpu.memory_space<vmem>>, %arg12: memref<18x18x64xbf16, #tpu.memory_space<vmem>>) attributes {dimension_semantics = [#tpu.dimension_semantics<parallel>], iteration_bounds = array<i64: 4>, scalar_prefetch = 0 : i64, scratch_operands = 2 : i64, tpu.core_type = #tpu.core_type<tc>, window_params = [{transform_indices = @transform_0, window_bounds = array<i64: 1, 64, 128>}, {pipeline_mode = #tpu.pipeline_mode<synchronous>, transform_indices = @transform_1, window_bounds = array<i64: 128, 512>}, {pipeline_mode = #tpu.pipeline_mode<synchronous>, transform_indices = @transform_2, window_bounds = array<i64: 1, 512>}, {pipeline_mode = #tpu.pipeline_mode<synchronous>, transform_indices = @transform_3, window_bounds = array<i64: 9, 128, 64>}, {pipeline_mode = #tpu.pipeline_mode<synchronous>, transform_indices = @transform_4, window_bounds = array<i64: 1, 64>}, {pipeline_mode = #tpu.pipeline_mode<synchronous>, transform_indices = @transform_5, window_bounds = array<i64: 1, 64>}, {pipeline_mode = #tpu.pipeline_mode<synchronous>, transform_indices = @transform_6, window_bounds = array<i64: 9, 64, 64>}, {pipeline_mode = #tpu.pipeline_mode<synchronous>, transform_indices = @transform_7, window_bounds = array<i64: 64, 1>}, {pipeline_mode = #tpu.pipeline_mode<synchronous>, transform_indices = @transform_8, window_bounds = array<i64: 64, 1>}, {transform_indices = @transform_9, window_bounds = array<i64: 1, 64, 256>}]} {
    %cst = arith.constant 0.000000e+00 : bf16
    %0 = vector.broadcast %cst : bf16 to vector<1x18x128xbf16>
    %c0 = arith.constant 0 : index
    %c0_0 = arith.constant 0 : index
    %c0_1 = arith.constant 0 : index
    %1 = vector.load %arg11[%c0, %c0_0, %c0_1] : memref<18x18x128xbf16, #tpu.memory_space<vmem>>, vector<1x18x128xbf16>
    tpu.vector_store %arg11[%c0, %c0_0, %c0_1], %0 {strides = array<i32>} : memref<18x18x128xbf16, #tpu.memory_space<vmem>>, vector<1x18x128xbf16>,
    %c17 = arith.constant 17 : index
    %c0_2 = arith.constant 0 : index
    %c0_3 = arith.constant 0 : index
    %2 = vector.load %arg11[%c17, %c0_2, %c0_3] : memref<18x18x128xbf16, #tpu.memory_space<vmem>>, vector<1x18x128xbf16>
    tpu.vector_store %arg11[%c17, %c0_2, %c0_3], %0 {strides = array<i32>} : memref<18x18x128xbf16, #tpu.memory_space<vmem>>, vector<1x18x128xbf16>,
    %cst_4 = arith.constant 0.000000e+00 : bf16
    %3 = vector.broadcast %cst_4 : bf16 to vector<18x1x128xbf16>
    %c0_5 = arith.constant 0 : index
    %c0_6 = arith.constant 0 : index
    %c0_7 = arith.constant 0 : index
    %4 = vector.load %arg11[%c0_5, %c0_6, %c0_7] : memref<18x18x128xbf16, #tpu.memory_space<vmem>>, vector<18x1x128xbf16>
    tpu.vector_store %arg11[%c0_5, %c0_6, %c0_7], %3 {strides = array<i32>} : memref<18x18x128xbf16, #tpu.memory_space<vmem>>, vector<18x1x128xbf16>,
    %c0_8 = arith.constant 0 : index
    %c17_9 = arith.constant 17 : index
    %c0_10 = arith.constant 0 : index
    %5 = vector.load %arg11[%c0_8, %c17_9, %c0_10] : memref<18x18x128xbf16, #tpu.memory_space<vmem>>, vector<18x1x128xbf16>
    tpu.vector_store %arg11[%c0_8, %c17_9, %c0_10], %3 {strides = array<i32>} : memref<18x18x128xbf16, #tpu.memory_space<vmem>>, vector<18x1x128xbf16>,
    %cst_11 = arith.constant 0.000000e+00 : bf16
    %6 = vector.broadcast %cst_11 : bf16 to vector<1x18x64xbf16>
    %c0_12 = arith.constant 0 : index
    %c0_13 = arith.constant 0 : index
    %c0_14 = arith.constant 0 : index
    %7 = vector.load %arg12[%c0_12, %c0_13, %c0_14] : memref<18x18x64xbf16, #tpu.memory_space<vmem>>, vector<1x18x64xbf16>
    tpu.vector_store %arg12[%c0_12, %c0_13, %c0_14], %6 {strides = array<i32>} : memref<18x18x64xbf16, #tpu.memory_space<vmem>>, vector<1x18x64xbf16>,
    %c17_15 = arith.constant 17 : index
    %c0_16 = arith.constant 0 : index
    %c0_17 = arith.constant 0 : index
    %8 = vector.load %arg12[%c17_15, %c0_16, %c0_17] : memref<18x18x64xbf16, #tpu.memory_space<vmem>>, vector<1x18x64xbf16>
    tpu.vector_store %arg12[%c17_15, %c0_16, %c0_17], %6 {strides = array<i32>} : memref<18x18x64xbf16, #tpu.memory_space<vmem>>, vector<1x18x64xbf16>,
    %cst_18 = arith.constant 0.000000e+00 : bf16
    %9 = vector.broadcast %cst_18 : bf16 to vector<18x1x64xbf16>
    %c0_19 = arith.constant 0 : index
    %c0_20 = arith.constant 0 : index
    %c0_21 = arith.constant 0 : index
    %10 = vector.load %arg12[%c0_19, %c0_20, %c0_21] : memref<18x18x64xbf16, #tpu.memory_space<vmem>>, vector<18x1x64xbf16>
    tpu.vector_store %arg12[%c0_19, %c0_20, %c0_21], %9 {strides = array<i32>} : memref<18x18x64xbf16, #tpu.memory_space<vmem>>, vector<18x1x64xbf16>,
    %c0_22 = arith.constant 0 : index
    %c17_23 = arith.constant 17 : index
    %c0_24 = arith.constant 0 : index
    %11 = vector.load %arg12[%c0_22, %c17_23, %c0_24] : memref<18x18x64xbf16, #tpu.memory_space<vmem>>, vector<18x1x64xbf16>
    tpu.vector_store %arg12[%c0_22, %c17_23, %c0_24], %9 {strides = array<i32>} : memref<18x18x64xbf16, #tpu.memory_space<vmem>>, vector<18x1x64xbf16>,
    %c0_25 = arith.constant 0 : index
    %c0_26 = arith.constant 0 : index
    %c0_27 = arith.constant 0 : index
    %12 = vector.load %arg1[%c0_25, %c0_26, %c0_27] : memref<1x64x128xbf16, #tpu.memory_space<vmem>>, vector<1x64x128xbf16>
    %13 = vector.shape_cast %12 : vector<1x64x128xbf16> to vector<64x128xbf16>
    %c0_28 = arith.constant 0 : index
    %c0_29 = arith.constant 0 : index
    %14 = vector.load %arg2[%c0_28, %c0_29] : memref<128x512xbf16, #tpu.memory_space<vmem>>, vector<128x512xbf16>
    %cst_30 = arith.constant dense<0.000000e+00> : vector<64x512xf32>
    %15 = tpu.matmul %13, %14, %cst_30 {dimension_numbers = #tpu.dot_dimension_numbers<[1], [0], [0], [1], [0, 0, 1, 1], [], []>} : vector<64x128xbf16>, vector<128x512xbf16>, vector<64x512xf32> -> vector<64x512xf32>
    %c0_31 = arith.constant 0 : index
    %c0_32 = arith.constant 0 : index
    %16 = vector.load %arg3[%c0_31, %c0_32] : memref<1x512xf32, #tpu.memory_space<vmem>>, vector<1x512xf32>
    %17 = vector.broadcast %16 : vector<1x512xf32> to vector<64x512xf32>
    %18 = arith.addf %15, %17 : vector<64x512xf32>
    %19 = vector.extract_strided_slice %18 {offsets = [0, 0], sizes = [64, 256], strides = [1, 1]} : vector<64x512xf32> to vector<64x256xf32>
    %20 = vector.shape_cast %19 : vector<64x256xf32> to vector<8x2048xf32>
    %21 = vector.extract_strided_slice %18 {offsets = [0, 256], sizes = [64, 256], strides = [1, 1]} : vector<64x512xf32> to vector<64x256xf32>
    %22 = vector.shape_cast %21 : vector<64x256xf32> to vector<8x2048xf32>
    %23 = tpu.concatenate %20, %22 in 1 : vector<8x2048xf32>, vector<8x2048xf32> -> vector<8x4096xf32>
    %24 = vector.shape_cast %23 : vector<8x4096xf32> to vector<16x16x128xf32>
    %25 = arith.truncf %24 : vector<16x16x128xf32> to vector<16x16x128xbf16>
    %c1 = arith.constant 1 : index
    %c1_33 = arith.constant 1 : index
    %c0_34 = arith.constant 0 : index
    %26 = vector.load %arg11[%c1, %c1_33, %c0_34] : memref<18x18x128xbf16, #tpu.memory_space<vmem>>, vector<16x16x128xbf16>
    tpu.vector_store %arg11[%c1, %c1_33, %c0_34], %25 {strides = array<i32>} : memref<18x18x128xbf16, #tpu.memory_space<vmem>>, vector<16x16x128xbf16>,
    %cst_35 = arith.constant 0.000000e+00 : f32
    %27 = vector.broadcast %cst_35 : f32 to vector<256x64xf32>
    %c0_36 = arith.constant 0 : index
    %c0_37 = arith.constant 0 : index
    %c0_38 = arith.constant 0 : index
    %28 = vector.load %arg11[%c0_36, %c0_37, %c0_38] : memref<18x18x128xbf16, #tpu.memory_space<vmem>>, vector<16x16x128xbf16>
    %29 = vector.shape_cast %28 : vector<16x16x128xbf16> to vector<256x128xbf16>
    %c0_39 = arith.constant 0 : index
    %c0_40 = arith.constant 0 : index
    %c0_41 = arith.constant 0 : index
    %30 = vector.load %arg4[%c0_39, %c0_40, %c0_41] : memref<9x128x64xbf16, #tpu.memory_space<vmem>>, vector<1x128x64xbf16>
    %31 = vector.shape_cast %30 : vector<1x128x64xbf16> to vector<128x64xbf16>
    %cst_42 = arith.constant dense<0.000000e+00> : vector<256x64xf32>
    %32 = tpu.matmul %29, %31, %cst_42 {dimension_numbers = #tpu.dot_dimension_numbers<[1], [0], [0], [1], [0, 0, 1, 1], [], []>} : vector<256x128xbf16>, vector<128x64xbf16>, vector<256x64xf32> -> vector<256x64xf32>
    %33 = arith.addf %27, %32 : vector<256x64xf32>
    %c0_43 = arith.constant 0 : index
    %c1_44 = arith.constant 1 : index
    %c0_45 = arith.constant 0 : index
    %34 = vector.load %arg11[%c0_43, %c1_44, %c0_45] : memref<18x18x128xbf16, #tpu.memory_space<vmem>>, vector<16x16x128xbf16>
    %35 = vector.shape_cast %34 : vector<16x16x128xbf16> to vector<256x128xbf16>
    %c1_46 = arith.constant 1 : index
    %c0_47 = arith.constant 0 : index
    %c0_48 = arith.constant 0 : index
    %36 = vector.load %arg4[%c1_46, %c0_47, %c0_48] : memref<9x128x64xbf16, #tpu.memory_space<vmem>>, vector<1x128x64xbf16>
    %37 = vector.shape_cast %36 : vector<1x128x64xbf16> to vector<128x64xbf16>
    %cst_49 = arith.constant dense<0.000000e+00> : vector<256x64xf32>
    %38 = tpu.matmul %35, %37, %cst_49 {dimension_numbers = #tpu.dot_dimension_numbers<[1], [0], [0], [1], [0, 0, 1, 1], [], []>} : vector<256x128xbf16>, vector<128x64xbf16>, vector<256x64xf32> -> vector<256x64xf32>
    %39 = arith.addf %33, %38 : vector<256x64xf32>
    %c0_50 = arith.constant 0 : index
    %c2 = arith.constant 2 : index
    %c0_51 = arith.constant 0 : index
    %40 = vector.load %arg11[%c0_50, %c2, %c0_51] : memref<18x18x128xbf16, #tpu.memory_space<vmem>>, vector<16x16x128xbf16>
    %41 = vector.shape_cast %40 : vector<16x16x128xbf16> to vector<256x128xbf16>
    %c2_52 = arith.constant 2 : index
    %c0_53 = arith.constant 0 : index
    %c0_54 = arith.constant 0 : index
    %42 = vector.load %arg4[%c2_52, %c0_53, %c0_54] : memref<9x128x64xbf16, #tpu.memory_space<vmem>>, vector<1x128x64xbf16>
    %43 = vector.shape_cast %42 : vector<1x128x64xbf16> to vector<128x64xbf16>
    %cst_55 = arith.constant dense<0.000000e+00> : vector<256x64xf32>
    %44 = tpu.matmul %41, %43, %cst_55 {dimension_numbers = #tpu.dot_dimension_numbers<[1], [0], [0], [1], [0, 0, 1, 1], [], []>} : vector<256x128xbf16>, vector<128x64xbf16>, vector<256x64xf32> -> vector<256x64xf32>
    %45 = arith.addf %39, %44 : vector<256x64xf32>
    %c1_56 = arith.constant 1 : index
    %c0_57 = arith.constant 0 : index
    %c0_58 = arith.constant 0 : index
    %46 = vector.load %arg11[%c1_56, %c0_57, %c0_58] : memref<18x18x128xbf16, #tpu.memory_space<vmem>>, vector<16x16x128xbf16>
    %47 = vector.shape_cast %46 : vector<16x16x128xbf16> to vector<256x128xbf16>
    %c3 = arith.constant 3 : index
    %c0_59 = arith.constant 0 : index
    %c0_60 = arith.constant 0 : index
    %48 = vector.load %arg4[%c3, %c0_59, %c0_60] : memref<9x128x64xbf16, #tpu.memory_space<vmem>>, vector<1x128x64xbf16>
    %49 = vector.shape_cast %48 : vector<1x128x64xbf16> to vector<128x64xbf16>
    %cst_61 = arith.constant dense<0.000000e+00> : vector<256x64xf32>
    %50 = tpu.matmul %47, %49, %cst_61 {dimension_numbers = #tpu.dot_dimension_numbers<[1], [0], [0], [1], [0, 0, 1, 1], [], []>} : vector<256x128xbf16>, vector<128x64xbf16>, vector<256x64xf32> -> vector<256x64xf32>
    %51 = arith.addf %45, %50 : vector<256x64xf32>
    %c1_62 = arith.constant 1 : index
    %c1_63 = arith.constant 1 : index
    %c0_64 = arith.constant 0 : index
    %52 = vector.load %arg11[%c1_62, %c1_63, %c0_64] : memref<18x18x128xbf16, #tpu.memory_space<vmem>>, vector<16x16x128xbf16>
    %53 = vector.shape_cast %52 : vector<16x16x128xbf16> to vector<256x128xbf16>
    %c4 = arith.constant 4 : index
    %c0_65 = arith.constant 0 : index
    %c0_66 = arith.constant 0 : index
    %54 = vector.load %arg4[%c4, %c0_65, %c0_66] : memref<9x128x64xbf16, #tpu.memory_space<vmem>>, vector<1x128x64xbf16>
    %55 = vector.shape_cast %54 : vector<1x128x64xbf16> to vector<128x64xbf16>
    %cst_67 = arith.constant dense<0.000000e+00> : vector<256x64xf32>
    %56 = tpu.matmul %53, %55, %cst_67 {dimension_numbers = #tpu.dot_dimension_numbers<[1], [0], [0], [1], [0, 0, 1, 1], [], []>} : vector<256x128xbf16>, vector<128x64xbf16>, vector<256x64xf32> -> vector<256x64xf32>
    %57 = arith.addf %51, %56 : vector<256x64xf32>
    %c1_68 = arith.constant 1 : index
    %c2_69 = arith.constant 2 : index
    %c0_70 = arith.constant 0 : index
    %58 = vector.load %arg11[%c1_68, %c2_69, %c0_70] : memref<18x18x128xbf16, #tpu.memory_space<vmem>>, vector<16x16x128xbf16>
    %59 = vector.shape_cast %58 : vector<16x16x128xbf16> to vector<256x128xbf16>
    %c5 = arith.constant 5 : index
    %c0_71 = arith.constant 0 : index
    %c0_72 = arith.constant 0 : index
    %60 = vector.load %arg4[%c5, %c0_71, %c0_72] : memref<9x128x64xbf16, #tpu.memory_space<vmem>>, vector<1x128x64xbf16>
    %61 = vector.shape_cast %60 : vector<1x128x64xbf16> to vector<128x64xbf16>
    %cst_73 = arith.constant dense<0.000000e+00> : vector<256x64xf32>
    %62 = tpu.matmul %59, %61, %cst_73 {dimension_numbers = #tpu.dot_dimension_numbers<[1], [0], [0], [1], [0, 0, 1, 1], [], []>} : vector<256x128xbf16>, vector<128x64xbf16>, vector<256x64xf32> -> vector<256x64xf32>
    %63 = arith.addf %57, %62 : vector<256x64xf32>
    %c2_74 = arith.constant 2 : index
    %c0_75 = arith.constant 0 : index
    %c0_76 = arith.constant 0 : index
    %64 = vector.load %arg11[%c2_74, %c0_75, %c0_76] : memref<18x18x128xbf16, #tpu.memory_space<vmem>>, vector<16x16x128xbf16>
    %65 = vector.shape_cast %64 : vector<16x16x128xbf16> to vector<256x128xbf16>
    %c6 = arith.constant 6 : index
    %c0_77 = arith.constant 0 : index
    %c0_78 = arith.constant 0 : index
    %66 = vector.load %arg4[%c6, %c0_77, %c0_78] : memref<9x128x64xbf16, #tpu.memory_space<vmem>>, vector<1x128x64xbf16>
    %67 = vector.shape_cast %66 : vector<1x128x64xbf16> to vector<128x64xbf16>
    %cst_79 = arith.constant dense<0.000000e+00> : vector<256x64xf32>
    %68 = tpu.matmul %65, %67, %cst_79 {dimension_numbers = #tpu.dot_dimension_numbers<[1], [0], [0], [1], [0, 0, 1, 1], [], []>} : vector<256x128xbf16>, vector<128x64xbf16>, vector<256x64xf32> -> vector<256x64xf32>
    %69 = arith.addf %63, %68 : vector<256x64xf32>
    %c2_80 = arith.constant 2 : index
    %c1_81 = arith.constant 1 : index
    %c0_82 = arith.constant 0 : index
    %70 = vector.load %arg11[%c2_80, %c1_81, %c0_82] : memref<18x18x128xbf16, #tpu.memory_space<vmem>>, vector<16x16x128xbf16>
    %71 = vector.shape_cast %70 : vector<16x16x128xbf16> to vector<256x128xbf16>
    %c7 = arith.constant 7 : index
    %c0_83 = arith.constant 0 : index
    %c0_84 = arith.constant 0 : index
    %72 = vector.load %arg4[%c7, %c0_83, %c0_84] : memref<9x128x64xbf16, #tpu.memory_space<vmem>>, vector<1x128x64xbf16>
    %73 = vector.shape_cast %72 : vector<1x128x64xbf16> to vector<128x64xbf16>
    %cst_85 = arith.constant dense<0.000000e+00> : vector<256x64xf32>
    %74 = tpu.matmul %71, %73, %cst_85 {dimension_numbers = #tpu.dot_dimension_numbers<[1], [0], [0], [1], [0, 0, 1, 1], [], []>} : vector<256x128xbf16>, vector<128x64xbf16>, vector<256x64xf32> -> vector<256x64xf32>
    %75 = arith.addf %69, %74 : vector<256x64xf32>
    %c2_86 = arith.constant 2 : index
    %c2_87 = arith.constant 2 : index
    %c0_88 = arith.constant 0 : index
    %76 = vector.load %arg11[%c2_86, %c2_87, %c0_88] : memref<18x18x128xbf16, #tpu.memory_space<vmem>>, vector<16x16x128xbf16>
    %77 = vector.shape_cast %76 : vector<16x16x128xbf16> to vector<256x128xbf16>
    %c8 = arith.constant 8 : index
    %c0_89 = arith.constant 0 : index
    %c0_90 = arith.constant 0 : index
    %78 = vector.load %arg4[%c8, %c0_89, %c0_90] : memref<9x128x64xbf16, #tpu.memory_space<vmem>>, vector<1x128x64xbf16>
    %79 = vector.shape_cast %78 : vector<1x128x64xbf16> to vector<128x64xbf16>
    %cst_91 = arith.constant dense<0.000000e+00> : vector<256x64xf32>
    %80 = tpu.matmul %77, %79, %cst_91 {dimension_numbers = #tpu.dot_dimension_numbers<[1], [0], [0], [1], [0, 0, 1, 1], [], []>} : vector<256x128xbf16>, vector<128x64xbf16>, vector<256x64xf32> -> vector<256x64xf32>
    %81 = arith.addf %75, %80 : vector<256x64xf32>
    %c0_92 = arith.constant 0 : index
    %c0_93 = arith.constant 0 : index
    %82 = vector.load %arg5[%c0_92, %c0_93] : memref<1x64xf32, #tpu.memory_space<vmem>>, vector<1x64xf32>
    %83 = vector.broadcast %82 : vector<1x64xf32> to vector<256x64xf32>
    %84 = arith.mulf %81, %83 : vector<256x64xf32>
    %c0_94 = arith.constant 0 : index
    %c0_95 = arith.constant 0 : index
    %85 = vector.load %arg6[%c0_94, %c0_95] : memref<1x64xf32, #tpu.memory_space<vmem>>, vector<1x64xf32>
    %86 = vector.broadcast %85 : vector<1x64xf32> to vector<256x64xf32>
    %87 = arith.addf %84, %86 : vector<256x64xf32>
    %cst_96 = arith.constant 0.000000e+00 : f32
    %88 = vector.broadcast %cst_96 : f32 to vector<256x64xf32>
    %89 = arith.maximumf %87, %88 : vector<256x64xf32>
    %90 = arith.truncf %89 : vector<256x64xf32> to vector<256x64xbf16>
    %91 = vector.shape_cast %90 : vector<256x64xbf16> to vector<16x16x64xbf16>
    %c1_97 = arith.constant 1 : index
    %c1_98 = arith.constant 1 : index
    %c0_99 = arith.constant 0 : index
    %92 = vector.load %arg12[%c1_97, %c1_98, %c0_99] : memref<18x18x64xbf16, #tpu.memory_space<vmem>>, vector<16x16x64xbf16>
    tpu.vector_store %arg12[%c1_97, %c1_98, %c0_99], %91 {strides = array<i32>} : memref<18x18x64xbf16, #tpu.memory_space<vmem>>, vector<16x16x64xbf16>,
    %cst_100 = arith.constant 0.000000e+00 : f32
    %93 = vector.broadcast %cst_100 : f32 to vector<64x256xf32>
    %c0_101 = arith.constant 0 : index
    %c0_102 = arith.constant 0 : index
    %c0_103 = arith.constant 0 : index
    %94 = vector.load %arg12[%c0_101, %c0_102, %c0_103] : memref<18x18x64xbf16, #tpu.memory_space<vmem>>, vector<16x16x64xbf16>
    %95 = vector.shape_cast %94 : vector<16x16x64xbf16> to vector<256x64xbf16>
    %c0_104 = arith.constant 0 : index
    %c0_105 = arith.constant 0 : index
    %c0_106 = arith.constant 0 : index
    %96 = vector.load %arg7[%c0_104, %c0_105, %c0_106] : memref<9x64x64xbf16, #tpu.memory_space<vmem>>, vector<1x64x64xbf16>
    %97 = vector.shape_cast %96 : vector<1x64x64xbf16> to vector<64x64xbf16>
    %cst_107 = arith.constant dense<0.000000e+00> : vector<64x256xf32>
    %98 = tpu.matmul %97, %95, %cst_107 {dimension_numbers = #tpu.dot_dimension_numbers<[1], [1], [0], [0], [0, 0, 1, 0], [], []>} : vector<64x64xbf16>, vector<256x64xbf16>, vector<64x256xf32> -> vector<64x256xf32>
    %99 = arith.addf %93, %98 : vector<64x256xf32>
    %c0_108 = arith.constant 0 : index
    %c1_109 = arith.constant 1 : index
    %c0_110 = arith.constant 0 : index
    %100 = vector.load %arg12[%c0_108, %c1_109, %c0_110] : memref<18x18x64xbf16, #tpu.memory_space<vmem>>, vector<16x16x64xbf16>
    %101 = vector.shape_cast %100 : vector<16x16x64xbf16> to vector<256x64xbf16>
    %c1_111 = arith.constant 1 : index
    %c0_112 = arith.constant 0 : index
    %c0_113 = arith.constant 0 : index
    %102 = vector.load %arg7[%c1_111, %c0_112, %c0_113] : memref<9x64x64xbf16, #tpu.memory_space<vmem>>, vector<1x64x64xbf16>
    %103 = vector.shape_cast %102 : vector<1x64x64xbf16> to vector<64x64xbf16>
    %cst_114 = arith.constant dense<0.000000e+00> : vector<64x256xf32>
    %104 = tpu.matmul %103, %101, %cst_114 {dimension_numbers = #tpu.dot_dimension_numbers<[1], [1], [0], [0], [0, 0, 1, 0], [], []>} : vector<64x64xbf16>, vector<256x64xbf16>, vector<64x256xf32> -> vector<64x256xf32>
    %105 = arith.addf %99, %104 : vector<64x256xf32>
    %c0_115 = arith.constant 0 : index
    %c2_116 = arith.constant 2 : index
    %c0_117 = arith.constant 0 : index
    %106 = vector.load %arg12[%c0_115, %c2_116, %c0_117] : memref<18x18x64xbf16, #tpu.memory_space<vmem>>, vector<16x16x64xbf16>
    %107 = vector.shape_cast %106 : vector<16x16x64xbf16> to vector<256x64xbf16>
    %c2_118 = arith.constant 2 : index
    %c0_119 = arith.constant 0 : index
    %c0_120 = arith.constant 0 : index
    %108 = vector.load %arg7[%c2_118, %c0_119, %c0_120] : memref<9x64x64xbf16, #tpu.memory_space<vmem>>, vector<1x64x64xbf16>
    %109 = vector.shape_cast %108 : vector<1x64x64xbf16> to vector<64x64xbf16>
    %cst_121 = arith.constant dense<0.000000e+00> : vector<64x256xf32>
    %110 = tpu.matmul %109, %107, %cst_121 {dimension_numbers = #tpu.dot_dimension_numbers<[1], [1], [0], [0], [0, 0, 1, 0], [], []>} : vector<64x64xbf16>, vector<256x64xbf16>, vector<64x256xf32> -> vector<64x256xf32>
    %111 = arith.addf %105, %110 : vector<64x256xf32>
    %c1_122 = arith.constant 1 : index
    %c0_123 = arith.constant 0 : index
    %c0_124 = arith.constant 0 : index
    %112 = vector.load %arg12[%c1_122, %c0_123, %c0_124] : memref<18x18x64xbf16, #tpu.memory_space<vmem>>, vector<16x16x64xbf16>
    %113 = vector.shape_cast %112 : vector<16x16x64xbf16> to vector<256x64xbf16>
    %c3_125 = arith.constant 3 : index
    %c0_126 = arith.constant 0 : index
    %c0_127 = arith.constant 0 : index
    %114 = vector.load %arg7[%c3_125, %c0_126, %c0_127] : memref<9x64x64xbf16, #tpu.memory_space<vmem>>, vector<1x64x64xbf16>
    %115 = vector.shape_cast %114 : vector<1x64x64xbf16> to vector<64x64xbf16>
    %cst_128 = arith.constant dense<0.000000e+00> : vector<64x256xf32>
    %116 = tpu.matmul %115, %113, %cst_128 {dimension_numbers = #tpu.dot_dimension_numbers<[1], [1], [0], [0], [0, 0, 1, 0], [], []>} : vector<64x64xbf16>, vector<256x64xbf16>, vector<64x256xf32> -> vector<64x256xf32>
    %117 = arith.addf %111, %116 : vector<64x256xf32>
    %c1_129 = arith.constant 1 : index
    %c1_130 = arith.constant 1 : index
    %c0_131 = arith.constant 0 : index
    %118 = vector.load %arg12[%c1_129, %c1_130, %c0_131] : memref<18x18x64xbf16, #tpu.memory_space<vmem>>, vector<16x16x64xbf16>
    %119 = vector.shape_cast %118 : vector<16x16x64xbf16> to vector<256x64xbf16>
    %c4_132 = arith.constant 4 : index
    %c0_133 = arith.constant 0 : index
    %c0_134 = arith.constant 0 : index
    %120 = vector.load %arg7[%c4_132, %c0_133, %c0_134] : memref<9x64x64xbf16, #tpu.memory_space<vmem>>, vector<1x64x64xbf16>
    %121 = vector.shape_cast %120 : vector<1x64x64xbf16> to vector<64x64xbf16>
    %cst_135 = arith.constant dense<0.000000e+00> : vector<64x256xf32>
    %122 = tpu.matmul %121, %119, %cst_135 {dimension_numbers = #tpu.dot_dimension_numbers<[1], [1], [0], [0], [0, 0, 1, 0], [], []>} : vector<64x64xbf16>, vector<256x64xbf16>, vector<64x256xf32> -> vector<64x256xf32>
    %123 = arith.addf %117, %122 : vector<64x256xf32>
    %c1_136 = arith.constant 1 : index
    %c2_137 = arith.constant 2 : index
    %c0_138 = arith.constant 0 : index
    %124 = vector.load %arg12[%c1_136, %c2_137, %c0_138] : memref<18x18x64xbf16, #tpu.memory_space<vmem>>, vector<16x16x64xbf16>
    %125 = vector.shape_cast %124 : vector<16x16x64xbf16> to vector<256x64xbf16>
    %c5_139 = arith.constant 5 : index
    %c0_140 = arith.constant 0 : index
    %c0_141 = arith.constant 0 : index
    %126 = vector.load %arg7[%c5_139, %c0_140, %c0_141] : memref<9x64x64xbf16, #tpu.memory_space<vmem>>, vector<1x64x64xbf16>
    %127 = vector.shape_cast %126 : vector<1x64x64xbf16> to vector<64x64xbf16>
    %cst_142 = arith.constant dense<0.000000e+00> : vector<64x256xf32>
    %128 = tpu.matmul %127, %125, %cst_142 {dimension_numbers = #tpu.dot_dimension_numbers<[1], [1], [0], [0], [0, 0, 1, 0], [], []>} : vector<64x64xbf16>, vector<256x64xbf16>, vector<64x256xf32> -> vector<64x256xf32>
    %129 = arith.addf %123, %128 : vector<64x256xf32>
    %c2_143 = arith.constant 2 : index
    %c0_144 = arith.constant 0 : index
    %c0_145 = arith.constant 0 : index
    %130 = vector.load %arg12[%c2_143, %c0_144, %c0_145] : memref<18x18x64xbf16, #tpu.memory_space<vmem>>, vector<16x16x64xbf16>
    %131 = vector.shape_cast %130 : vector<16x16x64xbf16> to vector<256x64xbf16>
    %c6_146 = arith.constant 6 : index
    %c0_147 = arith.constant 0 : index
    %c0_148 = arith.constant 0 : index
    %132 = vector.load %arg7[%c6_146, %c0_147, %c0_148] : memref<9x64x64xbf16, #tpu.memory_space<vmem>>, vector<1x64x64xbf16>
    %133 = vector.shape_cast %132 : vector<1x64x64xbf16> to vector<64x64xbf16>
    %cst_149 = arith.constant dense<0.000000e+00> : vector<64x256xf32>
    %134 = tpu.matmul %133, %131, %cst_149 {dimension_numbers = #tpu.dot_dimension_numbers<[1], [1], [0], [0], [0, 0, 1, 0], [], []>} : vector<64x64xbf16>, vector<256x64xbf16>, vector<64x256xf32> -> vector<64x256xf32>
    %135 = arith.addf %129, %134 : vector<64x256xf32>
    %c2_150 = arith.constant 2 : index
    %c1_151 = arith.constant 1 : index
    %c0_152 = arith.constant 0 : index
    %136 = vector.load %arg12[%c2_150, %c1_151, %c0_152] : memref<18x18x64xbf16, #tpu.memory_space<vmem>>, vector<16x16x64xbf16>
    %137 = vector.shape_cast %136 : vector<16x16x64xbf16> to vector<256x64xbf16>
    %c7_153 = arith.constant 7 : index
    %c0_154 = arith.constant 0 : index
    %c0_155 = arith.constant 0 : index
    %138 = vector.load %arg7[%c7_153, %c0_154, %c0_155] : memref<9x64x64xbf16, #tpu.memory_space<vmem>>, vector<1x64x64xbf16>
    %139 = vector.shape_cast %138 : vector<1x64x64xbf16> to vector<64x64xbf16>
    %cst_156 = arith.constant dense<0.000000e+00> : vector<64x256xf32>
    %140 = tpu.matmul %139, %137, %cst_156 {dimension_numbers = #tpu.dot_dimension_numbers<[1], [1], [0], [0], [0, 0, 1, 0], [], []>} : vector<64x64xbf16>, vector<256x64xbf16>, vector<64x256xf32> -> vector<64x256xf32>
    %141 = arith.addf %135, %140 : vector<64x256xf32>
    %c2_157 = arith.constant 2 : index
    %c2_158 = arith.constant 2 : index
    %c0_159 = arith.constant 0 : index
    %142 = vector.load %arg12[%c2_157, %c2_158, %c0_159] : memref<18x18x64xbf16, #tpu.memory_space<vmem>>, vector<16x16x64xbf16>
    %143 = vector.shape_cast %142 : vector<16x16x64xbf16> to vector<256x64xbf16>
    %c8_160 = arith.constant 8 : index
    %c0_161 = arith.constant 0 : index
    %c0_162 = arith.constant 0 : index
    %144 = vector.load %arg7[%c8_160, %c0_161, %c0_162] : memref<9x64x64xbf16, #tpu.memory_space<vmem>>, vector<1x64x64xbf16>
    %145 = vector.shape_cast %144 : vector<1x64x64xbf16> to vector<64x64xbf16>
    %cst_163 = arith.constant dense<0.000000e+00> : vector<64x256xf32>
    %146 = tpu.matmul %145, %143, %cst_163 {dimension_numbers = #tpu.dot_dimension_numbers<[1], [1], [0], [0], [0, 0, 1, 0], [], []>} : vector<64x64xbf16>, vector<256x64xbf16>, vector<64x256xf32> -> vector<64x256xf32>
    %147 = arith.addf %141, %146 : vector<64x256xf32>
    %c0_164 = arith.constant 0 : index
    %c0_165 = arith.constant 0 : index
    %148 = vector.load %arg8[%c0_164, %c0_165] : memref<64x1xf32, #tpu.memory_space<vmem>>, vector<64x1xf32>
    %149 = vector.broadcast %148 : vector<64x1xf32> to vector<64x256xf32>
    %150 = arith.mulf %147, %149 : vector<64x256xf32>
    %c0_166 = arith.constant 0 : index
    %c0_167 = arith.constant 0 : index
    %151 = vector.load %arg9[%c0_166, %c0_167] : memref<64x1xf32, #tpu.memory_space<vmem>>, vector<64x1xf32>
    %152 = vector.broadcast %151 : vector<64x1xf32> to vector<64x256xf32>
    %153 = arith.addf %150, %152 : vector<64x256xf32>
    %cst_168 = arith.constant 0.000000e+00 : f32
    %154 = vector.broadcast %cst_168 : f32 to vector<64x256xf32>
    %155 = arith.maximumf %153, %154 : vector<64x256xf32>
    %c0_169 = arith.constant 0 : index
    %c0_170 = arith.constant 0 : index
    %c0_171 = arith.constant 0 : index
    %156 = vector.load %arg10[%c0_169, %c0_170, %c0_171] : memref<1x64x256xf32, #tpu.memory_space<vmem>>, vector<1x64x256xf32>
    %157 = vector.shape_cast %156 : vector<1x64x256xf32> to vector<64x256xf32>
    %158 = vector.shape_cast %155 : vector<64x256xf32> to vector<1x64x256xf32>
    tpu.vector_store %arg10[%c0_169, %c0_170, %c0_171], %158 {strides = array<i32>} : memref<1x64x256xf32, #tpu.memory_space<vmem>>, vector<1x64x256xf32>,
    return
  }
  func.func @transform_0(%arg0: i32) -> (i32, i32, i32) {
    %c0_i32 = arith.constant 0 : i32
    %c0_i32_0 = arith.constant 0 : i32
    %c0_i32_1 = arith.constant 0 : i32
    return %arg0, %c0_i32, %c0_i32_0 : i32, i32, i32
  }
  func.func @transform_1(%arg0: i32) -> (i32, i32) {
    %c0_i32 = arith.constant 0 : i32
    %c0_i32_0 = arith.constant 0 : i32
    %c0_i32_1 = arith.constant 0 : i32
    return %c0_i32, %c0_i32_0 : i32, i32
  }
  func.func @transform_2(%arg0: i32) -> (i32, i32) {
    %c0_i32 = arith.constant 0 : i32
    %c0_i32_0 = arith.constant 0 : i32
    %c0_i32_1 = arith.constant 0 : i32
    return %c0_i32, %c0_i32_0 : i32, i32
  }
  func.func @transform_3(%arg0: i32) -> (i32, i32, i32) {
    %c0_i32 = arith.constant 0 : i32
    %c0_i32_0 = arith.constant 0 : i32
    %c0_i32_1 = arith.constant 0 : i32
    %c0_i32_2 = arith.constant 0 : i32
    return %c0_i32, %c0_i32_0, %c0_i32_1 : i32, i32, i32
  }
  func.func @transform_4(%arg0: i32) -> (i32, i32) {
    %c0_i32 = arith.constant 0 : i32
    %c0_i32_0 = arith.constant 0 : i32
    %c0_i32_1 = arith.constant 0 : i32
    return %c0_i32, %c0_i32_0 : i32, i32
  }
  func.func @transform_5(%arg0: i32) -> (i32, i32) {
    %c0_i32 = arith.constant 0 : i32
    %c0_i32_0 = arith.constant 0 : i32
    %c0_i32_1 = arith.constant 0 : i32
    return %c0_i32, %c0_i32_0 : i32, i32
  }
  func.func @transform_6(%arg0: i32) -> (i32, i32, i32) {
    %c0_i32 = arith.constant 0 : i32
    %c0_i32_0 = arith.constant 0 : i32
    %c0_i32_1 = arith.constant 0 : i32
    %c0_i32_2 = arith.constant 0 : i32
    return %c0_i32, %c0_i32_0, %c0_i32_1 : i32, i32, i32
  }
  func.func @transform_7(%arg0: i32) -> (i32, i32) {
    %c0_i32 = arith.constant 0 : i32
    %c0_i32_0 = arith.constant 0 : i32
    %c0_i32_1 = arith.constant 0 : i32
    return %c0_i32, %c0_i32_0 : i32, i32
  }
  func.func @transform_8(%arg0: i32) -> (i32, i32) {
    %c0_i32 = arith.constant 0 : i32
    %c0_i32_0 = arith.constant 0 : i32
    %c0_i32_1 = arith.constant 0 : i32
    return %c0_i32, %c0_i32_0 : i32, i32
  }
  func.func @transform_9(%arg0: i32) -> (i32, i32, i32) {
    %c0_i32 = arith.constant 0 : i32
    %c0_i32_0 = arith.constant 0 : i32
    %c0_i32_1 = arith.constant 0 : i32
    return %arg0, %c0_i32, %c0_i32_0 : i32, i32, i32
  }
}

</mosaic_0001>

<llo_original>
// kernel: up_block_forward.1
$region0: #{up_block_forward.1}
  #allocation0 [shape = 'u32[]', space=smem, size = 0x4, offset = 0x4, fixed_abs, tag = 'smem constant byte address 0x4 - core index']
  #allocation1 [shape = 'u32[144,128]{1,0:T(1,128)}', space=vmem, size = 0x12000, scoped, tag = 'internal scratch']
  #allocation2 [shape = 'bf16[18,18,128]{2,1,0:T(8,128)(2,1)}', space=vmem, size = 0x1b000, scoped, tag = 'scratch operand']
  #allocation3 [shape = 'bf16[18,18,64]{2,1,0:T(8,128)(2,1)}', space=vmem, size = 0x1b000, scoped, tag = 'scratch operand']
  %s0 = inlined_call_operand.vmem [shape: bf16[4,64,128], index: 0, kind: input, shape index: {}]
  %s1 = inlined_call_operand.vmem [shape: bf16[128,512], index: 1, kind: input, shape index: {}]
  %s2 = inlined_call_operand.vmem [shape: f32[1,512], index: 2, kind: input, shape index: {}]
  %s3 = inlined_call_operand.vmem [shape: bf16[9,128,64], index: 3, kind: input, shape index: {}]
  %s4 = inlined_call_operand.vmem [shape: f32[1,64], index: 4, kind: input, shape index: {}]
  %s5 = inlined_call_operand.vmem [shape: f32[1,64], index: 5, kind: input, shape index: {}]
  %s6 = inlined_call_operand.vmem [shape: bf16[9,64,64], index: 6, kind: input, shape index: {}]
  %s7 = inlined_call_operand.vmem [shape: f32[64,1], index: 7, kind: input, shape index: {}]
  %s8 = inlined_call_operand.vmem [shape: f32[64,1], index: 8, kind: input, shape index: {}]
  %s9 = inlined_call_operand.vmem [shape: f32[4,64,256], index: 9, kind: output, shape index: {}]
  %s10 = sld [smem:[#allocation0]]
  $region69: #{up_block_forward.1} parent=0
    _
  %s12 = ssub.s32 1, %s10
  %s13 = scalar_select 0, %s12, %s10
  loop: start=0, step=1, limit=6
  $region2: #{up_block_forward.1} parent=0 // loop_pre_header
    _
  $region3: #{up_block_forward.1} parent=0 // loop_header
    %s15 = sphi 0, %s19
    %p16 = scmp.ge.s32.totalorder %s15, 6
    %s25 = sphi 0, %s27
    %s28 = sphi 0, %s25
    %s29 = sphi 0, %s28
    %s45 = sphi 0, %s29
    %s49 = sphi 0, %s49
    %s51 = sphi 0, %s49
    %s52 = sphi 0, %s51
    %s66 = sphi 0, %s52
    %s70 = sphi 0, %s70
    %s72 = sphi 0, %s70
    %s73 = sphi 0, %s72
    %s87 = sphi 0, %s73
    %s91 = sphi 0, %s91
    %s93 = sphi 0, %s91
    %s94 = sphi 0, %s93
    %s108 = sphi 0, %s94
    %s112 = sphi 0, %s112
    %s114 = sphi 0, %s112
    %s115 = sphi 0, %s114
    %s129 = sphi 0, %s115
    %s133 = sphi 0, %s133
    %s135 = sphi 0, %s133
    %s136 = sphi 0, %s135
    %s150 = sphi 0, %s136
    %s154 = sphi 0, %s154
    %s156 = sphi 0, %s154
    %s157 = sphi 0, %s156
    %s171 = sphi 0, %s157
    %s175 = sphi 0, %s175
    %s177 = sphi 0, %s175
    %s178 = sphi 0, %s177
    %s192 = sphi 0, %s178
    %s196 = sphi 0, %s196
    %s198 = sphi 0, %s196
    %s199 = sphi 0, %s198
    %s213 = sphi 0, %s199
    %s219 = sphi 0, %s221
    %s222 = sphi 0, %s219
    %s223 = sphi 0, %s222
    %s239 = sphi 0, %s223
  $region4: #{up_block_forward.1} parent=0 // loop_header_branch
    %18 = sbr.rel (%p16) target = $region8
  $region5: #{up_block_forward.1} parent=0 // loop_body
    %s20 = ssub.s32 %s15, 1
    %s21 = ssub.s32 %s15, 2
    %s22 = sadd.s32 %s15, 1
    %s23 = ssub.s32 %s15, %s22
    %p24 = scmp.eq.s32.totalorder %s23, 0
    %s26 = sadd.s32 %s25, 1
    %s27 = scalar_select %p24, %s25, %s26
    %p30 = pneg %p24
    %p31 = scmp.eq.s32.totalorder %s15, 3
    %p32 = por %p30, %p31
    %p33 = scmp.ne.s32.totalorder %s25, %s28
    %p34 = scmp.eq.s32.totalorder %s15, 0
    %p35 = por %p33, %p34
    %p36 = scmp.ne.s32.totalorder %s25, %s28
    %p37 = scmp.eq.s32.totalorder %s20, 3
    %p38 = por %p36, %p37
    %p39 = scmp.ne.s32.totalorder %s28, %s29
    %p40 = scmp.eq.s32.totalorder %s20, 0
    %p41 = por %p39, %p40
    %p42 = scmp.ne.s32.totalorder %s28, %s29
    %p43 = scmp.eq.s32.totalorder %s21, 3
    %p44 = por %p42, %p43
    %p46 = scmp.ne.s32.totalorder %s29, %s45
    %p47 = scmp.eq.s32.totalorder %s21, 0
    %p48 = por %p46, %p47
    %s50 = sadd.s32 %s49, 1
    %p53 = scmp.eq.s32.totalorder %s15, 3
    %p54 = scmp.ne.s32.totalorder %s49, %s51
    %p55 = scmp.eq.s32.totalorder %s15, 0
    %p56 = por %p54, %p55
    %p57 = scmp.ne.s32.totalorder %s49, %s51
    %p58 = scmp.eq.s32.totalorder %s20, 3
    %p59 = por %p57, %p58
    %p60 = scmp.ne.s32.totalorder %s51, %s52
    %p61 = scmp.eq.s32.totalorder %s20, 0
    %p62 = por %p60, %p61
    %p63 = scmp.ne.s32.totalorder %s51, %s52
    %p64 = scmp.eq.s32.totalorder %s21, 3
    %p65 = por %p63, %p64
    %p67 = scmp.ne.s32.totalorder %s52, %s66
    %p68 = scmp.eq.s32.totalorder %s21, 0
    %p69 = por %p67, %p68
    %s71 = sadd.s32 %s70, 1
    %p74 = scmp.eq.s32.totalorder %s15, 3
    %p75 = scmp.ne.s32.totalorder %s70, %s72
    %p76 = scmp.eq.s32.totalorder %s15, 0
    %p77 = por %p75, %p76
    %p78 = scmp.ne.s32.totalorder %s70, %s72
    %p79 = scmp.eq.s32.totalorder %s20, 3
    %p80 = por %p78, %p79
    %p81 = scmp.ne.s32.totalorder %s72, %s73
    %p82 = scmp.eq.s32.totalorder %s20, 0
    %p83 = por %p81, %p82
    %p84 = scmp.ne.s32.totalorder %s72, %s73
    %p85 = scmp.eq.s32.totalorder %s21, 3
    %p86 = por %p84, %p85
    %p88 = scmp.ne.s32.totalorder %s73, %s87
    %p89 = scmp.eq.s32.totalorder %s21, 0
    %p90 = por %p88, %p89
    %s92 = sadd.s32 %s91, 1
    %p95 = scmp.eq.s32.totalorder %s15, 3
    %p96 = scmp.ne.s32.totalorder %s91, %s93
    %p97 = scmp.eq.s32.totalorder %s15, 0
    %p98 = por %p96, %p97
    %p99 = scmp.ne.s32.totalorder %s91, %s93
    %p100 = scmp.eq.s32.totalorder %s20, 3
    %p101 = por %p99, %p100
    %p102 = scmp.ne.s32.totalorder %s93, %s94
    %p103 = scmp.eq.s32.totalorder %s20, 0
    %p104 = por %p102, %p103
    %p105 = scmp.ne.s32.totalorder %s93, %s94
    %p106 = scmp.eq.s32.totalorder %s21, 3
    %p107 = por %p105, %p106
    %p109 = scmp.ne.s32.totalorder %s94, %s108
    %p110 = scmp.eq.s32.totalorder %s21, 0
    %p111 = por %p109, %p110
    %s113 = sadd.s32 %s112, 1
    %p116 = scmp.eq.s32.totalorder %s15, 3
    %p117 = scmp.ne.s32.totalorder %s112, %s114
    %p118 = scmp.eq.s32.totalorder %s15, 0
    %p119 = por %p117, %p118
    %p120 = scmp.ne.s32.totalorder %s112, %s114
    %p121 = scmp.eq.s32.totalorder %s20, 3
    %p122 = por %p120, %p121
    %p123 = scmp.ne.s32.totalorder %s114, %s115
    %p124 = scmp.eq.s32.totalorder %s20, 0
    %p125 = por %p123, %p124
    %p126 = scmp.ne.s32.totalorder %s114, %s115
    %p127 = scmp.eq.s32.totalorder %s21, 3
    %p128 = por %p126, %p127
    %p130 = scmp.ne.s32.totalorder %s115, %s129
    %p131 = scmp.eq.s32.totalorder %s21, 0
    %p132 = por %p130, %p131
    %s134 = sadd.s32 %s133, 1
    %p137 = scmp.eq.s32.totalorder %s15, 3
    %p138 = scmp.ne.s32.totalorder %s133, %s135
    %p139 = scmp.eq.s32.totalorder %s15, 0
    %p140 = por %p138, %p139
    %p141 = scmp.ne.s32.totalorder %s133, %s135
    %p142 = scmp.eq.s32.totalorder %s20, 3
    %p143 = por %p141, %p142
    %p144 = scmp.ne.s32.totalorder %s135, %s136
    %p145 = scmp.eq.s32.totalorder %s20, 0
    %p146 = por %p144, %p145
    %p147 = scmp.ne.s32.totalorder %s135, %s136
    %p148 = scmp.eq.s32.totalorder %s21, 3
    %p149 = por %p147, %p148
    %p151 = scmp.ne.s32.totalorder %s136, %s150
    %p152 = scmp.eq.s32.totalorder %s21, 0
    %p153 = por %p151, %p152
    %s155 = sadd.s32 %s154, 1
    %p158 = scmp.eq.s32.totalorder %s15, 3
    %p159 = scmp.ne.s32.totalorder %s154, %s156
    %p160 = scmp.eq.s32.totalorder %s15, 0
    %p161 = por %p159, %p160
    %p162 = scmp.ne.s32.totalorder %s154, %s156
    %p163 = scmp.eq.s32.totalorder %s20, 3
    %p164 = por %p162, %p163
    %p165 = scmp.ne.s32.totalorder %s156, %s157
    %p166 = scmp.eq.s32.totalorder %s20, 0
    %p167 = por %p165, %p166
    %p168 = scmp.ne.s32.totalorder %s156, %s157
    %p169 = scmp.eq.s32.totalorder %s21, 3
    %p170 = por %p168, %p169
    %p172 = scmp.ne.s32.totalorder %s157, %s171
    %p173 = scmp.eq.s32.totalorder %s21, 0
    %p174 = por %p172, %p173
    %s176 = sadd.s32 %s175, 1
    %p179 = scmp.eq.s32.totalorder %s15, 3
    %p180 = scmp.ne.s32.totalorder %s175, %s177
    %p181 = scmp.eq.s32.totalorder %s15, 0
    %p182 = por %p180, %p181
    %p183 = scmp.ne.s32.totalorder %s175, %s177
    %p184 = scmp.eq.s32.totalorder %s20, 3
    %p185 = por %p183, %p184
    %p186 = scmp.ne.s32.totalorder %s177, %s178
    %p187 = scmp.eq.s32.totalorder %s20, 0
    %p188 = por %p186, %p187
    %p189 = scmp.ne.s32.totalorder %s177, %s178
    %p190 = scmp.eq.s32.totalorder %s21, 3
    %p191 = por %p189, %p190
    %p193 = scmp.ne.s32.totalorder %s178, %s192
    %p194 = scmp.eq.s32.totalorder %s21, 0
    %p195 = por %p193, %p194
    %s197 = sadd.s32 %s196, 1
    %p200 = scmp.eq.s32.totalorder %s15, 3
    %p201 = scmp.ne.s32.totalorder %s196, %s198
    %p202 = scmp.eq.s32.totalorder %s15, 0
    %p203 = por %p201, %p202
    %p204 = scmp.ne.s32.totalorder %s196, %s198
    %p205 = scmp.eq.s32.totalorder %s20, 3
    %p206 = por %p204, %p205
    %p207 = scmp.ne.s32.totalorder %s198, %s199
    %p208 = scmp.eq.s32.totalorder %s20, 0
    %p209 = por %p207, %p208
    %p210 = scmp.ne.s32.totalorder %s198, %s199
    %p211 = scmp.eq.s32.totalorder %s21, 3
    %p212 = por %p210, %p211
    %p214 = scmp.ne.s32.totalorder %s199, %s213
    %p215 = scmp.eq.s32.totalorder %s21, 0
    %p216 = por %p214, %p215
    %s217 = ssub.s32 %s15, %s22
    %p218 = scmp.eq.s32.totalorder %s217, 0
    %s220 = sadd.s32 %s219, 1
    %s221 = scalar_select %p218, %s219, %s220
    %p224 = pneg %p218
    %p225 = scmp.eq.s32.totalorder %s15, 3
    %p226 = por %p224, %p225
    %p227 = scmp.ne.s32.totalorder %s219, %s222
    %p228 = scmp.eq.s32.totalorder %s15, 0
    %p229 = por %p227, %p228
    %p230 = scmp.ne.s32.totalorder %s219, %s222
    %p231 = scmp.eq.s32.totalorder %s20, 3
    %p232 = por %p230, %p231
    %p233 = scmp.ne.s32.totalorder %s222, %s223
    %p234 = scmp.eq.s32.totalorder %s20, 0
    %p235 = por %p233, %p234
    %p236 = scmp.ne.s32.totalorder %s222, %s223
    %p237 = scmp.eq.s32.totalorder %s21, 3
    %p238 = por %p236, %p237
    %p240 = scmp.ne.s32.totalorder %s223, %s239
    %p241 = scmp.eq.s32.totalorder %s21, 0
    %p242 = por %p240, %p241
    %p243 = scmp.le.s32.totalorder 1, %s15
    %p244 = scmp.lt.s32.totalorder %s15, 5
    %p245 = pnand %p243, %p244
    %p246 = pneg %p245
    // Predicated region
    $region9: #{up_block_forward.1} parent=5 // pred_check
      _
    $region10: #{up_block_forward.1} parent=5 // pred_check_branch
      %248 = sbr.rel (%p245) target = $region12
    $region11: #{up_block_forward.1} parent=5 // pred_region
      %s249 = ssub.s32 %s15, 1
      // Predicated region
      $region13: #{up_block_forward.1} parent=11 // pred_check
        %p250 = pneg %p62
      $region14: #{up_block_forward.1} parent=11 // pred_check_branch
        %252 = sbr.rel (%p250) target = $region16
      $region15: #{up_block_forward.1} parent=11 // pred_region
        _
      $region16: #{up_block_forward.1} parent=11 // pred_fallthru
        _
      // Predicated region
      $region17: #{up_block_forward.1} parent=11 // pred_check
        %p253 = pneg %p83
      $region18: #{up_block_forward.1} parent=11 // pred_check_branch
        %255 = sbr.rel (%p253) target = $region20
      $region19: #{up_block_forward.1} parent=11 // pred_region
        _
      $region20: #{up_block_forward.1} parent=11 // pred_fallthru
        _
      // Predicated region
      $region21: #{up_block_forward.1} parent=11 // pred_check
        %p256 = pneg %p104
      $region22: #{up_block_forward.1} parent=11 // pred_check_branch
        %258 = sbr.rel (%p256) target = $region24
      $region23: #{up_block_forward.1} parent=11 // pred_region
        _
      $region24: #{up_block_forward.1} parent=11 // pred_fallthru
        _
      // Predicated region
      $region25: #{up_block_forward.1} parent=11 // pred_check
        %p259 = pneg %p125
      $region26: #{up_block_forward.1} parent=11 // pred_check_branch
        %261 = sbr.rel (%p259) target = $region28
      $region27: #{up_block_forward.1} parent=11 // pred_region
        _
      $region28: #{up_block_forward.1} parent=11 // pred_fallthru
        _
      // Predicated region
      $region29: #{up_block_forward.1} parent=11 // pred_check
        %p262 = pneg %p146
      $region30: #{up_block_forward.1} parent=11 // pred_check_branch
        %264 = sbr.rel (%p262) target = $region32
      $region31: #{up_block_forward.1} parent=11 // pred_region
        _
      $region32: #{up_block_forward.1} parent=11 // pred_fallthru
        _
      // Predicated region
      $region33: #{up_block_forward.1} parent=11 // pred_check
        %p265 = pneg %p167
      $region34: #{up_block_forward.1} parent=11 // pred_check_branch
        %267 = sbr.rel (%p265) target = $region36
      $region35: #{up_block_forward.1} parent=11 // pred_region
        _
      $region36: #{up_block_forward.1} parent=11 // pred_fallthru
        _
      // Predicated region
      $region37: #{up_block_forward.1} parent=11 // pred_check
        %p268 = pneg %p188
      $region38: #{up_block_forward.1} parent=11 // pred_check_branch
        %270 = sbr.rel (%p268) target = $region40
      $region39: #{up_block_forward.1} parent=11 // pred_region
        _
      $region40: #{up_block_forward.1} parent=11 // pred_fallthru
        _
      // Predicated region
      $region41: #{up_block_forward.1} parent=11 // pred_check
        %p271 = pneg %p209
      $region42: #{up_block_forward.1} parent=11 // pred_check_branch
        %273 = sbr.rel (%p271) target = $region44
      $region43: #{up_block_forward.1} parent=11 // pred_region
        _
      $region44: #{up_block_forward.1} parent=11 // pred_fallthru
        _
    $region12: #{up_block_forward.1} parent=5 // pred_fallthru
      _
    %p274 = scmp.lt.s32.totalorder %s15, 4
    // Predicated region
    $region45: #{up_block_forward.1} parent=5 // pred_check
      %p275 = pneg %p274
    $region46: #{up_block_forward.1} parent=5 // pred_check_branch
      %277 = sbr.rel (%p275) target = $region48
    $region47: #{up_block_forward.1} parent=5 // pred_region
      // Predicated region
      $region49: #{up_block_forward.1} parent=47 // pred_check
        %p278 = pneg %p35
      $region50: #{up_block_forward.1} parent=47 // pred_check_branch
        %280 = sbr.rel (%p278) target = $region52
      $region51: #{up_block_forward.1} parent=47 // pred_region
        %p281 = scmp.lt.s32.totalorder %s15, 3
        %s282 = scalar_select %p281, %s15, 3
        %s283 = smul.addr %s282, 8
        %s284 = smul.addr %s283, 4
        %s285 = scalar_lea.vmem %s0, %s284
      $region52: #{up_block_forward.1} parent=47 // pred_fallthru
        _
    $region48: #{up_block_forward.1} parent=5 // pred_fallthru
      _
    %p286 = scmp.le.s32.totalorder 1, %s15
    %p287 = scmp.lt.s32.totalorder %s15, 5
    %p288 = pnand %p286, %p287
    %p289 = pneg %p288
    // Predicated region
    $region53: #{up_block_forward.1} parent=5 // pred_check
      _
    $region54: #{up_block_forward.1} parent=5 // pred_check_branch
      %291 = sbr.rel (%p288) target = $region56
    $region55: #{up_block_forward.1} parent=5 // pred_region
      %s292 = ssub.s32 %s15, 1
      %p293 = scmp.lt.s32.totalorder %s20, 3
      %s294 = scalar_select %p293, %s20, 3
      %s295 = smul.addr %s294, 8
      %s296 = smul.addr %s295, 4
      %s297 = scalar_lea.vmem %s0, %s296
      %p298 = pneg %p41
      %p299 = pneg %p38
      %p300 = pneg %p62
      %p301 = pneg %p59
      %p302 = pneg %p83
      %p303 = pneg %p80
      %p304 = pneg %p104
      %p305 = pneg %p101
      %p306 = pneg %p125
      %p307 = pneg %p122
      %p308 = pneg %p146
      %p309 = pneg %p143
      %p310 = pneg %p167
      %p311 = pneg %p164
      %p312 = pneg %p188
      %p313 = pneg %p185
      %p314 = pneg %p209
      %p315 = pneg %p206
      %p316 = pneg %p235
      %p317 = pneg %p232
      %p318 = scmp.lt.s32.totalorder %s20, 3
      %s319 = scalar_select %p318, %s20, 3
      %s320 = smul.addr %s319, 16
      %s321 = smul.addr %s320, 8
      %s322 = scalar_lea.vmem %s9, %s321
      %p323 = scmp.lt.s32.totalorder %s20, 3
      %s324 = scalar_select %p323, %s20, 3
      %s325 = smul.addr %s324, 8
      %s326 = smul.addr %s325, 4
      %s327 = scalar_lea.vmem %s0, %s326
      %p328 = scmp.lt.s32.totalorder %s20, 3
      %s329 = scalar_select %p328, %s20, 3
      %s330 = smul.addr %s329, 16
      %s331 = smul.addr %s330, 8
      %s332 = scalar_lea.vmem %s9, %s331
      %334 = vst [vmem:[#allocation2] sm:$0xf] 0
      %335 = vst [vmem:[#allocation2 + $0x4] sm:$0xf] 0
      %336 = vst [vmem:[#allocation2 + $0x8] sm:$0x1] 0
      %s337 = scalar_lea.vmem [#allocation2], 204
      %338 = vst [vmem:[%s337] sm:$0xf] 0
      %339 = vst [vmem:[%s337 + $0x4] sm:$0xf] 0
      %340 = vst [vmem:[%s337 + $0x8] sm:$0x1] 0
      %vm341 = vcmask 1040384
      %vm342 = vsmask.f32 256
      %vm343 = vmand %vm341, %vm342
      %v344 = vld [vmem:[#allocation2] sm:$0x1]
      %v345 = vsel %vm343, 0, %v344
      %346 = vst [vmem:[#allocation2] sm:$0x1] %v345
      %v347 = vld [vmem:[#allocation2 + $0xc] sm:$0x1]
      %v348 = vsel %vm343, 0, %v347
      %349 = vst [vmem:[#allocation2 + $0xc] sm:$0x1] %v348
      %v350 = vld [vmem:[#allocation2 + $0x18] sm:$0x1]
      %v351 = vsel %vm343, 0, %v350
      %352 = vst [vmem:[#allocation2 + $0x18] sm:$0x1] %v351
      %v353 = vld [vmem:[#allocation2 + $0x24] sm:$0x1]
      %v354 = vsel %vm343, 0, %v353
      %355 = vst [vmem:[#allocation2 + $0x24] sm:$0x1] %v354
      %v356 = vld [vmem:[#allocation2 + $0x30] sm:$0x1]
      %v357 = vsel %vm343, 0, %v356
      %358 = vst [vmem:[#allocation2 + $0x30] sm:$0x1] %v357
      %v359 = vld [vmem:[#allocation2 + $0x3c] sm:$0x1]
      %v360 = vsel %vm343, 0, %v359
      %361 = vst [vmem:[#allocation2 + $0x3c] sm:$0x1] %v360
      %v362 = vld [vmem:[#allocation2 + $0x48] sm:$0x1]
      %v363 = vsel %vm343, 0, %v362
      %364 = vst [vmem:[#allocation2 + $0x48] sm:$0x1] %v363
      %v365 = vld [vmem:[#allocation2 + $0x54] sm:$0x1]
      %v366 = vsel %vm343, 0, %v365
      %367 = vst [vmem:[#allocation2 + $0x54] sm:$0x1] %v366
      %v368 = vld [vmem:[#allocation2 + $0x60] sm:$0x1]
      %v369 = vsel %vm343, 0, %v368
      %370 = vst [vmem:[#allocation2 + $0x60] sm:$0x1] %v369
      %v371 = vld [vmem:[#allocation2 + $0x6c] sm:$0x1]
      %v372 = vsel %vm343, 0, %v371
      %373 = vst [vmem:[#allocation2 + $0x6c] sm:$0x1] %v372
      %v374 = vld [vmem:[#allocation2 + $0x78] sm:$0x1]
      %v375 = vsel %vm343, 0, %v374
      %376 = vst [vmem:[#allocation2 + $0x78] sm:$0x1] %v375
      %v377 = vld [vmem:[#allocation2 + $0x84] sm:$0x1]
      %v378 = vsel %vm343, 0, %v377
      %379 = vst [vmem:[#allocation2 + $0x84] sm:$0x1] %v378
      %v380 = vld [vmem:[#allocation2 + $0x90] sm:$0x1]
      %v381 = vsel %vm343, 0, %v380
      %382 = vst [vmem:[#allocation2 + $0x90] sm:$0x1] %v381
      %v383 = vld [vmem:[#allocation2 + $0x9c] sm:$0x1]
      %v384 = vsel %vm343, 0, %v383
      %385 = vst [vmem:[#allocation2 + $0x9c] sm:$0x1] %v384
      %v386 = vld [vmem:[#allocation2 + $0xa8] sm:$0x1]
      %v387 = vsel %vm343, 0, %v386
      %388 = vst [vmem:[#allocation2 + $0xa8] sm:$0x1] %v387
      %v389 = vld [vmem:[#allocation2 + $0xb4] sm:$0x1]
      %v390 = vsel %vm343, 0, %v389
      %391 = vst [vmem:[#allocation2 + $0xb4] sm:$0x1] %v390
      %v392 = vld [vmem:[#allocation2 + $0xc0] sm:$0x1]
      %v393 = vsel %vm343, 0, %v392
      %394 = vst [vmem:[#allocation2 + $0xc0] sm:$0x1] %v393
      %v395 = vld [vmem:[#allocation2 + $0xcc] sm:$0x1]
      %v396 = vsel %vm343, 0, %v395
      %397 = vst [vmem:[#allocation2 + $0xcc] sm:$0x1] %v396
      %vm398 = vsmask.f32 7938
      %vm399 = vmand %vm341, %vm398
      %v400 = vld [vmem:[#allocation2 + $0x8] sm:$0x1]
      %v401 = vsel %vm399, 0, %v400
      %402 = vst [vmem:[#allocation2 + $0x8] sm:$0x1] %v401
      %v403 = vld [vmem:[#allocation2 + $0x14] sm:$0x1]
      %v404 = vsel %vm399, 0, %v403
      %405 = vst [vmem:[#allocation2 + $0x14] sm:$0x1] %v404
      %v406 = vld [vmem:[#allocation2 + $0x20] sm:$0x1]
      %v407 = vsel %vm399, 0, %v406
      %408 = vst [vmem:[#allocation2 + $0x20] sm:$0x1] %v407
      %v409 = vld [vmem:[#allocation2 + $0x2c] sm:$0x1]
      %v410 = vsel %vm399, 0, %v409
      %411 = vst [vmem:[#allocation2 + $0x2c] sm:$0x1] %v410
      %v412 = vld [vmem:[#allocation2 + $0x38] sm:$0x1]
      %v413 = vsel %vm399, 0, %v412
      %414 = vst [vmem:[#allocation2 + $0x38] sm:$0x1] %v413
      %v415 = vld [vmem:[#allocation2 + $0x44] sm:$0x1]
      %v416 = vsel %vm399, 0, %v415
      %417 = vst [vmem:[#allocation2 + $0x44] sm:$0x1] %v416
      %v418 = vld [vmem:[#allocation2 + $0x50] sm:$0x1]
      %v419 = vsel %vm399, 0, %v418
      %420 = vst [vmem:[#allocation2 + $0x50] sm:$0x1] %v419
      %v421 = vld [vmem:[#allocation2 + $0x5c] sm:$0x1]
      %v422 = vsel %vm399, 0, %v421
      %423 = vst [vmem:[#allocation2 + $0x5c] sm:$0x1] %v422
      %v424 = vld [vmem:[#allocation2 + $0x68] sm:$0x1]
      %v425 = vsel %vm399, 0, %v424
      %426 = vst [vmem:[#allocation2 + $0x68] sm:$0x1] %v425
      %v427 = vld [vmem:[#allocation2 + $0x74] sm:$0x1]
      %v428 = vsel %vm399, 0, %v427
      %429 = vst [vmem:[#allocation2 + $0x74] sm:$0x1] %v428
      %v430 = vld [vmem:[#allocation2 + $0x80] sm:$0x1]
      %v431 = vsel %vm399, 0, %v430
      %432 = vst [vmem:[#allocation2 + $0x80] sm:$0x1] %v431
      %v433 = vld [vmem:[#allocation2 + $0x8c] sm:$0x1]
      %v434 = vsel %vm399, 0, %v433
      %435 = vst [vmem:[#allocation2 + $0x8c] sm:$0x1] %v434
      %v436 = vld [vmem:[#allocation2 + $0x98] sm:$0x1]
      %v437 = vsel %vm399, 0, %v436
      %438 = vst [vmem:[#allocation2 + $0x98] sm:$0x1] %v437
      %v439 = vld [vmem:[#allocation2 + $0xa4] sm:$0x1]
      %v440 = vsel %vm399, 0, %v439
      %441 = vst [vmem:[#allocation2 + $0xa4] sm:$0x1] %v440
      %v442 = vld [vmem:[#allocation2 + $0xb0] sm:$0x1]
      %v443 = vsel %vm399, 0, %v442
      %444 = vst [vmem:[#allocation2 + $0xb0] sm:$0x1] %v443
      %v445 = vld [vmem:[#allocation2 + $0xbc] sm:$0x1]
      %v446 = vsel %vm399, 0, %v445
      %447 = vst [vmem:[#allocation2 + $0xbc] sm:$0x1] %v446
      %v448 = vld [vmem:[#allocation2 + $0xc8] sm:$0x1]
      %v449 = vsel %vm399, 0, %v448
      %450 = vst [vmem:[#allocation2 + $0xc8] sm:$0x1] %v449
      %v451 = vld [vmem:[#allocation2 + $0xd4] sm:$0x1]
      %v452 = vsel %vm399, 0, %v451
      %453 = vst [vmem:[#allocation2 + $0xd4] sm:$0x1] %v452
      %vm454 = vcmask 519168
      %455 = vst.msk [vmem:[#allocation3] sm:$0xf] %vm454, 0
      %456 = vst.msk [vmem:[#allocation3 + $0x4] sm:$0xf] %vm454, 0
      %vm457 = vcmask 516096
      %458 = vst.msk [vmem:[#allocation3 + $0x8] sm:$0x1] %vm457, 0
      %s459 = scalar_lea.vmem [#allocation3], 204
      %460 = vst.msk [vmem:[%s459] sm:$0xf] %vm454, 0
      %461 = vst.msk [vmem:[%s459 + $0x4] sm:$0xf] %vm454, 0
      %462 = vst.msk [vmem:[%s459 + $0x8] sm:$0x1] %vm457, 0
      %vm463 = vcmask 516096
      %vm464 = vmand %vm463, %vm342
      %v465 = vld [vmem:[#allocation3] sm:$0x1]
      %v466 = vsel %vm464, 0, %v465
      %467 = vst [vmem:[#allocation3] sm:$0x1] %v466
      %v468 = vld [vmem:[#allocation3 + $0xc] sm:$0x1]
      %v469 = vsel %vm464, 0, %v468
      %470 = vst [vmem:[#allocation3 + $0xc] sm:$0x1] %v469
      %v471 = vld [vmem:[#allocation3 + $0x18] sm:$0x1]
      %v472 = vsel %vm464, 0, %v471
      %473 = vst [vmem:[#allocation3 + $0x18] sm:$0x1] %v472
      %v474 = vld [vmem:[#allocation3 + $0x24] sm:$0x1]
      %v475 = vsel %vm464, 0, %v474
      %476 = vst [vmem:[#allocation3 + $0x24] sm:$0x1] %v475
      %v477 = vld [vmem:[#allocation3 + $0x30] sm:$0x1]
      %v478 = vsel %vm464, 0, %v477
      %479 = vst [vmem:[#allocation3 + $0x30] sm:$0x1] %v478
      %v480 = vld [vmem:[#allocation3 + $0x3c] sm:$0x1]
      %v481 = vsel %vm464, 0, %v480
      %482 = vst [vmem:[#allocation3 + $0x3c] sm:$0x1] %v481
      %v483 = vld [vmem:[#allocation3 + $0x48] sm:$0x1]
      %v484 = vsel %vm464, 0, %v483
      %485 = vst [vmem:[#allocation3 + $0x48] sm:$0x1] %v484
      %v486 = vld [vmem:[#allocation3 + $0x54] sm:$0x1]
      %v487 = vsel %vm464, 0, %v486
      %488 = vst [vmem:[#allocation3 + $0x54] sm:$0x1] %v487
      %v489 = vld [vmem:[#allocation3 + $0x60] sm:$0x1]
      %v490 = vsel %vm464, 0, %v489
      %491 = vst [vmem:[#allocation3 + $0x60] sm:$0x1] %v490
      %v492 = vld [vmem:[#allocation3 + $0x6c] sm:$0x1]
      %v493 = vsel %vm464, 0, %v492
      %494 = vst [vmem:[#allocation3 + $0x6c] sm:$0x1] %v493
      %v495 = vld [vmem:[#allocation3 + $0x78] sm:$0x1]
      %v496 = vsel %vm464, 0, %v495
      %497 = vst [vmem:[#allocation3 + $0x78] sm:$0x1] %v496
      %v498 = vld [vmem:[#allocation3 + $0x84] sm:$0x1]
      %v499 = vsel %vm464, 0, %v498
      %500 = vst [vmem:[#allocation3 + $0x84] sm:$0x1] %v499
      %v501 = vld [vmem:[#allocation3 + $0x90] sm:$0x1]
      %v502 = vsel %vm464, 0, %v501
      %503 = vst [vmem:[#allocation3 + $0x90] sm:$0x1] %v502
      %v504 = vld [vmem:[#allocation3 + $0x9c] sm:$0x1]
      %v505 = vsel %vm464, 0, %v504
      %506 = vst [vmem:[#allocation3 + $0x9c] sm:$0x1] %v505
      %v507 = vld [vmem:[#allocation3 + $0xa8] sm:$0x1]
      %v508 = vsel %vm464, 0, %v507
      %509 = vst [vmem:[#allocation3 + $0xa8] sm:$0x1] %v508
      %v510 = vld [vmem:[#allocation3 + $0xb4] sm:$0x1]
      %v511 = vsel %vm464, 0, %v510
      %512 = vst [vmem:[#allocation3 + $0xb4] sm:$0x1] %v511
      %v513 = vld [vmem:[#allocation3 + $0xc0] sm:$0x1]
      %v514 = vsel %vm464, 0, %v513
      %515 = vst [vmem:[#allocation3 + $0xc0] sm:$0x1] %v514
      %v516 = vld [vmem:[#allocation3 + $0xcc] sm:$0x1]
      %v517 = vsel %vm464, 0, %v516
      %518 = vst [vmem:[#allocation3 + $0xcc] sm:$0x1] %v517
      %vm519 = vmand %vm463, %vm398
      %v520 = vld [vmem:[#allocation3 + $0x8] sm:$0x1]
      %v521 = vsel %vm519, 0, %v520
      %522 = vst [vmem:[#allocation3 + $0x8] sm:$0x1] %v521
      %v523 = vld [vmem:[#allocation3 + $0x14] sm:$0x1]
      %v524 = vsel %vm519, 0, %v523
      %525 = vst [vmem:[#allocation3 + $0x14] sm:$0x1] %v524
      %v526 = vld [vmem:[#allocation3 + $0x20] sm:$0x1]
      %v527 = vsel %vm519, 0, %v526
      %528 = vst [vmem:[#allocation3 + $0x20] sm:$0x1] %v527
      %v529 = vld [vmem:[#allocation3 + $0x2c] sm:$0x1]
      %v530 = vsel %vm519, 0, %v529
      %531 = vst [vmem:[#allocation3 + $0x2c] sm:$0x1] %v530
      %v532 = vld [vmem:[#allocation3 + $0x38] sm:$0x1]
      %v533 = vsel %vm519, 0, %v532
      %534 = vst [vmem:[#allocation3 + $0x38] sm:$0x1] %v533
      %v535 = vld [vmem:[#allocation3 + $0x44] sm:$0x1]
      %v536 = vsel %vm519, 0, %v535
      %537 = vst [vmem:[#allocation3 + $0x44] sm:$0x1] %v536
      %v538 = vld [vmem:[#allocation3 + $0x50] sm:$0x1]
      %v539 = vsel %vm519, 0, %v538
      %540 = vst [vmem:[#allocation3 + $0x50] sm:$0x1] %v539
      %v541 = vld [vmem:[#allocation3 + $0x5c] sm:$0x1]
      %v542 = vsel %vm519, 0, %v541
      %543 = vst [vmem:[#allocation3 + $0x5c] sm:$0x1] %v542
      %v544 = vld [vmem:[#allocation3 + $0x68] sm:$0x1]
      %v545 = vsel %vm519, 0, %v544
      %546 = vst [vmem:[#allocation3 + $0x68] sm:$0x1] %v545
      %v547 = vld [vmem:[#allocation3 + $0x74] sm:$0x1]
      %v548 = vsel %vm519, 0, %v547
      %549 = vst [vmem:[#allocation3 + $0x74] sm:$0x1] %v548
      %v550 = vld [vmem:[#allocation3 + $0x80] sm:$0x1]
      %v551 = vsel %vm519, 0, %v550
      %552 = vst [vmem:[#allocation3 + $0x80] sm:$0x1] %v551
      %v553 = vld [vmem:[#allocation3 + $0x8c] sm:$0x1]
      %v554 = vsel %vm519, 0, %v553
      %555 = vst [vmem:[#allocation3 + $0x8c] sm:$0x1] %v554
      %v556 = vld [vmem:[#allocation3 + $0x98] sm:$0x1]
      %v557 = vsel %vm519, 0, %v556
      %558 = vst [vmem:[#allocation3 + $0x98] sm:$0x1] %v557
      %v559 = vld [vmem:[#allocation3 + $0xa4] sm:$0x1]
      %v560 = vsel %vm519, 0, %v559
      %561 = vst [vmem:[#allocation3 + $0xa4] sm:$0x1] %v560
      %v562 = vld [vmem:[#allocation3 + $0xb0] sm:$0x1]
      %v563 = vsel %vm519, 0, %v562
      %564 = vst [vmem:[#allocation3 + $0xb0] sm:$0x1] %v563
      %v565 = vld [vmem:[#allocation3 + $0xbc] sm:$0x1]
      %v566 = vsel %vm519, 0, %v565
      %567 = vst [vmem:[#allocation3 + $0xbc] sm:$0x1] %v566
      %v568 = vld [vmem:[#allocation3 + $0xc8] sm:$0x1]
      %v569 = vsel %vm519, 0, %v568
      %570 = vst [vmem:[#allocation3 + $0xc8] sm:$0x1] %v569
      %v571 = vld [vmem:[#allocation3 + $0xd4] sm:$0x1]
      %v572 = vsel %vm519, 0, %v571
      %573 = vst [vmem:[#allocation3 + $0xd4] sm:$0x1] %v572
      %v574 = vld [vmem:[%s327] sm:$0xf]
      %v575 = vld [vmem:[%s327 + $0x4] sm:$0xf]
      %v576 = vld [vmem:[%s327 + $0x8] sm:$0xf]
      %v577 = vld [vmem:[%s327 + $0xc] sm:$0xf]
      %v578 = vld [vmem:[%s327 + $0x10] sm:$0xf]
      %v579 = vld [vmem:[%s327 + $0x14] sm:$0xf]
      %v580 = vld [vmem:[%s327 + $0x18] sm:$0xf]
      %v581 = vld [vmem:[%s327 + $0x1c] sm:$0xf]
      %v582 = vld [vmem:[%s1] sm:$0xff]
      %v583 = vld [vmem:[%s1 + $0x8] sm:$0xff]
      %v584 = vld [vmem:[%s1 + $0x10] sm:$0xff]
      %v585 = vld [vmem:[%s1 + $0x18] sm:$0xff]
      %v586 = vld [vmem:[%s1 + $0x20] sm:$0xff]
      %v587 = vld [vmem:[%s1 + $0x28] sm:$0xff]
      %v588 = vld [vmem:[%s1 + $0x30] sm:$0xff]
      %v589 = vld [vmem:[%s1 + $0x38] sm:$0xff]
      %v590 = vld [vmem:[%s1 + $0x40] sm:$0xff]
      %v591 = vld [vmem:[%s1 + $0x48] sm:$0xff]
      %v592 = vld [vmem:[%s1 + $0x50] sm:$0xff]
      %v593 = vld [vmem:[%s1 + $0x58] sm:$0xff]
      %v594 = vld [vmem:[%s1 + $0x60] sm:$0xff]
      %v595 = vld [vmem:[%s1 + $0x68] sm:$0xff]
      %v596 = vld [vmem:[%s1 + $0x70] sm:$0xff]
      %v597 = vld [vmem:[%s1 + $0x78] sm:$0xff]
      %v598 = vld [vmem:[%s1 + $0x80] sm:$0xff]
      %v599 = vld [vmem:[%s1 + $0x88] sm:$0xff]
      %v600 = vld [vmem:[%s1 + $0x90] sm:$0xff]
      %v601 = vld [vmem:[%s1 + $0x98] sm:$0xff]
      %v602 = vld [vmem:[%s1 + $0xa0] sm:$0xff]
      %v603 = vld [vmem:[%s1 + $0xa8] sm:$0xff]
      %v604 = vld [vmem:[%s1 + $0xb0] sm:$0xff]
      %v605 = vld [vmem:[%s1 + $0xb8] sm:$0xff]
      %v606 = vld [vmem:[%s1 + $0xc0] sm:$0xff]
      %v607 = vld [vmem:[%s1 + $0xc8] sm:$0xff]
      %v608 = vld [vmem:[%s1 + $0xd0] sm:$0xff]
      %v609 = vld [vmem:[%s1 + $0xd8] sm:$0xff]
      %v610 = vld [vmem:[%s1 + $0xe0] sm:$0xff]
      %v611 = vld [vmem:[%s1 + $0xe8] sm:$0xff]
      %v612 = vld [vmem:[%s1 + $0xf0] sm:$0xff]
      %v613 = vld [vmem:[%s1 + $0xf8] sm:$0xff]
      %v614 = vld [vmem:[%s2] sm:$0xf]
      %v616 = vlaneseq
      %v617 = vshrl.u32 %v616, 7
      %v618 = vsub.s32 0, %v617
      %v619 = vrot.slane %v614, %v618
      %v620 = vlaneseq
      %v621 = vshrl.u32 %v620, 7
      %v622 = vsub.s32 1, %v621
      %v623 = vrot.slane %v614, %v622
      %v624 = vlaneseq
      %v625 = vshrl.u32 %v624, 7
      %v626 = vsub.s32 2, %v625
      %v627 = vrot.slane %v614, %v626
      %v628 = vlaneseq
      %v629 = vshrl.u32 %v628, 7
      %v630 = vsub.s32 3, %v629
      %v631 = vrot.slane %v614, %v630
      %v644 = vunpack.c.l.b16 %v574
      %v645 = vunpack.c.l.b16 %v575
      %v646 = vunpack.c.l.b16 %v576
      %v647 = vunpack.c.l.b16 %v577
      %v648 = vunpack.c.l.b16 %v578
      %v649 = vunpack.c.l.b16 %v579
      %v650 = vunpack.c.l.b16 %v580
      %v651 = vunpack.c.l.b16 %v581
      %v652 = vpack.c.b16 %v645, %v644
      %v653 = vpack.c.b16 %v647, %v646
      %v654 = vpack.c.b16 %v649, %v648
      %v655 = vpack.c.b16 %v651, %v650
      %v692 = vunpack.c.l.b16 %v582
      %v693 = vunpack.c.h.b16 %v582
      %v694 = vunpack.c.l.b16 %v583
      %v695 = vunpack.c.h.b16 %v583
      %v696 = vunpack.c.l.b16 %v584
      %v697 = vunpack.c.h.b16 %v584
      %v698 = vunpack.c.l.b16 %v585
      %v699 = vunpack.c.h.b16 %v585
      %v700 = vunpack.c.l.b16 %v586
      %v701 = vunpack.c.h.b16 %v586
      %v702 = vunpack.c.l.b16 %v587
      %v703 = vunpack.c.h.b16 %v587
      %v704 = vunpack.c.l.b16 %v588
      %v705 = vunpack.c.h.b16 %v588
      %v706 = vunpack.c.l.b16 %v589
      %v707 = vunpack.c.h.b16 %v589
      %v708 = vunpack.c.l.b16 %v590
      %v709 = vunpack.c.h.b16 %v590
      %v710 = vunpack.c.l.b16 %v591
      %v711 = vunpack.c.h.b16 %v591
      %v712 = vunpack.c.l.b16 %v592
      %v713 = vunpack.c.h.b16 %v592
      %v714 = vunpack.c.l.b16 %v593
      %v715 = vunpack.c.h.b16 %v593
      %v716 = vunpack.c.l.b16 %v594
      %v717 = vunpack.c.h.b16 %v594
      %v718 = vunpack.c.l.b16 %v595
      %v719 = vunpack.c.h.b16 %v595
      %v720 = vunpack.c.l.b16 %v596
      %v721 = vunpack.c.h.b16 %v596
      %v722 = vunpack.c.l.b16 %v597
      %v723 = vunpack.c.h.b16 %v597
      %v724 = vunpack.c.l.b16 %v598
      %v725 = vunpack.c.h.b16 %v598
      %v726 = vunpack.c.l.b16 %v599
      %v727 = vunpack.c.h.b16 %v599
      %v728 = vunpack.c.l.b16 %v600
      %v729 = vunpack.c.h.b16 %v600
      %v730 = vunpack.c.l.b16 %v601
      %v731 = vunpack.c.h.b16 %v601
      %v732 = vunpack.c.l.b16 %v602
      %v733 = vunpack.c.h.b16 %v602
      %v734 = vunpack.c.l.b16 %v603
      %v735 = vunpack.c.h.b16 %v603
      %v736 = vunpack.c.l.b16 %v604
      %v737 = vunpack.c.h.b16 %v604
      %v738 = vunpack.c.l.b16 %v605
      %v739 = vunpack.c.h.b16 %v605
      %v740 = vunpack.c.l.b16 %v606
      %v741 = vunpack.c.h.b16 %v606
      %v742 = vunpack.c.l.b16 %v607
      %v743 = vunpack.c.h.b16 %v607
      %v744 = vunpack.c.l.b16 %v608
      %v745 = vunpack.c.h.b16 %v608
      %v746 = vunpack.c.l.b16 %v609
      %v747 = vunpack.c.h.b16 %v609
      %v748 = vunpack.c.l.b16 %v610
      %v749 = vunpack.c.h.b16 %v610
      %v750 = vunpack.c.l.b16 %v611
      %v751 = vunpack.c.h.b16 %v611
      %v752 = vunpack.c.l.b16 %v612
      %v753 = vunpack.c.h.b16 %v612
      %v754 = vunpack.c.l.b16 %v613
      %v755 = vunpack.c.h.b16 %v613
      %v756 = vpack.c.b16 %v696, %v692
      %v757 = vpack.c.b16 %v697, %v693
      %v758 = vpack.c.b16 %v698, %v694
      %v759 = vpack.c.b16 %v699, %v695
      %v760 = vpack.c.b16 %v704, %v700
      %v761 = vpack.c.b16 %v705, %v701
      %v762 = vpack.c.b16 %v706, %v702
      %v763 = vpack.c.b16 %v707, %v703
      %v764 = vpack.c.b16 %v712, %v708
      %v765 = vpack.c.b16 %v713, %v709
      %v766 = vpack.c.b16 %v714, %v710
      %v767 = vpack.c.b16 %v715, %v711
      %v768 = vpack.c.b16 %v720, %v716
      %v769 = vpack.c.b16 %v721, %v717
      %v770 = vpack.c.b16 %v722, %v718
      %v771 = vpack.c.b16 %v723, %v719
      %v772 = vpack.c.b16 %v728, %v724
      %v773 = vpack.c.b16 %v729, %v725
      %v774 = vpack.c.b16 %v730, %v726
      %v775 = vpack.c.b16 %v731, %v727
      %v776 = vpack.c.b16 %v736, %v732
      %v777 = vpack.c.b16 %v737, %v733
      %v778 = vpack.c.b16 %v738, %v734
      %v779 = vpack.c.b16 %v739, %v735
      %v780 = vpack.c.b16 %v744, %v740
      %v781 = vpack.c.b16 %v745, %v741
      %v782 = vpack.c.b16 %v746, %v742
      %v783 = vpack.c.b16 %v747, %v743
      %v784 = vpack.c.b16 %v752, %v748
      %v785 = vpack.c.b16 %v753, %v749
      %v786 = vpack.c.b16 %v754, %v750
      %v787 = vpack.c.b16 %v755, %v751
      %820 = vmatprep.subr.bf16.mxu0 %v785
      %821 = vmatpush1.bf16.msra.mxu0 %v784
      %822 = vmatprep.subr.bf16.mxu0 %v781
      %823 = vmatpush1.bf16.msra.mxu0 %v780
      %824 = vmatprep.subr.bf16.mxu0 %v777
      %825 = vmatpush1.bf16.msra.mxu0 %v776
      %826 = vmatprep.subr.bf16.mxu0 %v773
      %827 = vmatpush1.bf16.msra.mxu0 %v772
      %828 = vmatprep.subr.bf16.mxu0 %v769
      %829 = vmatpush1.bf16.msra.mxu0 %v768
      %830 = vmatprep.subr.bf16.mxu0 %v765
      %831 = vmatpush1.bf16.msra.mxu0 %v764
      %832 = vmatprep.subr.bf16.mxu0 %v761
      %833 = vmatpush1.bf16.msra.mxu0 %v760
      %834 = vmatprep.subr.bf16.mxu0 %v757
      %835 = vmatpush1.bf16.msra.mxu0 %v756
      %836 = vmatprep.subr.bf16.mxu0 0
      %837 = vmatpush2.bf16.msra.mxu0 0
      %838 = vmatprep.subr.bf16.mxu0 0
      %839 = vmatpush2.bf16.msra.mxu0 0
      %840 = vmatprep.subr.bf16.mxu0 0
      %841 = vmatpush2.bf16.msra.mxu0 0
      %842 = vmatprep.subr.bf16.mxu0 0
      %843 = vmatpush2.bf16.msra.mxu0 0
      %844 = vmatprep.subr.bf16.mxu0 0
      %845 = vmatpush2.bf16.msra.mxu0 0
      %846 = vmatprep.subr.bf16.mxu0 0
      %847 = vmatpush2.bf16.msra.mxu0 0
      %848 = vmatprep.subr.bf16.mxu0 0
      %849 = vmatpush2.bf16.msra.mxu0 0
      %850 = vmatprep.subr.bf16.mxu0 0
      %851 = vmatpush2.bf16.msra.mxu0 0
      %852 = vmatprep.mubr.bf16.mxu0 0
      %853 = vmatmul.mubr.bf16.gmra.mxu0 %v652
      %v854 = vpop.f32.mrf.mxu0
      %v855 = vadd.f32 %v619, %v854
      %v856 = vpop.f32.mrf.mxu0
      %v857 = vadd.f32 %v623, %v856
      %v858 = vpop.f32.mrf.mxu0
      %v859 = vadd.f32 %v619, %v858
      %v860 = vpop.f32.mrf.mxu0
      %v861 = vadd.f32 %v623, %v860
      %862 = vmatprep.mubr.bf16.mxu0 0
      %863 = vmatmul.mubr.bf16.gmra.mxu0 %v653
      %v864 = vpop.f32.mrf.mxu0
      %v865 = vadd.f32 %v619, %v864
      %v866 = vpop.f32.mrf.mxu0
      %v867 = vadd.f32 %v623, %v866
      %v868 = vpop.f32.mrf.mxu0
      %v869 = vadd.f32 %v619, %v868
      %v870 = vpop.f32.mrf.mxu0
      %v871 = vadd.f32 %v623, %v870
      %872 = vmatprep.mubr.bf16.mxu0 0
      %873 = vmatmul.mubr.bf16.gmra.mxu0 %v654
      %v874 = vpop.f32.mrf.mxu0
      %v875 = vadd.f32 %v619, %v874
      %v876 = vpop.f32.mrf.mxu0
      %v877 = vadd.f32 %v623, %v876
      %v878 = vpop.f32.mrf.mxu0
      %v879 = vadd.f32 %v619, %v878
      %v880 = vpop.f32.mrf.mxu0
      %v881 = vadd.f32 %v623, %v880
      %882 = vmatprep.mubr.bf16.mxu0 0
      %883 = vmatmul.mubr.bf16.gmra.mxu0 %v655
      %v884 = vpop.f32.mrf.mxu0
      %v885 = vadd.f32 %v619, %v884
      %v886 = vpop.f32.mrf.mxu0
      %v887 = vadd.f32 %v623, %v886
      %v888 = vpop.f32.mrf.mxu0
      %v889 = vadd.f32 %v619, %v888
      %v890 = vpop.f32.mrf.mxu0
      %v891 = vadd.f32 %v623, %v890
      %892 = vdwg.mxu0
      %893 = vmatprep.subr.bf16.mxu0 %v787
      %894 = vmatpush1.bf16.msra.mxu0 %v786
      %895 = vmatprep.subr.bf16.mxu0 %v783
      %896 = vmatpush1.bf16.msra.mxu0 %v782
      %897 = vmatprep.subr.bf16.mxu0 %v779
      %898 = vmatpush1.bf16.msra.mxu0 %v778
      %899 = vmatprep.subr.bf16.mxu0 %v775
      %900 = vmatpush1.bf16.msra.mxu0 %v774
      %901 = vmatprep.subr.bf16.mxu0 %v771
      %902 = vmatpush1.bf16.msra.mxu0 %v770
      %903 = vmatprep.subr.bf16.mxu0 %v767
      %904 = vmatpush1.bf16.msra.mxu0 %v766
      %905 = vmatprep.subr.bf16.mxu0 %v763
      %906 = vmatpush1.bf16.msra.mxu0 %v762
      %907 = vmatprep.subr.bf16.mxu0 %v759
      %908 = vmatpush1.bf16.msra.mxu0 %v758
      %909 = vmatprep.subr.bf16.mxu0 0
      %910 = vmatpush2.bf16.msra.mxu0 0
      %911 = vmatprep.subr.bf16.mxu0 0
      %912 = vmatpush2.bf16.msra.mxu0 0
      %913 = vmatprep.subr.bf16.mxu0 0
      %914 = vmatpush2.bf16.msra.mxu0 0
      %915 = vmatprep.subr.bf16.mxu0 0
      %916 = vmatpush2.bf16.msra.mxu0 0
      %917 = vmatprep.subr.bf16.mxu0 0
      %918 = vmatpush2.bf16.msra.mxu0 0
      %919 = vmatprep.subr.bf16.mxu0 0
      %920 = vmatpush2.bf16.msra.mxu0 0
      %921 = vmatprep.subr.bf16.mxu0 0
      %922 = vmatpush2.bf16.msra.mxu0 0
      %923 = vmatprep.subr.bf16.mxu0 0
      %924 = vmatpush2.bf16.msra.mxu0 0
      %925 = vmatprep.mubr.bf16.mxu0 0
      %926 = vmatmul.mubr.bf16.gmra.mxu0 %v652
      %v927 = vpop.f32.mrf.mxu0
      %v928 = vadd.f32 %v627, %v927
      %v929 = vpop.f32.mrf.mxu0
      %v930 = vadd.f32 %v631, %v929
      %v931 = vpop.f32.mrf.mxu0
      %v932 = vadd.f32 %v627, %v931
      %v933 = vpop.f32.mrf.mxu0
      %v934 = vadd.f32 %v631, %v933
      %935 = vmatprep.mubr.bf16.mxu0 0
      %936 = vmatmul.mubr.bf16.gmra.mxu0 %v653
      %v937 = vpop.f32.mrf.mxu0
      %v938 = vadd.f32 %v627, %v937
      %v939 = vpop.f32.mrf.mxu0
      %v940 = vadd.f32 %v631, %v939
      %v941 = vpop.f32.mrf.mxu0
      %v942 = vadd.f32 %v627, %v941
      %v943 = vpop.f32.mrf.mxu0
      %v944 = vadd.f32 %v631, %v943
      %945 = vmatprep.mubr.bf16.mxu0 0
      %946 = vmatmul.mubr.bf16.gmra.mxu0 %v654
      %v947 = vpop.f32.mrf.mxu0
      %v948 = vadd.f32 %v627, %v947
      %v949 = vpop.f32.mrf.mxu0
      %v950 = vadd.f32 %v631, %v949
      %v951 = vpop.f32.mrf.mxu0
      %v952 = vadd.f32 %v627, %v951
      %v953 = vpop.f32.mrf.mxu0
      %v954 = vadd.f32 %v631, %v953
      %955 = vmatprep.mubr.bf16.mxu0 0
      %956 = vmatmul.mubr.bf16.gmra.mxu0 %v655
      %v957 = vpop.f32.mrf.mxu0
      %v958 = vadd.f32 %v627, %v957
      %v959 = vpop.f32.mrf.mxu0
      %v960 = vadd.f32 %v631, %v959
      %v961 = vpop.f32.mrf.mxu0
      %v962 = vadd.f32 %v627, %v961
      %v963 = vpop.f32.mrf.mxu0
      %v964 = vadd.f32 %v631, %v963
      %965 = vdwg.mxu0
      %v982 = vcombine.low %v855, %v857
      %v983 = vcombine.high %v855, %v857
      %v984 = vcombine.low %v859, %v861
      %v985 = vcombine.high %v859, %v861
      %v986 = vcombine.low %v865, %v867
      %v987 = vcombine.high %v865, %v867
      %v988 = vcombine.low %v869, %v871
      %v989 = vcombine.high %v869, %v871
      %v990 = vcombine.low %v875, %v877
      %v991 = vcombine.high %v875, %v877
      %v992 = vcombine.low %v879, %v881
      %v993 = vcombine.high %v879, %v881
      %v994 = vcombine.low %v885, %v887
      %v995 = vcombine.high %v885, %v887
      %v996 = vcombine.low %v889, %v891
      %v997 = vcombine.high %v889, %v891
      %v1015 = vunpack.c.l.s4 1935823168
      %v1016 = vunpack.c.0.s8 %v1015
      %v1017 = vlaneseq
      %v1018 = vshrl.u32 %v1017, 7
      %v1019 = vsub.s32 %v1016, %v1018
      %v1020 = vrot.slane %v982, %v1019
      %v1022 = vunpack.c.l.s4 1935823168
      %v1023 = vunpack.c.0.s8 %v1022
      %v1024 = vlaneseq
      %v1025 = vshrl.u32 %v1024, 7
      %v1026 = vsub.s32 %v1023, %v1025
      %v1027 = vrot.slane %v983, %v1026
      %v1029 = vunpack.c.l.s4 1935823168
      %v1030 = vunpack.c.0.s8 %v1029
      %v1031 = vlaneseq
      %v1032 = vshrl.u32 %v1031, 7
      %v1033 = vsub.s32 %v1030, %v1032
      %v1034 = vrot.slane %v984, %v1033
      %v1036 = vunpack.c.l.s4 1935823168
      %v1037 = vunpack.c.0.s8 %v1036
      %v1038 = vlaneseq
      %v1039 = vshrl.u32 %v1038, 7
      %v1040 = vsub.s32 %v1037, %v1039
      %v1041 = vrot.slane %v985, %v1040
      %v1043 = vunpack.c.l.s4 1935823168
      %v1044 = vunpack.c.0.s8 %v1043
      %v1045 = vlaneseq
      %v1046 = vshrl.u32 %v1045, 7
      %v1047 = vsub.s32 %v1044, %v1046
      %v1048 = vrot.slane %v986, %v1047
      %v1050 = vunpack.c.l.s4 1935823168
      %v1051 = vunpack.c.0.s8 %v1050
      %v1052 = vlaneseq
      %v1053 = vshrl.u32 %v1052, 7
      %v1054 = vsub.s32 %v1051, %v1053
      %v1055 = vrot.slane %v987, %v1054
      %v1057 = vunpack.c.l.s4 1935823168
      %v1058 = vunpack.c.0.s8 %v1057
      %v1059 = vlaneseq
      %v1060 = vshrl.u32 %v1059, 7
      %v1061 = vsub.s32 %v1058, %v1060
      %v1062 = vrot.slane %v988, %v1061
      %v1064 = vunpack.c.l.s4 1935823168
      %v1065 = vunpack.c.0.s8 %v1064
      %v1066 = vlaneseq
      %v1067 = vshrl.u32 %v1066, 7
      %v1068 = vsub.s32 %v1065, %v1067
      %v1069 = vrot.slane %v989, %v1068
      %v1071 = vunpack.c.l.s4 1935823168
      %v1072 = vunpack.c.0.s8 %v1071
      %v1073 = vlaneseq
      %v1074 = vshrl.u32 %v1073, 7
      %v1075 = vsub.s32 %v1072, %v1074
      %v1076 = vrot.slane %v990, %v1075
      %v1078 = vunpack.c.l.s4 1935823168
      %v1079 = vunpack.c.0.s8 %v1078
      %v1080 = vlaneseq
      %v1081 = vshrl.u32 %v1080, 7
      %v1082 = vsub.s32 %v1079, %v1081
      %v1083 = vrot.slane %v991, %v1082
      %v1085 = vunpack.c.l.s4 1935823168
      %v1086 = vunpack.c.0.s8 %v1085
      %v1087 = vlaneseq
      %v1088 = vshrl.u32 %v1087, 7
      %v1089 = vsub.s32 %v1086, %v1088
      %v1090 = vrot.slane %v992, %v1089
      %v1092 = vunpack.c.l.s4 1935823168
      %v1093 = vunpack.c.0.s8 %v1092
      %v1094 = vlaneseq
      %v1095 = vshrl.u32 %v1094, 7
      %v1096 = vsub.s32 %v1093, %v1095
      %v1097 = vrot.slane %v993, %v1096
      %v1099 = vunpack.c.l.s4 1935823168
      %v1100 = vunpack.c.0.s8 %v1099
      %v1101 = vlaneseq
      %v1102 = vshrl.u32 %v1101, 7
      %v1103 = vsub.s32 %v1100, %v1102
      %v1104 = vrot.slane %v994, %v1103
      %v1106 = vunpack.c.l.s4 1935823168
      %v1107 = vunpack.c.0.s8 %v1106
      %v1108 = vlaneseq
      %v1109 = vshrl.u32 %v1108, 7
      %v1110 = vsub.s32 %v1107, %v1109
      %v1111 = vrot.slane %v995, %v1110
      %v1113 = vunpack.c.l.s4 1935823168
      %v1114 = vunpack.c.0.s8 %v1113
      %v1115 = vlaneseq
      %v1116 = vshrl.u32 %v1115, 7
      %v1117 = vsub.s32 %v1114, %v1116
      %v1118 = vrot.slane %v996, %v1117
      %v1120 = vunpack.c.l.s4 1935823168
      %v1121 = vunpack.c.0.s8 %v1120
      %v1122 = vlaneseq
      %v1123 = vshrl.u32 %v1122, 7
      %v1124 = vsub.s32 %v1121, %v1123
      %v1125 = vrot.slane %v997, %v1124
      %v1142 = vcombine.low %v928, %v930
      %v1143 = vcombine.high %v928, %v930
      %v1144 = vcombine.low %v932, %v934
      %v1145 = vcombine.high %v932, %v934
      %v1146 = vcombine.low %v938, %v940
      %v1147 = vcombine.high %v938, %v940
      %v1148 = vcombine.low %v942, %v944
      %v1149 = vcombine.high %v942, %v944
      %v1150 = vcombine.low %v948, %v950
      %v1151 = vcombine.high %v948, %v950
      %v1152 = vcombine.low %v952, %v954
      %v1153 = vcombine.high %v952, %v954
      %v1154 = vcombine.low %v958, %v960
      %v1155 = vcombine.high %v958, %v960
      %v1156 = vcombine.low %v962, %v964
      %v1157 = vcombine.high %v962, %v964
      %v1175 = vunpack.c.l.s4 1935823168
      %v1176 = vunpack.c.0.s8 %v1175
      %v1177 = vlaneseq
      %v1178 = vshrl.u32 %v1177, 7
      %v1179 = vsub.s32 %v1176, %v1178
      %v1180 = vrot.slane %v1142, %v1179
      %v1182 = vunpack.c.l.s4 1935823168
      %v1183 = vunpack.c.0.s8 %v1182
      %v1184 = vlaneseq
      %v1185 = vshrl.u32 %v1184, 7
      %v1186 = vsub.s32 %v1183, %v1185
      %v1187 = vrot.slane %v1143, %v1186
      %v1189 = vunpack.c.l.s4 1935823168
      %v1190 = vunpack.c.0.s8 %v1189
      %v1191 = vlaneseq
      %v1192 = vshrl.u32 %v1191, 7
      %v1193 = vsub.s32 %v1190, %v1192
      %v1194 = vrot.slane %v1144, %v1193
      %v1196 = vunpack.c.l.s4 1935823168
      %v1197 = vunpack.c.0.s8 %v1196
      %v1198 = vlaneseq
      %v1199 = vshrl.u32 %v1198, 7
      %v1200 = vsub.s32 %v1197, %v1199
      %v1201 = vrot.slane %v1145, %v1200
      %v1203 = vunpack.c.l.s4 1935823168
      %v1204 = vunpack.c.0.s8 %v1203
      %v1205 = vlaneseq
      %v1206 = vshrl.u32 %v1205, 7
      %v1207 = vsub.s32 %v1204, %v1206
      %v1208 = vrot.slane %v1146, %v1207
      %v1210 = vunpack.c.l.s4 1935823168
      %v1211 = vunpack.c.0.s8 %v1210
      %v1212 = vlaneseq
      %v1213 = vshrl.u32 %v1212, 7
      %v1214 = vsub.s32 %v1211, %v1213
      %v1215 = vrot.slane %v1147, %v1214
      %v1217 = vunpack.c.l.s4 1935823168
      %v1218 = vunpack.c.0.s8 %v1217
      %v1219 = vlaneseq
      %v1220 = vshrl.u32 %v1219, 7
      %v1221 = vsub.s32 %v1218, %v1220
      %v1222 = vrot.slane %v1148, %v1221
      %v1224 = vunpack.c.l.s4 1935823168
      %v1225 = vunpack.c.0.s8 %v1224
      %v1226 = vlaneseq
      %v1227 = vshrl.u32 %v1226, 7
      %v1228 = vsub.s32 %v1225, %v1227
      %v1229 = vrot.slane %v1149, %v1228
      %v1231 = vunpack.c.l.s4 1935823168
      %v1232 = vunpack.c.0.s8 %v1231
      %v1233 = vlaneseq
      %v1234 = vshrl.u32 %v1233, 7
      %v1235 = vsub.s32 %v1232, %v1234
      %v1236 = vrot.slane %v1150, %v1235
      %v1238 = vunpack.c.l.s4 1935823168
      %v1239 = vunpack.c.0.s8 %v1238
      %v1240 = vlaneseq
      %v1241 = vshrl.u32 %v1240, 7
      %v1242 = vsub.s32 %v1239, %v1241
      %v1243 = vrot.slane %v1151, %v1242
      %v1245 = vunpack.c.l.s4 1935823168
      %v1246 = vunpack.c.0.s8 %v1245
      %v1247 = vlaneseq
      %v1248 = vshrl.u32 %v1247, 7
      %v1249 = vsub.s32 %v1246, %v1248
      %v1250 = vrot.slane %v1152, %v1249
      %v1252 = vunpack.c.l.s4 1935823168
      %v1253 = vunpack.c.0.s8 %v1252
      %v1254 = vlaneseq
      %v1255 = vshrl.u32 %v1254, 7
      %v1256 = vsub.s32 %v1253, %v1255
      %v1257 = vrot.slane %v1153, %v1256
      %v1259 = vunpack.c.l.s4 1935823168
      %v1260 = vunpack.c.0.s8 %v1259
      %v1261 = vlaneseq
      %v1262 = vshrl.u32 %v1261, 7
      %v1263 = vsub.s32 %v1260, %v1262
      %v1264 = vrot.slane %v1154, %v1263
      %v1266 = vunpack.c.l.s4 1935823168
      %v1267 = vunpack.c.0.s8 %v1266
      %v1268 = vlaneseq
      %v1269 = vshrl.u32 %v1268, 7
      %v1270 = vsub.s32 %v1267, %v1269
      %v1271 = vrot.slane %v1155, %v1270
      %v1273 = vunpack.c.l.s4 1935823168
      %v1274 = vunpack.c.0.s8 %v1273
      %v1275 = vlaneseq
      %v1276 = vshrl.u32 %v1275, 7
      %v1277 = vsub.s32 %v1274, %v1276
      %v1278 = vrot.slane %v1156, %v1277
      %v1280 = vunpack.c.l.s4 1935823168
      %v1281 = vunpack.c.0.s8 %v1280
      %v1282 = vlaneseq
      %v1283 = vshrl.u32 %v1282, 7
      %v1284 = vsub.s32 %v1281, %v1283
      %v1285 = vrot.slane %v1157, %v1284
      %v1302 = vcombine.low %v1020, %v1034
      %v1303 = vcombine.high %v1020, %v1034
      %v1304 = vcombine.low %v1048, %v1062
      %v1305 = vcombine.high %v1048, %v1062
      %v1306 = vcombine.low %v1076, %v1090
      %v1307 = vcombine.high %v1076, %v1090
      %v1308 = vcombine.low %v1104, %v1118
      %v1309 = vcombine.high %v1104, %v1118
      %v1311 = vunpack.c.l.s4 1966171168
      %v1312 = vunpack.c.0.s8 %v1311
      %v1313 = vlaneseq
      %v1314 = vshrl.u32 %v1313, 7
      %v1315 = vsub.s32 %v1312, %v1314
      %v1316 = vrot.slane %v1302, %v1315
      %v1318 = vunpack.c.l.s4 1966171168
      %v1319 = vunpack.c.0.s8 %v1318
      %v1320 = vlaneseq
      %v1321 = vshrl.u32 %v1320, 7
      %v1322 = vsub.s32 %v1319, %v1321
      %v1323 = vrot.slane %v1303, %v1322
      %v1325 = vunpack.c.l.s4 1966171168
      %v1326 = vunpack.c.0.s8 %v1325
      %v1327 = vlaneseq
      %v1328 = vshrl.u32 %v1327, 7
      %v1329 = vsub.s32 %v1326, %v1328
      %v1330 = vrot.slane %v1304, %v1329
      %v1332 = vunpack.c.l.s4 1966171168
      %v1333 = vunpack.c.0.s8 %v1332
      %v1334 = vlaneseq
      %v1335 = vshrl.u32 %v1334, 7
      %v1336 = vsub.s32 %v1333, %v1335
      %v1337 = vrot.slane %v1305, %v1336
      %v1339 = vunpack.c.l.s4 1966171168
      %v1340 = vunpack.c.0.s8 %v1339
      %v1341 = vlaneseq
      %v1342 = vshrl.u32 %v1341, 7
      %v1343 = vsub.s32 %v1340, %v1342
      %v1344 = vrot.slane %v1306, %v1343
      %v1346 = vunpack.c.l.s4 1966171168
      %v1347 = vunpack.c.0.s8 %v1346
      %v1348 = vlaneseq
      %v1349 = vshrl.u32 %v1348, 7
      %v1350 = vsub.s32 %v1347, %v1349
      %v1351 = vrot.slane %v1307, %v1350
      %v1353 = vunpack.c.l.s4 1966171168
      %v1354 = vunpack.c.0.s8 %v1353
      %v1355 = vlaneseq
      %v1356 = vshrl.u32 %v1355, 7
      %v1357 = vsub.s32 %v1354, %v1356
      %v1358 = vrot.slane %v1308, %v1357
      %v1360 = vunpack.c.l.s4 1966171168
      %v1361 = vunpack.c.0.s8 %v1360
      %v1362 = vlaneseq
      %v1363 = vshrl.u32 %v1362, 7
      %v1364 = vsub.s32 %v1361, %v1363
      %v1365 = vrot.slane %v1309, %v1364
      %v1366 = vcombine.low %v1316, %v1330
      %v1367 = vcombine.high %v1316, %v1330
      %v1368 = vcombine.low %v1323, %v1337
      %v1369 = vcombine.high %v1323, %v1337
      %v1370 = vcombine.low %v1344, %v1358
      %v1371 = vcombine.high %v1344, %v1358
      %v1372 = vcombine.low %v1351, %v1365
      %v1373 = vcombine.high %v1351, %v1365
      %v1375 = vunpack.c.l.s4 1966171168
      %v1376 = vunpack.c.0.s8 %v1375
      %v1377 = vlaneseq
      %v1378 = vshrl.u32 %v1377, 7
      %v1379 = vsub.s32 %v1376, %v1378
      %v1380 = vrot.slane %v1366, %v1379
      %v1382 = vunpack.c.l.s4 1966171168
      %v1383 = vunpack.c.0.s8 %v1382
      %v1384 = vlaneseq
      %v1385 = vshrl.u32 %v1384, 7
      %v1386 = vsub.s32 %v1383, %v1385
      %v1387 = vrot.slane %v1368, %v1386
      %v1389 = vunpack.c.l.s4 1966171168
      %v1390 = vunpack.c.0.s8 %v1389
      %v1391 = vlaneseq
      %v1392 = vshrl.u32 %v1391, 7
      %v1393 = vsub.s32 %v1390, %v1392
      %v1394 = vrot.slane %v1367, %v1393
      %v1396 = vunpack.c.l.s4 1966171168
      %v1397 = vunpack.c.0.s8 %v1396
      %v1398 = vlaneseq
      %v1399 = vshrl.u32 %v1398, 7
      %v1400 = vsub.s32 %v1397, %v1399
      %v1401 = vrot.slane %v1369, %v1400
      %v1403 = vunpack.c.l.s4 1966171168
      %v1404 = vunpack.c.0.s8 %v1403
      %v1405 = vlaneseq
      %v1406 = vshrl.u32 %v1405, 7
      %v1407 = vsub.s32 %v1404, %v1406
      %v1408 = vrot.slane %v1370, %v1407
      %v1410 = vunpack.c.l.s4 1966171168
      %v1411 = vunpack.c.0.s8 %v1410
      %v1412 = vlaneseq
      %v1413 = vshrl.u32 %v1412, 7
      %v1414 = vsub.s32 %v1411, %v1413
      %v1415 = vrot.slane %v1372, %v1414
      %v1417 = vunpack.c.l.s4 1966171168
      %v1418 = vunpack.c.0.s8 %v1417
      %v1419 = vlaneseq
      %v1420 = vshrl.u32 %v1419, 7
      %v1421 = vsub.s32 %v1418, %v1420
      %v1422 = vrot.slane %v1371, %v1421
      %v1424 = vunpack.c.l.s4 1966171168
      %v1425 = vunpack.c.0.s8 %v1424
      %v1426 = vlaneseq
      %v1427 = vshrl.u32 %v1426, 7
      %v1428 = vsub.s32 %v1425, %v1427
      %v1429 = vrot.slane %v1373, %v1428
      %v1430 = vcombine.low %v1380, %v1408
      %v1431 = vcombine.high %v1380, %v1408
      %v1432 = vcombine.low %v1387, %v1415
      %v1433 = vcombine.high %v1387, %v1415
      %v1434 = vcombine.low %v1394, %v1422
      %v1435 = vcombine.high %v1394, %v1422
      %v1436 = vcombine.low %v1401, %v1429
      %v1437 = vcombine.high %v1401, %v1429
      %v1438 = vcombine.low %v1027, %v1041
      %v1439 = vcombine.high %v1027, %v1041
      %v1440 = vcombine.low %v1055, %v1069
      %v1441 = vcombine.high %v1055, %v1069
      %v1442 = vcombine.low %v1083, %v1097
      %v1443 = vcombine.high %v1083, %v1097
      %v1444 = vcombine.low %v1111, %v1125
      %v1445 = vcombine.high %v1111, %v1125
      %v1447 = vunpack.c.l.s4 1966171168
      %v1448 = vunpack.c.0.s8 %v1447
      %v1449 = vlaneseq
      %v1450 = vshrl.u32 %v1449, 7
      %v1451 = vsub.s32 %v1448, %v1450
      %v1452 = vrot.slane %v1438, %v1451
      %v1454 = vunpack.c.l.s4 1966171168
      %v1455 = vunpack.c.0.s8 %v1454
      %v1456 = vlaneseq
      %v1457 = vshrl.u32 %v1456, 7
      %v1458 = vsub.s32 %v1455, %v1457
      %v1459 = vrot.slane %v1439, %v1458
      %v1461 = vunpack.c.l.s4 1966171168
      %v1462 = vunpack.c.0.s8 %v1461
      %v1463 = vlaneseq
      %v1464 = vshrl.u32 %v1463, 7
      %v1465 = vsub.s32 %v1462, %v1464
      %v1466 = vrot.slane %v1440, %v1465
      %v1468 = vunpack.c.l.s4 1966171168
      %v1469 = vunpack.c.0.s8 %v1468
      %v1470 = vlaneseq
      %v1471 = vshrl.u32 %v1470, 7
      %v1472 = vsub.s32 %v1469, %v1471
      %v1473 = vrot.slane %v1441, %v1472
      %v1475 = vunpack.c.l.s4 1966171168
      %v1476 = vunpack.c.0.s8 %v1475
      %v1477 = vlaneseq
      %v1478 = vshrl.u32 %v1477, 7
      %v1479 = vsub.s32 %v1476, %v1478
      %v1480 = vrot.slane %v1442, %v1479
      %v1482 = vunpack.c.l.s4 1966171168
      %v1483 = vunpack.c.0.s8 %v1482
      %v1484 = vlaneseq
      %v1485 = vshrl.u32 %v1484, 7
      %v1486 = vsub.s32 %v1483, %v1485
      %v1487 = vrot.slane %v1443, %v1486
      %v1489 = vunpack.c.l.s4 1966171168
      %v1490 = vunpack.c.0.s8 %v1489
      %v1491 = vlaneseq
      %v1492 = vshrl.u32 %v1491, 7
      %v1493 = vsub.s32 %v1490, %v1492
      %v1494 = vrot.slane %v1444, %v1493
      %v1496 = vunpack.c.l.s4 1966171168
      %v1497 = vunpack.c.0.s8 %v1496
      %v1498 = vlaneseq
      %v1499 = vshrl.u32 %v1498, 7
      %v1500 = vsub.s32 %v1497, %v1499
      %v1501 = vrot.slane %v1445, %v1500
      %v1502 = vcombine.low %v1452, %v1466
      %v1503 = vcombine.high %v1452, %v1466
      %v1504 = vcombine.low %v1459, %v1473
      %v1505 = vcombine.high %v1459, %v1473
      %v1506 = vcombine.low %v1480, %v1494
      %v1507 = vcombine.high %v1480, %v1494
      %v1508 = vcombine.low %v1487, %v1501
      %v1509 = vcombine.high %v1487, %v1501
      %v1511 = vunpack.c.l.s4 1966171168
      %v1512 = vunpack.c.0.s8 %v1511
      %v1513 = vlaneseq
      %v1514 = vshrl.u32 %v1513, 7
      %v1515 = vsub.s32 %v1512, %v1514
      %v1516 = vrot.slane %v1502, %v1515
      %v1518 = vunpack.c.l.s4 1966171168
      %v1519 = vunpack.c.0.s8 %v1518
      %v1520 = vlaneseq
      %v1521 = vshrl.u32 %v1520, 7
      %v1522 = vsub.s32 %v1519, %v1521
      %v1523 = vrot.slane %v1504, %v1522
      %v1525 = vunpack.c.l.s4 1966171168
      %v1526 = vunpack.c.0.s8 %v1525
      %v1527 = vlaneseq
      %v1528 = vshrl.u32 %v1527, 7
      %v1529 = vsub.s32 %v1526, %v1528
      %v1530 = vrot.slane %v1503, %v1529
      %v1532 = vunpack.c.l.s4 1966171168
      %v1533 = vunpack.c.0.s8 %v1532
      %v1534 = vlaneseq
      %v1535 = vshrl.u32 %v1534, 7
      %v1536 = vsub.s32 %v1533, %v1535
      %v1537 = vrot.slane %v1505, %v1536
      %v1539 = vunpack.c.l.s4 1966171168
      %v1540 = vunpack.c.0.s8 %v1539
      %v1541 = vlaneseq
      %v1542 = vshrl.u32 %v1541, 7
      %v1543 = vsub.s32 %v1540, %v1542
      %v1544 = vrot.slane %v1506, %v1543
      %v1546 = vunpack.c.l.s4 1966171168
      %v1547 = vunpack.c.0.s8 %v1546
      %v1548 = vlaneseq
      %v1549 = vshrl.u32 %v1548, 7
      %v1550 = vsub.s32 %v1547, %v1549
      %v1551 = vrot.slane %v1508, %v1550
      %v1553 = vunpack.c.l.s4 1966171168
      %v1554 = vunpack.c.0.s8 %v1553
      %v1555 = vlaneseq
      %v1556 = vshrl.u32 %v1555, 7
      %v1557 = vsub.s32 %v1554, %v1556
      %v1558 = vrot.slane %v1507, %v1557
      %v1560 = vunpack.c.l.s4 1966171168
      %v1561 = vunpack.c.0.s8 %v1560
      %v1562 = vlaneseq
      %v1563 = vshrl.u32 %v1562, 7
      %v1564 = vsub.s32 %v1561, %v1563
      %v1565 = vrot.slane %v1509, %v1564
      %v1566 = vcombine.low %v1516, %v1544
      %v1567 = vcombine.high %v1516, %v1544
      %v1568 = vcombine.low %v1523, %v1551
      %v1569 = vcombine.high %v1523, %v1551
      %v1570 = vcombine.low %v1530, %v1558
      %v1571 = vcombine.high %v1530, %v1558
      %v1572 = vcombine.low %v1537, %v1565
      %v1573 = vcombine.high %v1537, %v1565
      %v1590 = vcombine.low %v1180, %v1194
      %v1591 = vcombine.high %v1180, %v1194
      %v1592 = vcombine.low %v1208, %v1222
      %v1593 = vcombine.high %v1208, %v1222
      %v1594 = vcombine.low %v1236, %v1250
      %v1595 = vcombine.high %v1236, %v1250
      %v1596 = vcombine.low %v1264, %v1278
      %v1597 = vcombine.high %v1264, %v1278
      %v1599 = vunpack.c.l.s4 1966171168
      %v1600 = vunpack.c.0.s8 %v1599
      %v1601 = vlaneseq
      %v1602 = vshrl.u32 %v1601, 7
      %v1603 = vsub.s32 %v1600, %v1602
      %v1604 = vrot.slane %v1590, %v1603
      %v1606 = vunpack.c.l.s4 1966171168
      %v1607 = vunpack.c.0.s8 %v1606
      %v1608 = vlaneseq
      %v1609 = vshrl.u32 %v1608, 7
      %v1610 = vsub.s32 %v1607, %v1609
      %v1611 = vrot.slane %v1591, %v1610
      %v1613 = vunpack.c.l.s4 1966171168
      %v1614 = vunpack.c.0.s8 %v1613
      %v1615 = vlaneseq
      %v1616 = vshrl.u32 %v1615, 7
      %v1617 = vsub.s32 %v1614, %v1616
      %v1618 = vrot.slane %v1592, %v1617
      %v1620 = vunpack.c.l.s4 1966171168
      %v1621 = vunpack.c.0.s8 %v1620
      %v1622 = vlaneseq
      %v1623 = vshrl.u32 %v1622, 7
      %v1624 = vsub.s32 %v1621, %v1623
      %v1625 = vrot.slane %v1593, %v1624
      %v1627 = vunpack.c.l.s4 1966171168
      %v1628 = vunpack.c.0.s8 %v1627
      %v1629 = vlaneseq
      %v1630 = vshrl.u32 %v1629, 7
      %v1631 = vsub.s32 %v1628, %v1630
      %v1632 = vrot.slane %v1594, %v1631
      %v1634 = vunpack.c.l.s4 1966171168
      %v1635 = vunpack.c.0.s8 %v1634
      %v1636 = vlaneseq
      %v1637 = vshrl.u32 %v1636, 7
      %v1638 = vsub.s32 %v1635, %v1637
      %v1639 = vrot.slane %v1595, %v1638
      %v1641 = vunpack.c.l.s4 1966171168
      %v1642 = vunpack.c.0.s8 %v1641
      %v1643 = vlaneseq
      %v1644 = vshrl.u32 %v1643, 7
      %v1645 = vsub.s32 %v1642, %v1644
      %v1646 = vrot.slane %v1596, %v1645
      %v1648 = vunpack.c.l.s4 1966171168
      %v1649 = vunpack.c.0.s8 %v1648
      %v1650 = vlaneseq
      %v1651 = vshrl.u32 %v1650, 7
      %v1652 = vsub.s32 %v1649, %v1651
      %v1653 = vrot.slane %v1597, %v1652
      %v1654 = vcombine.low %v1604, %v1618
      %v1655 = vcombine.high %v1604, %v1618
      %v1656 = vcombine.low %v1611, %v1625
      %v1657 = vcombine.high %v1611, %v1625
      %v1658 = vcombine.low %v1632, %v1646
      %v1659 = vcombine.high %v1632, %v1646
      %v1660 = vcombine.low %v1639, %v1653
      %v1661 = vcombine.high %v1639, %v1653
      %v1663 = vunpack.c.l.s4 1966171168
      %v1664 = vunpack.c.0.s8 %v1663
      %v1665 = vlaneseq
      %v1666 = vshrl.u32 %v1665, 7
      %v1667 = vsub.s32 %v1664, %v1666
      %v1668 = vrot.slane %v1654, %v1667
      %v1670 = vunpack.c.l.s4 1966171168
      %v1671 = vunpack.c.0.s8 %v1670
      %v1672 = vlaneseq
      %v1673 = vshrl.u32 %v1672, 7
      %v1674 = vsub.s32 %v1671, %v1673
      %v1675 = vrot.slane %v1656, %v1674
      %v1677 = vunpack.c.l.s4 1966171168
      %v1678 = vunpack.c.0.s8 %v1677
      %v1679 = vlaneseq
      %v1680 = vshrl.u32 %v1679, 7
      %v1681 = vsub.s32 %v1678, %v1680
      %v1682 = vrot.slane %v1655, %v1681
      %v1684 = vunpack.c.l.s4 1966171168
      %v1685 = vunpack.c.0.s8 %v1684
      %v1686 = vlaneseq
      %v1687 = vshrl.u32 %v1686, 7
      %v1688 = vsub.s32 %v1685, %v1687
      %v1689 = vrot.slane %v1657, %v1688
      %v1691 = vunpack.c.l.s4 1966171168
      %v1692 = vunpack.c.0.s8 %v1691
      %v1693 = vlaneseq
      %v1694 = vshrl.u32 %v1693, 7
      %v1695 = vsub.s32 %v1692, %v1694
      %v1696 = vrot.slane %v1658, %v1695
      %v1698 = vunpack.c.l.s4 1966171168
      %v1699 = vunpack.c.0.s8 %v1698
      %v1700 = vlaneseq
      %v1701 = vshrl.u32 %v1700, 7
      %v1702 = vsub.s32 %v1699, %v1701
      %v1703 = vrot.slane %v1660, %v1702
      %v1705 = vunpack.c.l.s4 1966171168
      %v1706 = vunpack.c.0.s8 %v1705
      %v1707 = vlaneseq
      %v1708 = vshrl.u32 %v1707, 7
      %v1709 = vsub.s32 %v1706, %v1708
      %v1710 = vrot.slane %v1659, %v1709
      %v1712 = vunpack.c.l.s4 1966171168
      %v1713 = vunpack.c.0.s8 %v1712
      %v1714 = vlaneseq
      %v1715 = vshrl.u32 %v1714, 7
      %v1716 = vsub.s32 %v1713, %v1715
      %v1717 = vrot.slane %v1661, %v1716
      %v1718 = vcombine.low %v1668, %v1696
      %v1719 = vcombine.high %v1668, %v1696
      %v1720 = vcombine.low %v1675, %v1703
      %v1721 = vcombine.high %v1675, %v1703
      %v1722 = vcombine.low %v1682, %v1710
      %v1723 = vcombine.high %v1682, %v1710
      %v1724 = vcombine.low %v1689, %v1717
      %v1725 = vcombine.high %v1689, %v1717
      %v1726 = vcombine.low %v1187, %v1201
      %v1727 = vcombine.high %v1187, %v1201
      %v1728 = vcombine.low %v1215, %v1229
      %v1729 = vcombine.high %v1215, %v1229
      %v1730 = vcombine.low %v1243, %v1257
      %v1731 = vcombine.high %v1243, %v1257
      %v1732 = vcombine.low %v1271, %v1285
      %v1733 = vcombine.high %v1271, %v1285
      %v1735 = vunpack.c.l.s4 1966171168
      %v1736 = vunpack.c.0.s8 %v1735
      %v1737 = vlaneseq
      %v1738 = vshrl.u32 %v1737, 7
      %v1739 = vsub.s32 %v1736, %v1738
      %v1740 = vrot.slane %v1726, %v1739
      %v1742 = vunpack.c.l.s4 1966171168
      %v1743 = vunpack.c.0.s8 %v1742
      %v1744 = vlaneseq
      %v1745 = vshrl.u32 %v1744, 7
      %v1746 = vsub.s32 %v1743, %v1745
      %v1747 = vrot.slane %v1727, %v1746
      %v1749 = vunpack.c.l.s4 1966171168
      %v1750 = vunpack.c.0.s8 %v1749
      %v1751 = vlaneseq
      %v1752 = vshrl.u32 %v1751, 7
      %v1753 = vsub.s32 %v1750, %v1752
      %v1754 = vrot.slane %v1728, %v1753
      %v1756 = vunpack.c.l.s4 1966171168
      %v1757 = vunpack.c.0.s8 %v1756
      %v1758 = vlaneseq
      %v1759 = vshrl.u32 %v1758, 7
      %v1760 = vsub.s32 %v1757, %v1759
      %v1761 = vrot.slane %v1729, %v1760
      %v1763 = vunpack.c.l.s4 1966171168
      %v1764 = vunpack.c.0.s8 %v1763
      %v1765 = vlaneseq
      %v1766 = vshrl.u32 %v1765, 7
      %v1767 = vsub.s32 %v1764, %v1766
      %v1768 = vrot.slane %v1730, %v1767
      %v1770 = vunpack.c.l.s4 1966171168
      %v1771 = vunpack.c.0.s8 %v1770
      %v1772 = vlaneseq
      %v1773 = vshrl.u32 %v1772, 7
      %v1774 = vsub.s32 %v1771, %v1773
      %v1775 = vrot.slane %v1731, %v1774
      %v1777 = vunpack.c.l.s4 1966171168
      %v1778 = vunpack.c.0.s8 %v1777
      %v1779 = vlaneseq
      %v1780 = vshrl.u32 %v1779, 7
      %v1781 = vsub.s32 %v1778, %v1780
      %v1782 = vrot.slane %v1732, %v1781
      %v1784 = vunpack.c.l.s4 1966171168
      %v1785 = vunpack.c.0.s8 %v1784
      %v1786 = vlaneseq
      %v1787 = vshrl.u32 %v1786, 7
      %v1788 = vsub.s32 %v1785, %v1787
      %v1789 = vrot.slane %v1733, %v1788
      %v1790 = vcombine.low %v1740, %v1754
      %v1791 = vcombine.high %v1740, %v1754
      %v1792 = vcombine.low %v1747, %v1761
      %v1793 = vcombine.high %v1747, %v1761
      %v1794 = vcombine.low %v1768, %v1782
      %v1795 = vcombine.high %v1768, %v1782
      %v1796 = vcombine.low %v1775, %v1789
      %v1797 = vcombine.high %v1775, %v1789
      %v1799 = vunpack.c.l.s4 1966171168
      %v1800 = vunpack.c.0.s8 %v1799
      %v1801 = vlaneseq
      %v1802 = vshrl.u32 %v1801, 7
      %v1803 = vsub.s32 %v1800, %v1802
      %v1804 = vrot.slane %v1790, %v1803
      %v1806 = vunpack.c.l.s4 1966171168
      %v1807 = vunpack.c.0.s8 %v1806
      %v1808 = vlaneseq
      %v1809 = vshrl.u32 %v1808, 7
      %v1810 = vsub.s32 %v1807, %v1809
      %v1811 = vrot.slane %v1792, %v1810
      %v1813 = vunpack.c.l.s4 1966171168
      %v1814 = vunpack.c.0.s8 %v1813
      %v1815 = vlaneseq
      %v1816 = vshrl.u32 %v1815, 7
      %v1817 = vsub.s32 %v1814, %v1816
      %v1818 = vrot.slane %v1791, %v1817
      %v1820 = vunpack.c.l.s4 1966171168
      %v1821 = vunpack.c.0.s8 %v1820
      %v1822 = vlaneseq
      %v1823 = vshrl.u32 %v1822, 7
      %v1824 = vsub.s32 %v1821, %v1823
      %v1825 = vrot.slane %v1793, %v1824
      %v1827 = vunpack.c.l.s4 1966171168
      %v1828 = vunpack.c.0.s8 %v1827
      %v1829 = vlaneseq
      %v1830 = vshrl.u32 %v1829, 7
      %v1831 = vsub.s32 %v1828, %v1830
      %v1832 = vrot.slane %v1794, %v1831
      %v1834 = vunpack.c.l.s4 1966171168
      %v1835 = vunpack.c.0.s8 %v1834
      %v1836 = vlaneseq
      %v1837 = vshrl.u32 %v1836, 7
      %v1838 = vsub.s32 %v1835, %v1837
      %v1839 = vrot.slane %v1796, %v1838
      %v1841 = vunpack.c.l.s4 1966171168
      %v1842 = vunpack.c.0.s8 %v1841
      %v1843 = vlaneseq
      %v1844 = vshrl.u32 %v1843, 7
      %v1845 = vsub.s32 %v1842, %v1844
      %v1846 = vrot.slane %v1795, %v1845
      %v1848 = vunpack.c.l.s4 1966171168
      %v1849 = vunpack.c.0.s8 %v1848
      %v1850 = vlaneseq
      %v1851 = vshrl.u32 %v1850, 7
      %v1852 = vsub.s32 %v1849, %v1851
      %v1853 = vrot.slane %v1797, %v1852
      %v1854 = vcombine.low %v1804, %v1832
      %v1855 = vcombine.high %v1804, %v1832
      %v1856 = vcombine.low %v1811, %v1839
      %v1857 = vcombine.high %v1811, %v1839
      %v1858 = vcombine.low %v1818, %v1846
      %v1859 = vcombine.high %v1818, %v1846
      %v1860 = vcombine.low %v1825, %v1853
      %v1861 = vcombine.high %v1825, %v1853
      %v1862 = vcombine.low %v1430, %v1434
      %v1863 = vcombine.high %v1430, %v1434
      %v1864 = vcombine.low %v1431, %v1435
      %v1865 = vcombine.high %v1431, %v1435
      %v1866 = vcombine.low %v1432, %v1436
      %v1867 = vcombine.high %v1432, %v1436
      %v1868 = vcombine.low %v1433, %v1437
      %v1869 = vcombine.high %v1433, %v1437
      %v1871 = vunpack.c.l.s4 1966171168
      %v1872 = vunpack.c.0.s8 %v1871
      %v1873 = vlaneseq
      %v1874 = vshrl.u32 %v1873, 7
      %v1875 = vsub.s32 %v1872, %v1874
      %v1876 = vrot.slane %v1862, %v1875
      %v1878 = vunpack.c.l.s4 1966171168
      %v1879 = vunpack.c.0.s8 %v1878
      %v1880 = vlaneseq
      %v1881 = vshrl.u32 %v1880, 7
      %v1882 = vsub.s32 %v1879, %v1881
      %v1883 = vrot.slane %v1863, %v1882
      %v1885 = vunpack.c.l.s4 1966171168
      %v1886 = vunpack.c.0.s8 %v1885
      %v1887 = vlaneseq
      %v1888 = vshrl.u32 %v1887, 7
      %v1889 = vsub.s32 %v1886, %v1888
      %v1890 = vrot.slane %v1864, %v1889
      %v1892 = vunpack.c.l.s4 1966171168
      %v1893 = vunpack.c.0.s8 %v1892
      %v1894 = vlaneseq
      %v1895 = vshrl.u32 %v1894, 7
      %v1896 = vsub.s32 %v1893, %v1895
      %v1897 = vrot.slane %v1865, %v1896
      %v1899 = vunpack.c.l.s4 1966171168
      %v1900 = vunpack.c.0.s8 %v1899
      %v1901 = vlaneseq
      %v1902 = vshrl.u32 %v1901, 7
      %v1903 = vsub.s32 %v1900, %v1902
      %v1904 = vrot.slane %v1866, %v1903
      %v1906 = vunpack.c.l.s4 1966171168
      %v1907 = vunpack.c.0.s8 %v1906
      %v1908 = vlaneseq
      %v1909 = vshrl.u32 %v1908, 7
      %v1910 = vsub.s32 %v1907, %v1909
      %v1911 = vrot.slane %v1867, %v1910
      %v1913 = vunpack.c.l.s4 1966171168
      %v1914 = vunpack.c.0.s8 %v1913
      %v1915 = vlaneseq
      %v1916 = vshrl.u32 %v1915, 7
      %v1917 = vsub.s32 %v1914, %v1916
      %v1918 = vrot.slane %v1868, %v1917
      %v1920 = vunpack.c.l.s4 1966171168
      %v1921 = vunpack.c.0.s8 %v1920
      %v1922 = vlaneseq
      %v1923 = vshrl.u32 %v1922, 7
      %v1924 = vsub.s32 %v1921, %v1923
      %v1925 = vrot.slane %v1869, %v1924
      %v1926 = vcombine.low %v1876, %v1890
      %v1927 = vcombine.high %v1876, %v1890
      %v1928 = vcombine.low %v1883, %v1897
      %v1929 = vcombine.high %v1883, %v1897
      %v1930 = vcombine.low %v1904, %v1918
      %v1931 = vcombine.high %v1904, %v1918
      %v1932 = vcombine.low %v1911, %v1925
      %v1933 = vcombine.high %v1911, %v1925
      %v1935 = vunpack.c.l.s4 1966171168
      %v1936 = vunpack.c.0.s8 %v1935
      %v1937 = vlaneseq
      %v1938 = vshrl.u32 %v1937, 7
      %v1939 = vsub.s32 %v1936, %v1938
      %v1940 = vrot.slane %v1926, %v1939
      %v1942 = vunpack.c.l.s4 1966171168
      %v1943 = vunpack.c.0.s8 %v1942
      %v1944 = vlaneseq
      %v1945 = vshrl.u32 %v1944, 7
      %v1946 = vsub.s32 %v1943, %v1945
      %v1947 = vrot.slane %v1928, %v1946
      %v1949 = vunpack.c.l.s4 1966171168
      %v1950 = vunpack.c.0.s8 %v1949
      %v1951 = vlaneseq
      %v1952 = vshrl.u32 %v1951, 7
      %v1953 = vsub.s32 %v1950, %v1952
      %v1954 = vrot.slane %v1927, %v1953
      %v1956 = vunpack.c.l.s4 1966171168
      %v1957 = vunpack.c.0.s8 %v1956
      %v1958 = vlaneseq
      %v1959 = vshrl.u32 %v1958, 7
      %v1960 = vsub.s32 %v1957, %v1959
      %v1961 = vrot.slane %v1929, %v1960
      %v1963 = vunpack.c.l.s4 1966171168
      %v1964 = vunpack.c.0.s8 %v1963
      %v1965 = vlaneseq
      %v1966 = vshrl.u32 %v1965, 7
      %v1967 = vsub.s32 %v1964, %v1966
      %v1968 = vrot.slane %v1930, %v1967
      %v1970 = vunpack.c.l.s4 1966171168
      %v1971 = vunpack.c.0.s8 %v1970
      %v1972 = vlaneseq
      %v1973 = vshrl.u32 %v1972, 7
      %v1974 = vsub.s32 %v1971, %v1973
      %v1975 = vrot.slane %v1932, %v1974
      %v1977 = vunpack.c.l.s4 1966171168
      %v1978 = vunpack.c.0.s8 %v1977
      %v1979 = vlaneseq
      %v1980 = vshrl.u32 %v1979, 7
      %v1981 = vsub.s32 %v1978, %v1980
      %v1982 = vrot.slane %v1931, %v1981
      %v1984 = vunpack.c.l.s4 1966171168
      %v1985 = vunpack.c.0.s8 %v1984
      %v1986 = vlaneseq
      %v1987 = vshrl.u32 %v1986, 7
      %v1988 = vsub.s32 %v1985, %v1987
      %v1989 = vrot.slane %v1933, %v1988
      %v1990 = vcombine.low %v1940, %v1968
      %v1991 = vcombine.high %v1940, %v1968
      %v1992 = vcombine.low %v1947, %v1975
      %v1993 = vcombine.high %v1947, %v1975
      %v1994 = vcombine.low %v1954, %v1982
      %v1995 = vcombine.high %v1954, %v1982
      %v1996 = vcombine.low %v1961, %v1989
      %v1997 = vcombine.high %v1961, %v1989
      %v1998 = vcombine.low %v1566, %v1570
      %v1999 = vcombine.high %v1566, %v1570
      %v2000 = vcombine.low %v1567, %v1571
      %v2001 = vcombine.high %v1567, %v1571
      %v2002 = vcombine.low %v1568, %v1572
      %v2003 = vcombine.high %v1568, %v1572
      %v2004 = vcombine.low %v1569, %v1573
      %v2005 = vcombine.high %v1569, %v1573
      %v2007 = vunpack.c.l.s4 1966171168
      %v2008 = vunpack.c.0.s8 %v2007
      %v2009 = vlaneseq
      %v2010 = vshrl.u32 %v2009, 7
      %v2011 = vsub.s32 %v2008, %v2010
      %v2012 = vrot.slane %v1998, %v2011
      %v2014 = vunpack.c.l.s4 1966171168
      %v2015 = vunpack.c.0.s8 %v2014
      %v2016 = vlaneseq
      %v2017 = vshrl.u32 %v2016, 7
      %v2018 = vsub.s32 %v2015, %v2017
      %v2019 = vrot.slane %v1999, %v2018
      %v2021 = vunpack.c.l.s4 1966171168
      %v2022 = vunpack.c.0.s8 %v2021
      %v2023 = vlaneseq
      %v2024 = vshrl.u32 %v2023, 7
      %v2025 = vsub.s32 %v2022, %v2024
      %v2026 = vrot.slane %v2000, %v2025
      %v2028 = vunpack.c.l.s4 1966171168
      %v2029 = vunpack.c.0.s8 %v2028
      %v2030 = vlaneseq
      %v2031 = vshrl.u32 %v2030, 7
      %v2032 = vsub.s32 %v2029, %v2031
      %v2033 = vrot.slane %v2001, %v2032
      %v2035 = vunpack.c.l.s4 1966171168
      %v2036 = vunpack.c.0.s8 %v2035
      %v2037 = vlaneseq
      %v2038 = vshrl.u32 %v2037, 7
      %v2039 = vsub.s32 %v2036, %v2038
      %v2040 = vrot.slane %v2002, %v2039
      %v2042 = vunpack.c.l.s4 1966171168
      %v2043 = vunpack.c.0.s8 %v2042
      %v2044 = vlaneseq
      %v2045 = vshrl.u32 %v2044, 7
      %v2046 = vsub.s32 %v2043, %v2045
      %v2047 = vrot.slane %v2003, %v2046
      %v2049 = vunpack.c.l.s4 1966171168
      %v2050 = vunpack.c.0.s8 %v2049
      %v2051 = vlaneseq
      %v2052 = vshrl.u32 %v2051, 7
      %v2053 = vsub.s32 %v2050, %v2052
      %v2054 = vrot.slane %v2004, %v2053
      %v2056 = vunpack.c.l.s4 1966171168
      %v2057 = vunpack.c.0.s8 %v2056
      %v2058 = vlaneseq
      %v2059 = vshrl.u32 %v2058, 7
      %v2060 = vsub.s32 %v2057, %v2059
      %v2061 = vrot.slane %v2005, %v2060
      %v2062 = vcombine.low %v2012, %v2026
      %v2063 = vcombine.high %v2012, %v2026
      %v2064 = vcombine.low %v2019, %v2033
      %v2065 = vcombine.high %v2019, %v2033
      %v2066 = vcombine.low %v2040, %v2054
      %v2067 = vcombine.high %v2040, %v2054
      %v2068 = vcombine.low %v2047, %v2061
      %v2069 = vcombine.high %v2047, %v2061
      %v2071 = vunpack.c.l.s4 1966171168
      %v2072 = vunpack.c.0.s8 %v2071
      %v2073 = vlaneseq
      %v2074 = vshrl.u32 %v2073, 7
      %v2075 = vsub.s32 %v2072, %v2074
      %v2076 = vrot.slane %v2062, %v2075
      %v2078 = vunpack.c.l.s4 1966171168
      %v2079 = vunpack.c.0.s8 %v2078
      %v2080 = vlaneseq
      %v2081 = vshrl.u32 %v2080, 7
      %v2082 = vsub.s32 %v2079, %v2081
      %v2083 = vrot.slane %v2064, %v2082
      %v2085 = vunpack.c.l.s4 1966171168
      %v2086 = vunpack.c.0.s8 %v2085
      %v2087 = vlaneseq
      %v2088 = vshrl.u32 %v2087, 7
      %v2089 = vsub.s32 %v2086, %v2088
      %v2090 = vrot.slane %v2063, %v2089
      %v2092 = vunpack.c.l.s4 1966171168
      %v2093 = vunpack.c.0.s8 %v2092
      %v2094 = vlaneseq
      %v2095 = vshrl.u32 %v2094, 7
      %v2096 = vsub.s32 %v2093, %v2095
      %v2097 = vrot.slane %v2065, %v2096
      %v2099 = vunpack.c.l.s4 1966171168
      %v2100 = vunpack.c.0.s8 %v2099
      %v2101 = vlaneseq
      %v2102 = vshrl.u32 %v2101, 7
      %v2103 = vsub.s32 %v2100, %v2102
      %v2104 = vrot.slane %v2066, %v2103
      %v2106 = vunpack.c.l.s4 1966171168
      %v2107 = vunpack.c.0.s8 %v2106
      %v2108 = vlaneseq
      %v2109 = vshrl.u32 %v2108, 7
      %v2110 = vsub.s32 %v2107, %v2109
      %v2111 = vrot.slane %v2068, %v2110
      %v2113 = vunpack.c.l.s4 1966171168
      %v2114 = vunpack.c.0.s8 %v2113
      %v2115 = vlaneseq
      %v2116 = vshrl.u32 %v2115, 7
      %v2117 = vsub.s32 %v2114, %v2116
      %v2118 = vrot.slane %v2067, %v2117
      %v2120 = vunpack.c.l.s4 1966171168
      %v2121 = vunpack.c.0.s8 %v2120
      %v2122 = vlaneseq
      %v2123 = vshrl.u32 %v2122, 7
      %v2124 = vsub.s32 %v2121, %v2123
      %v2125 = vrot.slane %v2069, %v2124
      %v2126 = vcombine.low %v2076, %v2104
      %v2127 = vcombine.high %v2076, %v2104
      %v2128 = vcombine.low %v2083, %v2111
      %v2129 = vcombine.high %v2083, %v2111
      %v2130 = vcombine.low %v2090, %v2118
      %v2131 = vcombine.high %v2090, %v2118
      %v2132 = vcombine.low %v2097, %v2125
      %v2133 = vcombine.high %v2097, %v2125
      %v2134 = vcombine.low %v1718, %v1722
      %v2135 = vcombine.high %v1718, %v1722
      %v2136 = vcombine.low %v1719, %v1723
      %v2137 = vcombine.high %v1719, %v1723
      %v2138 = vcombine.low %v1720, %v1724
      %v2139 = vcombine.high %v1720, %v1724
      %v2140 = vcombine.low %v1721, %v1725
      %v2141 = vcombine.high %v1721, %v1725
      %v2143 = vunpack.c.l.s4 1966171168
      %v2144 = vunpack.c.0.s8 %v2143
      %v2145 = vlaneseq
      %v2146 = vshrl.u32 %v2145, 7
      %v2147 = vsub.s32 %v2144, %v2146
      %v2148 = vrot.slane %v2134, %v2147
      %v2150 = vunpack.c.l.s4 1966171168
      %v2151 = vunpack.c.0.s8 %v2150
      %v2152 = vlaneseq
      %v2153 = vshrl.u32 %v2152, 7
      %v2154 = vsub.s32 %v2151, %v2153
      %v2155 = vrot.slane %v2135, %v2154
      %v2157 = vunpack.c.l.s4 1966171168
      %v2158 = vunpack.c.0.s8 %v2157
      %v2159 = vlaneseq
      %v2160 = vshrl.u32 %v2159, 7
      %v2161 = vsub.s32 %v2158, %v2160
      %v2162 = vrot.slane %v2136, %v2161
      %v2164 = vunpack.c.l.s4 1966171168
      %v2165 = vunpack.c.0.s8 %v2164
      %v2166 = vlaneseq
      %v2167 = vshrl.u32 %v2166, 7
      %v2168 = vsub.s32 %v2165, %v2167
      %v2169 = vrot.slane %v2137, %v2168
      %v2171 = vunpack.c.l.s4 1966171168
      %v2172 = vunpack.c.0.s8 %v2171
      %v2173 = vlaneseq
      %v2174 = vshrl.u32 %v2173, 7
      %v2175 = vsub.s32 %v2172, %v2174
      %v2176 = vrot.slane %v2138, %v2175
      %v2178 = vunpack.c.l.s4 1966171168
      %v2179 = vunpack.c.0.s8 %v2178
      %v2180 = vlaneseq
      %v2181 = vshrl.u32 %v2180, 7
      %v2182 = vsub.s32 %v2179, %v2181
      %v2183 = vrot.slane %v2139, %v2182
      %v2185 = vunpack.c.l.s4 1966171168
      %v2186 = vunpack.c.0.s8 %v2185
      %v2187 = vlaneseq
      %v2188 = vshrl.u32 %v2187, 7
      %v2189 = vsub.s32 %v2186, %v2188
      %v2190 = vrot.slane %v2140, %v2189
      %v2192 = vunpack.c.l.s4 1966171168
      %v2193 = vunpack.c.0.s8 %v2192
      %v2194 = vlaneseq
      %v2195 = vshrl.u32 %v2194, 7
      %v2196 = vsub.s32 %v2193, %v2195
      %v2197 = vrot.slane %v2141, %v2196
      %v2198 = vcombine.low %v2148, %v2162
      %v2199 = vcombine.high %v2148, %v2162
      %v2200 = vcombine.low %v2155, %v2169
      %v2201 = vcombine.high %v2155, %v2169
      %v2202 = vcombine.low %v2176, %v2190
      %v2203 = vcombine.high %v2176, %v2190
      %v2204 = vcombine.low %v2183, %v2197
      %v2205 = vcombine.high %v2183, %v2197
      %v2207 = vunpack.c.l.s4 1966171168
      %v2208 = vunpack.c.0.s8 %v2207
      %v2209 = vlaneseq
      %v2210 = vshrl.u32 %v2209, 7
      %v2211 = vsub.s32 %v2208, %v2210
      %v2212 = vrot.slane %v2198, %v2211
      %v2214 = vunpack.c.l.s4 1966171168
      %v2215 = vunpack.c.0.s8 %v2214
      %v2216 = vlaneseq
      %v2217 = vshrl.u32 %v2216, 7
      %v2218 = vsub.s32 %v2215, %v2217
      %v2219 = vrot.slane %v2200, %v2218
      %v2221 = vunpack.c.l.s4 1966171168
      %v2222 = vunpack.c.0.s8 %v2221
      %v2223 = vlaneseq
      %v2224 = vshrl.u32 %v2223, 7
      %v2225 = vsub.s32 %v2222, %v2224
      %v2226 = vrot.slane %v2199, %v2225
      %v2228 = vunpack.c.l.s4 1966171168
      %v2229 = vunpack.c.0.s8 %v2228
      %v2230 = vlaneseq
      %v2231 = vshrl.u32 %v2230, 7
      %v2232 = vsub.s32 %v2229, %v2231
      %v2233 = vrot.slane %v2201, %v2232
      %v2235 = vunpack.c.l.s4 1966171168
      %v2236 = vunpack.c.0.s8 %v2235
      %v2237 = vlaneseq
      %v2238 = vshrl.u32 %v2237, 7
      %v2239 = vsub.s32 %v2236, %v2238
      %v2240 = vrot.slane %v2202, %v2239
      %v2242 = vunpack.c.l.s4 1966171168
      %v2243 = vunpack.c.0.s8 %v2242
      %v2244 = vlaneseq
      %v2245 = vshrl.u32 %v2244, 7
      %v2246 = vsub.s32 %v2243, %v2245
      %v2247 = vrot.slane %v2204, %v2246
      %v2249 = vunpack.c.l.s4 1966171168
      %v2250 = vunpack.c.0.s8 %v2249
      %v2251 = vlaneseq
      %v2252 = vshrl.u32 %v2251, 7
      %v2253 = vsub.s32 %v2250, %v2252
      %v2254 = vrot.slane %v2203, %v2253
      %v2256 = vunpack.c.l.s4 1966171168
      %v2257 = vunpack.c.0.s8 %v2256
      %v2258 = vlaneseq
      %v2259 = vshrl.u32 %v2258, 7
      %v2260 = vsub.s32 %v2257, %v2259
      %v2261 = vrot.slane %v2205, %v2260
      %v2262 = vcombine.low %v2212, %v2240
      %v2263 = vcombine.high %v2212, %v2240
      %v2264 = vcombine.low %v2219, %v2247
      %v2265 = vcombine.high %v2219, %v2247
      %v2266 = vcombine.low %v2226, %v2254
      %v2267 = vcombine.high %v2226, %v2254
      %v2268 = vcombine.low %v2233, %v2261
      %v2269 = vcombine.high %v2233, %v2261
      %v2270 = vcombine.low %v1854, %v1858
      %v2271 = vcombine.high %v1854, %v1858
      %v2272 = vcombine.low %v1855, %v1859
      %v2273 = vcombine.high %v1855, %v1859
      %v2274 = vcombine.low %v1856, %v1860
      %v2275 = vcombine.high %v1856, %v1860
      %v2276 = vcombine.low %v1857, %v1861
      %v2277 = vcombine.high %v1857, %v1861
      %v2279 = vunpack.c.l.s4 1966171168
      %v2280 = vunpack.c.0.s8 %v2279
      %v2281 = vlaneseq
      %v2282 = vshrl.u32 %v2281, 7
      %v2283 = vsub.s32 %v2280, %v2282
      %v2284 = vrot.slane %v2270, %v2283
      %v2286 = vunpack.c.l.s4 1966171168
      %v2287 = vunpack.c.0.s8 %v2286
      %v2288 = vlaneseq
      %v2289 = vshrl.u32 %v2288, 7
      %v2290 = vsub.s32 %v2287, %v2289
      %v2291 = vrot.slane %v2271, %v2290
      %v2293 = vunpack.c.l.s4 1966171168
      %v2294 = vunpack.c.0.s8 %v2293
      %v2295 = vlaneseq
      %v2296 = vshrl.u32 %v2295, 7
      %v2297 = vsub.s32 %v2294, %v2296
      %v2298 = vrot.slane %v2272, %v2297
      %v2300 = vunpack.c.l.s4 1966171168
      %v2301 = vunpack.c.0.s8 %v2300
      %v2302 = vlaneseq
      %v2303 = vshrl.u32 %v2302, 7
      %v2304 = vsub.s32 %v2301, %v2303
      %v2305 = vrot.slane %v2273, %v2304
      %v2307 = vunpack.c.l.s4 1966171168
      %v2308 = vunpack.c.0.s8 %v2307
      %v2309 = vlaneseq
      %v2310 = vshrl.u32 %v2309, 7
      %v2311 = vsub.s32 %v2308, %v2310
      %v2312 = vrot.slane %v2274, %v2311
      %v2314 = vunpack.c.l.s4 1966171168
      %v2315 = vunpack.c.0.s8 %v2314
      %v2316 = vlaneseq
      %v2317 = vshrl.u32 %v2316, 7
      %v2318 = vsub.s32 %v2315, %v2317
      %v2319 = vrot.slane %v2275, %v2318
      %v2321 = vunpack.c.l.s4 1966171168
      %v2322 = vunpack.c.0.s8 %v2321
      %v2323 = vlaneseq
      %v2324 = vshrl.u32 %v2323, 7
      %v2325 = vsub.s32 %v2322, %v2324
      %v2326 = vrot.slane %v2276, %v2325
      %v2328 = vunpack.c.l.s4 1966171168
      %v2329 = vunpack.c.0.s8 %v2328
      %v2330 = vlaneseq
      %v2331 = vshrl.u32 %v2330, 7
      %v2332 = vsub.s32 %v2329, %v2331
      %v2333 = vrot.slane %v2277, %v2332
      %v2334 = vcombine.low %v2284, %v2298
      %v2335 = vcombine.high %v2284, %v2298
      %v2336 = vcombine.low %v2291, %v2305
      %v2337 = vcombine.high %v2291, %v2305
      %v2338 = vcombine.low %v2312, %v2326
      %v2339 = vcombine.high %v2312, %v2326
      %v2340 = vcombine.low %v2319, %v2333
      %v2341 = vcombine.high %v2319, %v2333
      %v2343 = vunpack.c.l.s4 1966171168
      %v2344 = vunpack.c.0.s8 %v2343
      %v2345 = vlaneseq
      %v2346 = vshrl.u32 %v2345, 7
      %v2347 = vsub.s32 %v2344, %v2346
      %v2348 = vrot.slane %v2334, %v2347
      %v2350 = vunpack.c.l.s4 1966171168
      %v2351 = vunpack.c.0.s8 %v2350
      %v2352 = vlaneseq
      %v2353 = vshrl.u32 %v2352, 7
      %v2354 = vsub.s32 %v2351, %v2353
      %v2355 = vrot.slane %v2336, %v2354
      %v2357 = vunpack.c.l.s4 1966171168
      %v2358 = vunpack.c.0.s8 %v2357
      %v2359 = vlaneseq
      %v2360 = vshrl.u32 %v2359, 7
      %v2361 = vsub.s32 %v2358, %v2360
      %v2362 = vrot.slane %v2335, %v2361
      %v2364 = vunpack.c.l.s4 1966171168
      %v2365 = vunpack.c.0.s8 %v2364
      %v2366 = vlaneseq
      %v2367 = vshrl.u32 %v2366, 7
      %v2368 = vsub.s32 %v2365, %v2367
      %v2369 = vrot.slane %v2337, %v2368
      %v2371 = vunpack.c.l.s4 1966171168
      %v2372 = vunpack.c.0.s8 %v2371
      %v2373 = vlaneseq
      %v2374 = vshrl.u32 %v2373, 7
      %v2375 = vsub.s32 %v2372, %v2374
      %v2376 = vrot.slane %v2338, %v2375
      %v2378 = vunpack.c.l.s4 1966171168
      %v2379 = vunpack.c.0.s8 %v2378
      %v2380 = vlaneseq
      %v2381 = vshrl.u32 %v2380, 7
      %v2382 = vsub.s32 %v2379, %v2381
      %v2383 = vrot.slane %v2340, %v2382
      %v2385 = vunpack.c.l.s4 1966171168
      %v2386 = vunpack.c.0.s8 %v2385
      %v2387 = vlaneseq
      %v2388 = vshrl.u32 %v2387, 7
      %v2389 = vsub.s32 %v2386, %v2388
      %v2390 = vrot.slane %v2339, %v2389
      %v2392 = vunpack.c.l.s4 1966171168
      %v2393 = vunpack.c.0.s8 %v2392
      %v2394 = vlaneseq
      %v2395 = vshrl.u32 %v2394, 7
      %v2396 = vsub.s32 %v2393, %v2395
      %v2397 = vrot.slane %v2341, %v2396
      %v2398 = vcombine.low %v2348, %v2376
      %v2399 = vcombine.high %v2348, %v2376
      %v2400 = vcombine.low %v2355, %v2383
      %v2401 = vcombine.high %v2355, %v2383
      %v2402 = vcombine.low %v2362, %v2390
      %v2403 = vcombine.high %v2362, %v2390
      %v2404 = vcombine.low %v2369, %v2397
      %v2405 = vcombine.high %v2369, %v2397
      %v2438 = vpack.c.bf16 %v2126, %v1990
      %v2439 = vpack.c.bf16 %v2398, %v2262
      %v2440 = vpack.c.bf16 %v2130, %v1994
      %v2441 = vpack.c.bf16 %v2402, %v2266
      %v2442 = vpack.c.bf16 %v2127, %v1991
      %v2443 = vpack.c.bf16 %v2399, %v2263
      %v2444 = vpack.c.bf16 %v2131, %v1995
      %v2445 = vpack.c.bf16 %v2403, %v2267
      %v2446 = vpack.c.bf16 %v2128, %v1992
      %v2447 = vpack.c.bf16 %v2400, %v2264
      %v2448 = vpack.c.bf16 %v2132, %v1996
      %v2449 = vpack.c.bf16 %v2404, %v2268
      %v2450 = vpack.c.bf16 %v2129, %v1993
      %v2451 = vpack.c.bf16 %v2401, %v2265
      %v2452 = vpack.c.bf16 %v2133, %v1997
      %v2453 = vpack.c.bf16 %v2405, %v2269
      %v2470 = vunpack.c.l.b16 %v2438
      %v2471 = vunpack.c.h.b16 %v2438
      %v2472 = vunpack.c.l.b16 %v2439
      %v2473 = vunpack.c.h.b16 %v2439
      %v2474 = vunpack.c.l.b16 %v2440
      %v2475 = vunpack.c.h.b16 %v2440
      %v2476 = vunpack.c.l.b16 %v2441
      %v2477 = vunpack.c.h.b16 %v2441
      %v2478 = vunpack.c.l.b16 %v2442
      %v2479 = vunpack.c.h.b16 %v2442
      %v2480 = vunpack.c.l.b16 %v2443
      %v2481 = vunpack.c.h.b16 %v2443
      %v2482 = vunpack.c.l.b16 %v2444
      %v2483 = vunpack.c.h.b16 %v2444
      %v2484 = vunpack.c.l.b16 %v2445
      %v2485 = vunpack.c.h.b16 %v2445
      %v2486 = vunpack.c.l.b16 %v2446
      %v2487 = vunpack.c.h.b16 %v2446
      %v2488 = vunpack.c.l.b16 %v2447
      %v2489 = vunpack.c.h.b16 %v2447
      %v2490 = vunpack.c.l.b16 %v2448
      %v2491 = vunpack.c.h.b16 %v2448
      %v2492 = vunpack.c.l.b16 %v2449
      %v2493 = vunpack.c.h.b16 %v2449
      %v2494 = vunpack.c.l.b16 %v2450
      %v2495 = vunpack.c.h.b16 %v2450
      %v2496 = vunpack.c.l.b16 %v2451
      %v2497 = vunpack.c.h.b16 %v2451
      %v2498 = vunpack.c.l.b16 %v2452
      %v2499 = vunpack.c.h.b16 %v2452
      %v2500 = vunpack.c.l.b16 %v2453
      %v2501 = vunpack.c.h.b16 %v2453
      %v2502 = vpack.c.b16 %v2470, %v2470
      %v2503 = vpack.c.b16 %v2471, %v2471
      %v2504 = vpack.c.b16 %v2472, %v2472
      %v2505 = vpack.c.b16 %v2473, %v2473
      %v2506 = vpack.c.b16 %v2474, %v2474
      %v2507 = vpack.c.b16 %v2475, %v2475
      %v2508 = vpack.c.b16 %v2476, %v2476
      %v2509 = vpack.c.b16 %v2477, %v2477
      %v2510 = vpack.c.b16 %v2478, %v2478
      %v2511 = vpack.c.b16 %v2479, %v2479
      %v2512 = vpack.c.b16 %v2480, %v2480
      %v2513 = vpack.c.b16 %v2481, %v2481
      %v2514 = vpack.c.b16 %v2482, %v2482
      %v2515 = vpack.c.b16 %v2483, %v2483
      %v2516 = vpack.c.b16 %v2484, %v2484
      %v2517 = vpack.c.b16 %v2485, %v2485
      %v2518 = vpack.c.b16 %v2486, %v2486
      %v2519 = vpack.c.b16 %v2487, %v2487
      %v2520 = vpack.c.b16 %v2488, %v2488
      %v2521 = vpack.c.b16 %v2489, %v2489
      %v2522 = vpack.c.b16 %v2490, %v2490
      %v2523 = vpack.c.b16 %v2491, %v2491
      %v2524 = vpack.c.b16 %v2492, %v2492
      %v2525 = vpack.c.b16 %v2493, %v2493
      %v2526 = vpack.c.b16 %v2494, %v2494
      %v2527 = vpack.c.b16 %v2495, %v2495
      %v2528 = vpack.c.b16 %v2496, %v2496
      %v2529 = vpack.c.b16 %v2497, %v2497
      %v2530 = vpack.c.b16 %v2498, %v2498
      %v2531 = vpack.c.b16 %v2499, %v2499
      %v2532 = vpack.c.b16 %v2500, %v2500
      %v2533 = vpack.c.b16 %v2501, %v2501
      %vm2534 = vsmask.f32 4368
      %vm2535 = vmor %vm342, %vm2534
      %v2537 = vshrl.u32 %v2502, 16
      %v2539 = vrot.slane %v2537, 7
      %v2540 = vshll.u32 %v2502, 16
      %v2542 = vor.u32 %v2539, %v2540
      %v2543 = vrot.slane %v2539, 4
      %v2545 = vshrl.u32 %v2503, 16
      %v2547 = vrot.slane %v2545, 7
      %v2548 = vshll.u32 %v2503, 16
      %v2550 = vor.u32 %v2547, %v2548
      %v2551 = vsel %vm2535, %v2543, %v2550
      %v2552 = vrot.slane %v2547, 4
      %v2554 = vshrl.u32 %v2504, 16
      %v2556 = vrot.slane %v2554, 7
      %v2557 = vshll.u32 %v2504, 16
      %v2559 = vor.u32 %v2556, %v2557
      %v2560 = vrot.slane %v2556, 4
      %v2562 = vshrl.u32 %v2505, 16
      %v2564 = vrot.slane %v2562, 7
      %v2565 = vshll.u32 %v2505, 16
      %v2567 = vor.u32 %v2564, %v2565
      %v2568 = vsel %vm2535, %v2560, %v2567
      %v2569 = vrot.slane %v2564, 4
      %v2571 = vshrl.u32 %v2506, 16
      %v2573 = vrot.slane %v2571, 7
      %v2574 = vshll.u32 %v2506, 16
      %v2576 = vor.u32 %v2573, %v2574
      %v2577 = vrot.slane %v2573, 4
      %v2579 = vshrl.u32 %v2507, 16
      %v2581 = vrot.slane %v2579, 7
      %v2582 = vshll.u32 %v2507, 16
      %v2584 = vor.u32 %v2581, %v2582
      %v2585 = vsel %vm2535, %v2577, %v2584
      %v2586 = vrot.slane %v2581, 4
      %v2588 = vshrl.u32 %v2508, 16
      %v2590 = vrot.slane %v2588, 7
      %v2591 = vshll.u32 %v2508, 16
      %v2593 = vor.u32 %v2590, %v2591
      %v2594 = vrot.slane %v2590, 4
      %v2596 = vshrl.u32 %v2509, 16
      %v2598 = vrot.slane %v2596, 7
      %v2599 = vshll.u32 %v2509, 16
      %v2601 = vor.u32 %v2598, %v2599
      %v2602 = vsel %vm2535, %v2594, %v2601
      %v2603 = vrot.slane %v2598, 4
      %v2605 = vshrl.u32 %v2510, 16
      %v2607 = vrot.slane %v2605, 7
      %v2608 = vshll.u32 %v2510, 16
      %v2610 = vor.u32 %v2607, %v2608
      %v2611 = vrot.slane %v2607, 4
      %v2613 = vshrl.u32 %v2511, 16
      %v2615 = vrot.slane %v2613, 7
      %v2616 = vshll.u32 %v2511, 16
      %v2618 = vor.u32 %v2615, %v2616
      %v2619 = vsel %vm2535, %v2611, %v2618
      %v2620 = vrot.slane %v2615, 4
      %v2622 = vshrl.u32 %v2512, 16
      %v2624 = vrot.slane %v2622, 7
      %v2625 = vshll.u32 %v2512, 16
      %v2627 = vor.u32 %v2624, %v2625
      %v2628 = vrot.slane %v2624, 4
      %v2630 = vshrl.u32 %v2513, 16
      %v2632 = vrot.slane %v2630, 7
      %v2633 = vshll.u32 %v2513, 16
      %v2635 = vor.u32 %v2632, %v2633
      %v2636 = vsel %vm2535, %v2628, %v2635
      %v2637 = vrot.slane %v2632, 4
      %v2639 = vshrl.u32 %v2514, 16
      %v2641 = vrot.slane %v2639, 7
      %v2642 = vshll.u32 %v2514, 16
      %v2644 = vor.u32 %v2641, %v2642
      %v2645 = vrot.slane %v2641, 4
      %v2647 = vshrl.u32 %v2515, 16
      %v2649 = vrot.slane %v2647, 7
      %v2650 = vshll.u32 %v2515, 16
      %v2652 = vor.u32 %v2649, %v2650
      %v2653 = vsel %vm2535, %v2645, %v2652
      %v2654 = vrot.slane %v2649, 4
      %v2656 = vshrl.u32 %v2516, 16
      %v2658 = vrot.slane %v2656, 7
      %v2659 = vshll.u32 %v2516, 16
      %v2661 = vor.u32 %v2658, %v2659
      %v2662 = vrot.slane %v2658, 4
      %v2664 = vshrl.u32 %v2517, 16
      %v2666 = vrot.slane %v2664, 7
      %v2667 = vshll.u32 %v2517, 16
      %v2669 = vor.u32 %v2666, %v2667
      %v2670 = vsel %vm2535, %v2662, %v2669
      %v2671 = vrot.slane %v2666, 4
      %v2673 = vshrl.u32 %v2518, 16
      %v2675 = vrot.slane %v2673, 7
      %v2676 = vshll.u32 %v2518, 16
      %v2678 = vor.u32 %v2675, %v2676
      %v2679 = vrot.slane %v2675, 4
      %v2681 = vshrl.u32 %v2519, 16
      %v2683 = vrot.slane %v2681, 7
      %v2684 = vshll.u32 %v2519, 16
      %v2686 = vor.u32 %v2683, %v2684
      %v2687 = vsel %vm2535, %v2679, %v2686
      %v2688 = vrot.slane %v2683, 4
      %v2690 = vshrl.u32 %v2520, 16
      %v2692 = vrot.slane %v2690, 7
      %v2693 = vshll.u32 %v2520, 16
      %v2695 = vor.u32 %v2692, %v2693
      %v2696 = vrot.slane %v2692, 4
      %v2698 = vshrl.u32 %v2521, 16
      %v2700 = vrot.slane %v2698, 7
      %v2701 = vshll.u32 %v2521, 16
      %v2703 = vor.u32 %v2700, %v2701
      %v2704 = vsel %vm2535, %v2696, %v2703
      %v2705 = vrot.slane %v2700, 4
      %v2707 = vshrl.u32 %v2522, 16
      %v2709 = vrot.slane %v2707, 7
      %v2710 = vshll.u32 %v2522, 16
      %v2712 = vor.u32 %v2709, %v2710
      %v2713 = vrot.slane %v2709, 4
      %v2715 = vshrl.u32 %v2523, 16
      %v2717 = vrot.slane %v2715, 7
      %v2718 = vshll.u32 %v2523, 16
      %v2720 = vor.u32 %v2717, %v2718
      %v2721 = vsel %vm2535, %v2713, %v2720
      %v2722 = vrot.slane %v2717, 4
      %v2724 = vshrl.u32 %v2524, 16
      %v2726 = vrot.slane %v2724, 7
      %v2727 = vshll.u32 %v2524, 16
      %v2729 = vor.u32 %v2726, %v2727
      %v2730 = vrot.slane %v2726, 4
      %v2732 = vshrl.u32 %v2525, 16
      %v2734 = vrot.slane %v2732, 7
      %v2735 = vshll.u32 %v2525, 16
      %v2737 = vor.u32 %v2734, %v2735
      %v2738 = vsel %vm2535, %v2730, %v2737
      %v2739 = vrot.slane %v2734, 4
      %v2741 = vshrl.u32 %v2526, 16
      %v2743 = vrot.slane %v2741, 7
      %v2744 = vshll.u32 %v2526, 16
      %v2746 = vor.u32 %v2743, %v2744
      %v2747 = vrot.slane %v2743, 4
      %v2749 = vshrl.u32 %v2527, 16
      %v2751 = vrot.slane %v2749, 7
      %v2752 = vshll.u32 %v2527, 16
      %v2754 = vor.u32 %v2751, %v2752
      %v2755 = vsel %vm2535, %v2747, %v2754
      %v2756 = vrot.slane %v2751, 4
      %v2758 = vshrl.u32 %v2528, 16
      %v2760 = vrot.slane %v2758, 7
      %v2761 = vshll.u32 %v2528, 16
      %v2763 = vor.u32 %v2760, %v2761
      %v2764 = vrot.slane %v2760, 4
      %v2766 = vshrl.u32 %v2529, 16
      %v2768 = vrot.slane %v2766, 7
      %v2769 = vshll.u32 %v2529, 16
      %v2771 = vor.u32 %v2768, %v2769
      %v2772 = vsel %vm2535, %v2764, %v2771
      %v2773 = vrot.slane %v2768, 4
      %v2775 = vshrl.u32 %v2530, 16
      %v2777 = vrot.slane %v2775, 7
      %v2778 = vshll.u32 %v2530, 16
      %v2780 = vor.u32 %v2777, %v2778
      %v2781 = vrot.slane %v2777, 4
      %v2783 = vshrl.u32 %v2531, 16
      %v2785 = vrot.slane %v2783, 7
      %v2786 = vshll.u32 %v2531, 16
      %v2788 = vor.u32 %v2785, %v2786
      %v2789 = vsel %vm2535, %v2781, %v2788
      %v2790 = vrot.slane %v2785, 4
      %v2792 = vshrl.u32 %v2532, 16
      %v2794 = vrot.slane %v2792, 7
      %v2795 = vshll.u32 %v2532, 16
      %v2797 = vor.u32 %v2794, %v2795
      %v2798 = vrot.slane %v2794, 4
      %v2800 = vshrl.u32 %v2533, 16
      %v2802 = vrot.slane %v2800, 7
      %v2803 = vshll.u32 %v2533, 16
      %v2805 = vor.u32 %v2802, %v2803
      %v2806 = vsel %vm2535, %v2798, %v2805
      %v2807 = vrot.slane %v2802, 4
      %s2856 = scalar_lea.vmem [#allocation2], 12
      %vm2857 = vcmask 1043456
      %vm2858 = vmand %vm2857, %vm398
      %v2859 = vld [vmem:[%s2856] sm:$0xf]
      %v2860 = vsel %vm2858, %v2542, %v2859
      %2861 = vst [vmem:[%s2856] sm:$0xf] %v2860
      %2862 = vst [vmem:[%s2856 + $0x4] sm:$0xf] %v2551
      %v2863 = vld [vmem:[%s2856 + $0x8] sm:$0x1]
      %v2864 = vsel %vm343, %v2552, %v2863
      %2865 = vst [vmem:[%s2856 + $0x8] sm:$0x1] %v2864
      %v2866 = vld [vmem:[%s2856 + $0xc] sm:$0xf]
      %v2867 = vsel %vm2858, %v2559, %v2866
      %2868 = vst [vmem:[%s2856 + $0xc] sm:$0xf] %v2867
      %2869 = vst [vmem:[%s2856 + $0x10] sm:$0xf] %v2568
      %v2870 = vld [vmem:[%s2856 + $0x14] sm:$0x1]
      %v2871 = vsel %vm343, %v2569, %v2870
      %2872 = vst [vmem:[%s2856 + $0x14] sm:$0x1] %v2871
      %v2873 = vld [vmem:[%s2856 + $0x18] sm:$0xf]
      %v2874 = vsel %vm2858, %v2576, %v2873
      %2875 = vst [vmem:[%s2856 + $0x18] sm:$0xf] %v2874
      %2876 = vst [vmem:[%s2856 + $0x1c] sm:$0xf] %v2585
      %v2877 = vld [vmem:[%s2856 + $0x20] sm:$0x1]
      %v2878 = vsel %vm343, %v2586, %v2877
      %2879 = vst [vmem:[%s2856 + $0x20] sm:$0x1] %v2878
      %v2880 = vld [vmem:[%s2856 + $0x24] sm:$0xf]
      %v2881 = vsel %vm2858, %v2593, %v2880
      %2882 = vst [vmem:[%s2856 + $0x24] sm:$0xf] %v2881
      %2883 = vst [vmem:[%s2856 + $0x28] sm:$0xf] %v2602
      %v2884 = vld [vmem:[%s2856 + $0x2c] sm:$0x1]
      %v2885 = vsel %vm343, %v2603, %v2884
      %2886 = vst [vmem:[%s2856 + $0x2c] sm:$0x1] %v2885
      %v2887 = vld [vmem:[%s2856 + $0x30] sm:$0xf]
      %v2888 = vsel %vm2858, %v2610, %v2887
      %2889 = vst [vmem:[%s2856 + $0x30] sm:$0xf] %v2888
      %2890 = vst [vmem:[%s2856 + $0x34] sm:$0xf] %v2619
      %v2891 = vld [vmem:[%s2856 + $0x38] sm:$0x1]
      %v2892 = vsel %vm343, %v2620, %v2891
      %2893 = vst [vmem:[%s2856 + $0x38] sm:$0x1] %v2892
      %v2894 = vld [vmem:[%s2856 + $0x3c] sm:$0xf]
      %v2895 = vsel %vm2858, %v2627, %v2894
      %2896 = vst [vmem:[%s2856 + $0x3c] sm:$0xf] %v2895
      %2897 = vst [vmem:[%s2856 + $0x40] sm:$0xf] %v2636
      %v2898 = vld [vmem:[%s2856 + $0x44] sm:$0x1]
      %v2899 = vsel %vm343, %v2637, %v2898
      %2900 = vst [vmem:[%s2856 + $0x44] sm:$0x1] %v2899
      %v2901 = vld [vmem:[%s2856 + $0x48] sm:$0xf]
      %v2902 = vsel %vm2858, %v2644, %v2901
      %2903 = vst [vmem:[%s2856 + $0x48] sm:$0xf] %v2902
      %2904 = vst [vmem:[%s2856 + $0x4c] sm:$0xf] %v2653
      %v2905 = vld [vmem:[%s2856 + $0x50] sm:$0x1]
      %v2906 = vsel %vm343, %v2654, %v2905
      %2907 = vst [vmem:[%s2856 + $0x50] sm:$0x1] %v2906
      %v2908 = vld [vmem:[%s2856 + $0x54] sm:$0xf]
      %v2909 = vsel %vm2858, %v2661, %v2908
      %2910 = vst [vmem:[%s2856 + $0x54] sm:$0xf] %v2909
      %2911 = vst [vmem:[%s2856 + $0x58] sm:$0xf] %v2670
      %v2912 = vld [vmem:[%s2856 + $0x5c] sm:$0x1]
      %v2913 = vsel %vm343, %v2671, %v2912
      %2914 = vst [vmem:[%s2856 + $0x5c] sm:$0x1] %v2913
      %v2915 = vld [vmem:[%s2856 + $0x60] sm:$0xf]
      %v2916 = vsel %vm2858, %v2678, %v2915
      %2917 = vst [vmem:[%s2856 + $0x60] sm:$0xf] %v2916
      %2918 = vst [vmem:[%s2856 + $0x64] sm:$0xf] %v2687
      %v2919 = vld [vmem:[%s2856 + $0x68] sm:$0x1]
      %v2920 = vsel %vm343, %v2688, %v2919
      %2921 = vst [vmem:[%s2856 + $0x68] sm:$0x1] %v2920
      %v2922 = vld [vmem:[%s2856 + $0x6c] sm:$0xf]
      %v2923 = vsel %vm2858, %v2695, %v2922
      %2924 = vst [vmem:[%s2856 + $0x6c] sm:$0xf] %v2923
      %2925 = vst [vmem:[%s2856 + $0x70] sm:$0xf] %v2704
      %v2926 = vld [vmem:[%s2856 + $0x74] sm:$0x1]
      %v2927 = vsel %vm343, %v2705, %v2926
      %2928 = vst [vmem:[%s2856 + $0x74] sm:$0x1] %v2927
      %v2929 = vld [vmem:[%s2856 + $0x78] sm:$0xf]
      %v2930 = vsel %vm2858, %v2712, %v2929
      %2931 = vst [vmem:[%s2856 + $0x78] sm:$0xf] %v2930
      %2932 = vst [vmem:[%s2856 + $0x7c] sm:$0xf] %v2721
      %v2933 = vld [vmem:[%s2856 + $0x80] sm:$0x1]
      %v2934 = vsel %vm343, %v2722, %v2933
      %2935 = vst [vmem:[%s2856 + $0x80] sm:$0x1] %v2934
      %v2936 = vld [vmem:[%s2856 + $0x84] sm:$0xf]
      %v2937 = vsel %vm2858, %v2729, %v2936
      %2938 = vst [vmem:[%s2856 + $0x84] sm:$0xf] %v2937
      %2939 = vst [vmem:[%s2856 + $0x88] sm:$0xf] %v2738
      %v2940 = vld [vmem:[%s2856 + $0x8c] sm:$0x1]
      %v2941 = vsel %vm343, %v2739, %v2940
      %2942 = vst [vmem:[%s2856 + $0x8c] sm:$0x1] %v2941
      %v2943 = vld [vmem:[%s2856 + $0x90] sm:$0xf]
      %v2944 = vsel %vm2858, %v2746, %v2943
      %2945 = vst [vmem:[%s2856 + $0x90] sm:$0xf] %v2944
      %2946 = vst [vmem:[%s2856 + $0x94] sm:$0xf] %v2755
      %v2947 = vld [vmem:[%s2856 + $0x98] sm:$0x1]
      %v2948 = vsel %vm343, %v2756, %v2947
      %2949 = vst [vmem:[%s2856 + $0x98] sm:$0x1] %v2948
      %v2950 = vld [vmem:[%s2856 + $0x9c] sm:$0xf]
      %v2951 = vsel %vm2858, %v2763, %v2950
      %2952 = vst [vmem:[%s2856 + $0x9c] sm:$0xf] %v2951
      %2953 = vst [vmem:[%s2856 + $0xa0] sm:$0xf] %v2772
      %v2954 = vld [vmem:[%s2856 + $0xa4] sm:$0x1]
      %v2955 = vsel %vm343, %v2773, %v2954
      %2956 = vst [vmem:[%s2856 + $0xa4] sm:$0x1] %v2955
      %v2957 = vld [vmem:[%s2856 + $0xa8] sm:$0xf]
      %v2958 = vsel %vm2858, %v2780, %v2957
      %2959 = vst [vmem:[%s2856 + $0xa8] sm:$0xf] %v2958
      %2960 = vst [vmem:[%s2856 + $0xac] sm:$0xf] %v2789
      %v2961 = vld [vmem:[%s2856 + $0xb0] sm:$0x1]
      %v2962 = vsel %vm343, %v2790, %v2961
      %2963 = vst [vmem:[%s2856 + $0xb0] sm:$0x1] %v2962
      %v2964 = vld [vmem:[%s2856 + $0xb4] sm:$0xf]
      %v2965 = vsel %vm2858, %v2797, %v2964
      %2966 = vst [vmem:[%s2856 + $0xb4] sm:$0xf] %v2965
      %2967 = vst [vmem:[%s2856 + $0xb8] sm:$0xf] %v2806
      %v2968 = vld [vmem:[%s2856 + $0xbc] sm:$0x1]
      %v2969 = vsel %vm343, %v2807, %v2968
      %2970 = vst [vmem:[%s2856 + $0xbc] sm:$0x1] %v2969
      %v2971 = vld [vmem:[#allocation2] sm:$0xf]
      %v2972 = vld [vmem:[#allocation2 + $0x4] sm:$0xf]
      %v2973 = vld [vmem:[#allocation2 + $0xc] sm:$0xf]
      %v2974 = vld [vmem:[#allocation2 + $0x10] sm:$0xf]
      %v2975 = vld [vmem:[#allocation2 + $0x18] sm:$0xf]
      %v2976 = vld [vmem:[#allocation2 + $0x1c] sm:$0xf]
      %v2977 = vld [vmem:[#allocation2 + $0x24] sm:$0xf]
      %v2978 = vld [vmem:[#allocation2 + $0x28] sm:$0xf]
      %v2979 = vld [vmem:[#allocation2 + $0x30] sm:$0xf]
      %v2980 = vld [vmem:[#allocation2 + $0x34] sm:$0xf]
      %v2981 = vld [vmem:[#allocation2 + $0x3c] sm:$0xf]
      %v2982 = vld [vmem:[#allocation2 + $0x40] sm:$0xf]
      %v2983 = vld [vmem:[#allocation2 + $0x48] sm:$0xf]
      %v2984 = vld [vmem:[#allocation2 + $0x4c] sm:$0xf]
      %v2985 = vld [vmem:[#allocation2 + $0x54] sm:$0xf]
      %v2986 = vld [vmem:[#allocation2 + $0x58] sm:$0xf]
      %v2987 = vld [vmem:[#allocation2 + $0x60] sm:$0xf]
      %v2988 = vld [vmem:[#allocation2 + $0x64] sm:$0xf]
      %v2989 = vld [vmem:[#allocation2 + $0x6c] sm:$0xf]
      %v2990 = vld [vmem:[#allocation2 + $0x70] sm:$0xf]
      %v2991 = vld [vmem:[#allocation2 + $0x78] sm:$0xf]
      %v2992 = vld [vmem:[#allocation2 + $0x7c] sm:$0xf]
      %v2993 = vld [vmem:[#allocation2 + $0x84] sm:$0xf]
      %v2994 = vld [vmem:[#allocation2 + $0x88] sm:$0xf]
      %v2995 = vld [vmem:[#allocation2 + $0x90] sm:$0xf]
      %v2996 = vld [vmem:[#allocation2 + $0x94] sm:$0xf]
      %v2997 = vld [vmem:[#allocation2 + $0x9c] sm:$0xf]
      %v2998 = vld [vmem:[#allocation2 + $0xa0] sm:$0xf]
      %v2999 = vld [vmem:[#allocation2 + $0xa8] sm:$0xf]
      %v3000 = vld [vmem:[#allocation2 + $0xac] sm:$0xf]
      %v3001 = vld [vmem:[#allocation2 + $0xb4] sm:$0xf]
      %v3002 = vld [vmem:[#allocation2 + $0xb8] sm:$0xf]
      %v3003 = vld [vmem:[%s3] sm:$0xf]
      %v3004 = vld [vmem:[%s3 + $0x4] sm:$0xf]
      %v3005 = vld [vmem:[%s3 + $0x8] sm:$0xf]
      %v3006 = vld [vmem:[%s3 + $0xc] sm:$0xf]
      %v3007 = vld [vmem:[%s3 + $0x10] sm:$0xf]
      %v3008 = vld [vmem:[%s3 + $0x14] sm:$0xf]
      %v3009 = vld [vmem:[%s3 + $0x18] sm:$0xf]
      %v3010 = vld [vmem:[%s3 + $0x1c] sm:$0xf]
      %v3011 = vld [vmem:[%s3 + $0x20] sm:$0xf]
      %v3012 = vld [vmem:[%s3 + $0x24] sm:$0xf]
      %v3013 = vld [vmem:[%s3 + $0x28] sm:$0xf]
      %v3014 = vld [vmem:[%s3 + $0x2c] sm:$0xf]
      %v3015 = vld [vmem:[%s3 + $0x30] sm:$0xf]
      %v3016 = vld [vmem:[%s3 + $0x34] sm:$0xf]
      %v3017 = vld [vmem:[%s3 + $0x38] sm:$0xf]
      %v3018 = vld [vmem:[%s3 + $0x3c] sm:$0xf]
      %v3019 = vld [vmem:[#allocation2 + $0x8] sm:$0x1]
      %v3020 = vld [vmem:[#allocation2 + $0x14] sm:$0x1]
      %v3021 = vld [vmem:[#allocation2 + $0x20] sm:$0x1]
      %v3022 = vld [vmem:[#allocation2 + $0x2c] sm:$0x1]
      %v3023 = vld [vmem:[#allocation2 + $0x38] sm:$0x1]
      %v3024 = vld [vmem:[#allocation2 + $0x44] sm:$0x1]
      %v3025 = vld [vmem:[#allocation2 + $0x50] sm:$0x1]
      %v3026 = vld [vmem:[#allocation2 + $0x5c] sm:$0x1]
      %v3027 = vld [vmem:[#allocation2 + $0x68] sm:$0x1]
      %v3028 = vld [vmem:[#allocation2 + $0x74] sm:$0x1]
      %v3029 = vld [vmem:[#allocation2 + $0x80] sm:$0x1]
      %v3030 = vld [vmem:[#allocation2 + $0x8c] sm:$0x1]
      %v3031 = vld [vmem:[#allocation2 + $0x98] sm:$0x1]
      %v3032 = vld [vmem:[#allocation2 + $0xa4] sm:$0x1]
      %v3033 = vld [vmem:[#allocation2 + $0xb0] sm:$0x1]
      %v3034 = vld [vmem:[#allocation2 + $0xbc] sm:$0x1]
      %vm3035 = vsmask.f32 3328
      %vm3036 = vsmask.f32 7440
      %vm3037 = vmor %vm3035, %vm3036
      %v3039 = vshrl.u32 %v2971, 16
      %v3041 = vrot.slane %v3039, 4
      %v3042 = vshll.u32 %v2971, 16
      %v3044 = vrot.slane %v3042, 5
      %v3045 = vor.u32 %v3041, %v3044
      %v3046 = vrot.slane %v3045, 4
      %v3048 = vshll.u32 %v2972, 16
      %v3050 = vrot.slane %v3048, 5
      %v3051 = vsel %vm3037, %v3046, %v3050
      %v3052 = vshrl.u32 %v2972, 16
      %v3054 = vrot.slane %v3052, 4
      %v3055 = vor.u32 %v3054, %v3050
      %v3056 = vrot.slane %v3055, 4
      %v3058 = vshll.u32 %v3019, 16
      %v3060 = vrot.slane %v3058, 5
      %v3061 = vsel %vm3037, %v3056, %v3060
      %v3063 = vshrl.u32 %v2973, 16
      %v3065 = vrot.slane %v3063, 4
      %v3066 = vshll.u32 %v2973, 16
      %v3068 = vrot.slane %v3066, 5
      %v3069 = vor.u32 %v3065, %v3068
      %v3070 = vrot.slane %v3069, 4
      %v3072 = vshll.u32 %v2974, 16
      %v3074 = vrot.slane %v3072, 5
      %v3075 = vsel %vm3037, %v3070, %v3074
      %v3076 = vshrl.u32 %v2974, 16
      %v3078 = vrot.slane %v3076, 4
      %v3079 = vor.u32 %v3078, %v3074
      %v3080 = vrot.slane %v3079, 4
      %v3082 = vshll.u32 %v3020, 16
      %v3084 = vrot.slane %v3082, 5
      %v3085 = vsel %vm3037, %v3080, %v3084
      %v3087 = vshrl.u32 %v2975, 16
      %v3089 = vrot.slane %v3087, 4
      %v3090 = vshll.u32 %v2975, 16
      %v3092 = vrot.slane %v3090, 5
      %v3093 = vor.u32 %v3089, %v3092
      %v3094 = vrot.slane %v3093, 4
      %v3096 = vshll.u32 %v2976, 16
      %v3098 = vrot.slane %v3096, 5
      %v3099 = vsel %vm3037, %v3094, %v3098
      %v3100 = vshrl.u32 %v2976, 16
      %v3102 = vrot.slane %v3100, 4
      %v3103 = vor.u32 %v3102, %v3098
      %v3104 = vrot.slane %v3103, 4
      %v3106 = vshll.u32 %v3021, 16
      %v3108 = vrot.slane %v3106, 5
      %v3109 = vsel %vm3037, %v3104, %v3108
      %v3111 = vshrl.u32 %v2977, 16
      %v3113 = vrot.slane %v3111, 4
      %v3114 = vshll.u32 %v2977, 16
      %v3116 = vrot.slane %v3114, 5
      %v3117 = vor.u32 %v3113, %v3116
      %v3118 = vrot.slane %v3117, 4
      %v3120 = vshll.u32 %v2978, 16
      %v3122 = vrot.slane %v3120, 5
      %v3123 = vsel %vm3037, %v3118, %v3122
      %v3124 = vshrl.u32 %v2978, 16
      %v3126 = vrot.slane %v3124, 4
      %v3127 = vor.u32 %v3126, %v3122
      %v3128 = vrot.slane %v3127, 4
      %v3130 = vshll.u32 %v3022, 16
      %v3132 = vrot.slane %v3130, 5
      %v3133 = vsel %vm3037, %v3128, %v3132
      %v3135 = vshrl.u32 %v2979, 16
      %v3137 = vrot.slane %v3135, 4
      %v3138 = vshll.u32 %v2979, 16
      %v3140 = vrot.slane %v3138, 5
      %v3141 = vor.u32 %v3137, %v3140
      %v3142 = vrot.slane %v3141, 4
      %v3144 = vshll.u32 %v2980, 16
      %v3146 = vrot.slane %v3144, 5
      %v3147 = vsel %vm3037, %v3142, %v3146
      %v3148 = vshrl.u32 %v2980, 16
      %v3150 = vrot.slane %v3148, 4
      %v3151 = vor.u32 %v3150, %v3146
      %v3152 = vrot.slane %v3151, 4
      %v3154 = vshll.u32 %v3023, 16
      %v3156 = vrot.slane %v3154, 5
      %v3157 = vsel %vm3037, %v3152, %v3156
      %v3159 = vshrl.u32 %v2981, 16
      %v3161 = vrot.slane %v3159, 4
      %v3162 = vshll.u32 %v2981, 16
      %v3164 = vrot.slane %v3162, 5
      %v3165 = vor.u32 %v3161, %v3164
      %v3166 = vrot.slane %v3165, 4
      %v3168 = vshll.u32 %v2982, 16
      %v3170 = vrot.slane %v3168, 5
      %v3171 = vsel %vm3037, %v3166, %v3170
      %v3172 = vshrl.u32 %v2982, 16
      %v3174 = vrot.slane %v3172, 4
      %v3175 = vor.u32 %v3174, %v3170
      %v3176 = vrot.slane %v3175, 4
      %v3178 = vshll.u32 %v3024, 16
      %v3180 = vrot.slane %v3178, 5
      %v3181 = vsel %vm3037, %v3176, %v3180
      %v3183 = vshrl.u32 %v2983, 16
      %v3185 = vrot.slane %v3183, 4
      %v3186 = vshll.u32 %v2983, 16
      %v3188 = vrot.slane %v3186, 5
      %v3189 = vor.u32 %v3185, %v3188
      %v3190 = vrot.slane %v3189, 4
      %v3192 = vshll.u32 %v2984, 16
      %v3194 = vrot.slane %v3192, 5
      %v3195 = vsel %vm3037, %v3190, %v3194
      %v3196 = vshrl.u32 %v2984, 16
      %v3198 = vrot.slane %v3196, 4
      %v3199 = vor.u32 %v3198, %v3194
      %v3200 = vrot.slane %v3199, 4
      %v3202 = vshll.u32 %v3025, 16
      %v3204 = vrot.slane %v3202, 5
      %v3205 = vsel %vm3037, %v3200, %v3204
      %v3207 = vshrl.u32 %v2985, 16
      %v3209 = vrot.slane %v3207, 4
      %v3210 = vshll.u32 %v2985, 16
      %v3212 = vrot.slane %v3210, 5
      %v3213 = vor.u32 %v3209, %v3212
      %v3214 = vrot.slane %v3213, 4
      %v3216 = vshll.u32 %v2986, 16
      %v3218 = vrot.slane %v3216, 5
      %v3219 = vsel %vm3037, %v3214, %v3218
      %v3220 = vshrl.u32 %v2986, 16
      %v3222 = vrot.slane %v3220, 4
      %v3223 = vor.u32 %v3222, %v3218
      %v3224 = vrot.slane %v3223, 4
      %v3226 = vshll.u32 %v3026, 16
      %v3228 = vrot.slane %v3226, 5
      %v3229 = vsel %vm3037, %v3224, %v3228
      %v3231 = vshrl.u32 %v2987, 16
      %v3233 = vrot.slane %v3231, 4
      %v3234 = vshll.u32 %v2987, 16
      %v3236 = vrot.slane %v3234, 5
      %v3237 = vor.u32 %v3233, %v3236
      %v3238 = vrot.slane %v3237, 4
      %v3240 = vshll.u32 %v2988, 16
      %v3242 = vrot.slane %v3240, 5
      %v3243 = vsel %vm3037, %v3238, %v3242
      %v3244 = vshrl.u32 %v2988, 16
      %v3246 = vrot.slane %v3244, 4
      %v3247 = vor.u32 %v3246, %v3242
      %v3248 = vrot.slane %v3247, 4
      %v3250 = vshll.u32 %v3027, 16
      %v3252 = vrot.slane %v3250, 5
      %v3253 = vsel %vm3037, %v3248, %v3252
      %v3255 = vshrl.u32 %v2989, 16
      %v3257 = vrot.slane %v3255, 4
      %v3258 = vshll.u32 %v2989, 16
      %v3260 = vrot.slane %v3258, 5
      %v3261 = vor.u32 %v3257, %v3260
      %v3262 = vrot.slane %v3261, 4
      %v3264 = vshll.u32 %v2990, 16
      %v3266 = vrot.slane %v3264, 5
      %v3267 = vsel %vm3037, %v3262, %v3266
      %v3268 = vshrl.u32 %v2990, 16
      %v3270 = vrot.slane %v3268, 4
      %v3271 = vor.u32 %v3270, %v3266
      %v3272 = vrot.slane %v3271, 4
      %v3274 = vshll.u32 %v3028, 16
      %v3276 = vrot.slane %v3274, 5
      %v3277 = vsel %vm3037, %v3272, %v3276
      %v3279 = vshrl.u32 %v2991, 16
      %v3281 = vrot.slane %v3279, 4
      %v3282 = vshll.u32 %v2991, 16
      %v3284 = vrot.slane %v3282, 5
      %v3285 = vor.u32 %v3281, %v3284
      %v3286 = vrot.slane %v3285, 4
      %v3288 = vshll.u32 %v2992, 16
      %v3290 = vrot.slane %v3288, 5
      %v3291 = vsel %vm3037, %v3286, %v3290
      %v3292 = vshrl.u32 %v2992, 16
      %v3294 = vrot.slane %v3292, 4
      %v3295 = vor.u32 %v3294, %v3290
      %v3296 = vrot.slane %v3295, 4
      %v3298 = vshll.u32 %v3029, 16
      %v3300 = vrot.slane %v3298, 5
      %v3301 = vsel %vm3037, %v3296, %v3300
      %v3303 = vshrl.u32 %v2993, 16
      %v3305 = vrot.slane %v3303, 4
      %v3306 = vshll.u32 %v2993, 16
      %v3308 = vrot.slane %v3306, 5
      %v3309 = vor.u32 %v3305, %v3308
      %v3310 = vrot.slane %v3309, 4
      %v3312 = vshll.u32 %v2994, 16
      %v3314 = vrot.slane %v3312, 5
      %v3315 = vsel %vm3037, %v3310, %v3314
      %v3316 = vshrl.u32 %v2994, 16
      %v3318 = vrot.slane %v3316, 4
      %v3319 = vor.u32 %v3318, %v3314
      %v3320 = vrot.slane %v3319, 4
      %v3322 = vshll.u32 %v3030, 16
      %v3324 = vrot.slane %v3322, 5
      %v3325 = vsel %vm3037, %v3320, %v3324
      %v3327 = vshrl.u32 %v2995, 16
      %v3329 = vrot.slane %v3327, 4
      %v3330 = vshll.u32 %v2995, 16
      %v3332 = vrot.slane %v3330, 5
      %v3333 = vor.u32 %v3329, %v3332
      %v3334 = vrot.slane %v3333, 4
      %v3336 = vshll.u32 %v2996, 16
      %v3338 = vrot.slane %v3336, 5
      %v3339 = vsel %vm3037, %v3334, %v3338
      %v3340 = vshrl.u32 %v2996, 16
      %v3342 = vrot.slane %v3340, 4
      %v3343 = vor.u32 %v3342, %v3338
      %v3344 = vrot.slane %v3343, 4
      %v3346 = vshll.u32 %v3031, 16
      %v3348 = vrot.slane %v3346, 5
      %v3349 = vsel %vm3037, %v3344, %v3348
      %v3351 = vshrl.u32 %v2997, 16
      %v3353 = vrot.slane %v3351, 4
      %v3354 = vshll.u32 %v2997, 16
      %v3356 = vrot.slane %v3354, 5
      %v3357 = vor.u32 %v3353, %v3356
      %v3358 = vrot.slane %v3357, 4
      %v3360 = vshll.u32 %v2998, 16
      %v3362 = vrot.slane %v3360, 5
      %v3363 = vsel %vm3037, %v3358, %v3362
      %v3364 = vshrl.u32 %v2998, 16
      %v3366 = vrot.slane %v3364, 4
      %v3367 = vor.u32 %v3366, %v3362
      %v3368 = vrot.slane %v3367, 4
      %v3370 = vshll.u32 %v3032, 16
      %v3372 = vrot.slane %v3370, 5
      %v3373 = vsel %vm3037, %v3368, %v3372
      %v3375 = vshrl.u32 %v2999, 16
      %v3377 = vrot.slane %v3375, 4
      %v3378 = vshll.u32 %v2999, 16
      %v3380 = vrot.slane %v3378, 5
      %v3381 = vor.u32 %v3377, %v3380
      %v3382 = vrot.slane %v3381, 4
      %v3384 = vshll.u32 %v3000, 16
      %v3386 = vrot.slane %v3384, 5
      %v3387 = vsel %vm3037, %v3382, %v3386
      %v3388 = vshrl.u32 %v3000, 16
      %v3390 = vrot.slane %v3388, 4
      %v3391 = vor.u32 %v3390, %v3386
      %v3392 = vrot.slane %v3391, 4
      %v3394 = vshll.u32 %v3033, 16
      %v3396 = vrot.slane %v3394, 5
      %v3397 = vsel %vm3037, %v3392, %v3396
      %v3399 = vshrl.u32 %v3001, 16
      %v3401 = vrot.slane %v3399, 4
      %v3402 = vshll.u32 %v3001, 16
      %v3404 = vrot.slane %v3402, 5
      %v3405 = vor.u32 %v3401, %v3404
      %v3406 = vrot.slane %v3405, 4
      %v3408 = vshll.u32 %v3002, 16
      %v3410 = vrot.slane %v3408, 5
      %v3411 = vsel %vm3037, %v3406, %v3410
      %v3412 = vshrl.u32 %v3002, 16
      %v3414 = vrot.slane %v3412, 4
      %v3415 = vor.u32 %v3414, %v3410
      %v3416 = vrot.slane %v3415, 4
      %v3418 = vshll.u32 %v3034, 16
      %v3420 = vrot.slane %v3418, 5
      %v3421 = vsel %vm3037, %v3416, %v3420
      %s3422 = scalar_lea.vmem %s3, 64
      %v3423 = vld [vmem:[%s3422] sm:$0xf]
      %v3424 = vld [vmem:[%s3422 + $0x4] sm:$0xf]
      %v3425 = vld [vmem:[%s3422 + $0x8] sm:$0xf]
      %v3426 = vld [vmem:[%s3422 + $0xc] sm:$0xf]
      %v3427 = vld [vmem:[%s3422 + $0x10] sm:$0xf]
      %v3428 = vld [vmem:[%s3422 + $0x14] sm:$0xf]
      %v3429 = vld [vmem:[%s3422 + $0x18] sm:$0xf]
      %v3430 = vld [vmem:[%s3422 + $0x1c] sm:$0xf]
      %v3431 = vld [vmem:[%s3422 + $0x20] sm:$0xf]
      %v3432 = vld [vmem:[%s3422 + $0x24] sm:$0xf]
      %v3433 = vld [vmem:[%s3422 + $0x28] sm:$0xf]
      %v3434 = vld [vmem:[%s3422 + $0x2c] sm:$0xf]
      %v3435 = vld [vmem:[%s3422 + $0x30] sm:$0xf]
      %v3436 = vld [vmem:[%s3422 + $0x34] sm:$0xf]
      %v3437 = vld [vmem:[%s3422 + $0x38] sm:$0xf]
      %v3438 = vld [vmem:[%s3422 + $0x3c] sm:$0xf]
      %v3439 = vunpack.c.l.b16 %v3051
      %v3440 = vunpack.c.l.b16 %v3061
      %v3441 = vunpack.c.l.b16 %v3075
      %v3442 = vunpack.c.l.b16 %v3085
      %v3443 = vunpack.c.l.b16 %v3099
      %v3444 = vunpack.c.l.b16 %v3109
      %v3445 = vunpack.c.l.b16 %v3123
      %v3446 = vunpack.c.l.b16 %v3133
      %v3447 = vunpack.c.l.b16 %v3147
      %v3448 = vunpack.c.l.b16 %v3157
      %v3449 = vunpack.c.l.b16 %v3171
      %v3450 = vunpack.c.l.b16 %v3181
      %v3451 = vunpack.c.l.b16 %v3195
      %v3452 = vunpack.c.l.b16 %v3205
      %v3453 = vunpack.c.l.b16 %v3219
      %v3454 = vunpack.c.l.b16 %v3229
      %v3455 = vunpack.c.l.b16 %v3243
      %v3456 = vunpack.c.l.b16 %v3253
      %v3457 = vunpack.c.l.b16 %v3267
      %v3458 = vunpack.c.l.b16 %v3277
      %v3459 = vunpack.c.l.b16 %v3291
      %v3460 = vunpack.c.l.b16 %v3301
      %v3461 = vunpack.c.l.b16 %v3315
      %v3462 = vunpack.c.l.b16 %v3325
      %v3463 = vunpack.c.l.b16 %v3339
      %v3464 = vunpack.c.l.b16 %v3349
      %v3465 = vunpack.c.l.b16 %v3363
      %v3466 = vunpack.c.l.b16 %v3373
      %v3467 = vunpack.c.l.b16 %v3387
      %v3468 = vunpack.c.l.b16 %v3397
      %v3469 = vunpack.c.l.b16 %v3411
      %v3470 = vunpack.c.l.b16 %v3421
      %v3471 = vpack.c.b16 %v3440, %v3439
      %v3472 = vpack.c.b16 %v3442, %v3441
      %v3473 = vpack.c.b16 %v3444, %v3443
      %v3474 = vpack.c.b16 %v3446, %v3445
      %v3475 = vpack.c.b16 %v3448, %v3447
      %v3476 = vpack.c.b16 %v3450, %v3449
      %v3477 = vpack.c.b16 %v3452, %v3451
      %v3478 = vpack.c.b16 %v3454, %v3453
      %v3479 = vpack.c.b16 %v3456, %v3455
      %v3480 = vpack.c.b16 %v3458, %v3457
      %v3481 = vpack.c.b16 %v3460, %v3459
      %v3482 = vpack.c.b16 %v3462, %v3461
      %v3483 = vpack.c.b16 %v3464, %v3463
      %v3484 = vpack.c.b16 %v3466, %v3465
      %v3485 = vpack.c.b16 %v3468, %v3467
      %v3486 = vpack.c.b16 %v3470, %v3469
      %v3519 = vunpack.c.l.b16 %v3423
      %v3520 = vunpack.c.l.b16 %v3424
      %v3521 = vunpack.c.l.b16 %v3425
      %v3522 = vunpack.c.l.b16 %v3426
      %v3523 = vunpack.c.l.b16 %v3427
      %v3524 = vunpack.c.l.b16 %v3428
      %v3525 = vunpack.c.l.b16 %v3429
      %v3526 = vunpack.c.l.b16 %v3430
      %v3527 = vunpack.c.l.b16 %v3431
      %v3528 = vunpack.c.l.b16 %v3432
      %v3529 = vunpack.c.l.b16 %v3433
      %v3530 = vunpack.c.l.b16 %v3434
      %v3531 = vunpack.c.l.b16 %v3435
      %v3532 = vunpack.c.l.b16 %v3436
      %v3533 = vunpack.c.l.b16 %v3437
      %v3534 = vunpack.c.l.b16 %v3438
      %v3535 = vpack.c.b16 %v3520, %v3519
      %v3536 = vpack.c.b16 %v3522, %v3521
      %v3537 = vpack.c.b16 %v3524, %v3523
      %v3538 = vpack.c.b16 %v3526, %v3525
      %v3539 = vpack.c.b16 %v3528, %v3527
      %v3540 = vpack.c.b16 %v3530, %v3529
      %v3541 = vpack.c.b16 %v3532, %v3531
      %v3542 = vpack.c.b16 %v3534, %v3533
      %3551 = vmatprep.subr.bf16.mxu0 0
      %3552 = vmatpush1.bf16.msra.mxu0 %v3542
      %3553 = vmatprep.subr.bf16.mxu0 0
      %3554 = vmatpush1.bf16.msra.mxu0 %v3541
      %3555 = vmatprep.subr.bf16.mxu0 0
      %3556 = vmatpush1.bf16.msra.mxu0 %v3540
      %3557 = vmatprep.subr.bf16.mxu0 0
      %3558 = vmatpush1.bf16.msra.mxu0 %v3539
      %3559 = vmatprep.subr.bf16.mxu0 0
      %3560 = vmatpush1.bf16.msra.mxu0 %v3538
      %3561 = vmatprep.subr.bf16.mxu0 0
      %3562 = vmatpush1.bf16.msra.mxu0 %v3537
      %3563 = vmatprep.subr.bf16.mxu0 0
      %3564 = vmatpush1.bf16.msra.mxu0 %v3536
      %3565 = vmatprep.subr.bf16.mxu0 0
      %3566 = vmatpush1.bf16.msra.mxu0 %v3535
      %3567 = vmatprep.subr.bf16.mxu0 0
      %3568 = vmatpush2.bf16.msra.mxu0 0
      %3569 = vmatprep.subr.bf16.mxu0 0
      %3570 = vmatpush2.bf16.msra.mxu0 0
      %3571 = vmatprep.subr.bf16.mxu0 0
      %3572 = vmatpush2.bf16.msra.mxu0 0
      %3573 = vmatprep.subr.bf16.mxu0 0
      %3574 = vmatpush2.bf16.msra.mxu0 0
      %3575 = vmatprep.subr.bf16.mxu0 0
      %3576 = vmatpush2.bf16.msra.mxu0 0
      %3577 = vmatprep.subr.bf16.mxu0 0
      %3578 = vmatpush2.bf16.msra.mxu0 0
      %3579 = vmatprep.subr.bf16.mxu0 0
      %3580 = vmatpush2.bf16.msra.mxu0 0
      %3581 = vmatprep.subr.bf16.mxu0 0
      %3582 = vmatpush2.bf16.msra.mxu0 0
      %3583 = vmatprep.mubr.bf16.mxu0 0
      %3584 = vmatmul.mubr.bf16.gmra.mxu0 %v3471
      %v3585 = vpop.f32.mrf.mxu0
      %v3586 = vadd.f32 0.0, %v3585
      %v3587 = vpop.f32.mrf.mxu0
      %v3588 = vpop.f32.mrf.mxu0
      %v3589 = vadd.f32 0.0, %v3588
      %v3590 = vpop.f32.mrf.mxu0
      %3591 = vmatprep.mubr.bf16.mxu0 0
      %3592 = vmatmul.mubr.bf16.gmra.mxu0 %v3472
      %v3593 = vpop.f32.mrf.mxu0
      %v3594 = vadd.f32 0.0, %v3593
      %v3595 = vpop.f32.mrf.mxu0
      %v3596 = vpop.f32.mrf.mxu0
      %v3597 = vadd.f32 0.0, %v3596
      %v3598 = vpop.f32.mrf.mxu0
      %3599 = vmatprep.mubr.bf16.mxu0 0
      %3600 = vmatmul.mubr.bf16.gmra.mxu0 %v3473
      %v3601 = vpop.f32.mrf.mxu0
      %v3602 = vadd.f32 0.0, %v3601
      %v3603 = vpop.f32.mrf.mxu0
      %v3604 = vpop.f32.mrf.mxu0
      %v3605 = vadd.f32 0.0, %v3604
      %v3606 = vpop.f32.mrf.mxu0
      %3607 = vmatprep.mubr.bf16.mxu0 0
      %3608 = vmatmul.mubr.bf16.gmra.mxu0 %v3474
      %v3609 = vpop.f32.mrf.mxu0
      %v3610 = vadd.f32 0.0, %v3609
      %v3611 = vpop.f32.mrf.mxu0
      %v3612 = vpop.f32.mrf.mxu0
      %v3613 = vadd.f32 0.0, %v3612
      %v3614 = vpop.f32.mrf.mxu0
      %3615 = vmatprep.mubr.bf16.mxu0 0
      %3616 = vmatmul.mubr.bf16.gmra.mxu0 %v3475
      %v3617 = vpop.f32.mrf.mxu0
      %v3618 = vadd.f32 0.0, %v3617
      %v3619 = vpop.f32.mrf.mxu0
      %v3620 = vpop.f32.mrf.mxu0
      %v3621 = vadd.f32 0.0, %v3620
      %v3622 = vpop.f32.mrf.mxu0
      %3623 = vmatprep.mubr.bf16.mxu0 0
      %3624 = vmatmul.mubr.bf16.gmra.mxu0 %v3476
      %v3625 = vpop.f32.mrf.mxu0
      %v3626 = vadd.f32 0.0, %v3625
      %v3627 = vpop.f32.mrf.mxu0
      %v3628 = vpop.f32.mrf.mxu0
      %v3629 = vadd.f32 0.0, %v3628
      %v3630 = vpop.f32.mrf.mxu0
      %3631 = vmatprep.mubr.bf16.mxu0 0
      %3632 = vmatmul.mubr.bf16.gmra.mxu0 %v3477
      %v3633 = vpop.f32.mrf.mxu0
      %v3634 = vadd.f32 0.0, %v3633
      %v3635 = vpop.f32.mrf.mxu0
      %v3636 = vpop.f32.mrf.mxu0
      %v3637 = vadd.f32 0.0, %v3636
      %v3638 = vpop.f32.mrf.mxu0
      %3639 = vmatprep.mubr.bf16.mxu0 0
      %3640 = vmatmul.mubr.bf16.gmra.mxu0 %v3478
      %v3641 = vpop.f32.mrf.mxu0
      %v3642 = vadd.f32 0.0, %v3641
      %v3643 = vpop.f32.mrf.mxu0
      %v3644 = vpop.f32.mrf.mxu0
      %v3645 = vadd.f32 0.0, %v3644
      %v3646 = vpop.f32.mrf.mxu0
      %3647 = vmatprep.mubr.bf16.mxu0 0
      %3648 = vmatmul.mubr.bf16.gmra.mxu0 %v3479
      %v3649 = vpop.f32.mrf.mxu0
      %v3650 = vadd.f32 0.0, %v3649
      %v3651 = vpop.f32.mrf.mxu0
      %v3652 = vpop.f32.mrf.mxu0
      %v3653 = vadd.f32 0.0, %v3652
      %v3654 = vpop.f32.mrf.mxu0
      %3655 = vmatprep.mubr.bf16.mxu0 0
      %3656 = vmatmul.mubr.bf16.gmra.mxu0 %v3480
      %v3657 = vpop.f32.mrf.mxu0
      %v3658 = vadd.f32 0.0, %v3657
      %v3659 = vpop.f32.mrf.mxu0
      %v3660 = vpop.f32.mrf.mxu0
      %v3661 = vadd.f32 0.0, %v3660
      %v3662 = vpop.f32.mrf.mxu0
      %3663 = vmatprep.mubr.bf16.mxu0 0
      %3664 = vmatmul.mubr.bf16.gmra.mxu0 %v3481
      %v3665 = vpop.f32.mrf.mxu0
      %v3666 = vadd.f32 0.0, %v3665
      %v3667 = vpop.f32.mrf.mxu0
      %v3668 = vpop.f32.mrf.mxu0
      %v3669 = vadd.f32 0.0, %v3668
      %v3670 = vpop.f32.mrf.mxu0
      %3671 = vmatprep.mubr.bf16.mxu0 0
      %3672 = vmatmul.mubr.bf16.gmra.mxu0 %v3482
      %v3673 = vpop.f32.mrf.mxu0
      %v3674 = vadd.f32 0.0, %v3673
      %v3675 = vpop.f32.mrf.mxu0
      %v3676 = vpop.f32.mrf.mxu0
      %v3677 = vadd.f32 0.0, %v3676
      %v3678 = vpop.f32.mrf.mxu0
      %3679 = vmatprep.mubr.bf16.mxu0 0
      %3680 = vmatmul.mubr.bf16.gmra.mxu0 %v3483
      %v3681 = vpop.f32.mrf.mxu0
      %v3682 = vadd.f32 0.0, %v3681
      %v3683 = vpop.f32.mrf.mxu0
      %v3684 = vpop.f32.mrf.mxu0
      %v3685 = vadd.f32 0.0, %v3684
      %v3686 = vpop.f32.mrf.mxu0
      %3687 = vmatprep.mubr.bf16.mxu0 0
      %3688 = vmatmul.mubr.bf16.gmra.mxu0 %v3484
      %v3689 = vpop.f32.mrf.mxu0
      %v3690 = vadd.f32 0.0, %v3689
      %v3691 = vpop.f32.mrf.mxu0
      %v3692 = vpop.f32.mrf.mxu0
      %v3693 = vadd.f32 0.0, %v3692
      %v3694 = vpop.f32.mrf.mxu0
      %3695 = vmatprep.mubr.bf16.mxu0 0
      %3696 = vmatmul.mubr.bf16.gmra.mxu0 %v3485
      %v3697 = vpop.f32.mrf.mxu0
      %v3698 = vadd.f32 0.0, %v3697
      %v3699 = vpop.f32.mrf.mxu0
      %v3700 = vpop.f32.mrf.mxu0
      %v3701 = vadd.f32 0.0, %v3700
      %v3702 = vpop.f32.mrf.mxu0
      %3703 = vmatprep.mubr.bf16.mxu0 0
      %3704 = vmatmul.mubr.bf16.gmra.mxu0 %v3486
      %v3705 = vpop.f32.mrf.mxu0
      %v3706 = vadd.f32 0.0, %v3705
      %v3707 = vpop.f32.mrf.mxu0
      %v3708 = vpop.f32.mrf.mxu0
      %v3709 = vadd.f32 0.0, %v3708
      %v3710 = vpop.f32.mrf.mxu0
      %3711 = vdwg.mxu0
      %v3744 = vunpack.c.l.b16 %v2971
      %v3745 = vunpack.c.l.b16 %v2972
      %v3746 = vunpack.c.l.b16 %v2973
      %v3747 = vunpack.c.l.b16 %v2974
      %v3748 = vunpack.c.l.b16 %v2975
      %v3749 = vunpack.c.l.b16 %v2976
      %v3750 = vunpack.c.l.b16 %v2977
      %v3751 = vunpack.c.l.b16 %v2978
      %v3752 = vunpack.c.l.b16 %v2979
      %v3753 = vunpack.c.l.b16 %v2980
      %v3754 = vunpack.c.l.b16 %v2981
      %v3755 = vunpack.c.l.b16 %v2982
      %v3756 = vunpack.c.l.b16 %v2983
      %v3757 = vunpack.c.l.b16 %v2984
      %v3758 = vunpack.c.l.b16 %v2985
      %v3759 = vunpack.c.l.b16 %v2986
      %v3760 = vunpack.c.l.b16 %v2987
      %v3761 = vunpack.c.l.b16 %v2988
      %v3762 = vunpack.c.l.b16 %v2989
      %v3763 = vunpack.c.l.b16 %v2990
      %v3764 = vunpack.c.l.b16 %v2991
      %v3765 = vunpack.c.l.b16 %v2992
      %v3766 = vunpack.c.l.b16 %v2993
      %v3767 = vunpack.c.l.b16 %v2994
      %v3768 = vunpack.c.l.b16 %v2995
      %v3769 = vunpack.c.l.b16 %v2996
      %v3770 = vunpack.c.l.b16 %v2997
      %v3771 = vunpack.c.l.b16 %v2998
      %v3772 = vunpack.c.l.b16 %v2999
      %v3773 = vunpack.c.l.b16 %v3000
      %v3774 = vunpack.c.l.b16 %v3001
      %v3775 = vunpack.c.l.b16 %v3002
      %v3776 = vpack.c.b16 %v3745, %v3744
      %v3777 = vpack.c.b16 %v3747, %v3746
      %v3778 = vpack.c.b16 %v3749, %v3748
      %v3779 = vpack.c.b16 %v3751, %v3750
      %v3780 = vpack.c.b16 %v3753, %v3752
      %v3781 = vpack.c.b16 %v3755, %v3754
      %v3782 = vpack.c.b16 %v3757, %v3756
      %v3783 = vpack.c.b16 %v3759, %v3758
      %v3784 = vpack.c.b16 %v3761, %v3760
      %v3785 = vpack.c.b16 %v3763, %v3762
      %v3786 = vpack.c.b16 %v3765, %v3764
      %v3787 = vpack.c.b16 %v3767, %v3766
      %v3788 = vpack.c.b16 %v3769, %v3768
      %v3789 = vpack.c.b16 %v3771, %v3770
      %v3790 = vpack.c.b16 %v3773, %v3772
      %v3791 = vpack.c.b16 %v3775, %v3774
      %v3824 = vunpack.c.l.b16 %v3003
      %v3825 = vunpack.c.l.b16 %v3004
      %v3826 = vunpack.c.l.b16 %v3005
      %v3827 = vunpack.c.l.b16 %v3006
      %v3828 = vunpack.c.l.b16 %v3007
      %v3829 = vunpack.c.l.b16 %v3008
      %v3830 = vunpack.c.l.b16 %v3009
      %v3831 = vunpack.c.l.b16 %v3010
      %v3832 = vunpack.c.l.b16 %v3011
      %v3833 = vunpack.c.l.b16 %v3012
      %v3834 = vunpack.c.l.b16 %v3013
      %v3835 = vunpack.c.l.b16 %v3014
      %v3836 = vunpack.c.l.b16 %v3015
      %v3837 = vunpack.c.l.b16 %v3016
      %v3838 = vunpack.c.l.b16 %v3017
      %v3839 = vunpack.c.l.b16 %v3018
      %v3840 = vpack.c.b16 %v3825, %v3824
      %v3841 = vpack.c.b16 %v3827, %v3826
      %v3842 = vpack.c.b16 %v3829, %v3828
      %v3843 = vpack.c.b16 %v3831, %v3830
      %v3844 = vpack.c.b16 %v3833, %v3832
      %v3845 = vpack.c.b16 %v3835, %v3834
      %v3846 = vpack.c.b16 %v3837, %v3836
      %v3847 = vpack.c.b16 %v3839, %v3838
      %3856 = vmatprep.subr.bf16.mxu0 0
      %3857 = vmatpush1.bf16.msra.mxu0 %v3847
      %3858 = vmatprep.subr.bf16.mxu0 0
      %3859 = vmatpush1.bf16.msra.mxu0 %v3846
      %3860 = vmatprep.subr.bf16.mxu0 0
      %3861 = vmatpush1.bf16.msra.mxu0 %v3845
      %3862 = vmatprep.subr.bf16.mxu0 0
      %3863 = vmatpush1.bf16.msra.mxu0 %v3844
      %3864 = vmatprep.subr.bf16.mxu0 0
      %3865 = vmatpush1.bf16.msra.mxu0 %v3843
      %3866 = vmatprep.subr.bf16.mxu0 0
      %3867 = vmatpush1.bf16.msra.mxu0 %v3842
      %3868 = vmatprep.subr.bf16.mxu0 0
      %3869 = vmatpush1.bf16.msra.mxu0 %v3841
      %3870 = vmatprep.subr.bf16.mxu0 0
      %3871 = vmatpush1.bf16.msra.mxu0 %v3840
      %3872 = vmatprep.subr.bf16.mxu0 0
      %3873 = vmatpush2.bf16.msra.mxu0 0
      %3874 = vmatprep.subr.bf16.mxu0 0
      %3875 = vmatpush2.bf16.msra.mxu0 0
      %3876 = vmatprep.subr.bf16.mxu0 0
      %3877 = vmatpush2.bf16.msra.mxu0 0
      %3878 = vmatprep.subr.bf16.mxu0 0
      %3879 = vmatpush2.bf16.msra.mxu0 0
      %3880 = vmatprep.subr.bf16.mxu0 0
      %3881 = vmatpush2.bf16.msra.mxu0 0
      %3882 = vmatprep.subr.bf16.mxu0 0
      %3883 = vmatpush2.bf16.msra.mxu0 0
      %3884 = vmatprep.subr.bf16.mxu0 0
      %3885 = vmatpush2.bf16.msra.mxu0 0
      %3886 = vmatprep.subr.bf16.mxu0 0
      %3887 = vmatpush2.bf16.msra.mxu0 0
      %3888 = vmatprep.mubr.bf16.mxu0 0
      %3889 = vmatmul.mubr.bf16.gmra.mxu0 %v3776
      %v3890 = vpop.f32.mrf.mxu0
      %v3891 = vadd.f32 %v3586, %v3890
      %v3892 = vpop.f32.mrf.mxu0
      %v3893 = vpop.f32.mrf.mxu0
      %v3894 = vadd.f32 %v3589, %v3893
      %v3895 = vpop.f32.mrf.mxu0
      %3896 = vmatprep.mubr.bf16.mxu0 0
      %3897 = vmatmul.mubr.bf16.gmra.mxu0 %v3777
      %v3898 = vpop.f32.mrf.mxu0
      %v3899 = vadd.f32 %v3594, %v3898
      %v3900 = vpop.f32.mrf.mxu0
      %v3901 = vpop.f32.mrf.mxu0
      %v3902 = vadd.f32 %v3597, %v3901
      %v3903 = vpop.f32.mrf.mxu0
      %3904 = vmatprep.mubr.bf16.mxu0 0
      %3905 = vmatmul.mubr.bf16.gmra.mxu0 %v3778
      %v3906 = vpop.f32.mrf.mxu0
      %v3907 = vadd.f32 %v3602, %v3906
      %v3908 = vpop.f32.mrf.mxu0
      %v3909 = vpop.f32.mrf.mxu0
      %v3910 = vadd.f32 %v3605, %v3909
      %v3911 = vpop.f32.mrf.mxu0
      %3912 = vmatprep.mubr.bf16.mxu0 0
      %3913 = vmatmul.mubr.bf16.gmra.mxu0 %v3779
      %v3914 = vpop.f32.mrf.mxu0
      %v3915 = vadd.f32 %v3610, %v3914
      %v3916 = vpop.f32.mrf.mxu0
      %v3917 = vpop.f32.mrf.mxu0
      %v3918 = vadd.f32 %v3613, %v3917
      %v3919 = vpop.f32.mrf.mxu0
      %3920 = vmatprep.mubr.bf16.mxu0 0
      %3921 = vmatmul.mubr.bf16.gmra.mxu0 %v3780
      %v3922 = vpop.f32.mrf.mxu0
      %v3923 = vadd.f32 %v3618, %v3922
      %v3924 = vpop.f32.mrf.mxu0
      %v3925 = vpop.f32.mrf.mxu0
      %v3926 = vadd.f32 %v3621, %v3925
      %v3927 = vpop.f32.mrf.mxu0
      %3928 = vmatprep.mubr.bf16.mxu0 0
      %3929 = vmatmul.mubr.bf16.gmra.mxu0 %v3781
      %v3930 = vpop.f32.mrf.mxu0
      %v3931 = vadd.f32 %v3626, %v3930
      %v3932 = vpop.f32.mrf.mxu0
      %v3933 = vpop.f32.mrf.mxu0
      %v3934 = vadd.f32 %v3629, %v3933
      %v3935 = vpop.f32.mrf.mxu0
      %3936 = vmatprep.mubr.bf16.mxu0 0
      %3937 = vmatmul.mubr.bf16.gmra.mxu0 %v3782
      %v3938 = vpop.f32.mrf.mxu0
      %v3939 = vadd.f32 %v3634, %v3938
      %v3940 = vpop.f32.mrf.mxu0
      %v3941 = vpop.f32.mrf.mxu0
      %v3942 = vadd.f32 %v3637, %v3941
      %v3943 = vpop.f32.mrf.mxu0
      %3944 = vmatprep.mubr.bf16.mxu0 0
      %3945 = vmatmul.mubr.bf16.gmra.mxu0 %v3783
      %v3946 = vpop.f32.mrf.mxu0
      %v3947 = vadd.f32 %v3642, %v3946
      %v3948 = vpop.f32.mrf.mxu0
      %v3949 = vpop.f32.mrf.mxu0
      %v3950 = vadd.f32 %v3645, %v3949
      %v3951 = vpop.f32.mrf.mxu0
      %3952 = vmatprep.mubr.bf16.mxu0 0
      %3953 = vmatmul.mubr.bf16.gmra.mxu0 %v3784
      %v3954 = vpop.f32.mrf.mxu0
      %v3955 = vadd.f32 %v3650, %v3954
      %v3956 = vpop.f32.mrf.mxu0
      %v3957 = vpop.f32.mrf.mxu0
      %v3958 = vadd.f32 %v3653, %v3957
      %v3959 = vpop.f32.mrf.mxu0
      %3960 = vmatprep.mubr.bf16.mxu0 0
      %3961 = vmatmul.mubr.bf16.gmra.mxu0 %v3785
      %v3962 = vpop.f32.mrf.mxu0
      %v3963 = vadd.f32 %v3658, %v3962
      %v3964 = vpop.f32.mrf.mxu0
      %v3965 = vpop.f32.mrf.mxu0
      %v3966 = vadd.f32 %v3661, %v3965
      %v3967 = vpop.f32.mrf.mxu0
      %3968 = vmatprep.mubr.bf16.mxu0 0
      %3969 = vmatmul.mubr.bf16.gmra.mxu0 %v3786
      %v3970 = vpop.f32.mrf.mxu0
      %v3971 = vadd.f32 %v3666, %v3970
      %v3972 = vpop.f32.mrf.mxu0
      %v3973 = vpop.f32.mrf.mxu0
      %v3974 = vadd.f32 %v3669, %v3973
      %v3975 = vpop.f32.mrf.mxu0
      %3976 = vmatprep.mubr.bf16.mxu0 0
      %3977 = vmatmul.mubr.bf16.gmra.mxu0 %v3787
      %v3978 = vpop.f32.mrf.mxu0
      %v3979 = vadd.f32 %v3674, %v3978
      %v3980 = vpop.f32.mrf.mxu0
      %v3981 = vpop.f32.mrf.mxu0
      %v3982 = vadd.f32 %v3677, %v3981
      %v3983 = vpop.f32.mrf.mxu0
      %3984 = vmatprep.mubr.bf16.mxu0 0
      %3985 = vmatmul.mubr.bf16.gmra.mxu0 %v3788
      %v3986 = vpop.f32.mrf.mxu0
      %v3987 = vadd.f32 %v3682, %v3986
      %v3988 = vpop.f32.mrf.mxu0
      %v3989 = vpop.f32.mrf.mxu0
      %v3990 = vadd.f32 %v3685, %v3989
      %v3991 = vpop.f32.mrf.mxu0
      %3992 = vmatprep.mubr.bf16.mxu0 0
      %3993 = vmatmul.mubr.bf16.gmra.mxu0 %v3789
      %v3994 = vpop.f32.mrf.mxu0
      %v3995 = vadd.f32 %v3690, %v3994
      %v3996 = vpop.f32.mrf.mxu0
      %v3997 = vpop.f32.mrf.mxu0
      %v3998 = vadd.f32 %v3693, %v3997
      %v3999 = vpop.f32.mrf.mxu0
      %4000 = vmatprep.mubr.bf16.mxu0 0
      %4001 = vmatmul.mubr.bf16.gmra.mxu0 %v3790
      %v4002 = vpop.f32.mrf.mxu0
      %v4003 = vadd.f32 %v3698, %v4002
      %v4004 = vpop.f32.mrf.mxu0
      %v4005 = vpop.f32.mrf.mxu0
      %v4006 = vadd.f32 %v3701, %v4005
      %v4007 = vpop.f32.mrf.mxu0
      %4008 = vmatprep.mubr.bf16.mxu0 0
      %4009 = vmatmul.mubr.bf16.gmra.mxu0 %v3791
      %v4010 = vpop.f32.mrf.mxu0
      %v4011 = vadd.f32 %v3706, %v4010
      %v4012 = vpop.f32.mrf.mxu0
      %v4013 = vpop.f32.mrf.mxu0
      %v4014 = vadd.f32 %v3709, %v4013
      %v4015 = vpop.f32.mrf.mxu0
      %4016 = vdwg.mxu0
      %v4017 = vld [vmem:[#allocation2] sm:$0xe]
      %v4018 = vld [vmem:[#allocation2 + $0xc] sm:$0xe]
      %v4019 = vld [vmem:[#allocation2 + $0x18] sm:$0xe]
      %v4020 = vld [vmem:[#allocation2 + $0x24] sm:$0xe]
      %v4021 = vld [vmem:[#allocation2 + $0x30] sm:$0xe]
      %v4022 = vld [vmem:[#allocation2 + $0x3c] sm:$0xe]
      %v4023 = vld [vmem:[#allocation2 + $0x48] sm:$0xe]
      %v4024 = vld [vmem:[#allocation2 + $0x54] sm:$0xe]
      %v4025 = vld [vmem:[#allocation2 + $0x60] sm:$0xe]
      %v4026 = vld [vmem:[#allocation2 + $0x6c] sm:$0xe]
      %v4027 = vld [vmem:[#allocation2 + $0x78] sm:$0xe]
      %v4028 = vld [vmem:[#allocation2 + $0x84] sm:$0xe]
      %v4029 = vld [vmem:[#allocation2 + $0x90] sm:$0xe]
      %v4030 = vld [vmem:[#allocation2 + $0x9c] sm:$0xe]
      %v4031 = vld [vmem:[#allocation2 + $0xa8] sm:$0xe]
      %v4032 = vld [vmem:[#allocation2 + $0xb4] sm:$0xe]
      %vm4065 = vcmask 1042432
      %vm4066 = vcmask 1046532
      %vm4067 = vmor %vm4065, %vm4066
      %v4068 = vrot.slane %v4017, 5
      %v4069 = vrot.slane %v4068, 4
      %v4070 = vrot.slane %v2972, 5
      %v4071 = vsel %vm4067, %v4069, %v4070
      %v4072 = vrot.slane %v4070, 4
      %v4073 = vrot.slane %v3019, 5
      %v4074 = vsel %vm4067, %v4072, %v4073
      %v4075 = vrot.slane %v4018, 5
      %v4076 = vrot.slane %v4075, 4
      %v4077 = vrot.slane %v2974, 5
      %v4078 = vsel %vm4067, %v4076, %v4077
      %v4079 = vrot.slane %v4077, 4
      %v4080 = vrot.slane %v3020, 5
      %v4081 = vsel %vm4067, %v4079, %v4080
      %v4082 = vrot.slane %v4019, 5
      %v4083 = vrot.slane %v4082, 4
      %v4084 = vrot.slane %v2976, 5
      %v4085 = vsel %vm4067, %v4083, %v4084
      %v4086 = vrot.slane %v4084, 4
      %v4087 = vrot.slane %v3021, 5
      %v4088 = vsel %vm4067, %v4086, %v4087
      %v4089 = vrot.slane %v4020, 5
      %v4090 = vrot.slane %v4089, 4
      %v4091 = vrot.slane %v2978, 5
      %v4092 = vsel %vm4067, %v4090, %v4091
      %v4093 = vrot.slane %v4091, 4
      %v4094 = vrot.slane %v3022, 5
      %v4095 = vsel %vm4067, %v4093, %v4094
      %v4096 = vrot.slane %v4021, 5
      %v4097 = vrot.slane %v4096, 4
      %v4098 = vrot.slane %v2980, 5
      %v4099 = vsel %vm4067, %v4097, %v4098
      %v4100 = vrot.slane %v4098, 4
      %v4101 = vrot.slane %v3023, 5
      %v4102 = vsel %vm4067, %v4100, %v4101
      %v4103 = vrot.slane %v4022, 5
      %v4104 = vrot.slane %v4103, 4
      %v4105 = vrot.slane %v2982, 5
      %v4106 = vsel %vm4067, %v4104, %v4105
      %v4107 = vrot.slane %v4105, 4
      %v4108 = vrot.slane %v3024, 5
      %v4109 = vsel %vm4067, %v4107, %v4108
      %v4110 = vrot.slane %v4023, 5
      %v4111 = vrot.slane %v4110, 4
      %v4112 = vrot.slane %v2984, 5
      %v4113 = vsel %vm4067, %v4111, %v4112
      %v4114 = vrot.slane %v4112, 4
      %v4115 = vrot.slane %v3025, 5
      %v4116 = vsel %vm4067, %v4114, %v4115
      %v4117 = vrot.slane %v4024, 5
      %v4118 = vrot.slane %v4117, 4
      %v4119 = vrot.slane %v2986, 5
      %v4120 = vsel %vm4067, %v4118, %v4119
      %v4121 = vrot.slane %v4119, 4
      %v4122 = vrot.slane %v3026, 5
      %v4123 = vsel %vm4067, %v4121, %v4122
      %v4124 = vrot.slane %v4025, 5
      %v4125 = vrot.slane %v4124, 4
      %v4126 = vrot.slane %v2988, 5
      %v4127 = vsel %vm4067, %v4125, %v4126
      %v4128 = vrot.slane %v4126, 4
      %v4129 = vrot.slane %v3027, 5
      %v4130 = vsel %vm4067, %v4128, %v4129
      %v4131 = vrot.slane %v4026, 5
      %v4132 = vrot.slane %v4131, 4
      %v4133 = vrot.slane %v2990, 5
      %v4134 = vsel %vm4067, %v4132, %v4133
      %v4135 = vrot.slane %v4133, 4
      %v4136 = vrot.slane %v3028, 5
      %v4137 = vsel %vm4067, %v4135, %v4136
      %v4138 = vrot.slane %v4027, 5
      %v4139 = vrot.slane %v4138, 4
      %v4140 = vrot.slane %v2992, 5
      %v4141 = vsel %vm4067, %v4139, %v4140
      %v4142 = vrot.slane %v4140, 4
      %v4143 = vrot.slane %v3029, 5
      %v4144 = vsel %vm4067, %v4142, %v4143
      %v4145 = vrot.slane %v4028, 5
      %v4146 = vrot.slane %v4145, 4
      %v4147 = vrot.slane %v2994, 5
      %v4148 = vsel %vm4067, %v4146, %v4147
      %v4149 = vrot.slane %v4147, 4
      %v4150 = vrot.slane %v3030, 5
      %v4151 = vsel %vm4067, %v4149, %v4150
      %v4152 = vrot.slane %v4029, 5
      %v4153 = vrot.slane %v4152, 4
      %v4154 = vrot.slane %v2996, 5
      %v4155 = vsel %vm4067, %v4153, %v4154
      %v4156 = vrot.slane %v4154, 4
      %v4157 = vrot.slane %v3031, 5
      %v4158 = vsel %vm4067, %v4156, %v4157
      %v4159 = vrot.slane %v4030, 5
      %v4160 = vrot.slane %v4159, 4
      %v4161 = vrot.slane %v2998, 5
      %v4162 = vsel %vm4067, %v4160, %v4161
      %v4163 = vrot.slane %v4161, 4
      %v4164 = vrot.slane %v3032, 5
      %v4165 = vsel %vm4067, %v4163, %v4164
      %v4166 = vrot.slane %v4031, 5
      %v4167 = vrot.slane %v4166, 4
      %v4168 = vrot.slane %v3000, 5
      %v4169 = vsel %vm4067, %v4167, %v4168
      %v4170 = vrot.slane %v4168, 4
      %v4171 = vrot.slane %v3033, 5
      %v4172 = vsel %vm4067, %v4170, %v4171
      %v4173 = vrot.slane %v4032, 5
      %v4174 = vrot.slane %v4173, 4
      %v4175 = vrot.slane %v3002, 5
      %v4176 = vsel %vm4067, %v4174, %v4175
      %v4177 = vrot.slane %v4175, 4
      %v4178 = vrot.slane %v3034, 5
      %v4179 = vsel %vm4067, %v4177, %v4178
      %s4180 = scalar_lea.vmem %s3, 128
      %v4181 = vld [vmem:[%s4180] sm:$0xf]
      %v4182 = vld [vmem:[%s4180 + $0x4] sm:$0xf]
      %v4183 = vld [vmem:[%s4180 + $0x8] sm:$0xf]
      %v4184 = vld [vmem:[%s4180 + $0xc] sm:$0xf]
      %v4185 = vld [vmem:[%s4180 + $0x10] sm:$0xf]
      %v4186 = vld [vmem:[%s4180 + $0x14] sm:$0xf]
      %v4187 = vld [vmem:[%s4180 + $0x18] sm:$0xf]
      %v4188 = vld [vmem:[%s4180 + $0x1c] sm:$0xf]
      %v4189 = vld [vmem:[%s4180 + $0x20] sm:$0xf]
      %v4190 = vld [vmem:[%s4180 + $0x24] sm:$0xf]
      %v4191 = vld [vmem:[%s4180 + $0x28] sm:$0xf]
      %v4192 = vld [vmem:[%s4180 + $0x2c] sm:$0xf]
      %v4193 = vld [vmem:[%s4180 + $0x30] sm:$0xf]
      %v4194 = vld [vmem:[%s4180 + $0x34] sm:$0xf]
      %v4195 = vld [vmem:[%s4180 + $0x38] sm:$0xf]
      %v4196 = vld [vmem:[%s4180 + $0x3c] sm:$0xf]
      %v4197 = vunpack.c.l.b16 %v4071
      %v4198 = vunpack.c.l.b16 %v4074
      %v4199 = vunpack.c.l.b16 %v4078
      %v4200 = vunpack.c.l.b16 %v4081
      %v4201 = vunpack.c.l.b16 %v4085
      %v4202 = vunpack.c.l.b16 %v4088
      %v4203 = vunpack.c.l.b16 %v4092
      %v4204 = vunpack.c.l.b16 %v4095
      %v4205 = vunpack.c.l.b16 %v4099
      %v4206 = vunpack.c.l.b16 %v4102
      %v4207 = vunpack.c.l.b16 %v4106
      %v4208 = vunpack.c.l.b16 %v4109
      %v4209 = vunpack.c.l.b16 %v4113
      %v4210 = vunpack.c.l.b16 %v4116
      %v4211 = vunpack.c.l.b16 %v4120
      %v4212 = vunpack.c.l.b16 %v4123
      %v4213 = vunpack.c.l.b16 %v4127
      %v4214 = vunpack.c.l.b16 %v4130
      %v4215 = vunpack.c.l.b16 %v4134
      %v4216 = vunpack.c.l.b16 %v4137
      %v4217 = vunpack.c.l.b16 %v4141
      %v4218 = vunpack.c.l.b16 %v4144
      %v4219 = vunpack.c.l.b16 %v4148
      %v4220 = vunpack.c.l.b16 %v4151
      %v4221 = vunpack.c.l.b16 %v4155
      %v4222 = vunpack.c.l.b16 %v4158
      %v4223 = vunpack.c.l.b16 %v4162
      %v4224 = vunpack.c.l.b16 %v4165
      %v4225 = vunpack.c.l.b16 %v4169
      %v4226 = vunpack.c.l.b16 %v4172
      %v4227 = vunpack.c.l.b16 %v4176
      %v4228 = vunpack.c.l.b16 %v4179
      %v4229 = vpack.c.b16 %v4198, %v4197
      %v4230 = vpack.c.b16 %v4200, %v4199
      %v4231 = vpack.c.b16 %v4202, %v4201
      %v4232 = vpack.c.b16 %v4204, %v4203
      %v4233 = vpack.c.b16 %v4206, %v4205
      %v4234 = vpack.c.b16 %v4208, %v4207
      %v4235 = vpack.c.b16 %v4210, %v4209
      %v4236 = vpack.c.b16 %v4212, %v4211
      %v4237 = vpack.c.b16 %v4214, %v4213
      %v4238 = vpack.c.b16 %v4216, %v4215
      %v4239 = vpack.c.b16 %v4218, %v4217
      %v4240 = vpack.c.b16 %v4220, %v4219
      %v4241 = vpack.c.b16 %v4222, %v4221
      %v4242 = vpack.c.b16 %v4224, %v4223
      %v4243 = vpack.c.b16 %v4226, %v4225
      %v4244 = vpack.c.b16 %v4228, %v4227
      %v4277 = vunpack.c.l.b16 %v4181
      %v4278 = vunpack.c.l.b16 %v4182
      %v4279 = vunpack.c.l.b16 %v4183
      %v4280 = vunpack.c.l.b16 %v4184
      %v4281 = vunpack.c.l.b16 %v4185
      %v4282 = vunpack.c.l.b16 %v4186
      %v4283 = vunpack.c.l.b16 %v4187
      %v4284 = vunpack.c.l.b16 %v4188
      %v4285 = vunpack.c.l.b16 %v4189
      %v4286 = vunpack.c.l.b16 %v4190
      %v4287 = vunpack.c.l.b16 %v4191
      %v4288 = vunpack.c.l.b16 %v4192
      %v4289 = vunpack.c.l.b16 %v4193
      %v4290 = vunpack.c.l.b16 %v4194
      %v4291 = vunpack.c.l.b16 %v4195
      %v4292 = vunpack.c.l.b16 %v4196
      %v4293 = vpack.c.b16 %v4278, %v4277
      %v4294 = vpack.c.b16 %v4280, %v4279
      %v4295 = vpack.c.b16 %v4282, %v4281
      %v4296 = vpack.c.b16 %v4284, %v4283
      %v4297 = vpack.c.b16 %v4286, %v4285
      %v4298 = vpack.c.b16 %v4288, %v4287
      %v4299 = vpack.c.b16 %v4290, %v4289
      %v4300 = vpack.c.b16 %v4292, %v4291
      %4309 = vmatprep.subr.bf16.mxu0 0
      %4310 = vmatpush1.bf16.msra.mxu0 %v4300
      %4311 = vmatprep.subr.bf16.mxu0 0
      %4312 = vmatpush1.bf16.msra.mxu0 %v4299
      %4313 = vmatprep.subr.bf16.mxu0 0
      %4314 = vmatpush1.bf16.msra.mxu0 %v4298
      %4315 = vmatprep.subr.bf16.mxu0 0
      %4316 = vmatpush1.bf16.msra.mxu0 %v4297
      %4317 = vmatprep.subr.bf16.mxu0 0
      %4318 = vmatpush1.bf16.msra.mxu0 %v4296
      %4319 = vmatprep.subr.bf16.mxu0 0
      %4320 = vmatpush1.bf16.msra.mxu0 %v4295
      %4321 = vmatprep.subr.bf16.mxu0 0
      %4322 = vmatpush1.bf16.msra.mxu0 %v4294
      %4323 = vmatprep.subr.bf16.mxu0 0
      %4324 = vmatpush1.bf16.msra.mxu0 %v4293
      %4325 = vmatprep.subr.bf16.mxu0 0
      %4326 = vmatpush2.bf16.msra.mxu0 0
      %4327 = vmatprep.subr.bf16.mxu0 0
      %4328 = vmatpush2.bf16.msra.mxu0 0
      %4329 = vmatprep.subr.bf16.mxu0 0
      %4330 = vmatpush2.bf16.msra.mxu0 0
      %4331 = vmatprep.subr.bf16.mxu0 0
      %4332 = vmatpush2.bf16.msra.mxu0 0
      %4333 = vmatprep.subr.bf16.mxu0 0
      %4334 = vmatpush2.bf16.msra.mxu0 0
      %4335 = vmatprep.subr.bf16.mxu0 0
      %4336 = vmatpush2.bf16.msra.mxu0 0
      %4337 = vmatprep.subr.bf16.mxu0 0
      %4338 = vmatpush2.bf16.msra.mxu0 0
      %4339 = vmatprep.subr.bf16.mxu0 0
      %4340 = vmatpush2.bf16.msra.mxu0 0
      %4341 = vmatprep.mubr.bf16.mxu0 0
      %4342 = vmatmul.mubr.bf16.gmra.mxu0 %v4229
      %v4343 = vpop.f32.mrf.mxu0
      %v4344 = vadd.f32 0.0, %v4343
      %v4345 = vpop.f32.mrf.mxu0
      %v4346 = vpop.f32.mrf.mxu0
      %v4347 = vadd.f32 0.0, %v4346
      %v4348 = vpop.f32.mrf.mxu0
      %4349 = vmatprep.mubr.bf16.mxu0 0
      %4350 = vmatmul.mubr.bf16.gmra.mxu0 %v4230
      %v4351 = vpop.f32.mrf.mxu0
      %v4352 = vadd.f32 0.0, %v4351
      %v4353 = vpop.f32.mrf.mxu0
      %v4354 = vpop.f32.mrf.mxu0
      %v4355 = vadd.f32 0.0, %v4354
      %v4356 = vpop.f32.mrf.mxu0
      %4357 = vmatprep.mubr.bf16.mxu0 0
      %4358 = vmatmul.mubr.bf16.gmra.mxu0 %v4231
      %v4359 = vpop.f32.mrf.mxu0
      %v4360 = vadd.f32 0.0, %v4359
      %v4361 = vpop.f32.mrf.mxu0
      %v4362 = vpop.f32.mrf.mxu0
      %v4363 = vadd.f32 0.0, %v4362
      %v4364 = vpop.f32.mrf.mxu0
      %4365 = vmatprep.mubr.bf16.mxu0 0
      %4366 = vmatmul.mubr.bf16.gmra.mxu0 %v4232
      %v4367 = vpop.f32.mrf.mxu0
      %v4368 = vadd.f32 0.0, %v4367
      %v4369 = vpop.f32.mrf.mxu0
      %v4370 = vpop.f32.mrf.mxu0
      %v4371 = vadd.f32 0.0, %v4370
      %v4372 = vpop.f32.mrf.mxu0
      %4373 = vmatprep.mubr.bf16.mxu0 0
      %4374 = vmatmul.mubr.bf16.gmra.mxu0 %v4233
      %v4375 = vpop.f32.mrf.mxu0
      %v4376 = vadd.f32 0.0, %v4375
      %v4377 = vpop.f32.mrf.mxu0
      %v4378 = vpop.f32.mrf.mxu0
      %v4379 = vadd.f32 0.0, %v4378
      %v4380 = vpop.f32.mrf.mxu0
      %4381 = vmatprep.mubr.bf16.mxu0 0
      %4382 = vmatmul.mubr.bf16.gmra.mxu0 %v4234
      %v4383 = vpop.f32.mrf.mxu0
      %v4384 = vadd.f32 0.0, %v4383
      %v4385 = vpop.f32.mrf.mxu0
      %v4386 = vpop.f32.mrf.mxu0
      %v4387 = vadd.f32 0.0, %v4386
      %v4388 = vpop.f32.mrf.mxu0
      %4389 = vmatprep.mubr.bf16.mxu0 0
      %4390 = vmatmul.mubr.bf16.gmra.mxu0 %v4235
      %v4391 = vpop.f32.mrf.mxu0
      %v4392 = vadd.f32 0.0, %v4391
      %v4393 = vpop.f32.mrf.mxu0
      %v4394 = vpop.f32.mrf.mxu0
      %v4395 = vadd.f32 0.0, %v4394
      %v4396 = vpop.f32.mrf.mxu0
      %4397 = vmatprep.mubr.bf16.mxu0 0
      %4398 = vmatmul.mubr.bf16.gmra.mxu0 %v4236
      %v4399 = vpop.f32.mrf.mxu0
      %v4400 = vadd.f32 0.0, %v4399
      %v4401 = vpop.f32.mrf.mxu0
      %v4402 = vpop.f32.mrf.mxu0
      %v4403 = vadd.f32 0.0, %v4402
      %v4404 = vpop.f32.mrf.mxu0
      %4405 = vmatprep.mubr.bf16.mxu0 0
      %4406 = vmatmul.mubr.bf16.gmra.mxu0 %v4237
      %v4407 = vpop.f32.mrf.mxu0
      %v4408 = vadd.f32 0.0, %v4407
      %v4409 = vpop.f32.mrf.mxu0
      %v4410 = vpop.f32.mrf.mxu0
      %v4411 = vadd.f32 0.0, %v4410
      %v4412 = vpop.f32.mrf.mxu0
      %4413 = vmatprep.mubr.bf16.mxu0 0
      %4414 = vmatmul.mubr.bf16.gmra.mxu0 %v4238
      %v4415 = vpop.f32.mrf.mxu0
      %v4416 = vadd.f32 0.0, %v4415
      %v4417 = vpop.f32.mrf.mxu0
      %v4418 = vpop.f32.mrf.mxu0
      %v4419 = vadd.f32 0.0, %v4418
      %v4420 = vpop.f32.mrf.mxu0
      %4421 = vmatprep.mubr.bf16.mxu0 0
      %4422 = vmatmul.mubr.bf16.gmra.mxu0 %v4239
      %v4423 = vpop.f32.mrf.mxu0
      %v4424 = vadd.f32 0.0, %v4423
      %v4425 = vpop.f32.mrf.mxu0
      %v4426 = vpop.f32.mrf.mxu0
      %v4427 = vadd.f32 0.0, %v4426
      %v4428 = vpop.f32.mrf.mxu0
      %4429 = vmatprep.mubr.bf16.mxu0 0
      %4430 = vmatmul.mubr.bf16.gmra.mxu0 %v4240
      %v4431 = vpop.f32.mrf.mxu0
      %v4432 = vadd.f32 0.0, %v4431
      %v4433 = vpop.f32.mrf.mxu0
      %v4434 = vpop.f32.mrf.mxu0
      %v4435 = vadd.f32 0.0, %v4434
      %v4436 = vpop.f32.mrf.mxu0
      %4437 = vmatprep.mubr.bf16.mxu0 0
      %4438 = vmatmul.mubr.bf16.gmra.mxu0 %v4241
      %v4439 = vpop.f32.mrf.mxu0
      %v4440 = vadd.f32 0.0, %v4439
      %v4441 = vpop.f32.mrf.mxu0
      %v4442 = vpop.f32.mrf.mxu0
      %v4443 = vadd.f32 0.0, %v4442
      %v4444 = vpop.f32.mrf.mxu0
      %4445 = vmatprep.mubr.bf16.mxu0 0
      %4446 = vmatmul.mubr.bf16.gmra.mxu0 %v4242
      %v4447 = vpop.f32.mrf.mxu0
      %v4448 = vadd.f32 0.0, %v4447
      %v4449 = vpop.f32.mrf.mxu0
      %v4450 = vpop.f32.mrf.mxu0
      %v4451 = vadd.f32 0.0, %v4450
      %v4452 = vpop.f32.mrf.mxu0
      %4453 = vmatprep.mubr.bf16.mxu0 0
      %4454 = vmatmul.mubr.bf16.gmra.mxu0 %v4243
      %v4455 = vpop.f32.mrf.mxu0
      %v4456 = vadd.f32 0.0, %v4455
      %v4457 = vpop.f32.mrf.mxu0
      %v4458 = vpop.f32.mrf.mxu0
      %v4459 = vadd.f32 0.0, %v4458
      %v4460 = vpop.f32.mrf.mxu0
      %4461 = vmatprep.mubr.bf16.mxu0 0
      %4462 = vmatmul.mubr.bf16.gmra.mxu0 %v4244
      %v4463 = vpop.f32.mrf.mxu0
      %v4464 = vadd.f32 0.0, %v4463
      %v4465 = vpop.f32.mrf.mxu0
      %v4466 = vpop.f32.mrf.mxu0
      %v4467 = vadd.f32 0.0, %v4466
      %v4468 = vpop.f32.mrf.mxu0
      %4469 = vdwg.mxu0
      %v4470 = vadd.f32 %v3891, %v4344
      %v4471 = vadd.f32 %v3894, %v4347
      %v4472 = vadd.f32 %v3899, %v4352
      %v4473 = vadd.f32 %v3902, %v4355
      %v4474 = vadd.f32 %v3907, %v4360
      %v4475 = vadd.f32 %v3910, %v4363
      %v4476 = vadd.f32 %v3915, %v4368
      %v4477 = vadd.f32 %v3918, %v4371
      %v4478 = vadd.f32 %v3923, %v4376
      %v4479 = vadd.f32 %v3926, %v4379
      %v4480 = vadd.f32 %v3931, %v4384
      %v4481 = vadd.f32 %v3934, %v4387
      %v4482 = vadd.f32 %v3939, %v4392
      %v4483 = vadd.f32 %v3942, %v4395
      %v4484 = vadd.f32 %v3947, %v4400
      %v4485 = vadd.f32 %v3950, %v4403
      %v4486 = vadd.f32 %v3955, %v4408
      %v4487 = vadd.f32 %v3958, %v4411
      %v4488 = vadd.f32 %v3963, %v4416
      %v4489 = vadd.f32 %v3966, %v4419
      %v4490 = vadd.f32 %v3971, %v4424
      %v4491 = vadd.f32 %v3974, %v4427
      %v4492 = vadd.f32 %v3979, %v4432
      %v4493 = vadd.f32 %v3982, %v4435
      %v4494 = vadd.f32 %v3987, %v4440
      %v4495 = vadd.f32 %v3990, %v4443
      %v4496 = vadd.f32 %v3995, %v4448
      %v4497 = vadd.f32 %v3998, %v4451
      %v4498 = vadd.f32 %v4003, %v4456
      %v4499 = vadd.f32 %v4006, %v4459
      %v4500 = vadd.f32 %v4011, %v4464
      %v4501 = vadd.f32 %v4014, %v4467
      %v4502 = vld [vmem:[%s2856] sm:$0xf]
      %v4503 = vld [vmem:[%s2856 + $0x4] sm:$0xf]
      %v4504 = vld [vmem:[%s2856 + $0xc] sm:$0xf]
      %v4505 = vld [vmem:[%s2856 + $0x10] sm:$0xf]
      %v4506 = vld [vmem:[%s2856 + $0x18] sm:$0xf]
      %v4507 = vld [vmem:[%s2856 + $0x1c] sm:$0xf]
      %v4508 = vld [vmem:[%s2856 + $0x24] sm:$0xf]
      %v4509 = vld [vmem:[%s2856 + $0x28] sm:$0xf]
      %v4510 = vld [vmem:[%s2856 + $0x30] sm:$0xf]
      %v4511 = vld [vmem:[%s2856 + $0x34] sm:$0xf]
      %v4512 = vld [vmem:[%s2856 + $0x3c] sm:$0xf]
      %v4513 = vld [vmem:[%s2856 + $0x40] sm:$0xf]
      %v4514 = vld [vmem:[%s2856 + $0x48] sm:$0xf]
      %v4515 = vld [vmem:[%s2856 + $0x4c] sm:$0xf]
      %v4516 = vld [vmem:[%s2856 + $0x54] sm:$0xf]
      %v4517 = vld [vmem:[%s2856 + $0x58] sm:$0xf]
      %v4518 = vld [vmem:[%s2856 + $0x60] sm:$0xf]
      %v4519 = vld [vmem:[%s2856 + $0x64] sm:$0xf]
      %v4520 = vld [vmem:[%s2856 + $0x6c] sm:$0xf]
      %v4521 = vld [vmem:[%s2856 + $0x70] sm:$0xf]
      %v4522 = vld [vmem:[%s2856 + $0x78] sm:$0xf]
      %v4523 = vld [vmem:[%s2856 + $0x7c] sm:$0xf]
      %v4524 = vld [vmem:[%s2856 + $0x84] sm:$0xf]
      %v4525 = vld [vmem:[%s2856 + $0x88] sm:$0xf]
      %v4526 = vld [vmem:[%s2856 + $0x90] sm:$0xf]
      %v4527 = vld [vmem:[%s2856 + $0x94] sm:$0xf]
      %v4528 = vld [vmem:[%s2856 + $0x9c] sm:$0xf]
      %v4529 = vld [vmem:[%s2856 + $0xa0] sm:$0xf]
      %v4530 = vld [vmem:[%s2856 + $0xa8] sm:$0xf]
      %v4531 = vld [vmem:[%s2856 + $0xac] sm:$0xf]
      %v4532 = vld [vmem:[%s2856 + $0xb4] sm:$0xf]
      %v4533 = vld [vmem:[%s2856 + $0xb8] sm:$0xf]
      %s4534 = scalar_lea.vmem %s3, 192
      %v4535 = vld [vmem:[%s4534] sm:$0xf]
      %v4536 = vld [vmem:[%s4534 + $0x4] sm:$0xf]
      %v4537 = vld [vmem:[%s4534 + $0x8] sm:$0xf]
      %v4538 = vld [vmem:[%s4534 + $0xc] sm:$0xf]
      %v4539 = vld [vmem:[%s4534 + $0x10] sm:$0xf]
      %v4540 = vld [vmem:[%s4534 + $0x14] sm:$0xf]
      %v4541 = vld [vmem:[%s4534 + $0x18] sm:$0xf]
      %v4542 = vld [vmem:[%s4534 + $0x1c] sm:$0xf]
      %v4543 = vld [vmem:[%s4534 + $0x20] sm:$0xf]
      %v4544 = vld [vmem:[%s4534 + $0x24] sm:$0xf]
      %v4545 = vld [vmem:[%s4534 + $0x28] sm:$0xf]
      %v4546 = vld [vmem:[%s4534 + $0x2c] sm:$0xf]
      %v4547 = vld [vmem:[%s4534 + $0x30] sm:$0xf]
      %v4548 = vld [vmem:[%s4534 + $0x34] sm:$0xf]
      %v4549 = vld [vmem:[%s4534 + $0x38] sm:$0xf]
      %v4550 = vld [vmem:[%s4534 + $0x3c] sm:$0xf]
      %v4583 = vunpack.c.l.b16 %v4502
      %v4584 = vunpack.c.l.b16 %v4503
      %v4585 = vunpack.c.l.b16 %v4504
      %v4586 = vunpack.c.l.b16 %v4505
      %v4587 = vunpack.c.l.b16 %v4506
      %v4588 = vunpack.c.l.b16 %v4507
      %v4589 = vunpack.c.l.b16 %v4508
      %v4590 = vunpack.c.l.b16 %v4509
      %v4591 = vunpack.c.l.b16 %v4510
      %v4592 = vunpack.c.l.b16 %v4511
      %v4593 = vunpack.c.l.b16 %v4512
      %v4594 = vunpack.c.l.b16 %v4513
      %v4595 = vunpack.c.l.b16 %v4514
      %v4596 = vunpack.c.l.b16 %v4515
      %v4597 = vunpack.c.l.b16 %v4516
      %v4598 = vunpack.c.l.b16 %v4517
      %v4599 = vunpack.c.l.b16 %v4518
      %v4600 = vunpack.c.l.b16 %v4519
      %v4601 = vunpack.c.l.b16 %v4520
      %v4602 = vunpack.c.l.b16 %v4521
      %v4603 = vunpack.c.l.b16 %v4522
      %v4604 = vunpack.c.l.b16 %v4523
      %v4605 = vunpack.c.l.b16 %v4524
      %v4606 = vunpack.c.l.b16 %v4525
      %v4607 = vunpack.c.l.b16 %v4526
      %v4608 = vunpack.c.l.b16 %v4527
      %v4609 = vunpack.c.l.b16 %v4528
      %v4610 = vunpack.c.l.b16 %v4529
      %v4611 = vunpack.c.l.b16 %v4530
      %v4612 = vunpack.c.l.b16 %v4531
      %v4613 = vunpack.c.l.b16 %v4532
      %v4614 = vunpack.c.l.b16 %v4533
      %v4615 = vpack.c.b16 %v4584, %v4583
      %v4616 = vpack.c.b16 %v4586, %v4585
      %v4617 = vpack.c.b16 %v4588, %v4587
      %v4618 = vpack.c.b16 %v4590, %v4589
      %v4619 = vpack.c.b16 %v4592, %v4591
      %v4620 = vpack.c.b16 %v4594, %v4593
      %v4621 = vpack.c.b16 %v4596, %v4595
      %v4622 = vpack.c.b16 %v4598, %v4597
      %v4623 = vpack.c.b16 %v4600, %v4599
      %v4624 = vpack.c.b16 %v4602, %v4601
      %v4625 = vpack.c.b16 %v4604, %v4603
      %v4626 = vpack.c.b16 %v4606, %v4605
      %v4627 = vpack.c.b16 %v4608, %v4607
      %v4628 = vpack.c.b16 %v4610, %v4609
      %v4629 = vpack.c.b16 %v4612, %v4611
      %v4630 = vpack.c.b16 %v4614, %v4613
      %v4663 = vunpack.c.l.b16 %v4535
      %v4664 = vunpack.c.l.b16 %v4536
      %v4665 = vunpack.c.l.b16 %v4537
      %v4666 = vunpack.c.l.b16 %v4538
      %v4667 = vunpack.c.l.b16 %v4539
      %v4668 = vunpack.c.l.b16 %v4540
      %v4669 = vunpack.c.l.b16 %v4541
      %v4670 = vunpack.c.l.b16 %v4542
      %v4671 = vunpack.c.l.b16 %v4543
      %v4672 = vunpack.c.l.b16 %v4544
      %v4673 = vunpack.c.l.b16 %v4545
      %v4674 = vunpack.c.l.b16 %v4546
      %v4675 = vunpack.c.l.b16 %v4547
      %v4676 = vunpack.c.l.b16 %v4548
      %v4677 = vunpack.c.l.b16 %v4549
      %v4678 = vunpack.c.l.b16 %v4550
      %v4679 = vpack.c.b16 %v4664, %v4663
      %v4680 = vpack.c.b16 %v4666, %v4665
      %v4681 = vpack.c.b16 %v4668, %v4667
      %v4682 = vpack.c.b16 %v4670, %v4669
      %v4683 = vpack.c.b16 %v4672, %v4671
      %v4684 = vpack.c.b16 %v4674, %v4673
      %v4685 = vpack.c.b16 %v4676, %v4675
      %v4686 = vpack.c.b16 %v4678, %v4677
      %4695 = vmatprep.subr.bf16.mxu0 0
      %4696 = vmatpush1.bf16.msra.mxu0 %v4686
      %4697 = vmatprep.subr.bf16.mxu0 0
      %4698 = vmatpush1.bf16.msra.mxu0 %v4685
      %4699 = vmatprep.subr.bf16.mxu0 0
      %4700 = vmatpush1.bf16.msra.mxu0 %v4684
      %4701 = vmatprep.subr.bf16.mxu0 0
      %4702 = vmatpush1.bf16.msra.mxu0 %v4683
      %4703 = vmatprep.subr.bf16.mxu0 0
      %4704 = vmatpush1.bf16.msra.mxu0 %v4682
      %4705 = vmatprep.subr.bf16.mxu0 0
      %4706 = vmatpush1.bf16.msra.mxu0 %v4681
      %4707 = vmatprep.subr.bf16.mxu0 0
      %4708 = vmatpush1.bf16.msra.mxu0 %v4680
      %4709 = vmatprep.subr.bf16.mxu0 0
      %4710 = vmatpush1.bf16.msra.mxu0 %v4679
      %4711 = vmatprep.subr.bf16.mxu0 0
      %4712 = vmatpush2.bf16.msra.mxu0 0
      %4713 = vmatprep.subr.bf16.mxu0 0
      %4714 = vmatpush2.bf16.msra.mxu0 0
      %4715 = vmatprep.subr.bf16.mxu0 0
      %4716 = vmatpush2.bf16.msra.mxu0 0
      %4717 = vmatprep.subr.bf16.mxu0 0
      %4718 = vmatpush2.bf16.msra.mxu0 0
      %4719 = vmatprep.subr.bf16.mxu0 0
      %4720 = vmatpush2.bf16.msra.mxu0 0
      %4721 = vmatprep.subr.bf16.mxu0 0
      %4722 = vmatpush2.bf16.msra.mxu0 0
      %4723 = vmatprep.subr.bf16.mxu0 0
      %4724 = vmatpush2.bf16.msra.mxu0 0
      %4725 = vmatprep.subr.bf16.mxu0 0
      %4726 = vmatpush2.bf16.msra.mxu0 0
      %4727 = vmatprep.mubr.bf16.mxu0 0
      %4728 = vmatmul.mubr.bf16.gmra.mxu0 %v4615
      %v4729 = vpop.f32.mrf.mxu0
      %v4730 = vadd.f32 0.0, %v4729
      %v4731 = vpop.f32.mrf.mxu0
      %v4732 = vpop.f32.mrf.mxu0
      %v4733 = vadd.f32 0.0, %v4732
      %v4734 = vpop.f32.mrf.mxu0
      %4735 = vmatprep.mubr.bf16.mxu0 0
      %4736 = vmatmul.mubr.bf16.gmra.mxu0 %v4616
      %v4737 = vpop.f32.mrf.mxu0
      %v4738 = vadd.f32 0.0, %v4737
      %v4739 = vpop.f32.mrf.mxu0
      %v4740 = vpop.f32.mrf.mxu0
      %v4741 = vadd.f32 0.0, %v4740
      %v4742 = vpop.f32.mrf.mxu0
      %4743 = vmatprep.mubr.bf16.mxu0 0
      %4744 = vmatmul.mubr.bf16.gmra.mxu0 %v4617
      %v4745 = vpop.f32.mrf.mxu0
      %v4746 = vadd.f32 0.0, %v4745
      %v4747 = vpop.f32.mrf.mxu0
      %v4748 = vpop.f32.mrf.mxu0
      %v4749 = vadd.f32 0.0, %v4748
      %v4750 = vpop.f32.mrf.mxu0
      %4751 = vmatprep.mubr.bf16.mxu0 0
      %4752 = vmatmul.mubr.bf16.gmra.mxu0 %v4618
      %v4753 = vpop.f32.mrf.mxu0
      %v4754 = vadd.f32 0.0, %v4753
      %v4755 = vpop.f32.mrf.mxu0
      %v4756 = vpop.f32.mrf.mxu0
      %v4757 = vadd.f32 0.0, %v4756
      %v4758 = vpop.f32.mrf.mxu0
      %4759 = vmatprep.mubr.bf16.mxu0 0
      %4760 = vmatmul.mubr.bf16.gmra.mxu0 %v4619
      %v4761 = vpop.f32.mrf.mxu0
      %v4762 = vadd.f32 0.0, %v4761
      %v4763 = vpop.f32.mrf.mxu0
      %v4764 = vpop.f32.mrf.mxu0
      %v4765 = vadd.f32 0.0, %v4764
      %v4766 = vpop.f32.mrf.mxu0
      %4767 = vmatprep.mubr.bf16.mxu0 0
      %4768 = vmatmul.mubr.bf16.gmra.mxu0 %v4620
      %v4769 = vpop.f32.mrf.mxu0
      %v4770 = vadd.f32 0.0, %v4769
      %v4771 = vpop.f32.mrf.mxu0
      %v4772 = vpop.f32.mrf.mxu0
      %v4773 = vadd.f32 0.0, %v4772
      %v4774 = vpop.f32.mrf.mxu0
      %4775 = vmatprep.mubr.bf16.mxu0 0
      %4776 = vmatmul.mubr.bf16.gmra.mxu0 %v4621
      %v4777 = vpop.f32.mrf.mxu0
      %v4778 = vadd.f32 0.0, %v4777
      %v4779 = vpop.f32.mrf.mxu0
      %v4780 = vpop.f32.mrf.mxu0
      %v4781 = vadd.f32 0.0, %v4780
      %v4782 = vpop.f32.mrf.mxu0
      %4783 = vmatprep.mubr.bf16.mxu0 0
      %4784 = vmatmul.mubr.bf16.gmra.mxu0 %v4622
      %v4785 = vpop.f32.mrf.mxu0
      %v4786 = vadd.f32 0.0, %v4785
      %v4787 = vpop.f32.mrf.mxu0
      %v4788 = vpop.f32.mrf.mxu0
      %v4789 = vadd.f32 0.0, %v4788
      %v4790 = vpop.f32.mrf.mxu0
      %4791 = vmatprep.mubr.bf16.mxu0 0
      %4792 = vmatmul.mubr.bf16.gmra.mxu0 %v4623
      %v4793 = vpop.f32.mrf.mxu0
      %v4794 = vadd.f32 0.0, %v4793
      %v4795 = vpop.f32.mrf.mxu0
      %v4796 = vpop.f32.mrf.mxu0
      %v4797 = vadd.f32 0.0, %v4796
      %v4798 = vpop.f32.mrf.mxu0
      %4799 = vmatprep.mubr.bf16.mxu0 0
      %4800 = vmatmul.mubr.bf16.gmra.mxu0 %v4624
      %v4801 = vpop.f32.mrf.mxu0
      %v4802 = vadd.f32 0.0, %v4801
      %v4803 = vpop.f32.mrf.mxu0
      %v4804 = vpop.f32.mrf.mxu0
      %v4805 = vadd.f32 0.0, %v4804
      %v4806 = vpop.f32.mrf.mxu0
      %4807 = vmatprep.mubr.bf16.mxu0 0
      %4808 = vmatmul.mubr.bf16.gmra.mxu0 %v4625
      %v4809 = vpop.f32.mrf.mxu0
      %v4810 = vadd.f32 0.0, %v4809
      %v4811 = vpop.f32.mrf.mxu0
      %v4812 = vpop.f32.mrf.mxu0
      %v4813 = vadd.f32 0.0, %v4812
      %v4814 = vpop.f32.mrf.mxu0
      %4815 = vmatprep.mubr.bf16.mxu0 0
      %4816 = vmatmul.mubr.bf16.gmra.mxu0 %v4626
      %v4817 = vpop.f32.mrf.mxu0
      %v4818 = vadd.f32 0.0, %v4817
      %v4819 = vpop.f32.mrf.mxu0
      %v4820 = vpop.f32.mrf.mxu0
      %v4821 = vadd.f32 0.0, %v4820
      %v4822 = vpop.f32.mrf.mxu0
      %4823 = vmatprep.mubr.bf16.mxu0 0
      %4824 = vmatmul.mubr.bf16.gmra.mxu0 %v4627
      %v4825 = vpop.f32.mrf.mxu0
      %v4826 = vadd.f32 0.0, %v4825
      %v4827 = vpop.f32.mrf.mxu0
      %v4828 = vpop.f32.mrf.mxu0
      %v4829 = vadd.f32 0.0, %v4828
      %v4830 = vpop.f32.mrf.mxu0
      %4831 = vmatprep.mubr.bf16.mxu0 0
      %4832 = vmatmul.mubr.bf16.gmra.mxu0 %v4628
      %v4833 = vpop.f32.mrf.mxu0
      %v4834 = vadd.f32 0.0, %v4833
      %v4835 = vpop.f32.mrf.mxu0
      %v4836 = vpop.f32.mrf.mxu0
      %v4837 = vadd.f32 0.0, %v4836
      %v4838 = vpop.f32.mrf.mxu0
      %4839 = vmatprep.mubr.bf16.mxu0 0
      %4840 = vmatmul.mubr.bf16.gmra.mxu0 %v4629
      %v4841 = vpop.f32.mrf.mxu0
      %v4842 = vadd.f32 0.0, %v4841
      %v4843 = vpop.f32.mrf.mxu0
      %v4844 = vpop.f32.mrf.mxu0
      %v4845 = vadd.f32 0.0, %v4844
      %v4846 = vpop.f32.mrf.mxu0
      %4847 = vmatprep.mubr.bf16.mxu0 0
      %4848 = vmatmul.mubr.bf16.gmra.mxu0 %v4630
      %v4849 = vpop.f32.mrf.mxu0
      %v4850 = vadd.f32 0.0, %v4849
      %v4851 = vpop.f32.mrf.mxu0
      %v4852 = vpop.f32.mrf.mxu0
      %v4853 = vadd.f32 0.0, %v4852
      %v4854 = vpop.f32.mrf.mxu0
      %4855 = vdwg.mxu0
      %v4856 = vadd.f32 %v4470, %v4730
      %v4857 = vadd.f32 %v4471, %v4733
      %v4858 = vadd.f32 %v4472, %v4738
      %v4859 = vadd.f32 %v4473, %v4741
      %v4860 = vadd.f32 %v4474, %v4746
      %v4861 = vadd.f32 %v4475, %v4749
      %v4862 = vadd.f32 %v4476, %v4754
      %v4863 = vadd.f32 %v4477, %v4757
      %v4864 = vadd.f32 %v4478, %v4762
      %v4865 = vadd.f32 %v4479, %v4765
      %v4866 = vadd.f32 %v4480, %v4770
      %v4867 = vadd.f32 %v4481, %v4773
      %v4868 = vadd.f32 %v4482, %v4778
      %v4869 = vadd.f32 %v4483, %v4781
      %v4870 = vadd.f32 %v4484, %v4786
      %v4871 = vadd.f32 %v4485, %v4789
      %v4872 = vadd.f32 %v4486, %v4794
      %v4873 = vadd.f32 %v4487, %v4797
      %v4874 = vadd.f32 %v4488, %v4802
      %v4875 = vadd.f32 %v4489, %v4805
      %v4876 = vadd.f32 %v4490, %v4810
      %v4877 = vadd.f32 %v4491, %v4813
      %v4878 = vadd.f32 %v4492, %v4818
      %v4879 = vadd.f32 %v4493, %v4821
      %v4880 = vadd.f32 %v4494, %v4826
      %v4881 = vadd.f32 %v4495, %v4829
      %v4882 = vadd.f32 %v4496, %v4834
      %v4883 = vadd.f32 %v4497, %v4837
      %v4884 = vadd.f32 %v4498, %v4842
      %v4885 = vadd.f32 %v4499, %v4845
      %v4886 = vadd.f32 %v4500, %v4850
      %v4887 = vadd.f32 %v4501, %v4853
      %v4888 = vld [vmem:[%s2856] sm:$0xf]
      %v4889 = vld [vmem:[%s2856 + $0x4] sm:$0xf]
      %v4890 = vld [vmem:[%s2856 + $0x8] sm:$0x1]
      %v4891 = vld [vmem:[%s2856 + $0xc] sm:$0xf]
      %v4892 = vld [vmem:[%s2856 + $0x10] sm:$0xf]
      %v4893 = vld [vmem:[%s2856 + $0x14] sm:$0x1]
      %v4894 = vld [vmem:[%s2856 + $0x18] sm:$0xf]
      %v4895 = vld [vmem:[%s2856 + $0x1c] sm:$0xf]
      %v4896 = vld [vmem:[%s2856 + $0x20] sm:$0x1]
      %v4897 = vld [vmem:[%s2856 + $0x24] sm:$0xf]
      %v4898 = vld [vmem:[%s2856 + $0x28] sm:$0xf]
      %v4899 = vld [vmem:[%s2856 + $0x2c] sm:$0x1]
      %v4900 = vld [vmem:[%s2856 + $0x30] sm:$0xf]
      %v4901 = vld [vmem:[%s2856 + $0x34] sm:$0xf]
      %v4902 = vld [vmem:[%s2856 + $0x38] sm:$0x1]
      %v4903 = vld [vmem:[%s2856 + $0x3c] sm:$0xf]
      %v4904 = vld [vmem:[%s2856 + $0x40] sm:$0xf]
      %v4905 = vld [vmem:[%s2856 + $0x44] sm:$0x1]
      %v4906 = vld [vmem:[%s2856 + $0x48] sm:$0xf]
      %v4907 = vld [vmem:[%s2856 + $0x4c] sm:$0xf]
      %v4908 = vld [vmem:[%s2856 + $0x50] sm:$0x1]
      %v4909 = vld [vmem:[%s2856 + $0x54] sm:$0xf]
      %v4910 = vld [vmem:[%s2856 + $0x58] sm:$0xf]
      %v4911 = vld [vmem:[%s2856 + $0x5c] sm:$0x1]
      %v4912 = vld [vmem:[%s2856 + $0x60] sm:$0xf]
      %v4913 = vld [vmem:[%s2856 + $0x64] sm:$0xf]
      %v4914 = vld [vmem:[%s2856 + $0x68] sm:$0x1]
      %v4915 = vld [vmem:[%s2856 + $0x6c] sm:$0xf]
      %v4916 = vld [vmem:[%s2856 + $0x70] sm:$0xf]
      %v4917 = vld [vmem:[%s2856 + $0x74] sm:$0x1]
      %v4918 = vld [vmem:[%s2856 + $0x78] sm:$0xf]
      %v4919 = vld [vmem:[%s2856 + $0x7c] sm:$0xf]
      %v4920 = vld [vmem:[%s2856 + $0x80] sm:$0x1]
      %v4921 = vld [vmem:[%s2856 + $0x84] sm:$0xf]
      %v4922 = vld [vmem:[%s2856 + $0x88] sm:$0xf]
      %v4923 = vld [vmem:[%s2856 + $0x8c] sm:$0x1]
      %v4924 = vld [vmem:[%s2856 + $0x90] sm:$0xf]
      %v4925 = vld [vmem:[%s2856 + $0x94] sm:$0xf]
      %v4926 = vld [vmem:[%s2856 + $0x98] sm:$0x1]
      %v4927 = vld [vmem:[%s2856 + $0x9c] sm:$0xf]
      %v4928 = vld [vmem:[%s2856 + $0xa0] sm:$0xf]
      %v4929 = vld [vmem:[%s2856 + $0xa4] sm:$0x1]
      %v4930 = vld [vmem:[%s2856 + $0xa8] sm:$0xf]
      %v4931 = vld [vmem:[%s2856 + $0xac] sm:$0xf]
      %v4932 = vld [vmem:[%s2856 + $0xb0] sm:$0x1]
      %v4933 = vld [vmem:[%s2856 + $0xb4] sm:$0xf]
      %v4934 = vld [vmem:[%s2856 + $0xb8] sm:$0xf]
      %v4935 = vld [vmem:[%s2856 + $0xbc] sm:$0x1]
      %v4937 = vshrl.u32 %v4888, 16
      %v4939 = vrot.slane %v4937, 4
      %v4940 = vshll.u32 %v4888, 16
      %v4942 = vrot.slane %v4940, 5
      %v4943 = vor.u32 %v4939, %v4942
      %v4944 = vrot.slane %v4943, 4
      %v4946 = vshll.u32 %v4889, 16
      %v4948 = vrot.slane %v4946, 5
      %v4949 = vsel %vm3037, %v4944, %v4948
      %v4950 = vshrl.u32 %v4889, 16
      %v4952 = vrot.slane %v4950, 4
      %v4953 = vor.u32 %v4952, %v4948
      %v4954 = vrot.slane %v4953, 4
      %v4956 = vshll.u32 %v4890, 16
      %v4958 = vrot.slane %v4956, 5
      %v4959 = vsel %vm3037, %v4954, %v4958
      %v4961 = vshrl.u32 %v4891, 16
      %v4963 = vrot.slane %v4961, 4
      %v4964 = vshll.u32 %v4891, 16
      %v4966 = vrot.slane %v4964, 5
      %v4967 = vor.u32 %v4963, %v4966
      %v4968 = vrot.slane %v4967, 4
      %v4970 = vshll.u32 %v4892, 16
      %v4972 = vrot.slane %v4970, 5
      %v4973 = vsel %vm3037, %v4968, %v4972
      %v4974 = vshrl.u32 %v4892, 16
      %v4976 = vrot.slane %v4974, 4
      %v4977 = vor.u32 %v4976, %v4972
      %v4978 = vrot.slane %v4977, 4
      %v4980 = vshll.u32 %v4893, 16
      %v4982 = vrot.slane %v4980, 5
      %v4983 = vsel %vm3037, %v4978, %v4982
      %v4985 = vshrl.u32 %v4894, 16
      %v4987 = vrot.slane %v4985, 4
      %v4988 = vshll.u32 %v4894, 16
      %v4990 = vrot.slane %v4988, 5
      %v4991 = vor.u32 %v4987, %v4990
      %v4992 = vrot.slane %v4991, 4
      %v4994 = vshll.u32 %v4895, 16
      %v4996 = vrot.slane %v4994, 5
      %v4997 = vsel %vm3037, %v4992, %v4996
      %v4998 = vshrl.u32 %v4895, 16
      %v5000 = vrot.slane %v4998, 4
      %v5001 = vor.u32 %v5000, %v4996
      %v5002 = vrot.slane %v5001, 4
      %v5004 = vshll.u32 %v4896, 16
      %v5006 = vrot.slane %v5004, 5
      %v5007 = vsel %vm3037, %v5002, %v5006
      %v5009 = vshrl.u32 %v4897, 16
      %v5011 = vrot.slane %v5009, 4
      %v5012 = vshll.u32 %v4897, 16
      %v5014 = vrot.slane %v5012, 5
      %v5015 = vor.u32 %v5011, %v5014
      %v5016 = vrot.slane %v5015, 4
      %v5018 = vshll.u32 %v4898, 16
      %v5020 = vrot.slane %v5018, 5
      %v5021 = vsel %vm3037, %v5016, %v5020
      %v5022 = vshrl.u32 %v4898, 16
      %v5024 = vrot.slane %v5022, 4
      %v5025 = vor.u32 %v5024, %v5020
      %v5026 = vrot.slane %v5025, 4
      %v5028 = vshll.u32 %v4899, 16
      %v5030 = vrot.slane %v5028, 5
      %v5031 = vsel %vm3037, %v5026, %v5030
      %v5033 = vshrl.u32 %v4900, 16
      %v5035 = vrot.slane %v5033, 4
      %v5036 = vshll.u32 %v4900, 16
      %v5038 = vrot.slane %v5036, 5
      %v5039 = vor.u32 %v5035, %v5038
      %v5040 = vrot.slane %v5039, 4
      %v5042 = vshll.u32 %v4901, 16
      %v5044 = vrot.slane %v5042, 5
      %v5045 = vsel %vm3037, %v5040, %v5044
      %v5046 = vshrl.u32 %v4901, 16
      %v5048 = vrot.slane %v5046, 4
      %v5049 = vor.u32 %v5048, %v5044
      %v5050 = vrot.slane %v5049, 4
      %v5052 = vshll.u32 %v4902, 16
      %v5054 = vrot.slane %v5052, 5
      %v5055 = vsel %vm3037, %v5050, %v5054
      %v5057 = vshrl.u32 %v4903, 16
      %v5059 = vrot.slane %v5057, 4
      %v5060 = vshll.u32 %v4903, 16
      %v5062 = vrot.slane %v5060, 5
      %v5063 = vor.u32 %v5059, %v5062
      %v5064 = vrot.slane %v5063, 4
      %v5066 = vshll.u32 %v4904, 16
      %v5068 = vrot.slane %v5066, 5
      %v5069 = vsel %vm3037, %v5064, %v5068
      %v5070 = vshrl.u32 %v4904, 16
      %v5072 = vrot.slane %v5070, 4
      %v5073 = vor.u32 %v5072, %v5068
      %v5074 = vrot.slane %v5073, 4
      %v5076 = vshll.u32 %v4905, 16
      %v5078 = vrot.slane %v5076, 5
      %v5079 = vsel %vm3037, %v5074, %v5078
      %v5081 = vshrl.u32 %v4906, 16
      %v5083 = vrot.slane %v5081, 4
      %v5084 = vshll.u32 %v4906, 16
      %v5086 = vrot.slane %v5084, 5
      %v5087 = vor.u32 %v5083, %v5086
      %v5088 = vrot.slane %v5087, 4
      %v5090 = vshll.u32 %v4907, 16
      %v5092 = vrot.slane %v5090, 5
      %v5093 = vsel %vm3037, %v5088, %v5092
      %v5094 = vshrl.u32 %v4907, 16
      %v5096 = vrot.slane %v5094, 4
      %v5097 = vor.u32 %v5096, %v5092
      %v5098 = vrot.slane %v5097, 4
      %v5100 = vshll.u32 %v4908, 16
      %v5102 = vrot.slane %v5100, 5
      %v5103 = vsel %vm3037, %v5098, %v5102
      %v5105 = vshrl.u32 %v4909, 16
      %v5107 = vrot.slane %v5105, 4
      %v5108 = vshll.u32 %v4909, 16
      %v5110 = vrot.slane %v5108, 5
      %v5111 = vor.u32 %v5107, %v5110
      %v5112 = vrot.slane %v5111, 4
      %v5114 = vshll.u32 %v4910, 16
      %v5116 = vrot.slane %v5114, 5
      %v5117 = vsel %vm3037, %v5112, %v5116
      %v5118 = vshrl.u32 %v4910, 16
      %v5120 = vrot.slane %v5118, 4
      %v5121 = vor.u32 %v5120, %v5116
      %v5122 = vrot.slane %v5121, 4
      %v5124 = vshll.u32 %v4911, 16
      %v5126 = vrot.slane %v5124, 5
      %v5127 = vsel %vm3037, %v5122, %v5126
      %v5129 = vshrl.u32 %v4912, 16
      %v5131 = vrot.slane %v5129, 4
      %v5132 = vshll.u32 %v4912, 16
      %v5134 = vrot.slane %v5132, 5
      %v5135 = vor.u32 %v5131, %v5134
      %v5136 = vrot.slane %v5135, 4
      %v5138 = vshll.u32 %v4913, 16
      %v5140 = vrot.slane %v5138, 5
      %v5141 = vsel %vm3037, %v5136, %v5140
      %v5142 = vshrl.u32 %v4913, 16
      %v5144 = vrot.slane %v5142, 4
      %v5145 = vor.u32 %v5144, %v5140
      %v5146 = vrot.slane %v5145, 4
      %v5148 = vshll.u32 %v4914, 16
      %v5150 = vrot.slane %v5148, 5
      %v5151 = vsel %vm3037, %v5146, %v5150
      %v5153 = vshrl.u32 %v4915, 16
      %v5155 = vrot.slane %v5153, 4
      %v5156 = vshll.u32 %v4915, 16
      %v5158 = vrot.slane %v5156, 5
      %v5159 = vor.u32 %v5155, %v5158
      %v5160 = vrot.slane %v5159, 4
      %v5162 = vshll.u32 %v4916, 16
      %v5164 = vrot.slane %v5162, 5
      %v5165 = vsel %vm3037, %v5160, %v5164
      %v5166 = vshrl.u32 %v4916, 16
      %v5168 = vrot.slane %v5166, 4
      %v5169 = vor.u32 %v5168, %v5164
      %v5170 = vrot.slane %v5169, 4
      %v5172 = vshll.u32 %v4917, 16
      %v5174 = vrot.slane %v5172, 5
      %v5175 = vsel %vm3037, %v5170, %v5174
      %v5177 = vshrl.u32 %v4918, 16
      %v5179 = vrot.slane %v5177, 4
      %v5180 = vshll.u32 %v4918, 16
      %v5182 = vrot.slane %v5180, 5
      %v5183 = vor.u32 %v5179, %v5182
      %v5184 = vrot.slane %v5183, 4
      %v5186 = vshll.u32 %v4919, 16
      %v5188 = vrot.slane %v5186, 5
      %v5189 = vsel %vm3037, %v5184, %v5188
      %v5190 = vshrl.u32 %v4919, 16
      %v5192 = vrot.slane %v5190, 4
      %v5193 = vor.u32 %v5192, %v5188
      %v5194 = vrot.slane %v5193, 4
      %v5196 = vshll.u32 %v4920, 16
      %v5198 = vrot.slane %v5196, 5
      %v5199 = vsel %vm3037, %v5194, %v5198
      %v5201 = vshrl.u32 %v4921, 16
      %v5203 = vrot.slane %v5201, 4
      %v5204 = vshll.u32 %v4921, 16
      %v5206 = vrot.slane %v5204, 5
      %v5207 = vor.u32 %v5203, %v5206
      %v5208 = vrot.slane %v5207, 4
      %v5210 = vshll.u32 %v4922, 16
      %v5212 = vrot.slane %v5210, 5
      %v5213 = vsel %vm3037, %v5208, %v5212
      %v5214 = vshrl.u32 %v4922, 16
      %v5216 = vrot.slane %v5214, 4
      %v5217 = vor.u32 %v5216, %v5212
      %v5218 = vrot.slane %v5217, 4
      %v5220 = vshll.u32 %v4923, 16
      %v5222 = vrot.slane %v5220, 5
      %v5223 = vsel %vm3037, %v5218, %v5222
      %v5225 = vshrl.u32 %v4924, 16
      %v5227 = vrot.slane %v5225, 4
      %v5228 = vshll.u32 %v4924, 16
      %v5230 = vrot.slane %v5228, 5
      %v5231 = vor.u32 %v5227, %v5230
      %v5232 = vrot.slane %v5231, 4
      %v5234 = vshll.u32 %v4925, 16
      %v5236 = vrot.slane %v5234, 5
      %v5237 = vsel %vm3037, %v5232, %v5236
      %v5238 = vshrl.u32 %v4925, 16
      %v5240 = vrot.slane %v5238, 4
      %v5241 = vor.u32 %v5240, %v5236
      %v5242 = vrot.slane %v5241, 4
      %v5244 = vshll.u32 %v4926, 16
      %v5246 = vrot.slane %v5244, 5
      %v5247 = vsel %vm3037, %v5242, %v5246
      %v5249 = vshrl.u32 %v4927, 16
      %v5251 = vrot.slane %v5249, 4
      %v5252 = vshll.u32 %v4927, 16
      %v5254 = vrot.slane %v5252, 5
      %v5255 = vor.u32 %v5251, %v5254
      %v5256 = vrot.slane %v5255, 4
      %v5258 = vshll.u32 %v4928, 16
      %v5260 = vrot.slane %v5258, 5
      %v5261 = vsel %vm3037, %v5256, %v5260
      %v5262 = vshrl.u32 %v4928, 16
      %v5264 = vrot.slane %v5262, 4
      %v5265 = vor.u32 %v5264, %v5260
      %v5266 = vrot.slane %v5265, 4
      %v5268 = vshll.u32 %v4929, 16
      %v5270 = vrot.slane %v5268, 5
      %v5271 = vsel %vm3037, %v5266, %v5270
      %v5273 = vshrl.u32 %v4930, 16
      %v5275 = vrot.slane %v5273, 4
      %v5276 = vshll.u32 %v4930, 16
      %v5278 = vrot.slane %v5276, 5
      %v5279 = vor.u32 %v5275, %v5278
      %v5280 = vrot.slane %v5279, 4
      %v5282 = vshll.u32 %v4931, 16
      %v5284 = vrot.slane %v5282, 5
      %v5285 = vsel %vm3037, %v5280, %v5284
      %v5286 = vshrl.u32 %v4931, 16
      %v5288 = vrot.slane %v5286, 4
      %v5289 = vor.u32 %v5288, %v5284
      %v5290 = vrot.slane %v5289, 4
      %v5292 = vshll.u32 %v4932, 16
      %v5294 = vrot.slane %v5292, 5
      %v5295 = vsel %vm3037, %v5290, %v5294
      %v5297 = vshrl.u32 %v4933, 16
      %v5299 = vrot.slane %v5297, 4
      %v5300 = vshll.u32 %v4933, 16
      %v5302 = vrot.slane %v5300, 5
      %v5303 = vor.u32 %v5299, %v5302
      %v5304 = vrot.slane %v5303, 4
      %v5306 = vshll.u32 %v4934, 16
      %v5308 = vrot.slane %v5306, 5
      %v5309 = vsel %vm3037, %v5304, %v5308
      %v5310 = vshrl.u32 %v4934, 16
      %v5312 = vrot.slane %v5310, 4
      %v5313 = vor.u32 %v5312, %v5308
      %v5314 = vrot.slane %v5313, 4
      %v5316 = vshll.u32 %v4935, 16
      %v5318 = vrot.slane %v5316, 5
      %v5319 = vsel %vm3037, %v5314, %v5318
      %s5320 = scalar_lea.vmem %s3, 256
      %v5321 = vld [vmem:[%s5320] sm:$0xf]
      %v5322 = vld [vmem:[%s5320 + $0x4] sm:$0xf]
      %v5323 = vld [vmem:[%s5320 + $0x8] sm:$0xf]
      %v5324 = vld [vmem:[%s5320 + $0xc] sm:$0xf]
      %v5325 = vld [vmem:[%s5320 + $0x10] sm:$0xf]
      %v5326 = vld [vmem:[%s5320 + $0x14] sm:$0xf]
      %v5327 = vld [vmem:[%s5320 + $0x18] sm:$0xf]
      %v5328 = vld [vmem:[%s5320 + $0x1c] sm:$0xf]
      %v5329 = vld [vmem:[%s5320 + $0x20] sm:$0xf]
      %v5330 = vld [vmem:[%s5320 + $0x24] sm:$0xf]
      %v5331 = vld [vmem:[%s5320 + $0x28] sm:$0xf]
      %v5332 = vld [vmem:[%s5320 + $0x2c] sm:$0xf]
      %v5333 = vld [vmem:[%s5320 + $0x30] sm:$0xf]
      %v5334 = vld [vmem:[%s5320 + $0x34] sm:$0xf]
      %v5335 = vld [vmem:[%s5320 + $0x38] sm:$0xf]
      %v5336 = vld [vmem:[%s5320 + $0x3c] sm:$0xf]
      %v5337 = vunpack.c.l.b16 %v4949
      %v5338 = vunpack.c.l.b16 %v4959
      %v5339 = vunpack.c.l.b16 %v4973
      %v5340 = vunpack.c.l.b16 %v4983
      %v5341 = vunpack.c.l.b16 %v4997
      %v5342 = vunpack.c.l.b16 %v5007
      %v5343 = vunpack.c.l.b16 %v5021
      %v5344 = vunpack.c.l.b16 %v5031
      %v5345 = vunpack.c.l.b16 %v5045
      %v5346 = vunpack.c.l.b16 %v5055
      %v5347 = vunpack.c.l.b16 %v5069
      %v5348 = vunpack.c.l.b16 %v5079
      %v5349 = vunpack.c.l.b16 %v5093
      %v5350 = vunpack.c.l.b16 %v5103
      %v5351 = vunpack.c.l.b16 %v5117
      %v5352 = vunpack.c.l.b16 %v5127
      %v5353 = vunpack.c.l.b16 %v5141
      %v5354 = vunpack.c.l.b16 %v5151
      %v5355 = vunpack.c.l.b16 %v5165
      %v5356 = vunpack.c.l.b16 %v5175
      %v5357 = vunpack.c.l.b16 %v5189
      %v5358 = vunpack.c.l.b16 %v5199
      %v5359 = vunpack.c.l.b16 %v5213
      %v5360 = vunpack.c.l.b16 %v5223
      %v5361 = vunpack.c.l.b16 %v5237
      %v5362 = vunpack.c.l.b16 %v5247
      %v5363 = vunpack.c.l.b16 %v5261
      %v5364 = vunpack.c.l.b16 %v5271
      %v5365 = vunpack.c.l.b16 %v5285
      %v5366 = vunpack.c.l.b16 %v5295
      %v5367 = vunpack.c.l.b16 %v5309
      %v5368 = vunpack.c.l.b16 %v5319
      %v5369 = vpack.c.b16 %v5338, %v5337
      %v5370 = vpack.c.b16 %v5340, %v5339
      %v5371 = vpack.c.b16 %v5342, %v5341
      %v5372 = vpack.c.b16 %v5344, %v5343
      %v5373 = vpack.c.b16 %v5346, %v5345
      %v5374 = vpack.c.b16 %v5348, %v5347
      %v5375 = vpack.c.b16 %v5350, %v5349
      %v5376 = vpack.c.b16 %v5352, %v5351
      %v5377 = vpack.c.b16 %v5354, %v5353
      %v5378 = vpack.c.b16 %v5356, %v5355
      %v5379 = vpack.c.b16 %v5358, %v5357
      %v5380 = vpack.c.b16 %v5360, %v5359
      %v5381 = vpack.c.b16 %v5362, %v5361
      %v5382 = vpack.c.b16 %v5364, %v5363
      %v5383 = vpack.c.b16 %v5366, %v5365
      %v5384 = vpack.c.b16 %v5368, %v5367
      %v5417 = vunpack.c.l.b16 %v5321
      %v5418 = vunpack.c.l.b16 %v5322
      %v5419 = vunpack.c.l.b16 %v5323
      %v5420 = vunpack.c.l.b16 %v5324
      %v5421 = vunpack.c.l.b16 %v5325
      %v5422 = vunpack.c.l.b16 %v5326
      %v5423 = vunpack.c.l.b16 %v5327
      %v5424 = vunpack.c.l.b16 %v5328
      %v5425 = vunpack.c.l.b16 %v5329
      %v5426 = vunpack.c.l.b16 %v5330
      %v5427 = vunpack.c.l.b16 %v5331
      %v5428 = vunpack.c.l.b16 %v5332
      %v5429 = vunpack.c.l.b16 %v5333
      %v5430 = vunpack.c.l.b16 %v5334
      %v5431 = vunpack.c.l.b16 %v5335
      %v5432 = vunpack.c.l.b16 %v5336
      %v5433 = vpack.c.b16 %v5418, %v5417
      %v5434 = vpack.c.b16 %v5420, %v5419
      %v5435 = vpack.c.b16 %v5422, %v5421
      %v5436 = vpack.c.b16 %v5424, %v5423
      %v5437 = vpack.c.b16 %v5426, %v5425
      %v5438 = vpack.c.b16 %v5428, %v5427
      %v5439 = vpack.c.b16 %v5430, %v5429
      %v5440 = vpack.c.b16 %v5432, %v5431
      %5449 = vmatprep.subr.bf16.mxu0 0
      %5450 = vmatpush1.bf16.msra.mxu0 %v5440
      %5451 = vmatprep.subr.bf16.mxu0 0
      %5452 = vmatpush1.bf16.msra.mxu0 %v5439
      %5453 = vmatprep.subr.bf16.mxu0 0
      %5454 = vmatpush1.bf16.msra.mxu0 %v5438
      %5455 = vmatprep.subr.bf16.mxu0 0
      %5456 = vmatpush1.bf16.msra.mxu0 %v5437
      %5457 = vmatprep.subr.bf16.mxu0 0
      %5458 = vmatpush1.bf16.msra.mxu0 %v5436
      %5459 = vmatprep.subr.bf16.mxu0 0
      %5460 = vmatpush1.bf16.msra.mxu0 %v5435
      %5461 = vmatprep.subr.bf16.mxu0 0
      %5462 = vmatpush1.bf16.msra.mxu0 %v5434
      %5463 = vmatprep.subr.bf16.mxu0 0
      %5464 = vmatpush1.bf16.msra.mxu0 %v5433
      %5465 = vmatprep.subr.bf16.mxu0 0
      %5466 = vmatpush2.bf16.msra.mxu0 0
      %5467 = vmatprep.subr.bf16.mxu0 0
      %5468 = vmatpush2.bf16.msra.mxu0 0
      %5469 = vmatprep.subr.bf16.mxu0 0
      %5470 = vmatpush2.bf16.msra.mxu0 0
      %5471 = vmatprep.subr.bf16.mxu0 0
      %5472 = vmatpush2.bf16.msra.mxu0 0
      %5473 = vmatprep.subr.bf16.mxu0 0
      %5474 = vmatpush2.bf16.msra.mxu0 0
      %5475 = vmatprep.subr.bf16.mxu0 0
      %5476 = vmatpush2.bf16.msra.mxu0 0
      %5477 = vmatprep.subr.bf16.mxu0 0
      %5478 = vmatpush2.bf16.msra.mxu0 0
      %5479 = vmatprep.subr.bf16.mxu0 0
      %5480 = vmatpush2.bf16.msra.mxu0 0
      %5481 = vmatprep.mubr.bf16.mxu0 0
      %5482 = vmatmul.mubr.bf16.gmra.mxu0 %v5369
      %v5483 = vpop.f32.mrf.mxu0
      %v5484 = vadd.f32 0.0, %v5483
      %v5485 = vpop.f32.mrf.mxu0
      %v5486 = vpop.f32.mrf.mxu0
      %v5487 = vadd.f32 0.0, %v5486
      %v5488 = vpop.f32.mrf.mxu0
      %5489 = vmatprep.mubr.bf16.mxu0 0
      %5490 = vmatmul.mubr.bf16.gmra.mxu0 %v5370
      %v5491 = vpop.f32.mrf.mxu0
      %v5492 = vadd.f32 0.0, %v5491
      %v5493 = vpop.f32.mrf.mxu0
      %v5494 = vpop.f32.mrf.mxu0
      %v5495 = vadd.f32 0.0, %v5494
      %v5496 = vpop.f32.mrf.mxu0
      %5497 = vmatprep.mubr.bf16.mxu0 0
      %5498 = vmatmul.mubr.bf16.gmra.mxu0 %v5371
      %v5499 = vpop.f32.mrf.mxu0
      %v5500 = vadd.f32 0.0, %v5499
      %v5501 = vpop.f32.mrf.mxu0
      %v5502 = vpop.f32.mrf.mxu0
      %v5503 = vadd.f32 0.0, %v5502
      %v5504 = vpop.f32.mrf.mxu0
      %5505 = vmatprep.mubr.bf16.mxu0 0
      %5506 = vmatmul.mubr.bf16.gmra.mxu0 %v5372
      %v5507 = vpop.f32.mrf.mxu0
      %v5508 = vadd.f32 0.0, %v5507
      %v5509 = vpop.f32.mrf.mxu0
      %v5510 = vpop.f32.mrf.mxu0
      %v5511 = vadd.f32 0.0, %v5510
      %v5512 = vpop.f32.mrf.mxu0
      %5513 = vmatprep.mubr.bf16.mxu0 0
      %5514 = vmatmul.mubr.bf16.gmra.mxu0 %v5373
      %v5515 = vpop.f32.mrf.mxu0
      %v5516 = vadd.f32 0.0, %v5515
      %v5517 = vpop.f32.mrf.mxu0
      %v5518 = vpop.f32.mrf.mxu0
      %v5519 = vadd.f32 0.0, %v5518
      %v5520 = vpop.f32.mrf.mxu0
      %5521 = vmatprep.mubr.bf16.mxu0 0
      %5522 = vmatmul.mubr.bf16.gmra.mxu0 %v5374
      %v5523 = vpop.f32.mrf.mxu0
      %v5524 = vadd.f32 0.0, %v5523
      %v5525 = vpop.f32.mrf.mxu0
      %v5526 = vpop.f32.mrf.mxu0
      %v5527 = vadd.f32 0.0, %v5526
      %v5528 = vpop.f32.mrf.mxu0
      %5529 = vmatprep.mubr.bf16.mxu0 0
      %5530 = vmatmul.mubr.bf16.gmra.mxu0 %v5375
      %v5531 = vpop.f32.mrf.mxu0
      %v5532 = vadd.f32 0.0, %v5531
      %v5533 = vpop.f32.mrf.mxu0
      %v5534 = vpop.f32.mrf.mxu0
      %v5535 = vadd.f32 0.0, %v5534
      %v5536 = vpop.f32.mrf.mxu0
      %5537 = vmatprep.mubr.bf16.mxu0 0
      %5538 = vmatmul.mubr.bf16.gmra.mxu0 %v5376
      %v5539 = vpop.f32.mrf.mxu0
      %v5540 = vadd.f32 0.0, %v5539
      %v5541 = vpop.f32.mrf.mxu0
      %v5542 = vpop.f32.mrf.mxu0
      %v5543 = vadd.f32 0.0, %v5542
      %v5544 = vpop.f32.mrf.mxu0
      %5545 = vmatprep.mubr.bf16.mxu0 0
      %5546 = vmatmul.mubr.bf16.gmra.mxu0 %v5377
      %v5547 = vpop.f32.mrf.mxu0
      %v5548 = vadd.f32 0.0, %v5547
      %v5549 = vpop.f32.mrf.mxu0
      %v5550 = vpop.f32.mrf.mxu0
      %v5551 = vadd.f32 0.0, %v5550
      %v5552 = vpop.f32.mrf.mxu0
      %5553 = vmatprep.mubr.bf16.mxu0 0
      %5554 = vmatmul.mubr.bf16.gmra.mxu0 %v5378
      %v5555 = vpop.f32.mrf.mxu0
      %v5556 = vadd.f32 0.0, %v5555
      %v5557 = vpop.f32.mrf.mxu0
      %v5558 = vpop.f32.mrf.mxu0
      %v5559 = vadd.f32 0.0, %v5558
      %v5560 = vpop.f32.mrf.mxu0
      %5561 = vmatprep.mubr.bf16.mxu0 0
      %5562 = vmatmul.mubr.bf16.gmra.mxu0 %v5379
      %v5563 = vpop.f32.mrf.mxu0
      %v5564 = vadd.f32 0.0, %v5563
      %v5565 = vpop.f32.mrf.mxu0
      %v5566 = vpop.f32.mrf.mxu0
      %v5567 = vadd.f32 0.0, %v5566
      %v5568 = vpop.f32.mrf.mxu0
      %5569 = vmatprep.mubr.bf16.mxu0 0
      %5570 = vmatmul.mubr.bf16.gmra.mxu0 %v5380
      %v5571 = vpop.f32.mrf.mxu0
      %v5572 = vadd.f32 0.0, %v5571
      %v5573 = vpop.f32.mrf.mxu0
      %v5574 = vpop.f32.mrf.mxu0
      %v5575 = vadd.f32 0.0, %v5574
      %v5576 = vpop.f32.mrf.mxu0
      %5577 = vmatprep.mubr.bf16.mxu0 0
      %5578 = vmatmul.mubr.bf16.gmra.mxu0 %v5381
      %v5579 = vpop.f32.mrf.mxu0
      %v5580 = vadd.f32 0.0, %v5579
      %v5581 = vpop.f32.mrf.mxu0
      %v5582 = vpop.f32.mrf.mxu0
      %v5583 = vadd.f32 0.0, %v5582
      %v5584 = vpop.f32.mrf.mxu0
      %5585 = vmatprep.mubr.bf16.mxu0 0
      %5586 = vmatmul.mubr.bf16.gmra.mxu0 %v5382
      %v5587 = vpop.f32.mrf.mxu0
      %v5588 = vadd.f32 0.0, %v5587
      %v5589 = vpop.f32.mrf.mxu0
      %v5590 = vpop.f32.mrf.mxu0
      %v5591 = vadd.f32 0.0, %v5590
      %v5592 = vpop.f32.mrf.mxu0
      %5593 = vmatprep.mubr.bf16.mxu0 0
      %5594 = vmatmul.mubr.bf16.gmra.mxu0 %v5383
      %v5595 = vpop.f32.mrf.mxu0
      %v5596 = vadd.f32 0.0, %v5595
      %v5597 = vpop.f32.mrf.mxu0
      %v5598 = vpop.f32.mrf.mxu0
      %v5599 = vadd.f32 0.0, %v5598
      %v5600 = vpop.f32.mrf.mxu0
      %5601 = vmatprep.mubr.bf16.mxu0 0
      %5602 = vmatmul.mubr.bf16.gmra.mxu0 %v5384
      %v5603 = vpop.f32.mrf.mxu0
      %v5604 = vadd.f32 0.0, %v5603
      %v5605 = vpop.f32.mrf.mxu0
      %v5606 = vpop.f32.mrf.mxu0
      %v5607 = vadd.f32 0.0, %v5606
      %v5608 = vpop.f32.mrf.mxu0
      %5609 = vdwg.mxu0
      %v5610 = vadd.f32 %v4856, %v5484
      %v5611 = vadd.f32 %v4857, %v5487
      %v5612 = vadd.f32 %v4858, %v5492
      %v5613 = vadd.f32 %v4859, %v5495
      %v5614 = vadd.f32 %v4860, %v5500
      %v5615 = vadd.f32 %v4861, %v5503
      %v5616 = vadd.f32 %v4862, %v5508
      %v5617 = vadd.f32 %v4863, %v5511
      %v5618 = vadd.f32 %v4864, %v5516
      %v5619 = vadd.f32 %v4865, %v5519
      %v5620 = vadd.f32 %v4866, %v5524
      %v5621 = vadd.f32 %v4867, %v5527
      %v5622 = vadd.f32 %v4868, %v5532
      %v5623 = vadd.f32 %v4869, %v5535
      %v5624 = vadd.f32 %v4870, %v5540
      %v5625 = vadd.f32 %v4871, %v5543
      %v5626 = vadd.f32 %v4872, %v5548
      %v5627 = vadd.f32 %v4873, %v5551
      %v5628 = vadd.f32 %v4874, %v5556
      %v5629 = vadd.f32 %v4875, %v5559
      %v5630 = vadd.f32 %v4876, %v5564
      %v5631 = vadd.f32 %v4877, %v5567
      %v5632 = vadd.f32 %v4878, %v5572
      %v5633 = vadd.f32 %v4879, %v5575
      %v5634 = vadd.f32 %v4880, %v5580
      %v5635 = vadd.f32 %v4881, %v5583
      %v5636 = vadd.f32 %v4882, %v5588
      %v5637 = vadd.f32 %v4883, %v5591
      %v5638 = vadd.f32 %v4884, %v5596
      %v5639 = vadd.f32 %v4885, %v5599
      %v5640 = vadd.f32 %v4886, %v5604
      %v5641 = vadd.f32 %v4887, %v5607
      %v5642 = vld [vmem:[%s2856] sm:$0xe]
      %v5643 = vld [vmem:[%s2856 + $0xc] sm:$0xe]
      %v5644 = vld [vmem:[%s2856 + $0x18] sm:$0xe]
      %v5645 = vld [vmem:[%s2856 + $0x24] sm:$0xe]
      %v5646 = vld [vmem:[%s2856 + $0x30] sm:$0xe]
      %v5647 = vld [vmem:[%s2856 + $0x3c] sm:$0xe]
      %v5648 = vld [vmem:[%s2856 + $0x48] sm:$0xe]
      %v5649 = vld [vmem:[%s2856 + $0x54] sm:$0xe]
      %v5650 = vld [vmem:[%s2856 + $0x60] sm:$0xe]
      %v5651 = vld [vmem:[%s2856 + $0x6c] sm:$0xe]
      %v5652 = vld [vmem:[%s2856 + $0x78] sm:$0xe]
      %v5653 = vld [vmem:[%s2856 + $0x84] sm:$0xe]
      %v5654 = vld [vmem:[%s2856 + $0x90] sm:$0xe]
      %v5655 = vld [vmem:[%s2856 + $0x9c] sm:$0xe]
      %v5656 = vld [vmem:[%s2856 + $0xa8] sm:$0xe]
      %v5657 = vld [vmem:[%s2856 + $0xb4] sm:$0xe]
      %v5706 = vrot.slane %v5642, 5
      %v5707 = vrot.slane %v5706, 4
      %v5708 = vrot.slane %v4889, 5
      %v5709 = vsel %vm4067, %v5707, %v5708
      %v5710 = vrot.slane %v5708, 4
      %v5711 = vrot.slane %v4890, 5
      %v5712 = vsel %vm4067, %v5710, %v5711
      %v5713 = vrot.slane %v5643, 5
      %v5714 = vrot.slane %v5713, 4
      %v5715 = vrot.slane %v4892, 5
      %v5716 = vsel %vm4067, %v5714, %v5715
      %v5717 = vrot.slane %v5715, 4
      %v5718 = vrot.slane %v4893, 5
      %v5719 = vsel %vm4067, %v5717, %v5718
      %v5720 = vrot.slane %v5644, 5
      %v5721 = vrot.slane %v5720, 4
      %v5722 = vrot.slane %v4895, 5
      %v5723 = vsel %vm4067, %v5721, %v5722
      %v5724 = vrot.slane %v5722, 4
      %v5725 = vrot.slane %v4896, 5
      %v5726 = vsel %vm4067, %v5724, %v5725
      %v5727 = vrot.slane %v5645, 5
      %v5728 = vrot.slane %v5727, 4
      %v5729 = vrot.slane %v4898, 5
      %v5730 = vsel %vm4067, %v5728, %v5729
      %v5731 = vrot.slane %v5729, 4
      %v5732 = vrot.slane %v4899, 5
      %v5733 = vsel %vm4067, %v5731, %v5732
      %v5734 = vrot.slane %v5646, 5
      %v5735 = vrot.slane %v5734, 4
      %v5736 = vrot.slane %v4901, 5
      %v5737 = vsel %vm4067, %v5735, %v5736
      %v5738 = vrot.slane %v5736, 4
      %v5739 = vrot.slane %v4902, 5
      %v5740 = vsel %vm4067, %v5738, %v5739
      %v5741 = vrot.slane %v5647, 5
      %v5742 = vrot.slane %v5741, 4
      %v5743 = vrot.slane %v4904, 5
      %v5744 = vsel %vm4067, %v5742, %v5743
      %v5745 = vrot.slane %v5743, 4
      %v5746 = vrot.slane %v4905, 5
      %v5747 = vsel %vm4067, %v5745, %v5746
      %v5748 = vrot.slane %v5648, 5
      %v5749 = vrot.slane %v5748, 4
      %v5750 = vrot.slane %v4907, 5
      %v5751 = vsel %vm4067, %v5749, %v5750
      %v5752 = vrot.slane %v5750, 4
      %v5753 = vrot.slane %v4908, 5
      %v5754 = vsel %vm4067, %v5752, %v5753
      %v5755 = vrot.slane %v5649, 5
      %v5756 = vrot.slane %v5755, 4
      %v5757 = vrot.slane %v4910, 5
      %v5758 = vsel %vm4067, %v5756, %v5757
      %v5759 = vrot.slane %v5757, 4
      %v5760 = vrot.slane %v4911, 5
      %v5761 = vsel %vm4067, %v5759, %v5760
      %v5762 = vrot.slane %v5650, 5
      %v5763 = vrot.slane %v5762, 4
      %v5764 = vrot.slane %v4913, 5
      %v5765 = vsel %vm4067, %v5763, %v5764
      %v5766 = vrot.slane %v5764, 4
      %v5767 = vrot.slane %v4914, 5
      %v5768 = vsel %vm4067, %v5766, %v5767
      %v5769 = vrot.slane %v5651, 5
      %v5770 = vrot.slane %v5769, 4
      %v5771 = vrot.slane %v4916, 5
      %v5772 = vsel %vm4067, %v5770, %v5771
      %v5773 = vrot.slane %v5771, 4
      %v5774 = vrot.slane %v4917, 5
      %v5775 = vsel %vm4067, %v5773, %v5774
      %v5776 = vrot.slane %v5652, 5
      %v5777 = vrot.slane %v5776, 4
      %v5778 = vrot.slane %v4919, 5
      %v5779 = vsel %vm4067, %v5777, %v5778
      %v5780 = vrot.slane %v5778, 4
      %v5781 = vrot.slane %v4920, 5
      %v5782 = vsel %vm4067, %v5780, %v5781
      %v5783 = vrot.slane %v5653, 5
      %v5784 = vrot.slane %v5783, 4
      %v5785 = vrot.slane %v4922, 5
      %v5786 = vsel %vm4067, %v5784, %v5785
      %v5787 = vrot.slane %v5785, 4
      %v5788 = vrot.slane %v4923, 5
      %v5789 = vsel %vm4067, %v5787, %v5788
      %v5790 = vrot.slane %v5654, 5
      %v5791 = vrot.slane %v5790, 4
      %v5792 = vrot.slane %v4925, 5
      %v5793 = vsel %vm4067, %v5791, %v5792
      %v5794 = vrot.slane %v5792, 4
      %v5795 = vrot.slane %v4926, 5
      %v5796 = vsel %vm4067, %v5794, %v5795
      %v5797 = vrot.slane %v5655, 5
      %v5798 = vrot.slane %v5797, 4
      %v5799 = vrot.slane %v4928, 5
      %v5800 = vsel %vm4067, %v5798, %v5799
      %v5801 = vrot.slane %v5799, 4
      %v5802 = vrot.slane %v4929, 5
      %v5803 = vsel %vm4067, %v5801, %v5802
      %v5804 = vrot.slane %v5656, 5
      %v5805 = vrot.slane %v5804, 4
      %v5806 = vrot.slane %v4931, 5
      %v5807 = vsel %vm4067, %v5805, %v5806
      %v5808 = vrot.slane %v5806, 4
      %v5809 = vrot.slane %v4932, 5
      %v5810 = vsel %vm4067, %v5808, %v5809
      %v5811 = vrot.slane %v5657, 5
      %v5812 = vrot.slane %v5811, 4
      %v5813 = vrot.slane %v4934, 5
      %v5814 = vsel %vm4067, %v5812, %v5813
      %v5815 = vrot.slane %v5813, 4
      %v5816 = vrot.slane %v4935, 5
      %v5817 = vsel %vm4067, %v5815, %v5816
      %s5818 = scalar_lea.vmem %s3, 320
      %v5819 = vld [vmem:[%s5818] sm:$0xf]
      %v5820 = vld [vmem:[%s5818 + $0x4] sm:$0xf]
      %v5821 = vld [vmem:[%s5818 + $0x8] sm:$0xf]
      %v5822 = vld [vmem:[%s5818 + $0xc] sm:$0xf]
      %v5823 = vld [vmem:[%s5818 + $0x10] sm:$0xf]
      %v5824 = vld [vmem:[%s5818 + $0x14] sm:$0xf]
      %v5825 = vld [vmem:[%s5818 + $0x18] sm:$0xf]
      %v5826 = vld [vmem:[%s5818 + $0x1c] sm:$0xf]
      %v5827 = vld [vmem:[%s5818 + $0x20] sm:$0xf]
      %v5828 = vld [vmem:[%s5818 + $0x24] sm:$0xf]
      %v5829 = vld [vmem:[%s5818 + $0x28] sm:$0xf]
      %v5830 = vld [vmem:[%s5818 + $0x2c] sm:$0xf]
      %v5831 = vld [vmem:[%s5818 + $0x30] sm:$0xf]
      %v5832 = vld [vmem:[%s5818 + $0x34] sm:$0xf]
      %v5833 = vld [vmem:[%s5818 + $0x38] sm:$0xf]
      %v5834 = vld [vmem:[%s5818 + $0x3c] sm:$0xf]
      %v5835 = vunpack.c.l.b16 %v5709
      %v5836 = vunpack.c.l.b16 %v5712
      %v5837 = vunpack.c.l.b16 %v5716
      %v5838 = vunpack.c.l.b16 %v5719
      %v5839 = vunpack.c.l.b16 %v5723
      %v5840 = vunpack.c.l.b16 %v5726
      %v5841 = vunpack.c.l.b16 %v5730
      %v5842 = vunpack.c.l.b16 %v5733
      %v5843 = vunpack.c.l.b16 %v5737
      %v5844 = vunpack.c.l.b16 %v5740
      %v5845 = vunpack.c.l.b16 %v5744
      %v5846 = vunpack.c.l.b16 %v5747
      %v5847 = vunpack.c.l.b16 %v5751
      %v5848 = vunpack.c.l.b16 %v5754
      %v5849 = vunpack.c.l.b16 %v5758
      %v5850 = vunpack.c.l.b16 %v5761
      %v5851 = vunpack.c.l.b16 %v5765
      %v5852 = vunpack.c.l.b16 %v5768
      %v5853 = vunpack.c.l.b16 %v5772
      %v5854 = vunpack.c.l.b16 %v5775
      %v5855 = vunpack.c.l.b16 %v5779
      %v5856 = vunpack.c.l.b16 %v5782
      %v5857 = vunpack.c.l.b16 %v5786
      %v5858 = vunpack.c.l.b16 %v5789
      %v5859 = vunpack.c.l.b16 %v5793
      %v5860 = vunpack.c.l.b16 %v5796
      %v5861 = vunpack.c.l.b16 %v5800
      %v5862 = vunpack.c.l.b16 %v5803
      %v5863 = vunpack.c.l.b16 %v5807
      %v5864 = vunpack.c.l.b16 %v5810
      %v5865 = vunpack.c.l.b16 %v5814
      %v5866 = vunpack.c.l.b16 %v5817
      %v5867 = vpack.c.b16 %v5836, %v5835
      %v5868 = vpack.c.b16 %v5838, %v5837
      %v5869 = vpack.c.b16 %v5840, %v5839
      %v5870 = vpack.c.b16 %v5842, %v5841
      %v5871 = vpack.c.b16 %v5844, %v5843
      %v5872 = vpack.c.b16 %v5846, %v5845
      %v5873 = vpack.c.b16 %v5848, %v5847
      %v5874 = vpack.c.b16 %v5850, %v5849
      %v5875 = vpack.c.b16 %v5852, %v5851
      %v5876 = vpack.c.b16 %v5854, %v5853
      %v5877 = vpack.c.b16 %v5856, %v5855
      %v5878 = vpack.c.b16 %v5858, %v5857
      %v5879 = vpack.c.b16 %v5860, %v5859
      %v5880 = vpack.c.b16 %v5862, %v5861
      %v5881 = vpack.c.b16 %v5864, %v5863
      %v5882 = vpack.c.b16 %v5866, %v5865
      %v5915 = vunpack.c.l.b16 %v5819
      %v5916 = vunpack.c.l.b16 %v5820
      %v5917 = vunpack.c.l.b16 %v5821
      %v5918 = vunpack.c.l.b16 %v5822
      %v5919 = vunpack.c.l.b16 %v5823
      %v5920 = vunpack.c.l.b16 %v5824
      %v5921 = vunpack.c.l.b16 %v5825
      %v5922 = vunpack.c.l.b16 %v5826
      %v5923 = vunpack.c.l.b16 %v5827
      %v5924 = vunpack.c.l.b16 %v5828
      %v5925 = vunpack.c.l.b16 %v5829
      %v5926 = vunpack.c.l.b16 %v5830
      %v5927 = vunpack.c.l.b16 %v5831
      %v5928 = vunpack.c.l.b16 %v5832
      %v5929 = vunpack.c.l.b16 %v5833
      %v5930 = vunpack.c.l.b16 %v5834
      %v5931 = vpack.c.b16 %v5916, %v5915
      %v5932 = vpack.c.b16 %v5918, %v5917
      %v5933 = vpack.c.b16 %v5920, %v5919
      %v5934 = vpack.c.b16 %v5922, %v5921
      %v5935 = vpack.c.b16 %v5924, %v5923
      %v5936 = vpack.c.b16 %v5926, %v5925
      %v5937 = vpack.c.b16 %v5928, %v5927
      %v5938 = vpack.c.b16 %v5930, %v5929
      %5947 = vmatprep.subr.bf16.mxu0 0
      %5948 = vmatpush1.bf16.msra.mxu0 %v5938
      %5949 = vmatprep.subr.bf16.mxu0 0
      %5950 = vmatpush1.bf16.msra.mxu0 %v5937
      %5951 = vmatprep.subr.bf16.mxu0 0
      %5952 = vmatpush1.bf16.msra.mxu0 %v5936
      %5953 = vmatprep.subr.bf16.mxu0 0
      %5954 = vmatpush1.bf16.msra.mxu0 %v5935
      %5955 = vmatprep.subr.bf16.mxu0 0
      %5956 = vmatpush1.bf16.msra.mxu0 %v5934
      %5957 = vmatprep.subr.bf16.mxu0 0
      %5958 = vmatpush1.bf16.msra.mxu0 %v5933
      %5959 = vmatprep.subr.bf16.mxu0 0
      %5960 = vmatpush1.bf16.msra.mxu0 %v5932
      %5961 = vmatprep.subr.bf16.mxu0 0
      %5962 = vmatpush1.bf16.msra.mxu0 %v5931
      %5963 = vmatprep.subr.bf16.mxu0 0
      %5964 = vmatpush2.bf16.msra.mxu0 0
      %5965 = vmatprep.subr.bf16.mxu0 0
      %5966 = vmatpush2.bf16.msra.mxu0 0
      %5967 = vmatprep.subr.bf16.mxu0 0
      %5968 = vmatpush2.bf16.msra.mxu0 0
      %5969 = vmatprep.subr.bf16.mxu0 0
      %5970 = vmatpush2.bf16.msra.mxu0 0
      %5971 = vmatprep.subr.bf16.mxu0 0
      %5972 = vmatpush2.bf16.msra.mxu0 0
      %5973 = vmatprep.subr.bf16.mxu0 0
      %5974 = vmatpush2.bf16.msra.mxu0 0
      %5975 = vmatprep.subr.bf16.mxu0 0
      %5976 = vmatpush2.bf16.msra.mxu0 0
      %5977 = vmatprep.subr.bf16.mxu0 0
      %5978 = vmatpush2.bf16.msra.mxu0 0
      %5979 = vmatprep.mubr.bf16.mxu0 0
      %5980 = vmatmul.mubr.bf16.gmra.mxu0 %v5867
      %v5981 = vpop.f32.mrf.mxu0
      %v5982 = vadd.f32 0.0, %v5981
      %v5983 = vpop.f32.mrf.mxu0
      %v5984 = vpop.f32.mrf.mxu0
      %v5985 = vadd.f32 0.0, %v5984
      %v5986 = vpop.f32.mrf.mxu0
      %5987 = vmatprep.mubr.bf16.mxu0 0
      %5988 = vmatmul.mubr.bf16.gmra.mxu0 %v5868
      %v5989 = vpop.f32.mrf.mxu0
      %v5990 = vadd.f32 0.0, %v5989
      %v5991 = vpop.f32.mrf.mxu0
      %v5992 = vpop.f32.mrf.mxu0
      %v5993 = vadd.f32 0.0, %v5992
      %v5994 = vpop.f32.mrf.mxu0
      %5995 = vmatprep.mubr.bf16.mxu0 0
      %5996 = vmatmul.mubr.bf16.gmra.mxu0 %v5869
      %v5997 = vpop.f32.mrf.mxu0
      %v5998 = vadd.f32 0.0, %v5997
      %v5999 = vpop.f32.mrf.mxu0
      %v6000 = vpop.f32.mrf.mxu0
      %v6001 = vadd.f32 0.0, %v6000
      %v6002 = vpop.f32.mrf.mxu0
      %6003 = vmatprep.mubr.bf16.mxu0 0
      %6004 = vmatmul.mubr.bf16.gmra.mxu0 %v5870
      %v6005 = vpop.f32.mrf.mxu0
      %v6006 = vadd.f32 0.0, %v6005
      %v6007 = vpop.f32.mrf.mxu0
      %v6008 = vpop.f32.mrf.mxu0
      %v6009 = vadd.f32 0.0, %v6008
      %v6010 = vpop.f32.mrf.mxu0
      %6011 = vmatprep.mubr.bf16.mxu0 0
      %6012 = vmatmul.mubr.bf16.gmra.mxu0 %v5871
      %v6013 = vpop.f32.mrf.mxu0
      %v6014 = vadd.f32 0.0, %v6013
      %v6015 = vpop.f32.mrf.mxu0
      %v6016 = vpop.f32.mrf.mxu0
      %v6017 = vadd.f32 0.0, %v6016
      %v6018 = vpop.f32.mrf.mxu0
      %6019 = vmatprep.mubr.bf16.mxu0 0
      %6020 = vmatmul.mubr.bf16.gmra.mxu0 %v5872
      %v6021 = vpop.f32.mrf.mxu0
      %v6022 = vadd.f32 0.0, %v6021
      %v6023 = vpop.f32.mrf.mxu0
      %v6024 = vpop.f32.mrf.mxu0
      %v6025 = vadd.f32 0.0, %v6024
      %v6026 = vpop.f32.mrf.mxu0
      %6027 = vmatprep.mubr.bf16.mxu0 0
      %6028 = vmatmul.mubr.bf16.gmra.mxu0 %v5873
      %v6029 = vpop.f32.mrf.mxu0
      %v6030 = vadd.f32 0.0, %v6029
      %v6031 = vpop.f32.mrf.mxu0
      %v6032 = vpop.f32.mrf.mxu0
      %v6033 = vadd.f32 0.0, %v6032
      %v6034 = vpop.f32.mrf.mxu0
      %6035 = vmatprep.mubr.bf16.mxu0 0
      %6036 = vmatmul.mubr.bf16.gmra.mxu0 %v5874
      %v6037 = vpop.f32.mrf.mxu0
      %v6038 = vadd.f32 0.0, %v6037
      %v6039 = vpop.f32.mrf.mxu0
      %v6040 = vpop.f32.mrf.mxu0
      %v6041 = vadd.f32 0.0, %v6040
      %v6042 = vpop.f32.mrf.mxu0
      %6043 = vmatprep.mubr.bf16.mxu0 0
      %6044 = vmatmul.mubr.bf16.gmra.mxu0 %v5875
      %v6045 = vpop.f32.mrf.mxu0
      %v6046 = vadd.f32 0.0, %v6045
      %v6047 = vpop.f32.mrf.mxu0
      %v6048 = vpop.f32.mrf.mxu0
      %v6049 = vadd.f32 0.0, %v6048
      %v6050 = vpop.f32.mrf.mxu0
      %6051 = vmatprep.mubr.bf16.mxu0 0
      %6052 = vmatmul.mubr.bf16.gmra.mxu0 %v5876
      %v6053 = vpop.f32.mrf.mxu0
      %v6054 = vadd.f32 0.0, %v6053
      %v6055 = vpop.f32.mrf.mxu0
      %v6056 = vpop.f32.mrf.mxu0
      %v6057 = vadd.f32 0.0, %v6056
      %v6058 = vpop.f32.mrf.mxu0
      %6059 = vmatprep.mubr.bf16.mxu0 0
      %6060 = vmatmul.mubr.bf16.gmra.mxu0 %v5877
      %v6061 = vpop.f32.mrf.mxu0
      %v6062 = vadd.f32 0.0, %v6061
      %v6063 = vpop.f32.mrf.mxu0
      %v6064 = vpop.f32.mrf.mxu0
      %v6065 = vadd.f32 0.0, %v6064
      %v6066 = vpop.f32.mrf.mxu0
      %6067 = vmatprep.mubr.bf16.mxu0 0
      %6068 = vmatmul.mubr.bf16.gmra.mxu0 %v5878
      %v6069 = vpop.f32.mrf.mxu0
      %v6070 = vadd.f32 0.0, %v6069
      %v6071 = vpop.f32.mrf.mxu0
      %v6072 = vpop.f32.mrf.mxu0
      %v6073 = vadd.f32 0.0, %v6072
      %v6074 = vpop.f32.mrf.mxu0
      %6075 = vmatprep.mubr.bf16.mxu0 0
      %6076 = vmatmul.mubr.bf16.gmra.mxu0 %v5879
      %v6077 = vpop.f32.mrf.mxu0
      %v6078 = vadd.f32 0.0, %v6077
      %v6079 = vpop.f32.mrf.mxu0
      %v6080 = vpop.f32.mrf.mxu0
      %v6081 = vadd.f32 0.0, %v6080
      %v6082 = vpop.f32.mrf.mxu0
      %6083 = vmatprep.mubr.bf16.mxu0 0
      %6084 = vmatmul.mubr.bf16.gmra.mxu0 %v5880
      %v6085 = vpop.f32.mrf.mxu0
      %v6086 = vadd.f32 0.0, %v6085
      %v6087 = vpop.f32.mrf.mxu0
      %v6088 = vpop.f32.mrf.mxu0
      %v6089 = vadd.f32 0.0, %v6088
      %v6090 = vpop.f32.mrf.mxu0
      %6091 = vmatprep.mubr.bf16.mxu0 0
      %6092 = vmatmul.mubr.bf16.gmra.mxu0 %v5881
      %v6093 = vpop.f32.mrf.mxu0
      %v6094 = vadd.f32 0.0, %v6093
      %v6095 = vpop.f32.mrf.mxu0
      %v6096 = vpop.f32.mrf.mxu0
      %v6097 = vadd.f32 0.0, %v6096
      %v6098 = vpop.f32.mrf.mxu0
      %6099 = vmatprep.mubr.bf16.mxu0 0
      %6100 = vmatmul.mubr.bf16.gmra.mxu0 %v5882
      %v6101 = vpop.f32.mrf.mxu0
      %v6102 = vadd.f32 0.0, %v6101
      %v6103 = vpop.f32.mrf.mxu0
      %v6104 = vpop.f32.mrf.mxu0
      %v6105 = vadd.f32 0.0, %v6104
      %v6106 = vpop.f32.mrf.mxu0
      %6107 = vdwg.mxu0
      %v6108 = vadd.f32 %v5610, %v5982
      %v6109 = vadd.f32 %v5611, %v5985
      %v6110 = vadd.f32 %v5612, %v5990
      %v6111 = vadd.f32 %v5613, %v5993
      %v6112 = vadd.f32 %v5614, %v5998
      %v6113 = vadd.f32 %v5615, %v6001
      %v6114 = vadd.f32 %v5616, %v6006
      %v6115 = vadd.f32 %v5617, %v6009
      %v6116 = vadd.f32 %v5618, %v6014
      %v6117 = vadd.f32 %v5619, %v6017
      %v6118 = vadd.f32 %v5620, %v6022
      %v6119 = vadd.f32 %v5621, %v6025
      %v6120 = vadd.f32 %v5622, %v6030
      %v6121 = vadd.f32 %v5623, %v6033
      %v6122 = vadd.f32 %v5624, %v6038
      %v6123 = vadd.f32 %v5625, %v6041
      %v6124 = vadd.f32 %v5626, %v6046
      %v6125 = vadd.f32 %v5627, %v6049
      %v6126 = vadd.f32 %v5628, %v6054
      %v6127 = vadd.f32 %v5629, %v6057
      %v6128 = vadd.f32 %v5630, %v6062
      %v6129 = vadd.f32 %v5631, %v6065
      %v6130 = vadd.f32 %v5632, %v6070
      %v6131 = vadd.f32 %v5633, %v6073
      %v6132 = vadd.f32 %v5634, %v6078
      %v6133 = vadd.f32 %v5635, %v6081
      %v6134 = vadd.f32 %v5636, %v6086
      %v6135 = vadd.f32 %v5637, %v6089
      %v6136 = vadd.f32 %v5638, %v6094
      %v6137 = vadd.f32 %v5639, %v6097
      %v6138 = vadd.f32 %v5640, %v6102
      %v6139 = vadd.f32 %v5641, %v6105
      %s6140 = scalar_lea.vmem [#allocation2], 24
      %v6141 = vld [vmem:[%s6140] sm:$0xf]
      %v6142 = vld [vmem:[%s6140 + $0x4] sm:$0xf]
      %v6143 = vld [vmem:[%s6140 + $0xc] sm:$0xf]
      %v6144 = vld [vmem:[%s6140 + $0x10] sm:$0xf]
      %v6145 = vld [vmem:[%s6140 + $0x18] sm:$0xf]
      %v6146 = vld [vmem:[%s6140 + $0x1c] sm:$0xf]
      %v6147 = vld [vmem:[%s6140 + $0x24] sm:$0xf]
      %v6148 = vld [vmem:[%s6140 + $0x28] sm:$0xf]
      %v6149 = vld [vmem:[%s6140 + $0x30] sm:$0xf]
      %v6150 = vld [vmem:[%s6140 + $0x34] sm:$0xf]
      %v6151 = vld [vmem:[%s6140 + $0x3c] sm:$0xf]
      %v6152 = vld [vmem:[%s6140 + $0x40] sm:$0xf]
      %v6153 = vld [vmem:[%s6140 + $0x48] sm:$0xf]
      %v6154 = vld [vmem:[%s6140 + $0x4c] sm:$0xf]
      %v6155 = vld [vmem:[%s6140 + $0x54] sm:$0xf]
      %v6156 = vld [vmem:[%s6140 + $0x58] sm:$0xf]
      %v6157 = vld [vmem:[%s6140 + $0x60] sm:$0xf]
      %v6158 = vld [vmem:[%s6140 + $0x64] sm:$0xf]
      %v6159 = vld [vmem:[%s6140 + $0x6c] sm:$0xf]
      %v6160 = vld [vmem:[%s6140 + $0x70] sm:$0xf]
      %v6161 = vld [vmem:[%s6140 + $0x78] sm:$0xf]
      %v6162 = vld [vmem:[%s6140 + $0x7c] sm:$0xf]
      %v6163 = vld [vmem:[%s6140 + $0x84] sm:$0xf]
      %v6164 = vld [vmem:[%s6140 + $0x88] sm:$0xf]
      %v6165 = vld [vmem:[%s6140 + $0x90] sm:$0xf]
      %v6166 = vld [vmem:[%s6140 + $0x94] sm:$0xf]
      %v6167 = vld [vmem:[%s6140 + $0x9c] sm:$0xf]
      %v6168 = vld [vmem:[%s6140 + $0xa0] sm:$0xf]
      %v6169 = vld [vmem:[%s6140 + $0xa8] sm:$0xf]
      %v6170 = vld [vmem:[%s6140 + $0xac] sm:$0xf]
      %v6171 = vld [vmem:[%s6140 + $0xb4] sm:$0xf]
      %v6172 = vld [vmem:[%s6140 + $0xb8] sm:$0xf]
      %s6173 = scalar_lea.vmem %s3, 384
      %v6174 = vld [vmem:[%s6173] sm:$0xf]
      %v6175 = vld [vmem:[%s6173 + $0x4] sm:$0xf]
      %v6176 = vld [vmem:[%s6173 + $0x8] sm:$0xf]
      %v6177 = vld [vmem:[%s6173 + $0xc] sm:$0xf]
      %v6178 = vld [vmem:[%s6173 + $0x10] sm:$0xf]
      %v6179 = vld [vmem:[%s6173 + $0x14] sm:$0xf]
      %v6180 = vld [vmem:[%s6173 + $0x18] sm:$0xf]
      %v6181 = vld [vmem:[%s6173 + $0x1c] sm:$0xf]
      %v6182 = vld [vmem:[%s6173 + $0x20] sm:$0xf]
      %v6183 = vld [vmem:[%s6173 + $0x24] sm:$0xf]
      %v6184 = vld [vmem:[%s6173 + $0x28] sm:$0xf]
      %v6185 = vld [vmem:[%s6173 + $0x2c] sm:$0xf]
      %v6186 = vld [vmem:[%s6173 + $0x30] sm:$0xf]
      %v6187 = vld [vmem:[%s6173 + $0x34] sm:$0xf]
      %v6188 = vld [vmem:[%s6173 + $0x38] sm:$0xf]
      %v6189 = vld [vmem:[%s6173 + $0x3c] sm:$0xf]
      %v6222 = vunpack.c.l.b16 %v6141
      %v6223 = vunpack.c.l.b16 %v6142
      %v6224 = vunpack.c.l.b16 %v6143
      %v6225 = vunpack.c.l.b16 %v6144
      %v6226 = vunpack.c.l.b16 %v6145
      %v6227 = vunpack.c.l.b16 %v6146
      %v6228 = vunpack.c.l.b16 %v6147
      %v6229 = vunpack.c.l.b16 %v6148
      %v6230 = vunpack.c.l.b16 %v6149
      %v6231 = vunpack.c.l.b16 %v6150
      %v6232 = vunpack.c.l.b16 %v6151
      %v6233 = vunpack.c.l.b16 %v6152
      %v6234 = vunpack.c.l.b16 %v6153
      %v6235 = vunpack.c.l.b16 %v6154
      %v6236 = vunpack.c.l.b16 %v6155
      %v6237 = vunpack.c.l.b16 %v6156
      %v6238 = vunpack.c.l.b16 %v6157
      %v6239 = vunpack.c.l.b16 %v6158
      %v6240 = vunpack.c.l.b16 %v6159
      %v6241 = vunpack.c.l.b16 %v6160
      %v6242 = vunpack.c.l.b16 %v6161
      %v6243 = vunpack.c.l.b16 %v6162
      %v6244 = vunpack.c.l.b16 %v6163
      %v6245 = vunpack.c.l.b16 %v6164
      %v6246 = vunpack.c.l.b16 %v6165
      %v6247 = vunpack.c.l.b16 %v6166
      %v6248 = vunpack.c.l.b16 %v6167
      %v6249 = vunpack.c.l.b16 %v6168
      %v6250 = vunpack.c.l.b16 %v6169
      %v6251 = vunpack.c.l.b16 %v6170
      %v6252 = vunpack.c.l.b16 %v6171
      %v6253 = vunpack.c.l.b16 %v6172
      %v6254 = vpack.c.b16 %v6223, %v6222
      %v6255 = vpack.c.b16 %v6225, %v6224
      %v6256 = vpack.c.b16 %v6227, %v6226
      %v6257 = vpack.c.b16 %v6229, %v6228
      %v6258 = vpack.c.b16 %v6231, %v6230
      %v6259 = vpack.c.b16 %v6233, %v6232
      %v6260 = vpack.c.b16 %v6235, %v6234
      %v6261 = vpack.c.b16 %v6237, %v6236
      %v6262 = vpack.c.b16 %v6239, %v6238
      %v6263 = vpack.c.b16 %v6241, %v6240
      %v6264 = vpack.c.b16 %v6243, %v6242
      %v6265 = vpack.c.b16 %v6245, %v6244
      %v6266 = vpack.c.b16 %v6247, %v6246
      %v6267 = vpack.c.b16 %v6249, %v6248
      %v6268 = vpack.c.b16 %v6251, %v6250
      %v6269 = vpack.c.b16 %v6253, %v6252
      %v6302 = vunpack.c.l.b16 %v6174
      %v6303 = vunpack.c.l.b16 %v6175
      %v6304 = vunpack.c.l.b16 %v6176
      %v6305 = vunpack.c.l.b16 %v6177
      %v6306 = vunpack.c.l.b16 %v6178
      %v6307 = vunpack.c.l.b16 %v6179
      %v6308 = vunpack.c.l.b16 %v6180
      %v6309 = vunpack.c.l.b16 %v6181
      %v6310 = vunpack.c.l.b16 %v6182
      %v6311 = vunpack.c.l.b16 %v6183
      %v6312 = vunpack.c.l.b16 %v6184
      %v6313 = vunpack.c.l.b16 %v6185
      %v6314 = vunpack.c.l.b16 %v6186
      %v6315 = vunpack.c.l.b16 %v6187
      %v6316 = vunpack.c.l.b16 %v6188
      %v6317 = vunpack.c.l.b16 %v6189
      %v6318 = vpack.c.b16 %v6303, %v6302
      %v6319 = vpack.c.b16 %v6305, %v6304
      %v6320 = vpack.c.b16 %v6307, %v6306
      %v6321 = vpack.c.b16 %v6309, %v6308
      %v6322 = vpack.c.b16 %v6311, %v6310
      %v6323 = vpack.c.b16 %v6313, %v6312
      %v6324 = vpack.c.b16 %v6315, %v6314
      %v6325 = vpack.c.b16 %v6317, %v6316
      %6334 = vmatprep.subr.bf16.mxu0 0
      %6335 = vmatpush1.bf16.msra.mxu0 %v6325
      %6336 = vmatprep.subr.bf16.mxu0 0
      %6337 = vmatpush1.bf16.msra.mxu0 %v6324
      %6338 = vmatprep.subr.bf16.mxu0 0
      %6339 = vmatpush1.bf16.msra.mxu0 %v6323
      %6340 = vmatprep.subr.bf16.mxu0 0
      %6341 = vmatpush1.bf16.msra.mxu0 %v6322
      %6342 = vmatprep.subr.bf16.mxu0 0
      %6343 = vmatpush1.bf16.msra.mxu0 %v6321
      %6344 = vmatprep.subr.bf16.mxu0 0
      %6345 = vmatpush1.bf16.msra.mxu0 %v6320
      %6346 = vmatprep.subr.bf16.mxu0 0
      %6347 = vmatpush1.bf16.msra.mxu0 %v6319
      %6348 = vmatprep.subr.bf16.mxu0 0
      %6349 = vmatpush1.bf16.msra.mxu0 %v6318
      %6350 = vmatprep.subr.bf16.mxu0 0
      %6351 = vmatpush2.bf16.msra.mxu0 0
      %6352 = vmatprep.subr.bf16.mxu0 0
      %6353 = vmatpush2.bf16.msra.mxu0 0
      %6354 = vmatprep.subr.bf16.mxu0 0
      %6355 = vmatpush2.bf16.msra.mxu0 0
      %6356 = vmatprep.subr.bf16.mxu0 0
      %6357 = vmatpush2.bf16.msra.mxu0 0
      %6358 = vmatprep.subr.bf16.mxu0 0
      %6359 = vmatpush2.bf16.msra.mxu0 0
      %6360 = vmatprep.subr.bf16.mxu0 0
      %6361 = vmatpush2.bf16.msra.mxu0 0
      %6362 = vmatprep.subr.bf16.mxu0 0
      %6363 = vmatpush2.bf16.msra.mxu0 0
      %6364 = vmatprep.subr.bf16.mxu0 0
      %6365 = vmatpush2.bf16.msra.mxu0 0
      %6366 = vmatprep.mubr.bf16.mxu0 0
      %6367 = vmatmul.mubr.bf16.gmra.mxu0 %v6254
      %v6368 = vpop.f32.mrf.mxu0
      %v6369 = vadd.f32 0.0, %v6368
      %v6370 = vpop.f32.mrf.mxu0
      %v6371 = vpop.f32.mrf.mxu0
      %v6372 = vadd.f32 0.0, %v6371
      %v6373 = vpop.f32.mrf.mxu0
      %6374 = vmatprep.mubr.bf16.mxu0 0
      %6375 = vmatmul.mubr.bf16.gmra.mxu0 %v6255
      %v6376 = vpop.f32.mrf.mxu0
      %v6377 = vadd.f32 0.0, %v6376
      %v6378 = vpop.f32.mrf.mxu0
      %v6379 = vpop.f32.mrf.mxu0
      %v6380 = vadd.f32 0.0, %v6379
      %v6381 = vpop.f32.mrf.mxu0
      %6382 = vmatprep.mubr.bf16.mxu0 0
      %6383 = vmatmul.mubr.bf16.gmra.mxu0 %v6256
      %v6384 = vpop.f32.mrf.mxu0
      %v6385 = vadd.f32 0.0, %v6384
      %v6386 = vpop.f32.mrf.mxu0
      %v6387 = vpop.f32.mrf.mxu0
      %v6388 = vadd.f32 0.0, %v6387
      %v6389 = vpop.f32.mrf.mxu0
      %6390 = vmatprep.mubr.bf16.mxu0 0
      %6391 = vmatmul.mubr.bf16.gmra.mxu0 %v6257
      %v6392 = vpop.f32.mrf.mxu0
      %v6393 = vadd.f32 0.0, %v6392
      %v6394 = vpop.f32.mrf.mxu0
      %v6395 = vpop.f32.mrf.mxu0
      %v6396 = vadd.f32 0.0, %v6395
      %v6397 = vpop.f32.mrf.mxu0
      %6398 = vmatprep.mubr.bf16.mxu0 0
      %6399 = vmatmul.mubr.bf16.gmra.mxu0 %v6258
      %v6400 = vpop.f32.mrf.mxu0
      %v6401 = vadd.f32 0.0, %v6400
      %v6402 = vpop.f32.mrf.mxu0
      %v6403 = vpop.f32.mrf.mxu0
      %v6404 = vadd.f32 0.0, %v6403
      %v6405 = vpop.f32.mrf.mxu0
      %6406 = vmatprep.mubr.bf16.mxu0 0
      %6407 = vmatmul.mubr.bf16.gmra.mxu0 %v6259
      %v6408 = vpop.f32.mrf.mxu0
      %v6409 = vadd.f32 0.0, %v6408
      %v6410 = vpop.f32.mrf.mxu0
      %v6411 = vpop.f32.mrf.mxu0
      %v6412 = vadd.f32 0.0, %v6411
      %v6413 = vpop.f32.mrf.mxu0
      %6414 = vmatprep.mubr.bf16.mxu0 0
      %6415 = vmatmul.mubr.bf16.gmra.mxu0 %v6260
      %v6416 = vpop.f32.mrf.mxu0
      %v6417 = vadd.f32 0.0, %v6416
      %v6418 = vpop.f32.mrf.mxu0
      %v6419 = vpop.f32.mrf.mxu0
      %v6420 = vadd.f32 0.0, %v6419
      %v6421 = vpop.f32.mrf.mxu0
      %6422 = vmatprep.mubr.bf16.mxu0 0
      %6423 = vmatmul.mubr.bf16.gmra.mxu0 %v6261
      %v6424 = vpop.f32.mrf.mxu0
      %v6425 = vadd.f32 0.0, %v6424
      %v6426 = vpop.f32.mrf.mxu0
      %v6427 = vpop.f32.mrf.mxu0
      %v6428 = vadd.f32 0.0, %v6427
      %v6429 = vpop.f32.mrf.mxu0
      %6430 = vmatprep.mubr.bf16.mxu0 0
      %6431 = vmatmul.mubr.bf16.gmra.mxu0 %v6262
      %v6432 = vpop.f32.mrf.mxu0
      %v6433 = vadd.f32 0.0, %v6432
      %v6434 = vpop.f32.mrf.mxu0
      %v6435 = vpop.f32.mrf.mxu0
      %v6436 = vadd.f32 0.0, %v6435
      %v6437 = vpop.f32.mrf.mxu0
      %6438 = vmatprep.mubr.bf16.mxu0 0
      %6439 = vmatmul.mubr.bf16.gmra.mxu0 %v6263
      %v6440 = vpop.f32.mrf.mxu0
      %v6441 = vadd.f32 0.0, %v6440
      %v6442 = vpop.f32.mrf.mxu0
      %v6443 = vpop.f32.mrf.mxu0
      %v6444 = vadd.f32 0.0, %v6443
      %v6445 = vpop.f32.mrf.mxu0
      %6446 = vmatprep.mubr.bf16.mxu0 0
      %6447 = vmatmul.mubr.bf16.gmra.mxu0 %v6264
      %v6448 = vpop.f32.mrf.mxu0
      %v6449 = vadd.f32 0.0, %v6448
      %v6450 = vpop.f32.mrf.mxu0
      %v6451 = vpop.f32.mrf.mxu0
      %v6452 = vadd.f32 0.0, %v6451
      %v6453 = vpop.f32.mrf.mxu0
      %6454 = vmatprep.mubr.bf16.mxu0 0
      %6455 = vmatmul.mubr.bf16.gmra.mxu0 %v6265
      %v6456 = vpop.f32.mrf.mxu0
      %v6457 = vadd.f32 0.0, %v6456
      %v6458 = vpop.f32.mrf.mxu0
      %v6459 = vpop.f32.mrf.mxu0
      %v6460 = vadd.f32 0.0, %v6459
      %v6461 = vpop.f32.mrf.mxu0
      %6462 = vmatprep.mubr.bf16.mxu0 0
      %6463 = vmatmul.mubr.bf16.gmra.mxu0 %v6266
      %v6464 = vpop.f32.mrf.mxu0
      %v6465 = vadd.f32 0.0, %v6464
      %v6466 = vpop.f32.mrf.mxu0
      %v6467 = vpop.f32.mrf.mxu0
      %v6468 = vadd.f32 0.0, %v6467
      %v6469 = vpop.f32.mrf.mxu0
      %6470 = vmatprep.mubr.bf16.mxu0 0
      %6471 = vmatmul.mubr.bf16.gmra.mxu0 %v6267
      %v6472 = vpop.f32.mrf.mxu0
      %v6473 = vadd.f32 0.0, %v6472
      %v6474 = vpop.f32.mrf.mxu0
      %v6475 = vpop.f32.mrf.mxu0
      %v6476 = vadd.f32 0.0, %v6475
      %v6477 = vpop.f32.mrf.mxu0
      %6478 = vmatprep.mubr.bf16.mxu0 0
      %6479 = vmatmul.mubr.bf16.gmra.mxu0 %v6268
      %v6480 = vpop.f32.mrf.mxu0
      %v6481 = vadd.f32 0.0, %v6480
      %v6482 = vpop.f32.mrf.mxu0
      %v6483 = vpop.f32.mrf.mxu0
      %v6484 = vadd.f32 0.0, %v6483
      %v6485 = vpop.f32.mrf.mxu0
      %6486 = vmatprep.mubr.bf16.mxu0 0
      %6487 = vmatmul.mubr.bf16.gmra.mxu0 %v6269
      %v6488 = vpop.f32.mrf.mxu0
      %v6489 = vadd.f32 0.0, %v6488
      %v6490 = vpop.f32.mrf.mxu0
      %v6491 = vpop.f32.mrf.mxu0
      %v6492 = vadd.f32 0.0, %v6491
      %v6493 = vpop.f32.mrf.mxu0
      %6494 = vdwg.mxu0
      %v6495 = vadd.f32 %v6108, %v6369
      %v6496 = vadd.f32 %v6109, %v6372
      %v6497 = vadd.f32 %v6110, %v6377
      %v6498 = vadd.f32 %v6111, %v6380
      %v6499 = vadd.f32 %v6112, %v6385
      %v6500 = vadd.f32 %v6113, %v6388
      %v6501 = vadd.f32 %v6114, %v6393
      %v6502 = vadd.f32 %v6115, %v6396
      %v6503 = vadd.f32 %v6116, %v6401
      %v6504 = vadd.f32 %v6117, %v6404
      %v6505 = vadd.f32 %v6118, %v6409
      %v6506 = vadd.f32 %v6119, %v6412
      %v6507 = vadd.f32 %v6120, %v6417
      %v6508 = vadd.f32 %v6121, %v6420
      %v6509 = vadd.f32 %v6122, %v6425
      %v6510 = vadd.f32 %v6123, %v6428
      %v6511 = vadd.f32 %v6124, %v6433
      %v6512 = vadd.f32 %v6125, %v6436
      %v6513 = vadd.f32 %v6126, %v6441
      %v6514 = vadd.f32 %v6127, %v6444
      %v6515 = vadd.f32 %v6128, %v6449
      %v6516 = vadd.f32 %v6129, %v6452
      %v6517 = vadd.f32 %v6130, %v6457
      %v6518 = vadd.f32 %v6131, %v6460
      %v6519 = vadd.f32 %v6132, %v6465
      %v6520 = vadd.f32 %v6133, %v6468
      %v6521 = vadd.f32 %v6134, %v6473
      %v6522 = vadd.f32 %v6135, %v6476
      %v6523 = vadd.f32 %v6136, %v6481
      %v6524 = vadd.f32 %v6137, %v6484
      %v6525 = vadd.f32 %v6138, %v6489
      %v6526 = vadd.f32 %v6139, %v6492
      %v6527 = vld [vmem:[%s6140] sm:$0xf]
      %v6528 = vld [vmem:[%s6140 + $0x4] sm:$0xf]
      %v6529 = vld [vmem:[%s6140 + $0x8] sm:$0x1]
      %v6530 = vld [vmem:[%s6140 + $0xc] sm:$0xf]
      %v6531 = vld [vmem:[%s6140 + $0x10] sm:$0xf]
      %v6532 = vld [vmem:[%s6140 + $0x14] sm:$0x1]
      %v6533 = vld [vmem:[%s6140 + $0x18] sm:$0xf]
      %v6534 = vld [vmem:[%s6140 + $0x1c] sm:$0xf]
      %v6535 = vld [vmem:[%s6140 + $0x20] sm:$0x1]
      %v6536 = vld [vmem:[%s6140 + $0x24] sm:$0xf]
      %v6537 = vld [vmem:[%s6140 + $0x28] sm:$0xf]
      %v6538 = vld [vmem:[%s6140 + $0x2c] sm:$0x1]
      %v6539 = vld [vmem:[%s6140 + $0x30] sm:$0xf]
      %v6540 = vld [vmem:[%s6140 + $0x34] sm:$0xf]
      %v6541 = vld [vmem:[%s6140 + $0x38] sm:$0x1]
      %v6542 = vld [vmem:[%s6140 + $0x3c] sm:$0xf]
      %v6543 = vld [vmem:[%s6140 + $0x40] sm:$0xf]
      %v6544 = vld [vmem:[%s6140 + $0x44] sm:$0x1]
      %v6545 = vld [vmem:[%s6140 + $0x48] sm:$0xf]
      %v6546 = vld [vmem:[%s6140 + $0x4c] sm:$0xf]
      %v6547 = vld [vmem:[%s6140 + $0x50] sm:$0x1]
      %v6548 = vld [vmem:[%s6140 + $0x54] sm:$0xf]
      %v6549 = vld [vmem:[%s6140 + $0x58] sm:$0xf]
      %v6550 = vld [vmem:[%s6140 + $0x5c] sm:$0x1]
      %v6551 = vld [vmem:[%s6140 + $0x60] sm:$0xf]
      %v6552 = vld [vmem:[%s6140 + $0x64] sm:$0xf]
      %v6553 = vld [vmem:[%s6140 + $0x68] sm:$0x1]
      %v6554 = vld [vmem:[%s6140 + $0x6c] sm:$0xf]
      %v6555 = vld [vmem:[%s6140 + $0x70] sm:$0xf]
      %v6556 = vld [vmem:[%s6140 + $0x74] sm:$0x1]
      %v6557 = vld [vmem:[%s6140 + $0x78] sm:$0xf]
      %v6558 = vld [vmem:[%s6140 + $0x7c] sm:$0xf]
      %v6559 = vld [vmem:[%s6140 + $0x80] sm:$0x1]
      %v6560 = vld [vmem:[%s6140 + $0x84] sm:$0xf]
      %v6561 = vld [vmem:[%s6140 + $0x88] sm:$0xf]
      %v6562 = vld [vmem:[%s6140 + $0x8c] sm:$0x1]
      %v6563 = vld [vmem:[%s6140 + $0x90] sm:$0xf]
      %v6564 = vld [vmem:[%s6140 + $0x94] sm:$0xf]
      %v6565 = vld [vmem:[%s6140 + $0x98] sm:$0x1]
      %v6566 = vld [vmem:[%s6140 + $0x9c] sm:$0xf]
      %v6567 = vld [vmem:[%s6140 + $0xa0] sm:$0xf]
      %v6568 = vld [vmem:[%s6140 + $0xa4] sm:$0x1]
      %v6569 = vld [vmem:[%s6140 + $0xa8] sm:$0xf]
      %v6570 = vld [vmem:[%s6140 + $0xac] sm:$0xf]
      %v6571 = vld [vmem:[%s6140 + $0xb0] sm:$0x1]
      %v6572 = vld [vmem:[%s6140 + $0xb4] sm:$0xf]
      %v6573 = vld [vmem:[%s6140 + $0xb8] sm:$0xf]
      %v6574 = vld [vmem:[%s6140 + $0xbc] sm:$0x1]
      %v6576 = vshrl.u32 %v6527, 16
      %v6578 = vrot.slane %v6576, 4
      %v6579 = vshll.u32 %v6527, 16
      %v6581 = vrot.slane %v6579, 5
      %v6582 = vor.u32 %v6578, %v6581
      %v6583 = vrot.slane %v6582, 4
      %v6585 = vshll.u32 %v6528, 16
      %v6587 = vrot.slane %v6585, 5
      %v6588 = vsel %vm3037, %v6583, %v6587
      %v6589 = vshrl.u32 %v6528, 16
      %v6591 = vrot.slane %v6589, 4
      %v6592 = vor.u32 %v6591, %v6587
      %v6593 = vrot.slane %v6592, 4
      %v6595 = vshll.u32 %v6529, 16
      %v6597 = vrot.slane %v6595, 5
      %v6598 = vsel %vm3037, %v6593, %v6597
      %v6600 = vshrl.u32 %v6530, 16
      %v6602 = vrot.slane %v6600, 4
      %v6603 = vshll.u32 %v6530, 16
      %v6605 = vrot.slane %v6603, 5
      %v6606 = vor.u32 %v6602, %v6605
      %v6607 = vrot.slane %v6606, 4
      %v6609 = vshll.u32 %v6531, 16
      %v6611 = vrot.slane %v6609, 5
      %v6612 = vsel %vm3037, %v6607, %v6611
      %v6613 = vshrl.u32 %v6531, 16
      %v6615 = vrot.slane %v6613, 4
      %v6616 = vor.u32 %v6615, %v6611
      %v6617 = vrot.slane %v6616, 4
      %v6619 = vshll.u32 %v6532, 16
      %v6621 = vrot.slane %v6619, 5
      %v6622 = vsel %vm3037, %v6617, %v6621
      %v6624 = vshrl.u32 %v6533, 16
      %v6626 = vrot.slane %v6624, 4
      %v6627 = vshll.u32 %v6533, 16
      %v6629 = vrot.slane %v6627, 5
      %v6630 = vor.u32 %v6626, %v6629
      %v6631 = vrot.slane %v6630, 4
      %v6633 = vshll.u32 %v6534, 16
      %v6635 = vrot.slane %v6633, 5
      %v6636 = vsel %vm3037, %v6631, %v6635
      %v6637 = vshrl.u32 %v6534, 16
      %v6639 = vrot.slane %v6637, 4
      %v6640 = vor.u32 %v6639, %v6635
      %v6641 = vrot.slane %v6640, 4
      %v6643 = vshll.u32 %v6535, 16
      %v6645 = vrot.slane %v6643, 5
      %v6646 = vsel %vm3037, %v6641, %v6645
      %v6648 = vshrl.u32 %v6536, 16
      %v6650 = vrot.slane %v6648, 4
      %v6651 = vshll.u32 %v6536, 16
      %v6653 = vrot.slane %v6651, 5
      %v6654 = vor.u32 %v6650, %v6653
      %v6655 = vrot.slane %v6654, 4
      %v6657 = vshll.u32 %v6537, 16
      %v6659 = vrot.slane %v6657, 5
      %v6660 = vsel %vm3037, %v6655, %v6659
      %v6661 = vshrl.u32 %v6537, 16
      %v6663 = vrot.slane %v6661, 4
      %v6664 = vor.u32 %v6663, %v6659
      %v6665 = vrot.slane %v6664, 4
      %v6667 = vshll.u32 %v6538, 16
      %v6669 = vrot.slane %v6667, 5
      %v6670 = vsel %vm3037, %v6665, %v6669
      %v6672 = vshrl.u32 %v6539, 16
      %v6674 = vrot.slane %v6672, 4
      %v6675 = vshll.u32 %v6539, 16
      %v6677 = vrot.slane %v6675, 5
      %v6678 = vor.u32 %v6674, %v6677
      %v6679 = vrot.slane %v6678, 4
      %v6681 = vshll.u32 %v6540, 16
      %v6683 = vrot.slane %v6681, 5
      %v6684 = vsel %vm3037, %v6679, %v6683
      %v6685 = vshrl.u32 %v6540, 16
      %v6687 = vrot.slane %v6685, 4
      %v6688 = vor.u32 %v6687, %v6683
      %v6689 = vrot.slane %v6688, 4
      %v6691 = vshll.u32 %v6541, 16
      %v6693 = vrot.slane %v6691, 5
      %v6694 = vsel %vm3037, %v6689, %v6693
      %v6696 = vshrl.u32 %v6542, 16
      %v6698 = vrot.slane %v6696, 4
      %v6699 = vshll.u32 %v6542, 16
      %v6701 = vrot.slane %v6699, 5
      %v6702 = vor.u32 %v6698, %v6701
      %v6703 = vrot.slane %v6702, 4
      %v6705 = vshll.u32 %v6543, 16
      %v6707 = vrot.slane %v6705, 5
      %v6708 = vsel %vm3037, %v6703, %v6707
      %v6709 = vshrl.u32 %v6543, 16
      %v6711 = vrot.slane %v6709, 4
      %v6712 = vor.u32 %v6711, %v6707
      %v6713 = vrot.slane %v6712, 4
      %v6715 = vshll.u32 %v6544, 16
      %v6717 = vrot.slane %v6715, 5
      %v6718 = vsel %vm3037, %v6713, %v6717
      %v6720 = vshrl.u32 %v6545, 16
      %v6722 = vrot.slane %v6720, 4
      %v6723 = vshll.u32 %v6545, 16
      %v6725 = vrot.slane %v6723, 5
      %v6726 = vor.u32 %v6722, %v6725
      %v6727 = vrot.slane %v6726, 4
      %v6729 = vshll.u32 %v6546, 16
      %v6731 = vrot.slane %v6729, 5
      %v6732 = vsel %vm3037, %v6727, %v6731
      %v6733 = vshrl.u32 %v6546, 16
      %v6735 = vrot.slane %v6733, 4
      %v6736 = vor.u32 %v6735, %v6731
      %v6737 = vrot.slane %v6736, 4
      %v6739 = vshll.u32 %v6547, 16
      %v6741 = vrot.slane %v6739, 5
      %v6742 = vsel %vm3037, %v6737, %v6741
      %v6744 = vshrl.u32 %v6548, 16
      %v6746 = vrot.slane %v6744, 4
      %v6747 = vshll.u32 %v6548, 16
      %v6749 = vrot.slane %v6747, 5
      %v6750 = vor.u32 %v6746, %v6749
      %v6751 = vrot.slane %v6750, 4
      %v6753 = vshll.u32 %v6549, 16
      %v6755 = vrot.slane %v6753, 5
      %v6756 = vsel %vm3037, %v6751, %v6755
      %v6757 = vshrl.u32 %v6549, 16
      %v6759 = vrot.slane %v6757, 4
      %v6760 = vor.u32 %v6759, %v6755
      %v6761 = vrot.slane %v6760, 4
      %v6763 = vshll.u32 %v6550, 16
      %v6765 = vrot.slane %v6763, 5
      %v6766 = vsel %vm3037, %v6761, %v6765
      %v6768 = vshrl.u32 %v6551, 16
      %v6770 = vrot.slane %v6768, 4
      %v6771 = vshll.u32 %v6551, 16
      %v6773 = vrot.slane %v6771, 5
      %v6774 = vor.u32 %v6770, %v6773
      %v6775 = vrot.slane %v6774, 4
      %v6777 = vshll.u32 %v6552, 16
      %v6779 = vrot.slane %v6777, 5
      %v6780 = vsel %vm3037, %v6775, %v6779
      %v6781 = vshrl.u32 %v6552, 16
      %v6783 = vrot.slane %v6781, 4
      %v6784 = vor.u32 %v6783, %v6779
      %v6785 = vrot.slane %v6784, 4
      %v6787 = vshll.u32 %v6553, 16
      %v6789 = vrot.slane %v6787, 5
      %v6790 = vsel %vm3037, %v6785, %v6789
      %v6792 = vshrl.u32 %v6554, 16
      %v6794 = vrot.slane %v6792, 4
      %v6795 = vshll.u32 %v6554, 16
      %v6797 = vrot.slane %v6795, 5
      %v6798 = vor.u32 %v6794, %v6797
      %v6799 = vrot.slane %v6798, 4
      %v6801 = vshll.u32 %v6555, 16
      %v6803 = vrot.slane %v6801, 5
      %v6804 = vsel %vm3037, %v6799, %v6803
      %v6805 = vshrl.u32 %v6555, 16
      %v6807 = vrot.slane %v6805, 4
      %v6808 = vor.u32 %v6807, %v6803
      %v6809 = vrot.slane %v6808, 4
      %v6811 = vshll.u32 %v6556, 16
      %v6813 = vrot.slane %v6811, 5
      %v6814 = vsel %vm3037, %v6809, %v6813
      %v6816 = vshrl.u32 %v6557, 16
      %v6818 = vrot.slane %v6816, 4
      %v6819 = vshll.u32 %v6557, 16
      %v6821 = vrot.slane %v6819, 5
      %v6822 = vor.u32 %v6818, %v6821
      %v6823 = vrot.slane %v6822, 4
      %v6825 = vshll.u32 %v6558, 16
      %v6827 = vrot.slane %v6825, 5
      %v6828 = vsel %vm3037, %v6823, %v6827
      %v6829 = vshrl.u32 %v6558, 16
      %v6831 = vrot.slane %v6829, 4
      %v6832 = vor.u32 %v6831, %v6827
      %v6833 = vrot.slane %v6832, 4
      %v6835 = vshll.u32 %v6559, 16
      %v6837 = vrot.slane %v6835, 5
      %v6838 = vsel %vm3037, %v6833, %v6837
      %v6840 = vshrl.u32 %v6560, 16
      %v6842 = vrot.slane %v6840, 4
      %v6843 = vshll.u32 %v6560, 16
      %v6845 = vrot.slane %v6843, 5
      %v6846 = vor.u32 %v6842, %v6845
      %v6847 = vrot.slane %v6846, 4
      %v6849 = vshll.u32 %v6561, 16
      %v6851 = vrot.slane %v6849, 5
      %v6852 = vsel %vm3037, %v6847, %v6851
      %v6853 = vshrl.u32 %v6561, 16
      %v6855 = vrot.slane %v6853, 4
      %v6856 = vor.u32 %v6855, %v6851
      %v6857 = vrot.slane %v6856, 4
      %v6859 = vshll.u32 %v6562, 16
      %v6861 = vrot.slane %v6859, 5
      %v6862 = vsel %vm3037, %v6857, %v6861
      %v6864 = vshrl.u32 %v6563, 16
      %v6866 = vrot.slane %v6864, 4
      %v6867 = vshll.u32 %v6563, 16
      %v6869 = vrot.slane %v6867, 5
      %v6870 = vor.u32 %v6866, %v6869
      %v6871 = vrot.slane %v6870, 4
      %v6873 = vshll.u32 %v6564, 16
      %v6875 = vrot.slane %v6873, 5
      %v6876 = vsel %vm3037, %v6871, %v6875
      %v6877 = vshrl.u32 %v6564, 16
      %v6879 = vrot.slane %v6877, 4
      %v6880 = vor.u32 %v6879, %v6875
      %v6881 = vrot.slane %v6880, 4
      %v6883 = vshll.u32 %v6565, 16
      %v6885 = vrot.slane %v6883, 5
      %v6886 = vsel %vm3037, %v6881, %v6885
      %v6888 = vshrl.u32 %v6566, 16
      %v6890 = vrot.slane %v6888, 4
      %v6891 = vshll.u32 %v6566, 16
      %v6893 = vrot.slane %v6891, 5
      %v6894 = vor.u32 %v6890, %v6893
      %v6895 = vrot.slane %v6894, 4
      %v6897 = vshll.u32 %v6567, 16
      %v6899 = vrot.slane %v6897, 5
      %v6900 = vsel %vm3037, %v6895, %v6899
      %v6901 = vshrl.u32 %v6567, 16
      %v6903 = vrot.slane %v6901, 4
      %v6904 = vor.u32 %v6903, %v6899
      %v6905 = vrot.slane %v6904, 4
      %v6907 = vshll.u32 %v6568, 16
      %v6909 = vrot.slane %v6907, 5
      %v6910 = vsel %vm3037, %v6905, %v6909
      %v6912 = vshrl.u32 %v6569, 16
      %v6914 = vrot.slane %v6912, 4
      %v6915 = vshll.u32 %v6569, 16
      %v6917 = vrot.slane %v6915, 5
      %v6918 = vor.u32 %v6914, %v6917
      %v6919 = vrot.slane %v6918, 4
      %v6921 = vshll.u32 %v6570, 16
      %v6923 = vrot.slane %v6921, 5
      %v6924 = vsel %vm3037, %v6919, %v6923
      %v6925 = vshrl.u32 %v6570, 16
      %v6927 = vrot.slane %v6925, 4
      %v6928 = vor.u32 %v6927, %v6923
      %v6929 = vrot.slane %v6928, 4
      %v6931 = vshll.u32 %v6571, 16
      %v6933 = vrot.slane %v6931, 5
      %v6934 = vsel %vm3037, %v6929, %v6933
      %v6936 = vshrl.u32 %v6572, 16
      %v6938 = vrot.slane %v6936, 4
      %v6939 = vshll.u32 %v6572, 16
      %v6941 = vrot.slane %v6939, 5
      %v6942 = vor.u32 %v6938, %v6941
      %v6943 = vrot.slane %v6942, 4
      %v6945 = vshll.u32 %v6573, 16
      %v6947 = vrot.slane %v6945, 5
      %v6948 = vsel %vm3037, %v6943, %v6947
      %v6949 = vshrl.u32 %v6573, 16
      %v6951 = vrot.slane %v6949, 4
      %v6952 = vor.u32 %v6951, %v6947
      %v6953 = vrot.slane %v6952, 4
      %v6955 = vshll.u32 %v6574, 16
      %v6957 = vrot.slane %v6955, 5
      %v6958 = vsel %vm3037, %v6953, %v6957
      %s6959 = scalar_lea.vmem %s3, 448
      %v6960 = vld [vmem:[%s6959] sm:$0xf]
      %v6961 = vld [vmem:[%s6959 + $0x4] sm:$0xf]
      %v6962 = vld [vmem:[%s6959 + $0x8] sm:$0xf]
      %v6963 = vld [vmem:[%s6959 + $0xc] sm:$0xf]
      %v6964 = vld [vmem:[%s6959 + $0x10] sm:$0xf]
      %v6965 = vld [vmem:[%s6959 + $0x14] sm:$0xf]
      %v6966 = vld [vmem:[%s6959 + $0x18] sm:$0xf]
      %v6967 = vld [vmem:[%s6959 + $0x1c] sm:$0xf]
      %v6968 = vld [vmem:[%s6959 + $0x20] sm:$0xf]
      %v6969 = vld [vmem:[%s6959 + $0x24] sm:$0xf]
      %v6970 = vld [vmem:[%s6959 + $0x28] sm:$0xf]
      %v6971 = vld [vmem:[%s6959 + $0x2c] sm:$0xf]
      %v6972 = vld [vmem:[%s6959 + $0x30] sm:$0xf]
      %v6973 = vld [vmem:[%s6959 + $0x34] sm:$0xf]
      %v6974 = vld [vmem:[%s6959 + $0x38] sm:$0xf]
      %v6975 = vld [vmem:[%s6959 + $0x3c] sm:$0xf]
      %v6976 = vunpack.c.l.b16 %v6588
      %v6977 = vunpack.c.l.b16 %v6598
      %v6978 = vunpack.c.l.b16 %v6612
      %v6979 = vunpack.c.l.b16 %v6622
      %v6980 = vunpack.c.l.b16 %v6636
      %v6981 = vunpack.c.l.b16 %v6646
      %v6982 = vunpack.c.l.b16 %v6660
      %v6983 = vunpack.c.l.b16 %v6670
      %v6984 = vunpack.c.l.b16 %v6684
      %v6985 = vunpack.c.l.b16 %v6694
      %v6986 = vunpack.c.l.b16 %v6708
      %v6987 = vunpack.c.l.b16 %v6718
      %v6988 = vunpack.c.l.b16 %v6732
      %v6989 = vunpack.c.l.b16 %v6742
      %v6990 = vunpack.c.l.b16 %v6756
      %v6991 = vunpack.c.l.b16 %v6766
      %v6992 = vunpack.c.l.b16 %v6780
      %v6993 = vunpack.c.l.b16 %v6790
      %v6994 = vunpack.c.l.b16 %v6804
      %v6995 = vunpack.c.l.b16 %v6814
      %v6996 = vunpack.c.l.b16 %v6828
      %v6997 = vunpack.c.l.b16 %v6838
      %v6998 = vunpack.c.l.b16 %v6852
      %v6999 = vunpack.c.l.b16 %v6862
      %v7000 = vunpack.c.l.b16 %v6876
      %v7001 = vunpack.c.l.b16 %v6886
      %v7002 = vunpack.c.l.b16 %v6900
      %v7003 = vunpack.c.l.b16 %v6910
      %v7004 = vunpack.c.l.b16 %v6924
      %v7005 = vunpack.c.l.b16 %v6934
      %v7006 = vunpack.c.l.b16 %v6948
      %v7007 = vunpack.c.l.b16 %v6958
      %v7008 = vpack.c.b16 %v6977, %v6976
      %v7009 = vpack.c.b16 %v6979, %v6978
      %v7010 = vpack.c.b16 %v6981, %v6980
      %v7011 = vpack.c.b16 %v6983, %v6982
      %v7012 = vpack.c.b16 %v6985, %v6984
      %v7013 = vpack.c.b16 %v6987, %v6986
      %v7014 = vpack.c.b16 %v6989, %v6988
      %v7015 = vpack.c.b16 %v6991, %v6990
      %v7016 = vpack.c.b16 %v6993, %v6992
      %v7017 = vpack.c.b16 %v6995, %v6994
      %v7018 = vpack.c.b16 %v6997, %v6996
      %v7019 = vpack.c.b16 %v6999, %v6998
      %v7020 = vpack.c.b16 %v7001, %v7000
      %v7021 = vpack.c.b16 %v7003, %v7002
      %v7022 = vpack.c.b16 %v7005, %v7004
      %v7023 = vpack.c.b16 %v7007, %v7006
      %v7056 = vunpack.c.l.b16 %v6960
      %v7057 = vunpack.c.l.b16 %v6961
      %v7058 = vunpack.c.l.b16 %v6962
      %v7059 = vunpack.c.l.b16 %v6963
      %v7060 = vunpack.c.l.b16 %v6964
      %v7061 = vunpack.c.l.b16 %v6965
      %v7062 = vunpack.c.l.b16 %v6966
      %v7063 = vunpack.c.l.b16 %v6967
      %v7064 = vunpack.c.l.b16 %v6968
      %v7065 = vunpack.c.l.b16 %v6969
      %v7066 = vunpack.c.l.b16 %v6970
      %v7067 = vunpack.c.l.b16 %v6971
      %v7068 = vunpack.c.l.b16 %v6972
      %v7069 = vunpack.c.l.b16 %v6973
      %v7070 = vunpack.c.l.b16 %v6974
      %v7071 = vunpack.c.l.b16 %v6975
      %v7072 = vpack.c.b16 %v7057, %v7056
      %v7073 = vpack.c.b16 %v7059, %v7058
      %v7074 = vpack.c.b16 %v7061, %v7060
      %v7075 = vpack.c.b16 %v7063, %v7062
      %v7076 = vpack.c.b16 %v7065, %v7064
      %v7077 = vpack.c.b16 %v7067, %v7066
      %v7078 = vpack.c.b16 %v7069, %v7068
      %v7079 = vpack.c.b16 %v7071, %v7070
      %7088 = vmatprep.subr.bf16.mxu0 0
      %7089 = vmatpush1.bf16.msra.mxu0 %v7079
      %7090 = vmatprep.subr.bf16.mxu0 0
      %7091 = vmatpush1.bf16.msra.mxu0 %v7078
      %7092 = vmatprep.subr.bf16.mxu0 0
      %7093 = vmatpush1.bf16.msra.mxu0 %v7077
      %7094 = vmatprep.subr.bf16.mxu0 0
      %7095 = vmatpush1.bf16.msra.mxu0 %v7076
      %7096 = vmatprep.subr.bf16.mxu0 0
      %7097 = vmatpush1.bf16.msra.mxu0 %v7075
      %7098 = vmatprep.subr.bf16.mxu0 0
      %7099 = vmatpush1.bf16.msra.mxu0 %v7074
      %7100 = vmatprep.subr.bf16.mxu0 0
      %7101 = vmatpush1.bf16.msra.mxu0 %v7073
      %7102 = vmatprep.subr.bf16.mxu0 0
      %7103 = vmatpush1.bf16.msra.mxu0 %v7072
      %7104 = vmatprep.subr.bf16.mxu0 0
      %7105 = vmatpush2.bf16.msra.mxu0 0
      %7106 = vmatprep.subr.bf16.mxu0 0
      %7107 = vmatpush2.bf16.msra.mxu0 0
      %7108 = vmatprep.subr.bf16.mxu0 0
      %7109 = vmatpush2.bf16.msra.mxu0 0
      %7110 = vmatprep.subr.bf16.mxu0 0
      %7111 = vmatpush2.bf16.msra.mxu0 0
      %7112 = vmatprep.subr.bf16.mxu0 0
      %7113 = vmatpush2.bf16.msra.mxu0 0
      %7114 = vmatprep.subr.bf16.mxu0 0
      %7115 = vmatpush2.bf16.msra.mxu0 0
      %7116 = vmatprep.subr.bf16.mxu0 0
      %7117 = vmatpush2.bf16.msra.mxu0 0
      %7118 = vmatprep.subr.bf16.mxu0 0
      %7119 = vmatpush2.bf16.msra.mxu0 0
      %7120 = vmatprep.mubr.bf16.mxu0 0
      %7121 = vmatmul.mubr.bf16.gmra.mxu0 %v7008
      %v7122 = vpop.f32.mrf.mxu0
      %v7123 = vadd.f32 0.0, %v7122
      %v7124 = vpop.f32.mrf.mxu0
      %v7125 = vpop.f32.mrf.mxu0
      %v7126 = vadd.f32 0.0, %v7125
      %v7127 = vpop.f32.mrf.mxu0
      %7128 = vmatprep.mubr.bf16.mxu0 0
      %7129 = vmatmul.mubr.bf16.gmra.mxu0 %v7009
      %v7130 = vpop.f32.mrf.mxu0
      %v7131 = vadd.f32 0.0, %v7130
      %v7132 = vpop.f32.mrf.mxu0
      %v7133 = vpop.f32.mrf.mxu0
      %v7134 = vadd.f32 0.0, %v7133
      %v7135 = vpop.f32.mrf.mxu0
      %7136 = vmatprep.mubr.bf16.mxu0 0
      %7137 = vmatmul.mubr.bf16.gmra.mxu0 %v7010
      %v7138 = vpop.f32.mrf.mxu0
      %v7139 = vadd.f32 0.0, %v7138
      %v7140 = vpop.f32.mrf.mxu0
      %v7141 = vpop.f32.mrf.mxu0
      %v7142 = vadd.f32 0.0, %v7141
      %v7143 = vpop.f32.mrf.mxu0
      %7144 = vmatprep.mubr.bf16.mxu0 0
      %7145 = vmatmul.mubr.bf16.gmra.mxu0 %v7011
      %v7146 = vpop.f32.mrf.mxu0
      %v7147 = vadd.f32 0.0, %v7146
      %v7148 = vpop.f32.mrf.mxu0
      %v7149 = vpop.f32.mrf.mxu0
      %v7150 = vadd.f32 0.0, %v7149
      %v7151 = vpop.f32.mrf.mxu0
      %7152 = vmatprep.mubr.bf16.mxu0 0
      %7153 = vmatmul.mubr.bf16.gmra.mxu0 %v7012
      %v7154 = vpop.f32.mrf.mxu0
      %v7155 = vadd.f32 0.0, %v7154
      %v7156 = vpop.f32.mrf.mxu0
      %v7157 = vpop.f32.mrf.mxu0
      %v7158 = vadd.f32 0.0, %v7157
      %v7159 = vpop.f32.mrf.mxu0
      %7160 = vmatprep.mubr.bf16.mxu0 0
      %7161 = vmatmul.mubr.bf16.gmra.mxu0 %v7013
      %v7162 = vpop.f32.mrf.mxu0
      %v7163 = vadd.f32 0.0, %v7162
      %v7164 = vpop.f32.mrf.mxu0
      %v7165 = vpop.f32.mrf.mxu0
      %v7166 = vadd.f32 0.0, %v7165
      %v7167 = vpop.f32.mrf.mxu0
      %7168 = vmatprep.mubr.bf16.mxu0 0
      %7169 = vmatmul.mubr.bf16.gmra.mxu0 %v7014
      %v7170 = vpop.f32.mrf.mxu0
      %v7171 = vadd.f32 0.0, %v7170
      %v7172 = vpop.f32.mrf.mxu0
      %v7173 = vpop.f32.mrf.mxu0
      %v7174 = vadd.f32 0.0, %v7173
      %v7175 = vpop.f32.mrf.mxu0
      %7176 = vmatprep.mubr.bf16.mxu0 0
      %7177 = vmatmul.mubr.bf16.gmra.mxu0 %v7015
      %v7178 = vpop.f32.mrf.mxu0
      %v7179 = vadd.f32 0.0, %v7178
      %v7180 = vpop.f32.mrf.mxu0
      %v7181 = vpop.f32.mrf.mxu0
      %v7182 = vadd.f32 0.0, %v7181
      %v7183 = vpop.f32.mrf.mxu0
      %7184 = vmatprep.mubr.bf16.mxu0 0
      %7185 = vmatmul.mubr.bf16.gmra.mxu0 %v7016
      %v7186 = vpop.f32.mrf.mxu0
      %v7187 = vadd.f32 0.0, %v7186
      %v7188 = vpop.f32.mrf.mxu0
      %v7189 = vpop.f32.mrf.mxu0
      %v7190 = vadd.f32 0.0, %v7189
      %v7191 = vpop.f32.mrf.mxu0
      %7192 = vmatprep.mubr.bf16.mxu0 0
      %7193 = vmatmul.mubr.bf16.gmra.mxu0 %v7017
      %v7194 = vpop.f32.mrf.mxu0
      %v7195 = vadd.f32 0.0, %v7194
      %v7196 = vpop.f32.mrf.mxu0
      %v7197 = vpop.f32.mrf.mxu0
      %v7198 = vadd.f32 0.0, %v7197
      %v7199 = vpop.f32.mrf.mxu0
      %7200 = vmatprep.mubr.bf16.mxu0 0
      %7201 = vmatmul.mubr.bf16.gmra.mxu0 %v7018
      %v7202 = vpop.f32.mrf.mxu0
      %v7203 = vadd.f32 0.0, %v7202
      %v7204 = vpop.f32.mrf.mxu0
      %v7205 = vpop.f32.mrf.mxu0
      %v7206 = vadd.f32 0.0, %v7205
      %v7207 = vpop.f32.mrf.mxu0
      %7208 = vmatprep.mubr.bf16.mxu0 0
      %7209 = vmatmul.mubr.bf16.gmra.mxu0 %v7019
      %v7210 = vpop.f32.mrf.mxu0
      %v7211 = vadd.f32 0.0, %v7210
      %v7212 = vpop.f32.mrf.mxu0
      %v7213 = vpop.f32.mrf.mxu0
      %v7214 = vadd.f32 0.0, %v7213
      %v7215 = vpop.f32.mrf.mxu0
      %7216 = vmatprep.mubr.bf16.mxu0 0
      %7217 = vmatmul.mubr.bf16.gmra.mxu0 %v7020
      %v7218 = vpop.f32.mrf.mxu0
      %v7219 = vadd.f32 0.0, %v7218
      %v7220 = vpop.f32.mrf.mxu0
      %v7221 = vpop.f32.mrf.mxu0
      %v7222 = vadd.f32 0.0, %v7221
      %v7223 = vpop.f32.mrf.mxu0
      %7224 = vmatprep.mubr.bf16.mxu0 0
      %7225 = vmatmul.mubr.bf16.gmra.mxu0 %v7021
      %v7226 = vpop.f32.mrf.mxu0
      %v7227 = vadd.f32 0.0, %v7226
      %v7228 = vpop.f32.mrf.mxu0
      %v7229 = vpop.f32.mrf.mxu0
      %v7230 = vadd.f32 0.0, %v7229
      %v7231 = vpop.f32.mrf.mxu0
      %7232 = vmatprep.mubr.bf16.mxu0 0
      %7233 = vmatmul.mubr.bf16.gmra.mxu0 %v7022
      %v7234 = vpop.f32.mrf.mxu0
      %v7235 = vadd.f32 0.0, %v7234
      %v7236 = vpop.f32.mrf.mxu0
      %v7237 = vpop.f32.mrf.mxu0
      %v7238 = vadd.f32 0.0, %v7237
      %v7239 = vpop.f32.mrf.mxu0
      %7240 = vmatprep.mubr.bf16.mxu0 0
      %7241 = vmatmul.mubr.bf16.gmra.mxu0 %v7023
      %v7242 = vpop.f32.mrf.mxu0
      %v7243 = vadd.f32 0.0, %v7242
      %v7244 = vpop.f32.mrf.mxu0
      %v7245 = vpop.f32.mrf.mxu0
      %v7246 = vadd.f32 0.0, %v7245
      %v7247 = vpop.f32.mrf.mxu0
      %7248 = vdwg.mxu0
      %v7249 = vadd.f32 %v6495, %v7123
      %v7250 = vadd.f32 %v6496, %v7126
      %v7251 = vadd.f32 %v6497, %v7131
      %v7252 = vadd.f32 %v6498, %v7134
      %v7253 = vadd.f32 %v6499, %v7139
      %v7254 = vadd.f32 %v6500, %v7142
      %v7255 = vadd.f32 %v6501, %v7147
      %v7256 = vadd.f32 %v6502, %v7150
      %v7257 = vadd.f32 %v6503, %v7155
      %v7258 = vadd.f32 %v6504, %v7158
      %v7259 = vadd.f32 %v6505, %v7163
      %v7260 = vadd.f32 %v6506, %v7166
      %v7261 = vadd.f32 %v6507, %v7171
      %v7262 = vadd.f32 %v6508, %v7174
      %v7263 = vadd.f32 %v6509, %v7179
      %v7264 = vadd.f32 %v6510, %v7182
      %v7265 = vadd.f32 %v6511, %v7187
      %v7266 = vadd.f32 %v6512, %v7190
      %v7267 = vadd.f32 %v6513, %v7195
      %v7268 = vadd.f32 %v6514, %v7198
      %v7269 = vadd.f32 %v6515, %v7203
      %v7270 = vadd.f32 %v6516, %v7206
      %v7271 = vadd.f32 %v6517, %v7211
      %v7272 = vadd.f32 %v6518, %v7214
      %v7273 = vadd.f32 %v6519, %v7219
      %v7274 = vadd.f32 %v6520, %v7222
      %v7275 = vadd.f32 %v6521, %v7227
      %v7276 = vadd.f32 %v6522, %v7230
      %v7277 = vadd.f32 %v6523, %v7235
      %v7278 = vadd.f32 %v6524, %v7238
      %v7279 = vadd.f32 %v6525, %v7243
      %v7280 = vadd.f32 %v6526, %v7246
      %v7281 = vld [vmem:[%s6140] sm:$0xe]
      %v7282 = vld [vmem:[%s6140 + $0xc] sm:$0xe]
      %v7283 = vld [vmem:[%s6140 + $0x18] sm:$0xe]
      %v7284 = vld [vmem:[%s6140 + $0x24] sm:$0xe]
      %v7285 = vld [vmem:[%s6140 + $0x30] sm:$0xe]
      %v7286 = vld [vmem:[%s6140 + $0x3c] sm:$0xe]
      %v7287 = vld [vmem:[%s6140 + $0x48] sm:$0xe]
      %v7288 = vld [vmem:[%s6140 + $0x54] sm:$0xe]
      %v7289 = vld [vmem:[%s6140 + $0x60] sm:$0xe]
      %v7290 = vld [vmem:[%s6140 + $0x6c] sm:$0xe]
      %v7291 = vld [vmem:[%s6140 + $0x78] sm:$0xe]
      %v7292 = vld [vmem:[%s6140 + $0x84] sm:$0xe]
      %v7293 = vld [vmem:[%s6140 + $0x90] sm:$0xe]
      %v7294 = vld [vmem:[%s6140 + $0x9c] sm:$0xe]
      %v7295 = vld [vmem:[%s6140 + $0xa8] sm:$0xe]
      %v7296 = vld [vmem:[%s6140 + $0xb4] sm:$0xe]
      %v7345 = vrot.slane %v7281, 5
      %v7346 = vrot.slane %v7345, 4
      %v7347 = vrot.slane %v6528, 5
      %v7348 = vsel %vm4067, %v7346, %v7347
      %v7349 = vrot.slane %v7347, 4
      %v7350 = vrot.slane %v6529, 5
      %v7351 = vsel %vm4067, %v7349, %v7350
      %v7352 = vrot.slane %v7282, 5
      %v7353 = vrot.slane %v7352, 4
      %v7354 = vrot.slane %v6531, 5
      %v7355 = vsel %vm4067, %v7353, %v7354
      %v7356 = vrot.slane %v7354, 4
      %v7357 = vrot.slane %v6532, 5
      %v7358 = vsel %vm4067, %v7356, %v7357
      %v7359 = vrot.slane %v7283, 5
      %v7360 = vrot.slane %v7359, 4
      %v7361 = vrot.slane %v6534, 5
      %v7362 = vsel %vm4067, %v7360, %v7361
      %v7363 = vrot.slane %v7361, 4
      %v7364 = vrot.slane %v6535, 5
      %v7365 = vsel %vm4067, %v7363, %v7364
      %v7366 = vrot.slane %v7284, 5
      %v7367 = vrot.slane %v7366, 4
      %v7368 = vrot.slane %v6537, 5
      %v7369 = vsel %vm4067, %v7367, %v7368
      %v7370 = vrot.slane %v7368, 4
      %v7371 = vrot.slane %v6538, 5
      %v7372 = vsel %vm4067, %v7370, %v7371
      %v7373 = vrot.slane %v7285, 5
      %v7374 = vrot.slane %v7373, 4
      %v7375 = vrot.slane %v6540, 5
      %v7376 = vsel %vm4067, %v7374, %v7375
      %v7377 = vrot.slane %v7375, 4
      %v7378 = vrot.slane %v6541, 5
      %v7379 = vsel %vm4067, %v7377, %v7378
      %v7380 = vrot.slane %v7286, 5
      %v7381 = vrot.slane %v7380, 4
      %v7382 = vrot.slane %v6543, 5
      %v7383 = vsel %vm4067, %v7381, %v7382
      %v7384 = vrot.slane %v7382, 4
      %v7385 = vrot.slane %v6544, 5
      %v7386 = vsel %vm4067, %v7384, %v7385
      %v7387 = vrot.slane %v7287, 5
      %v7388 = vrot.slane %v7387, 4
      %v7389 = vrot.slane %v6546, 5
      %v7390 = vsel %vm4067, %v7388, %v7389
      %v7391 = vrot.slane %v7389, 4
      %v7392 = vrot.slane %v6547, 5
      %v7393 = vsel %vm4067, %v7391, %v7392
      %v7394 = vrot.slane %v7288, 5
      %v7395 = vrot.slane %v7394, 4
      %v7396 = vrot.slane %v6549, 5
      %v7397 = vsel %vm4067, %v7395, %v7396
      %v7398 = vrot.slane %v7396, 4
      %v7399 = vrot.slane %v6550, 5
      %v7400 = vsel %vm4067, %v7398, %v7399
      %v7401 = vrot.slane %v7289, 5
      %v7402 = vrot.slane %v7401, 4
      %v7403 = vrot.slane %v6552, 5
      %v7404 = vsel %vm4067, %v7402, %v7403
      %v7405 = vrot.slane %v7403, 4
      %v7406 = vrot.slane %v6553, 5
      %v7407 = vsel %vm4067, %v7405, %v7406
      %v7408 = vrot.slane %v7290, 5
      %v7409 = vrot.slane %v7408, 4
      %v7410 = vrot.slane %v6555, 5
      %v7411 = vsel %vm4067, %v7409, %v7410
      %v7412 = vrot.slane %v7410, 4
      %v7413 = vrot.slane %v6556, 5
      %v7414 = vsel %vm4067, %v7412, %v7413
      %v7415 = vrot.slane %v7291, 5
      %v7416 = vrot.slane %v7415, 4
      %v7417 = vrot.slane %v6558, 5
      %v7418 = vsel %vm4067, %v7416, %v7417
      %v7419 = vrot.slane %v7417, 4
      %v7420 = vrot.slane %v6559, 5
      %v7421 = vsel %vm4067, %v7419, %v7420
      %v7422 = vrot.slane %v7292, 5
      %v7423 = vrot.slane %v7422, 4
      %v7424 = vrot.slane %v6561, 5
      %v7425 = vsel %vm4067, %v7423, %v7424
      %v7426 = vrot.slane %v7424, 4
      %v7427 = vrot.slane %v6562, 5
      %v7428 = vsel %vm4067, %v7426, %v7427
      %v7429 = vrot.slane %v7293, 5
      %v7430 = vrot.slane %v7429, 4
      %v7431 = vrot.slane %v6564, 5
      %v7432 = vsel %vm4067, %v7430, %v7431
      %v7433 = vrot.slane %v7431, 4
      %v7434 = vrot.slane %v6565, 5
      %v7435 = vsel %vm4067, %v7433, %v7434
      %v7436 = vrot.slane %v7294, 5
      %v7437 = vrot.slane %v7436, 4
      %v7438 = vrot.slane %v6567, 5
      %v7439 = vsel %vm4067, %v7437, %v7438
      %v7440 = vrot.slane %v7438, 4
      %v7441 = vrot.slane %v6568, 5
      %v7442 = vsel %vm4067, %v7440, %v7441
      %v7443 = vrot.slane %v7295, 5
      %v7444 = vrot.slane %v7443, 4
      %v7445 = vrot.slane %v6570, 5
      %v7446 = vsel %vm4067, %v7444, %v7445
      %v7447 = vrot.slane %v7445, 4
      %v7448 = vrot.slane %v6571, 5
      %v7449 = vsel %vm4067, %v7447, %v7448
      %v7450 = vrot.slane %v7296, 5
      %v7451 = vrot.slane %v7450, 4
      %v7452 = vrot.slane %v6573, 5
      %v7453 = vsel %vm4067, %v7451, %v7452
      %v7454 = vrot.slane %v7452, 4
      %v7455 = vrot.slane %v6574, 5
      %v7456 = vsel %vm4067, %v7454, %v7455
      %s7457 = scalar_lea.vmem %s3, 512
      %v7458 = vld [vmem:[%s7457] sm:$0xf]
      %v7459 = vld [vmem:[%s7457 + $0x4] sm:$0xf]
      %v7460 = vld [vmem:[%s7457 + $0x8] sm:$0xf]
      %v7461 = vld [vmem:[%s7457 + $0xc] sm:$0xf]
      %v7462 = vld [vmem:[%s7457 + $0x10] sm:$0xf]
      %v7463 = vld [vmem:[%s7457 + $0x14] sm:$0xf]
      %v7464 = vld [vmem:[%s7457 + $0x18] sm:$0xf]
      %v7465 = vld [vmem:[%s7457 + $0x1c] sm:$0xf]
      %v7466 = vld [vmem:[%s7457 + $0x20] sm:$0xf]
      %v7467 = vld [vmem:[%s7457 + $0x24] sm:$0xf]
      %v7468 = vld [vmem:[%s7457 + $0x28] sm:$0xf]
      %v7469 = vld [vmem:[%s7457 + $0x2c] sm:$0xf]
      %v7470 = vld [vmem:[%s7457 + $0x30] sm:$0xf]
      %v7471 = vld [vmem:[%s7457 + $0x34] sm:$0xf]
      %v7472 = vld [vmem:[%s7457 + $0x38] sm:$0xf]
      %v7473 = vld [vmem:[%s7457 + $0x3c] sm:$0xf]
      %v7474 = vunpack.c.l.b16 %v7348
      %v7475 = vunpack.c.l.b16 %v7351
      %v7476 = vunpack.c.l.b16 %v7355
      %v7477 = vunpack.c.l.b16 %v7358
      %v7478 = vunpack.c.l.b16 %v7362
      %v7479 = vunpack.c.l.b16 %v7365
      %v7480 = vunpack.c.l.b16 %v7369
      %v7481 = vunpack.c.l.b16 %v7372
      %v7482 = vunpack.c.l.b16 %v7376
      %v7483 = vunpack.c.l.b16 %v7379
      %v7484 = vunpack.c.l.b16 %v7383
      %v7485 = vunpack.c.l.b16 %v7386
      %v7486 = vunpack.c.l.b16 %v7390
      %v7487 = vunpack.c.l.b16 %v7393
      %v7488 = vunpack.c.l.b16 %v7397
      %v7489 = vunpack.c.l.b16 %v7400
      %v7490 = vunpack.c.l.b16 %v7404
      %v7491 = vunpack.c.l.b16 %v7407
      %v7492 = vunpack.c.l.b16 %v7411
      %v7493 = vunpack.c.l.b16 %v7414
      %v7494 = vunpack.c.l.b16 %v7418
      %v7495 = vunpack.c.l.b16 %v7421
      %v7496 = vunpack.c.l.b16 %v7425
      %v7497 = vunpack.c.l.b16 %v7428
      %v7498 = vunpack.c.l.b16 %v7432
      %v7499 = vunpack.c.l.b16 %v7435
      %v7500 = vunpack.c.l.b16 %v7439
      %v7501 = vunpack.c.l.b16 %v7442
      %v7502 = vunpack.c.l.b16 %v7446
      %v7503 = vunpack.c.l.b16 %v7449
      %v7504 = vunpack.c.l.b16 %v7453
      %v7505 = vunpack.c.l.b16 %v7456
      %v7506 = vpack.c.b16 %v7475, %v7474
      %v7507 = vpack.c.b16 %v7477, %v7476
      %v7508 = vpack.c.b16 %v7479, %v7478
      %v7509 = vpack.c.b16 %v7481, %v7480
      %v7510 = vpack.c.b16 %v7483, %v7482
      %v7511 = vpack.c.b16 %v7485, %v7484
      %v7512 = vpack.c.b16 %v7487, %v7486
      %v7513 = vpack.c.b16 %v7489, %v7488
      %v7514 = vpack.c.b16 %v7491, %v7490
      %v7515 = vpack.c.b16 %v7493, %v7492
      %v7516 = vpack.c.b16 %v7495, %v7494
      %v7517 = vpack.c.b16 %v7497, %v7496
      %v7518 = vpack.c.b16 %v7499, %v7498
      %v7519 = vpack.c.b16 %v7501, %v7500
      %v7520 = vpack.c.b16 %v7503, %v7502
      %v7521 = vpack.c.b16 %v7505, %v7504
      %v7554 = vunpack.c.l.b16 %v7458
      %v7555 = vunpack.c.l.b16 %v7459
      %v7556 = vunpack.c.l.b16 %v7460
      %v7557 = vunpack.c.l.b16 %v7461
      %v7558 = vunpack.c.l.b16 %v7462
      %v7559 = vunpack.c.l.b16 %v7463
      %v7560 = vunpack.c.l.b16 %v7464
      %v7561 = vunpack.c.l.b16 %v7465
      %v7562 = vunpack.c.l.b16 %v7466
      %v7563 = vunpack.c.l.b16 %v7467
      %v7564 = vunpack.c.l.b16 %v7468
      %v7565 = vunpack.c.l.b16 %v7469
      %v7566 = vunpack.c.l.b16 %v7470
      %v7567 = vunpack.c.l.b16 %v7471
      %v7568 = vunpack.c.l.b16 %v7472
      %v7569 = vunpack.c.l.b16 %v7473
      %v7570 = vpack.c.b16 %v7555, %v7554
      %v7571 = vpack.c.b16 %v7557, %v7556
      %v7572 = vpack.c.b16 %v7559, %v7558
      %v7573 = vpack.c.b16 %v7561, %v7560
      %v7574 = vpack.c.b16 %v7563, %v7562
      %v7575 = vpack.c.b16 %v7565, %v7564
      %v7576 = vpack.c.b16 %v7567, %v7566
      %v7577 = vpack.c.b16 %v7569, %v7568
      %7586 = vmatprep.subr.bf16.mxu0 0
      %7587 = vmatpush1.bf16.msra.mxu0 %v7577
      %7588 = vmatprep.subr.bf16.mxu0 0
      %7589 = vmatpush1.bf16.msra.mxu0 %v7576
      %7590 = vmatprep.subr.bf16.mxu0 0
      %7591 = vmatpush1.bf16.msra.mxu0 %v7575
      %7592 = vmatprep.subr.bf16.mxu0 0
      %7593 = vmatpush1.bf16.msra.mxu0 %v7574
      %7594 = vmatprep.subr.bf16.mxu0 0
      %7595 = vmatpush1.bf16.msra.mxu0 %v7573
      %7596 = vmatprep.subr.bf16.mxu0 0
      %7597 = vmatpush1.bf16.msra.mxu0 %v7572
      %7598 = vmatprep.subr.bf16.mxu0 0
      %7599 = vmatpush1.bf16.msra.mxu0 %v7571
      %7600 = vmatprep.subr.bf16.mxu0 0
      %7601 = vmatpush1.bf16.msra.mxu0 %v7570
      %7602 = vmatprep.subr.bf16.mxu0 0
      %7603 = vmatpush2.bf16.msra.mxu0 0
      %7604 = vmatprep.subr.bf16.mxu0 0
      %7605 = vmatpush2.bf16.msra.mxu0 0
      %7606 = vmatprep.subr.bf16.mxu0 0
      %7607 = vmatpush2.bf16.msra.mxu0 0
      %7608 = vmatprep.subr.bf16.mxu0 0
      %7609 = vmatpush2.bf16.msra.mxu0 0
      %7610 = vmatprep.subr.bf16.mxu0 0
      %7611 = vmatpush2.bf16.msra.mxu0 0
      %7612 = vmatprep.subr.bf16.mxu0 0
      %7613 = vmatpush2.bf16.msra.mxu0 0
      %7614 = vmatprep.subr.bf16.mxu0 0
      %7615 = vmatpush2.bf16.msra.mxu0 0
      %7616 = vmatprep.subr.bf16.mxu0 0
      %7617 = vmatpush2.bf16.msra.mxu0 0
      %7618 = vmatprep.mubr.bf16.mxu0 0
      %7619 = vmatmul.mubr.bf16.gmra.mxu0 %v7506
      %v7620 = vpop.f32.mrf.mxu0
      %v7621 = vadd.f32 0.0, %v7620
      %v7622 = vpop.f32.mrf.mxu0
      %v7623 = vpop.f32.mrf.mxu0
      %v7624 = vadd.f32 0.0, %v7623
      %v7625 = vpop.f32.mrf.mxu0
      %7626 = vmatprep.mubr.bf16.mxu0 0
      %7627 = vmatmul.mubr.bf16.gmra.mxu0 %v7507
      %v7628 = vpop.f32.mrf.mxu0
      %v7629 = vadd.f32 0.0, %v7628
      %v7630 = vpop.f32.mrf.mxu0
      %v7631 = vpop.f32.mrf.mxu0
      %v7632 = vadd.f32 0.0, %v7631
      %v7633 = vpop.f32.mrf.mxu0
      %7634 = vmatprep.mubr.bf16.mxu0 0
      %7635 = vmatmul.mubr.bf16.gmra.mxu0 %v7508
      %v7636 = vpop.f32.mrf.mxu0
      %v7637 = vadd.f32 0.0, %v7636
      %v7638 = vpop.f32.mrf.mxu0
      %v7639 = vpop.f32.mrf.mxu0
      %v7640 = vadd.f32 0.0, %v7639
      %v7641 = vpop.f32.mrf.mxu0
      %7642 = vmatprep.mubr.bf16.mxu0 0
      %7643 = vmatmul.mubr.bf16.gmra.mxu0 %v7509
      %v7644 = vpop.f32.mrf.mxu0
      %v7645 = vadd.f32 0.0, %v7644
      %v7646 = vpop.f32.mrf.mxu0
      %v7647 = vpop.f32.mrf.mxu0
      %v7648 = vadd.f32 0.0, %v7647
      %v7649 = vpop.f32.mrf.mxu0
      %7650 = vmatprep.mubr.bf16.mxu0 0
      %7651 = vmatmul.mubr.bf16.gmra.mxu0 %v7510
      %v7652 = vpop.f32.mrf.mxu0
      %v7653 = vadd.f32 0.0, %v7652
      %v7654 = vpop.f32.mrf.mxu0
      %v7655 = vpop.f32.mrf.mxu0
      %v7656 = vadd.f32 0.0, %v7655
      %v7657 = vpop.f32.mrf.mxu0
      %7658 = vmatprep.mubr.bf16.mxu0 0
      %7659 = vmatmul.mubr.bf16.gmra.mxu0 %v7511
      %v7660 = vpop.f32.mrf.mxu0
      %v7661 = vadd.f32 0.0, %v7660
      %v7662 = vpop.f32.mrf.mxu0
      %v7663 = vpop.f32.mrf.mxu0
      %v7664 = vadd.f32 0.0, %v7663
      %v7665 = vpop.f32.mrf.mxu0
      %7666 = vmatprep.mubr.bf16.mxu0 0
      %7667 = vmatmul.mubr.bf16.gmra.mxu0 %v7512
      %v7668 = vpop.f32.mrf.mxu0
      %v7669 = vadd.f32 0.0, %v7668
      %v7670 = vpop.f32.mrf.mxu0
      %v7671 = vpop.f32.mrf.mxu0
      %v7672 = vadd.f32 0.0, %v7671
      %v7673 = vpop.f32.mrf.mxu0
      %7674 = vmatprep.mubr.bf16.mxu0 0
      %7675 = vmatmul.mubr.bf16.gmra.mxu0 %v7513
      %v7676 = vpop.f32.mrf.mxu0
      %v7677 = vadd.f32 0.0, %v7676
      %v7678 = vpop.f32.mrf.mxu0
      %v7679 = vpop.f32.mrf.mxu0
      %v7680 = vadd.f32 0.0, %v7679
      %v7681 = vpop.f32.mrf.mxu0
      %7682 = vmatprep.mubr.bf16.mxu0 0
      %7683 = vmatmul.mubr.bf16.gmra.mxu0 %v7514
      %v7684 = vpop.f32.mrf.mxu0
      %v7685 = vadd.f32 0.0, %v7684
      %v7686 = vpop.f32.mrf.mxu0
      %v7687 = vpop.f32.mrf.mxu0
      %v7688 = vadd.f32 0.0, %v7687
      %v7689 = vpop.f32.mrf.mxu0
      %7690 = vmatprep.mubr.bf16.mxu0 0
      %7691 = vmatmul.mubr.bf16.gmra.mxu0 %v7515
      %v7692 = vpop.f32.mrf.mxu0
      %v7693 = vadd.f32 0.0, %v7692
      %v7694 = vpop.f32.mrf.mxu0
      %v7695 = vpop.f32.mrf.mxu0
      %v7696 = vadd.f32 0.0, %v7695
      %v7697 = vpop.f32.mrf.mxu0
      %7698 = vmatprep.mubr.bf16.mxu0 0
      %7699 = vmatmul.mubr.bf16.gmra.mxu0 %v7516
      %v7700 = vpop.f32.mrf.mxu0
      %v7701 = vadd.f32 0.0, %v7700
      %v7702 = vpop.f32.mrf.mxu0
      %v7703 = vpop.f32.mrf.mxu0
      %v7704 = vadd.f32 0.0, %v7703
      %v7705 = vpop.f32.mrf.mxu0
      %7706 = vmatprep.mubr.bf16.mxu0 0
      %7707 = vmatmul.mubr.bf16.gmra.mxu0 %v7517
      %v7708 = vpop.f32.mrf.mxu0
      %v7709 = vadd.f32 0.0, %v7708
      %v7710 = vpop.f32.mrf.mxu0
      %v7711 = vpop.f32.mrf.mxu0
      %v7712 = vadd.f32 0.0, %v7711
      %v7713 = vpop.f32.mrf.mxu0
      %7714 = vmatprep.mubr.bf16.mxu0 0
      %7715 = vmatmul.mubr.bf16.gmra.mxu0 %v7518
      %v7716 = vpop.f32.mrf.mxu0
      %v7717 = vadd.f32 0.0, %v7716
      %v7718 = vpop.f32.mrf.mxu0
      %v7719 = vpop.f32.mrf.mxu0
      %v7720 = vadd.f32 0.0, %v7719
      %v7721 = vpop.f32.mrf.mxu0
      %7722 = vmatprep.mubr.bf16.mxu0 0
      %7723 = vmatmul.mubr.bf16.gmra.mxu0 %v7519
      %v7724 = vpop.f32.mrf.mxu0
      %v7725 = vadd.f32 0.0, %v7724
      %v7726 = vpop.f32.mrf.mxu0
      %v7727 = vpop.f32.mrf.mxu0
      %v7728 = vadd.f32 0.0, %v7727
      %v7729 = vpop.f32.mrf.mxu0
      %7730 = vmatprep.mubr.bf16.mxu0 0
      %7731 = vmatmul.mubr.bf16.gmra.mxu0 %v7520
      %v7732 = vpop.f32.mrf.mxu0
      %v7733 = vadd.f32 0.0, %v7732
      %v7734 = vpop.f32.mrf.mxu0
      %v7735 = vpop.f32.mrf.mxu0
      %v7736 = vadd.f32 0.0, %v7735
      %v7737 = vpop.f32.mrf.mxu0
      %7738 = vmatprep.mubr.bf16.mxu0 0
      %7739 = vmatmul.mubr.bf16.gmra.mxu0 %v7521
      %v7740 = vpop.f32.mrf.mxu0
      %v7741 = vadd.f32 0.0, %v7740
      %v7742 = vpop.f32.mrf.mxu0
      %v7743 = vpop.f32.mrf.mxu0
      %v7744 = vadd.f32 0.0, %v7743
      %v7745 = vpop.f32.mrf.mxu0
      %7746 = vdwg.mxu0
      %v7747 = vadd.f32 %v7249, %v7621
      %v7748 = vadd.f32 %v7250, %v7624
      %v7749 = vadd.f32 %v7251, %v7629
      %v7750 = vadd.f32 %v7252, %v7632
      %v7751 = vadd.f32 %v7253, %v7637
      %v7752 = vadd.f32 %v7254, %v7640
      %v7753 = vadd.f32 %v7255, %v7645
      %v7754 = vadd.f32 %v7256, %v7648
      %v7755 = vadd.f32 %v7257, %v7653
      %v7756 = vadd.f32 %v7258, %v7656
      %v7757 = vadd.f32 %v7259, %v7661
      %v7758 = vadd.f32 %v7260, %v7664
      %v7759 = vadd.f32 %v7261, %v7669
      %v7760 = vadd.f32 %v7262, %v7672
      %v7761 = vadd.f32 %v7263, %v7677
      %v7762 = vadd.f32 %v7264, %v7680
      %v7763 = vadd.f32 %v7265, %v7685
      %v7764 = vadd.f32 %v7266, %v7688
      %v7765 = vadd.f32 %v7267, %v7693
      %v7766 = vadd.f32 %v7268, %v7696
      %v7767 = vadd.f32 %v7269, %v7701
      %v7768 = vadd.f32 %v7270, %v7704
      %v7769 = vadd.f32 %v7271, %v7709
      %v7770 = vadd.f32 %v7272, %v7712
      %v7771 = vadd.f32 %v7273, %v7717
      %v7772 = vadd.f32 %v7274, %v7720
      %v7773 = vadd.f32 %v7275, %v7725
      %v7774 = vadd.f32 %v7276, %v7728
      %v7775 = vadd.f32 %v7277, %v7733
      %v7776 = vadd.f32 %v7278, %v7736
      %v7777 = vadd.f32 %v7279, %v7741
      %v7778 = vadd.f32 %v7280, %v7744
      %v7779 = vld [vmem:[%s4] sm:$0x1]
      %v7781 = vlaneseq
      %v7782 = vshrl.u32 %v7781, 7
      %v7783 = vsub.s32 0, %v7782
      %v7784 = vrot.slane %v7779, %v7783
      %v7786 = vmul.f32 %v7747, %v7784
      %v7787 = vmul.f32 %v7748, %v7784
      %v7788 = vmul.f32 %v7749, %v7784
      %v7789 = vmul.f32 %v7750, %v7784
      %v7790 = vmul.f32 %v7751, %v7784
      %v7791 = vmul.f32 %v7752, %v7784
      %v7792 = vmul.f32 %v7753, %v7784
      %v7793 = vmul.f32 %v7754, %v7784
      %v7794 = vmul.f32 %v7755, %v7784
      %v7795 = vmul.f32 %v7756, %v7784
      %v7796 = vmul.f32 %v7757, %v7784
      %v7797 = vmul.f32 %v7758, %v7784
      %v7798 = vmul.f32 %v7759, %v7784
      %v7799 = vmul.f32 %v7760, %v7784
      %v7800 = vmul.f32 %v7761, %v7784
      %v7801 = vmul.f32 %v7762, %v7784
      %v7802 = vmul.f32 %v7763, %v7784
      %v7803 = vmul.f32 %v7764, %v7784
      %v7804 = vmul.f32 %v7765, %v7784
      %v7805 = vmul.f32 %v7766, %v7784
      %v7806 = vmul.f32 %v7767, %v7784
      %v7807 = vmul.f32 %v7768, %v7784
      %v7808 = vmul.f32 %v7769, %v7784
      %v7809 = vmul.f32 %v7770, %v7784
      %v7810 = vmul.f32 %v7771, %v7784
      %v7811 = vmul.f32 %v7772, %v7784
      %v7812 = vmul.f32 %v7773, %v7784
      %v7813 = vmul.f32 %v7774, %v7784
      %v7814 = vmul.f32 %v7775, %v7784
      %v7815 = vmul.f32 %v7776, %v7784
      %v7816 = vmul.f32 %v7777, %v7784
      %v7817 = vmul.f32 %v7778, %v7784
      %v7818 = vld [vmem:[%s5] sm:$0x1]
      %v7820 = vlaneseq
      %v7821 = vshrl.u32 %v7820, 7
      %v7822 = vsub.s32 0, %v7821
      %v7823 = vrot.slane %v7818, %v7822
      %v7825 = vadd.f32 %v7786, %v7823
      %v7826 = vadd.f32 %v7787, %v7823
      %v7827 = vadd.f32 %v7788, %v7823
      %v7828 = vadd.f32 %v7789, %v7823
      %v7829 = vadd.f32 %v7790, %v7823
      %v7830 = vadd.f32 %v7791, %v7823
      %v7831 = vadd.f32 %v7792, %v7823
      %v7832 = vadd.f32 %v7793, %v7823
      %v7833 = vadd.f32 %v7794, %v7823
      %v7834 = vadd.f32 %v7795, %v7823
      %v7835 = vadd.f32 %v7796, %v7823
      %v7836 = vadd.f32 %v7797, %v7823
      %v7837 = vadd.f32 %v7798, %v7823
      %v7838 = vadd.f32 %v7799, %v7823
      %v7839 = vadd.f32 %v7800, %v7823
      %v7840 = vadd.f32 %v7801, %v7823
      %v7841 = vadd.f32 %v7802, %v7823
      %v7842 = vadd.f32 %v7803, %v7823
      %v7843 = vadd.f32 %v7804, %v7823
      %v7844 = vadd.f32 %v7805, %v7823
      %v7845 = vadd.f32 %v7806, %v7823
      %v7846 = vadd.f32 %v7807, %v7823
      %v7847 = vadd.f32 %v7808, %v7823
      %v7848 = vadd.f32 %v7809, %v7823
      %v7849 = vadd.f32 %v7810, %v7823
      %v7850 = vadd.f32 %v7811, %v7823
      %v7851 = vadd.f32 %v7812, %v7823
      %v7852 = vadd.f32 %v7813, %v7823
      %v7853 = vadd.f32 %v7814, %v7823
      %v7854 = vadd.f32 %v7815, %v7823
      %v7855 = vadd.f32 %v7816, %v7823
      %v7856 = vadd.f32 %v7817, %v7823
      %v7857 = vmax.f32 %v7825, 0.0
      %v7858 = vmax.f32 %v7826, 0.0
      %v7859 = vmax.f32 %v7827, 0.0
      %v7860 = vmax.f32 %v7828, 0.0
      %v7861 = vmax.f32 %v7829, 0.0
      %v7862 = vmax.f32 %v7830, 0.0
      %v7863 = vmax.f32 %v7831, 0.0
      %v7864 = vmax.f32 %v7832, 0.0
      %v7865 = vmax.f32 %v7833, 0.0
      %v7866 = vmax.f32 %v7834, 0.0
      %v7867 = vmax.f32 %v7835, 0.0
      %v7868 = vmax.f32 %v7836, 0.0
      %v7869 = vmax.f32 %v7837, 0.0
      %v7870 = vmax.f32 %v7838, 0.0
      %v7871 = vmax.f32 %v7839, 0.0
      %v7872 = vmax.f32 %v7840, 0.0
      %v7873 = vmax.f32 %v7841, 0.0
      %v7874 = vmax.f32 %v7842, 0.0
      %v7875 = vmax.f32 %v7843, 0.0
      %v7876 = vmax.f32 %v7844, 0.0
      %v7877 = vmax.f32 %v7845, 0.0
      %v7878 = vmax.f32 %v7846, 0.0
      %v7879 = vmax.f32 %v7847, 0.0
      %v7880 = vmax.f32 %v7848, 0.0
      %v7881 = vmax.f32 %v7849, 0.0
      %v7882 = vmax.f32 %v7850, 0.0
      %v7883 = vmax.f32 %v7851, 0.0
      %v7884 = vmax.f32 %v7852, 0.0
      %v7885 = vmax.f32 %v7853, 0.0
      %v7886 = vmax.f32 %v7854, 0.0
      %v7887 = vmax.f32 %v7855, 0.0
      %v7888 = vmax.f32 %v7856, 0.0
      %v7889 = vpack.c.bf16 %v7858, %v7857
      %v7890 = vpack.c.bf16 %v7860, %v7859
      %v7891 = vpack.c.bf16 %v7862, %v7861
      %v7892 = vpack.c.bf16 %v7864, %v7863
      %v7893 = vpack.c.bf16 %v7866, %v7865
      %v7894 = vpack.c.bf16 %v7868, %v7867
      %v7895 = vpack.c.bf16 %v7870, %v7869
      %v7896 = vpack.c.bf16 %v7872, %v7871
      %v7897 = vpack.c.bf16 %v7874, %v7873
      %v7898 = vpack.c.bf16 %v7876, %v7875
      %v7899 = vpack.c.bf16 %v7878, %v7877
      %v7900 = vpack.c.bf16 %v7880, %v7879
      %v7901 = vpack.c.bf16 %v7882, %v7881
      %v7902 = vpack.c.bf16 %v7884, %v7883
      %v7903 = vpack.c.bf16 %v7886, %v7885
      %v7904 = vpack.c.bf16 %v7888, %v7887
      %v7921 = vunpack.c.l.b16 %v7889
      %v7922 = vunpack.c.h.b16 %v7889
      %v7923 = vunpack.c.l.b16 %v7890
      %v7924 = vunpack.c.h.b16 %v7890
      %v7925 = vunpack.c.l.b16 %v7891
      %v7926 = vunpack.c.h.b16 %v7891
      %v7927 = vunpack.c.l.b16 %v7892
      %v7928 = vunpack.c.h.b16 %v7892
      %v7929 = vunpack.c.l.b16 %v7893
      %v7930 = vunpack.c.h.b16 %v7893
      %v7931 = vunpack.c.l.b16 %v7894
      %v7932 = vunpack.c.h.b16 %v7894
      %v7933 = vunpack.c.l.b16 %v7895
      %v7934 = vunpack.c.h.b16 %v7895
      %v7935 = vunpack.c.l.b16 %v7896
      %v7936 = vunpack.c.h.b16 %v7896
      %v7937 = vunpack.c.l.b16 %v7897
      %v7938 = vunpack.c.h.b16 %v7897
      %v7939 = vunpack.c.l.b16 %v7898
      %v7940 = vunpack.c.h.b16 %v7898
      %v7941 = vunpack.c.l.b16 %v7899
      %v7942 = vunpack.c.h.b16 %v7899
      %v7943 = vunpack.c.l.b16 %v7900
      %v7944 = vunpack.c.h.b16 %v7900
      %v7945 = vunpack.c.l.b16 %v7901
      %v7946 = vunpack.c.h.b16 %v7901
      %v7947 = vunpack.c.l.b16 %v7902
      %v7948 = vunpack.c.h.b16 %v7902
      %v7949 = vunpack.c.l.b16 %v7903
      %v7950 = vunpack.c.h.b16 %v7903
      %v7951 = vunpack.c.l.b16 %v7904
      %v7952 = vunpack.c.h.b16 %v7904
      %v7953 = vpack.c.b16 %v7921, %v7921
      %v7954 = vpack.c.b16 %v7922, %v7922
      %v7955 = vpack.c.b16 %v7923, %v7923
      %v7956 = vpack.c.b16 %v7924, %v7924
      %v7957 = vpack.c.b16 %v7925, %v7925
      %v7958 = vpack.c.b16 %v7926, %v7926
      %v7959 = vpack.c.b16 %v7927, %v7927
      %v7960 = vpack.c.b16 %v7928, %v7928
      %v7961 = vpack.c.b16 %v7929, %v7929
      %v7962 = vpack.c.b16 %v7930, %v7930
      %v7963 = vpack.c.b16 %v7931, %v7931
      %v7964 = vpack.c.b16 %v7932, %v7932
      %v7965 = vpack.c.b16 %v7933, %v7933
      %v7966 = vpack.c.b16 %v7934, %v7934
      %v7967 = vpack.c.b16 %v7935, %v7935
      %v7968 = vpack.c.b16 %v7936, %v7936
      %v7969 = vpack.c.b16 %v7937, %v7937
      %v7970 = vpack.c.b16 %v7938, %v7938
      %v7971 = vpack.c.b16 %v7939, %v7939
      %v7972 = vpack.c.b16 %v7940, %v7940
      %v7973 = vpack.c.b16 %v7941, %v7941
      %v7974 = vpack.c.b16 %v7942, %v7942
      %v7975 = vpack.c.b16 %v7943, %v7943
      %v7976 = vpack.c.b16 %v7944, %v7944
      %v7977 = vpack.c.b16 %v7945, %v7945
      %v7978 = vpack.c.b16 %v7946, %v7946
      %v7979 = vpack.c.b16 %v7947, %v7947
      %v7980 = vpack.c.b16 %v7948, %v7948
      %v7981 = vpack.c.b16 %v7949, %v7949
      %v7982 = vpack.c.b16 %v7950, %v7950
      %v7983 = vpack.c.b16 %v7951, %v7951
      %v7984 = vpack.c.b16 %v7952, %v7952
      %v7986 = vshrl.u32 %v7953, 16
      %v7988 = vrot.slane %v7986, 7
      %v7989 = vshll.u32 %v7953, 16
      %v7991 = vor.u32 %v7988, %v7989
      %v7992 = vrot.slane %v7988, 4
      %v7994 = vshrl.u32 %v7954, 16
      %v7996 = vrot.slane %v7994, 7
      %v7997 = vshll.u32 %v7954, 16
      %v7999 = vor.u32 %v7996, %v7997
      %v8000 = vsel %vm2535, %v7992, %v7999
      %v8001 = vrot.slane %v7996, 4
      %v8003 = vshrl.u32 %v7955, 16
      %v8005 = vrot.slane %v8003, 7
      %v8006 = vshll.u32 %v7955, 16
      %v8008 = vor.u32 %v8005, %v8006
      %v8009 = vrot.slane %v8005, 4
      %v8011 = vshrl.u32 %v7956, 16
      %v8013 = vrot.slane %v8011, 7
      %v8014 = vshll.u32 %v7956, 16
      %v8016 = vor.u32 %v8013, %v8014
      %v8017 = vsel %vm2535, %v8009, %v8016
      %v8018 = vrot.slane %v8013, 4
      %v8020 = vshrl.u32 %v7957, 16
      %v8022 = vrot.slane %v8020, 7
      %v8023 = vshll.u32 %v7957, 16
      %v8025 = vor.u32 %v8022, %v8023
      %v8026 = vrot.slane %v8022, 4
      %v8028 = vshrl.u32 %v7958, 16
      %v8030 = vrot.slane %v8028, 7
      %v8031 = vshll.u32 %v7958, 16
      %v8033 = vor.u32 %v8030, %v8031
      %v8034 = vsel %vm2535, %v8026, %v8033
      %v8035 = vrot.slane %v8030, 4
      %v8037 = vshrl.u32 %v7959, 16
      %v8039 = vrot.slane %v8037, 7
      %v8040 = vshll.u32 %v7959, 16
      %v8042 = vor.u32 %v8039, %v8040
      %v8043 = vrot.slane %v8039, 4
      %v8045 = vshrl.u32 %v7960, 16
      %v8047 = vrot.slane %v8045, 7
      %v8048 = vshll.u32 %v7960, 16
      %v8050 = vor.u32 %v8047, %v8048
      %v8051 = vsel %vm2535, %v8043, %v8050
      %v8052 = vrot.slane %v8047, 4
      %v8054 = vshrl.u32 %v7961, 16
      %v8056 = vrot.slane %v8054, 7
      %v8057 = vshll.u32 %v7961, 16
      %v8059 = vor.u32 %v8056, %v8057
      %v8060 = vrot.slane %v8056, 4
      %v8062 = vshrl.u32 %v7962, 16
      %v8064 = vrot.slane %v8062, 7
      %v8065 = vshll.u32 %v7962, 16
      %v8067 = vor.u32 %v8064, %v8065
      %v8068 = vsel %vm2535, %v8060, %v8067
      %v8069 = vrot.slane %v8064, 4
      %v8071 = vshrl.u32 %v7963, 16
      %v8073 = vrot.slane %v8071, 7
      %v8074 = vshll.u32 %v7963, 16
      %v8076 = vor.u32 %v8073, %v8074
      %v8077 = vrot.slane %v8073, 4
      %v8079 = vshrl.u32 %v7964, 16
      %v8081 = vrot.slane %v8079, 7
      %v8082 = vshll.u32 %v7964, 16
      %v8084 = vor.u32 %v8081, %v8082
      %v8085 = vsel %vm2535, %v8077, %v8084
      %v8086 = vrot.slane %v8081, 4
      %v8088 = vshrl.u32 %v7965, 16
      %v8090 = vrot.slane %v8088, 7
      %v8091 = vshll.u32 %v7965, 16
      %v8093 = vor.u32 %v8090, %v8091
      %v8094 = vrot.slane %v8090, 4
      %v8096 = vshrl.u32 %v7966, 16
      %v8098 = vrot.slane %v8096, 7
      %v8099 = vshll.u32 %v7966, 16
      %v8101 = vor.u32 %v8098, %v8099
      %v8102 = vsel %vm2535, %v8094, %v8101
      %v8103 = vrot.slane %v8098, 4
      %v8105 = vshrl.u32 %v7967, 16
      %v8107 = vrot.slane %v8105, 7
      %v8108 = vshll.u32 %v7967, 16
      %v8110 = vor.u32 %v8107, %v8108
      %v8111 = vrot.slane %v8107, 4
      %v8113 = vshrl.u32 %v7968, 16
      %v8115 = vrot.slane %v8113, 7
      %v8116 = vshll.u32 %v7968, 16
      %v8118 = vor.u32 %v8115, %v8116
      %v8119 = vsel %vm2535, %v8111, %v8118
      %v8120 = vrot.slane %v8115, 4
      %v8122 = vshrl.u32 %v7969, 16
      %v8124 = vrot.slane %v8122, 7
      %v8125 = vshll.u32 %v7969, 16
      %v8127 = vor.u32 %v8124, %v8125
      %v8128 = vrot.slane %v8124, 4
      %v8130 = vshrl.u32 %v7970, 16
      %v8132 = vrot.slane %v8130, 7
      %v8133 = vshll.u32 %v7970, 16
      %v8135 = vor.u32 %v8132, %v8133
      %v8136 = vsel %vm2535, %v8128, %v8135
      %v8137 = vrot.slane %v8132, 4
      %v8139 = vshrl.u32 %v7971, 16
      %v8141 = vrot.slane %v8139, 7
      %v8142 = vshll.u32 %v7971, 16
      %v8144 = vor.u32 %v8141, %v8142
      %v8145 = vrot.slane %v8141, 4
      %v8147 = vshrl.u32 %v7972, 16
      %v8149 = vrot.slane %v8147, 7
      %v8150 = vshll.u32 %v7972, 16
      %v8152 = vor.u32 %v8149, %v8150
      %v8153 = vsel %vm2535, %v8145, %v8152
      %v8154 = vrot.slane %v8149, 4
      %v8156 = vshrl.u32 %v7973, 16
      %v8158 = vrot.slane %v8156, 7
      %v8159 = vshll.u32 %v7973, 16
      %v8161 = vor.u32 %v8158, %v8159
      %v8162 = vrot.slane %v8158, 4
      %v8164 = vshrl.u32 %v7974, 16
      %v8166 = vrot.slane %v8164, 7
      %v8167 = vshll.u32 %v7974, 16
      %v8169 = vor.u32 %v8166, %v8167
      %v8170 = vsel %vm2535, %v8162, %v8169
      %v8171 = vrot.slane %v8166, 4
      %v8173 = vshrl.u32 %v7975, 16
      %v8175 = vrot.slane %v8173, 7
      %v8176 = vshll.u32 %v7975, 16
      %v8178 = vor.u32 %v8175, %v8176
      %v8179 = vrot.slane %v8175, 4
      %v8181 = vshrl.u32 %v7976, 16
      %v8183 = vrot.slane %v8181, 7
      %v8184 = vshll.u32 %v7976, 16
      %v8186 = vor.u32 %v8183, %v8184
      %v8187 = vsel %vm2535, %v8179, %v8186
      %v8188 = vrot.slane %v8183, 4
      %v8190 = vshrl.u32 %v7977, 16
      %v8192 = vrot.slane %v8190, 7
      %v8193 = vshll.u32 %v7977, 16
      %v8195 = vor.u32 %v8192, %v8193
      %v8196 = vrot.slane %v8192, 4
      %v8198 = vshrl.u32 %v7978, 16
      %v8200 = vrot.slane %v8198, 7
      %v8201 = vshll.u32 %v7978, 16
      %v8203 = vor.u32 %v8200, %v8201
      %v8204 = vsel %vm2535, %v8196, %v8203
      %v8205 = vrot.slane %v8200, 4
      %v8207 = vshrl.u32 %v7979, 16
      %v8209 = vrot.slane %v8207, 7
      %v8210 = vshll.u32 %v7979, 16
      %v8212 = vor.u32 %v8209, %v8210
      %v8213 = vrot.slane %v8209, 4
      %v8215 = vshrl.u32 %v7980, 16
      %v8217 = vrot.slane %v8215, 7
      %v8218 = vshll.u32 %v7980, 16
      %v8220 = vor.u32 %v8217, %v8218
      %v8221 = vsel %vm2535, %v8213, %v8220
      %v8222 = vrot.slane %v8217, 4
      %v8224 = vshrl.u32 %v7981, 16
      %v8226 = vrot.slane %v8224, 7
      %v8227 = vshll.u32 %v7981, 16
      %v8229 = vor.u32 %v8226, %v8227
      %v8230 = vrot.slane %v8226, 4
      %v8232 = vshrl.u32 %v7982, 16
      %v8234 = vrot.slane %v8232, 7
      %v8235 = vshll.u32 %v7982, 16
      %v8237 = vor.u32 %v8234, %v8235
      %v8238 = vsel %vm2535, %v8230, %v8237
      %v8239 = vrot.slane %v8234, 4
      %v8241 = vshrl.u32 %v7983, 16
      %v8243 = vrot.slane %v8241, 7
      %v8244 = vshll.u32 %v7983, 16
      %v8246 = vor.u32 %v8243, %v8244
      %v8247 = vrot.slane %v8243, 4
      %v8249 = vshrl.u32 %v7984, 16
      %v8251 = vrot.slane %v8249, 7
      %v8252 = vshll.u32 %v7984, 16
      %v8254 = vor.u32 %v8251, %v8252
      %v8255 = vsel %vm2535, %v8247, %v8254
      %v8256 = vrot.slane %v8251, 4
      %s8305 = scalar_lea.vmem [#allocation3], 12
      %vm8306 = vcmask 519168
      %vm8307 = vmand %vm8306, %vm398
      %v8308 = vld [vmem:[%s8305] sm:$0xf]
      %v8309 = vsel %vm8307, %v7991, %v8308
      %8310 = vst [vmem:[%s8305] sm:$0xf] %v8309
      %8311 = vst.msk [vmem:[%s8305 + $0x4] sm:$0xf] %vm454, %v8000
      %v8312 = vld [vmem:[%s8305 + $0x8] sm:$0x1]
      %v8313 = vsel %vm464, %v8001, %v8312
      %8314 = vst [vmem:[%s8305 + $0x8] sm:$0x1] %v8313
      %v8315 = vld [vmem:[%s8305 + $0xc] sm:$0xf]
      %v8316 = vsel %vm8307, %v8008, %v8315
      %8317 = vst [vmem:[%s8305 + $0xc] sm:$0xf] %v8316
      %8318 = vst.msk [vmem:[%s8305 + $0x10] sm:$0xf] %vm454, %v8017
      %v8319 = vld [vmem:[%s8305 + $0x14] sm:$0x1]
      %v8320 = vsel %vm464, %v8018, %v8319
      %8321 = vst [vmem:[%s8305 + $0x14] sm:$0x1] %v8320
      %v8322 = vld [vmem:[%s8305 + $0x18] sm:$0xf]
      %v8323 = vsel %vm8307, %v8025, %v8322
      %8324 = vst [vmem:[%s8305 + $0x18] sm:$0xf] %v8323
      %8325 = vst.msk [vmem:[%s8305 + $0x1c] sm:$0xf] %vm454, %v8034
      %v8326 = vld [vmem:[%s8305 + $0x20] sm:$0x1]
      %v8327 = vsel %vm464, %v8035, %v8326
      %8328 = vst [vmem:[%s8305 + $0x20] sm:$0x1] %v8327
      %v8329 = vld [vmem:[%s8305 + $0x24] sm:$0xf]
      %v8330 = vsel %vm8307, %v8042, %v8329
      %8331 = vst [vmem:[%s8305 + $0x24] sm:$0xf] %v8330
      %8332 = vst.msk [vmem:[%s8305 + $0x28] sm:$0xf] %vm454, %v8051
      %v8333 = vld [vmem:[%s8305 + $0x2c] sm:$0x1]
      %v8334 = vsel %vm464, %v8052, %v8333
      %8335 = vst [vmem:[%s8305 + $0x2c] sm:$0x1] %v8334
      %v8336 = vld [vmem:[%s8305 + $0x30] sm:$0xf]
      %v8337 = vsel %vm8307, %v8059, %v8336
      %8338 = vst [vmem:[%s8305 + $0x30] sm:$0xf] %v8337
      %8339 = vst.msk [vmem:[%s8305 + $0x34] sm:$0xf] %vm454, %v8068
      %v8340 = vld [vmem:[%s8305 + $0x38] sm:$0x1]
      %v8341 = vsel %vm464, %v8069, %v8340
      %8342 = vst [vmem:[%s8305 + $0x38] sm:$0x1] %v8341
      %v8343 = vld [vmem:[%s8305 + $0x3c] sm:$0xf]
      %v8344 = vsel %vm8307, %v8076, %v8343
      %8345 = vst [vmem:[%s8305 + $0x3c] sm:$0xf] %v8344
      %8346 = vst.msk [vmem:[%s8305 + $0x40] sm:$0xf] %vm454, %v8085
      %v8347 = vld [vmem:[%s8305 + $0x44] sm:$0x1]
      %v8348 = vsel %vm464, %v8086, %v8347
      %8349 = vst [vmem:[%s8305 + $0x44] sm:$0x1] %v8348
      %v8350 = vld [vmem:[%s8305 + $0x48] sm:$0xf]
      %v8351 = vsel %vm8307, %v8093, %v8350
      %8352 = vst [vmem:[%s8305 + $0x48] sm:$0xf] %v8351
      %8353 = vst.msk [vmem:[%s8305 + $0x4c] sm:$0xf] %vm454, %v8102
      %v8354 = vld [vmem:[%s8305 + $0x50] sm:$0x1]
      %v8355 = vsel %vm464, %v8103, %v8354
      %8356 = vst [vmem:[%s8305 + $0x50] sm:$0x1] %v8355
      %v8357 = vld [vmem:[%s8305 + $0x54] sm:$0xf]
      %v8358 = vsel %vm8307, %v8110, %v8357
      %8359 = vst [vmem:[%s8305 + $0x54] sm:$0xf] %v8358
      %8360 = vst.msk [vmem:[%s8305 + $0x58] sm:$0xf] %vm454, %v8119
      %v8361 = vld [vmem:[%s8305 + $0x5c] sm:$0x1]
      %v8362 = vsel %vm464, %v8120, %v8361
      %8363 = vst [vmem:[%s8305 + $0x5c] sm:$0x1] %v8362
      %v8364 = vld [vmem:[%s8305 + $0x60] sm:$0xf]
      %v8365 = vsel %vm8307, %v8127, %v8364
      %8366 = vst [vmem:[%s8305 + $0x60] sm:$0xf] %v8365
      %8367 = vst.msk [vmem:[%s8305 + $0x64] sm:$0xf] %vm454, %v8136
      %v8368 = vld [vmem:[%s8305 + $0x68] sm:$0x1]
      %v8369 = vsel %vm464, %v8137, %v8368
      %8370 = vst [vmem:[%s8305 + $0x68] sm:$0x1] %v8369
      %v8371 = vld [vmem:[%s8305 + $0x6c] sm:$0xf]
      %v8372 = vsel %vm8307, %v8144, %v8371
      %8373 = vst [vmem:[%s8305 + $0x6c] sm:$0xf] %v8372
      %8374 = vst.msk [vmem:[%s8305 + $0x70] sm:$0xf] %vm454, %v8153
      %v8375 = vld [vmem:[%s8305 + $0x74] sm:$0x1]
      %v8376 = vsel %vm464, %v8154, %v8375
      %8377 = vst [vmem:[%s8305 + $0x74] sm:$0x1] %v8376
      %v8378 = vld [vmem:[%s8305 + $0x78] sm:$0xf]
      %v8379 = vsel %vm8307, %v8161, %v8378
      %8380 = vst [vmem:[%s8305 + $0x78] sm:$0xf] %v8379
      %8381 = vst.msk [vmem:[%s8305 + $0x7c] sm:$0xf] %vm454, %v8170
      %v8382 = vld [vmem:[%s8305 + $0x80] sm:$0x1]
      %v8383 = vsel %vm464, %v8171, %v8382
      %8384 = vst [vmem:[%s8305 + $0x80] sm:$0x1] %v8383
      %v8385 = vld [vmem:[%s8305 + $0x84] sm:$0xf]
      %v8386 = vsel %vm8307, %v8178, %v8385
      %8387 = vst [vmem:[%s8305 + $0x84] sm:$0xf] %v8386
      %8388 = vst.msk [vmem:[%s8305 + $0x88] sm:$0xf] %vm454, %v8187
      %v8389 = vld [vmem:[%s8305 + $0x8c] sm:$0x1]
      %v8390 = vsel %vm464, %v8188, %v8389
      %8391 = vst [vmem:[%s8305 + $0x8c] sm:$0x1] %v8390
      %v8392 = vld [vmem:[%s8305 + $0x90] sm:$0xf]
      %v8393 = vsel %vm8307, %v8195, %v8392
      %8394 = vst [vmem:[%s8305 + $0x90] sm:$0xf] %v8393
      %8395 = vst.msk [vmem:[%s8305 + $0x94] sm:$0xf] %vm454, %v8204
      %v8396 = vld [vmem:[%s8305 + $0x98] sm:$0x1]
      %v8397 = vsel %vm464, %v8205, %v8396
      %8398 = vst [vmem:[%s8305 + $0x98] sm:$0x1] %v8397
      %v8399 = vld [vmem:[%s8305 + $0x9c] sm:$0xf]
      %v8400 = vsel %vm8307, %v8212, %v8399
      %8401 = vst [vmem:[%s8305 + $0x9c] sm:$0xf] %v8400
      %8402 = vst.msk [vmem:[%s8305 + $0xa0] sm:$0xf] %vm454, %v8221
      %v8403 = vld [vmem:[%s8305 + $0xa4] sm:$0x1]
      %v8404 = vsel %vm464, %v8222, %v8403
      %8405 = vst [vmem:[%s8305 + $0xa4] sm:$0x1] %v8404
      %v8406 = vld [vmem:[%s8305 + $0xa8] sm:$0xf]
      %v8407 = vsel %vm8307, %v8229, %v8406
      %8408 = vst [vmem:[%s8305 + $0xa8] sm:$0xf] %v8407
      %8409 = vst.msk [vmem:[%s8305 + $0xac] sm:$0xf] %vm454, %v8238
      %v8410 = vld [vmem:[%s8305 + $0xb0] sm:$0x1]
      %v8411 = vsel %vm464, %v8239, %v8410
      %8412 = vst [vmem:[%s8305 + $0xb0] sm:$0x1] %v8411
      %v8413 = vld [vmem:[%s8305 + $0xb4] sm:$0xf]
      %v8414 = vsel %vm8307, %v8246, %v8413
      %8415 = vst [vmem:[%s8305 + $0xb4] sm:$0xf] %v8414
      %8416 = vst.msk [vmem:[%s8305 + $0xb8] sm:$0xf] %vm454, %v8255
      %v8417 = vld [vmem:[%s8305 + $0xbc] sm:$0x1]
      %v8418 = vsel %vm464, %v8256, %v8417
      %8419 = vst [vmem:[%s8305 + $0xbc] sm:$0x1] %v8418
      %v8420 = vld [vmem:[#allocation3] sm:$0xf]
      %v8421 = vld [vmem:[#allocation3 + $0x4] sm:$0xf]
      %v8422 = vld [vmem:[#allocation3 + $0xc] sm:$0xf]
      %v8423 = vld [vmem:[#allocation3 + $0x10] sm:$0xf]
      %v8424 = vld [vmem:[#allocation3 + $0x18] sm:$0xf]
      %v8425 = vld [vmem:[#allocation3 + $0x1c] sm:$0xf]
      %v8426 = vld [vmem:[#allocation3 + $0x24] sm:$0xf]
      %v8427 = vld [vmem:[#allocation3 + $0x28] sm:$0xf]
      %v8428 = vld [vmem:[#allocation3 + $0x30] sm:$0xf]
      %v8429 = vld [vmem:[#allocation3 + $0x34] sm:$0xf]
      %v8430 = vld [vmem:[#allocation3 + $0x3c] sm:$0xf]
      %v8431 = vld [vmem:[#allocation3 + $0x40] sm:$0xf]
      %v8432 = vld [vmem:[#allocation3 + $0x48] sm:$0xf]
      %v8433 = vld [vmem:[#allocation3 + $0x4c] sm:$0xf]
      %v8434 = vld [vmem:[#allocation3 + $0x54] sm:$0xf]
      %v8435 = vld [vmem:[#allocation3 + $0x58] sm:$0xf]
      %v8436 = vld [vmem:[#allocation3 + $0x60] sm:$0xf]
      %v8437 = vld [vmem:[#allocation3 + $0x64] sm:$0xf]
      %v8438 = vld [vmem:[#allocation3 + $0x6c] sm:$0xf]
      %v8439 = vld [vmem:[#allocation3 + $0x70] sm:$0xf]
      %v8440 = vld [vmem:[#allocation3 + $0x78] sm:$0xf]
      %v8441 = vld [vmem:[#allocation3 + $0x7c] sm:$0xf]
      %v8442 = vld [vmem:[#allocation3 + $0x84] sm:$0xf]
      %v8443 = vld [vmem:[#allocation3 + $0x88] sm:$0xf]
      %v8444 = vld [vmem:[#allocation3 + $0x90] sm:$0xf]
      %v8445 = vld [vmem:[#allocation3 + $0x94] sm:$0xf]
      %v8446 = vld [vmem:[#allocation3 + $0x9c] sm:$0xf]
      %v8447 = vld [vmem:[#allocation3 + $0xa0] sm:$0xf]
      %v8448 = vld [vmem:[#allocation3 + $0xa8] sm:$0xf]
      %v8449 = vld [vmem:[#allocation3 + $0xac] sm:$0xf]
      %v8450 = vld [vmem:[#allocation3 + $0xb4] sm:$0xf]
      %v8451 = vld [vmem:[#allocation3 + $0xb8] sm:$0xf]
      %v8452 = vld [vmem:[%s6] sm:$0xf]
      %v8453 = vld [vmem:[%s6 + $0x4] sm:$0xf]
      %v8454 = vld [vmem:[%s6 + $0x8] sm:$0xf]
      %v8455 = vld [vmem:[%s6 + $0xc] sm:$0xf]
      %v8456 = vld [vmem:[%s6 + $0x10] sm:$0xf]
      %v8457 = vld [vmem:[%s6 + $0x14] sm:$0xf]
      %v8458 = vld [vmem:[%s6 + $0x18] sm:$0xf]
      %v8459 = vld [vmem:[%s6 + $0x1c] sm:$0xf]
      %v8460 = vld [vmem:[#allocation3 + $0x8] sm:$0x1]
      %v8461 = vld [vmem:[#allocation3 + $0x14] sm:$0x1]
      %v8462 = vld [vmem:[#allocation3 + $0x20] sm:$0x1]
      %v8463 = vld [vmem:[#allocation3 + $0x2c] sm:$0x1]
      %v8464 = vld [vmem:[#allocation3 + $0x38] sm:$0x1]
      %v8465 = vld [vmem:[#allocation3 + $0x44] sm:$0x1]
      %v8466 = vld [vmem:[#allocation3 + $0x50] sm:$0x1]
      %v8467 = vld [vmem:[#allocation3 + $0x5c] sm:$0x1]
      %v8468 = vld [vmem:[#allocation3 + $0x68] sm:$0x1]
      %v8469 = vld [vmem:[#allocation3 + $0x74] sm:$0x1]
      %v8470 = vld [vmem:[#allocation3 + $0x80] sm:$0x1]
      %v8471 = vld [vmem:[#allocation3 + $0x8c] sm:$0x1]
      %v8472 = vld [vmem:[#allocation3 + $0x98] sm:$0x1]
      %v8473 = vld [vmem:[#allocation3 + $0xa4] sm:$0x1]
      %v8474 = vld [vmem:[#allocation3 + $0xb0] sm:$0x1]
      %v8475 = vld [vmem:[#allocation3 + $0xbc] sm:$0x1]
      %v8477 = vshrl.u32 %v8420, 16
      %v8479 = vrot.slane %v8477, 4
      %v8480 = vshll.u32 %v8420, 16
      %v8482 = vrot.slane %v8480, 5
      %v8483 = vor.u32 %v8479, %v8482
      %v8484 = vrot.slane %v8483, 4
      %v8486 = vshll.u32 %v8421, 16
      %v8488 = vrot.slane %v8486, 5
      %v8489 = vsel %vm3037, %v8484, %v8488
      %v8490 = vshrl.u32 %v8421, 16
      %v8492 = vrot.slane %v8490, 4
      %v8493 = vor.u32 %v8492, %v8488
      %v8494 = vrot.slane %v8493, 4
      %v8496 = vshll.u32 %v8460, 16
      %v8498 = vrot.slane %v8496, 5
      %v8499 = vsel %vm3037, %v8494, %v8498
      %v8501 = vshrl.u32 %v8422, 16
      %v8503 = vrot.slane %v8501, 4
      %v8504 = vshll.u32 %v8422, 16
      %v8506 = vrot.slane %v8504, 5
      %v8507 = vor.u32 %v8503, %v8506
      %v8508 = vrot.slane %v8507, 4
      %v8510 = vshll.u32 %v8423, 16
      %v8512 = vrot.slane %v8510, 5
      %v8513 = vsel %vm3037, %v8508, %v8512
      %v8514 = vshrl.u32 %v8423, 16
      %v8516 = vrot.slane %v8514, 4
      %v8517 = vor.u32 %v8516, %v8512
      %v8518 = vrot.slane %v8517, 4
      %v8520 = vshll.u32 %v8461, 16
      %v8522 = vrot.slane %v8520, 5
      %v8523 = vsel %vm3037, %v8518, %v8522
      %v8525 = vshrl.u32 %v8424, 16
      %v8527 = vrot.slane %v8525, 4
      %v8528 = vshll.u32 %v8424, 16
      %v8530 = vrot.slane %v8528, 5
      %v8531 = vor.u32 %v8527, %v8530
      %v8532 = vrot.slane %v8531, 4
      %v8534 = vshll.u32 %v8425, 16
      %v8536 = vrot.slane %v8534, 5
      %v8537 = vsel %vm3037, %v8532, %v8536
      %v8538 = vshrl.u32 %v8425, 16
      %v8540 = vrot.slane %v8538, 4
      %v8541 = vor.u32 %v8540, %v8536
      %v8542 = vrot.slane %v8541, 4
      %v8544 = vshll.u32 %v8462, 16
      %v8546 = vrot.slane %v8544, 5
      %v8547 = vsel %vm3037, %v8542, %v8546
      %v8549 = vshrl.u32 %v8426, 16
      %v8551 = vrot.slane %v8549, 4
      %v8552 = vshll.u32 %v8426, 16
      %v8554 = vrot.slane %v8552, 5
      %v8555 = vor.u32 %v8551, %v8554
      %v8556 = vrot.slane %v8555, 4
      %v8558 = vshll.u32 %v8427, 16
      %v8560 = vrot.slane %v8558, 5
      %v8561 = vsel %vm3037, %v8556, %v8560
      %v8562 = vshrl.u32 %v8427, 16
      %v8564 = vrot.slane %v8562, 4
      %v8565 = vor.u32 %v8564, %v8560
      %v8566 = vrot.slane %v8565, 4
      %v8568 = vshll.u32 %v8463, 16
      %v8570 = vrot.slane %v8568, 5
      %v8571 = vsel %vm3037, %v8566, %v8570
      %v8573 = vshrl.u32 %v8428, 16
      %v8575 = vrot.slane %v8573, 4
      %v8576 = vshll.u32 %v8428, 16
      %v8578 = vrot.slane %v8576, 5
      %v8579 = vor.u32 %v8575, %v8578
      %v8580 = vrot.slane %v8579, 4
      %v8582 = vshll.u32 %v8429, 16
      %v8584 = vrot.slane %v8582, 5
      %v8585 = vsel %vm3037, %v8580, %v8584
      %v8586 = vshrl.u32 %v8429, 16
      %v8588 = vrot.slane %v8586, 4
      %v8589 = vor.u32 %v8588, %v8584
      %v8590 = vrot.slane %v8589, 4
      %v8592 = vshll.u32 %v8464, 16
      %v8594 = vrot.slane %v8592, 5
      %v8595 = vsel %vm3037, %v8590, %v8594
      %v8597 = vshrl.u32 %v8430, 16
      %v8599 = vrot.slane %v8597, 4
      %v8600 = vshll.u32 %v8430, 16
      %v8602 = vrot.slane %v8600, 5
      %v8603 = vor.u32 %v8599, %v8602
      %v8604 = vrot.slane %v8603, 4
      %v8606 = vshll.u32 %v8431, 16
      %v8608 = vrot.slane %v8606, 5
      %v8609 = vsel %vm3037, %v8604, %v8608
      %v8610 = vshrl.u32 %v8431, 16
      %v8612 = vrot.slane %v8610, 4
      %v8613 = vor.u32 %v8612, %v8608
      %v8614 = vrot.slane %v8613, 4
      %v8616 = vshll.u32 %v8465, 16
      %v8618 = vrot.slane %v8616, 5
      %v8619 = vsel %vm3037, %v8614, %v8618
      %v8621 = vshrl.u32 %v8432, 16
      %v8623 = vrot.slane %v8621, 4
      %v8624 = vshll.u32 %v8432, 16
      %v8626 = vrot.slane %v8624, 5
      %v8627 = vor.u32 %v8623, %v8626
      %v8628 = vrot.slane %v8627, 4
      %v8630 = vshll.u32 %v8433, 16
      %v8632 = vrot.slane %v8630, 5
      %v8633 = vsel %vm3037, %v8628, %v8632
      %v8634 = vshrl.u32 %v8433, 16
      %v8636 = vrot.slane %v8634, 4
      %v8637 = vor.u32 %v8636, %v8632
      %v8638 = vrot.slane %v8637, 4
      %v8640 = vshll.u32 %v8466, 16
      %v8642 = vrot.slane %v8640, 5
      %v8643 = vsel %vm3037, %v8638, %v8642
      %v8645 = vshrl.u32 %v8434, 16
      %v8647 = vrot.slane %v8645, 4
      %v8648 = vshll.u32 %v8434, 16
      %v8650 = vrot.slane %v8648, 5
      %v8651 = vor.u32 %v8647, %v8650
      %v8652 = vrot.slane %v8651, 4
      %v8654 = vshll.u32 %v8435, 16
      %v8656 = vrot.slane %v8654, 5
      %v8657 = vsel %vm3037, %v8652, %v8656
      %v8658 = vshrl.u32 %v8435, 16
      %v8660 = vrot.slane %v8658, 4
      %v8661 = vor.u32 %v8660, %v8656
      %v8662 = vrot.slane %v8661, 4
      %v8664 = vshll.u32 %v8467, 16
      %v8666 = vrot.slane %v8664, 5
      %v8667 = vsel %vm3037, %v8662, %v8666
      %v8669 = vshrl.u32 %v8436, 16
      %v8671 = vrot.slane %v8669, 4
      %v8672 = vshll.u32 %v8436, 16
      %v8674 = vrot.slane %v8672, 5
      %v8675 = vor.u32 %v8671, %v8674
      %v8676 = vrot.slane %v8675, 4
      %v8678 = vshll.u32 %v8437, 16
      %v8680 = vrot.slane %v8678, 5
      %v8681 = vsel %vm3037, %v8676, %v8680
      %v8682 = vshrl.u32 %v8437, 16
      %v8684 = vrot.slane %v8682, 4
      %v8685 = vor.u32 %v8684, %v8680
      %v8686 = vrot.slane %v8685, 4
      %v8688 = vshll.u32 %v8468, 16
      %v8690 = vrot.slane %v8688, 5
      %v8691 = vsel %vm3037, %v8686, %v8690
      %v8693 = vshrl.u32 %v8438, 16
      %v8695 = vrot.slane %v8693, 4
      %v8696 = vshll.u32 %v8438, 16
      %v8698 = vrot.slane %v8696, 5
      %v8699 = vor.u32 %v8695, %v8698
      %v8700 = vrot.slane %v8699, 4
      %v8702 = vshll.u32 %v8439, 16
      %v8704 = vrot.slane %v8702, 5
      %v8705 = vsel %vm3037, %v8700, %v8704
      %v8706 = vshrl.u32 %v8439, 16
      %v8708 = vrot.slane %v8706, 4
      %v8709 = vor.u32 %v8708, %v8704
      %v8710 = vrot.slane %v8709, 4
      %v8712 = vshll.u32 %v8469, 16
      %v8714 = vrot.slane %v8712, 5
      %v8715 = vsel %vm3037, %v8710, %v8714
      %v8717 = vshrl.u32 %v8440, 16
      %v8719 = vrot.slane %v8717, 4
      %v8720 = vshll.u32 %v8440, 16
      %v8722 = vrot.slane %v8720, 5
      %v8723 = vor.u32 %v8719, %v8722
      %v8724 = vrot.slane %v8723, 4
      %v8726 = vshll.u32 %v8441, 16
      %v8728 = vrot.slane %v8726, 5
      %v8729 = vsel %vm3037, %v8724, %v8728
      %v8730 = vshrl.u32 %v8441, 16
      %v8732 = vrot.slane %v8730, 4
      %v8733 = vor.u32 %v8732, %v8728
      %v8734 = vrot.slane %v8733, 4
      %v8736 = vshll.u32 %v8470, 16
      %v8738 = vrot.slane %v8736, 5
      %v8739 = vsel %vm3037, %v8734, %v8738
      %v8741 = vshrl.u32 %v8442, 16
      %v8743 = vrot.slane %v8741, 4
      %v8744 = vshll.u32 %v8442, 16
      %v8746 = vrot.slane %v8744, 5
      %v8747 = vor.u32 %v8743, %v8746
      %v8748 = vrot.slane %v8747, 4
      %v8750 = vshll.u32 %v8443, 16
      %v8752 = vrot.slane %v8750, 5
      %v8753 = vsel %vm3037, %v8748, %v8752
      %v8754 = vshrl.u32 %v8443, 16
      %v8756 = vrot.slane %v8754, 4
      %v8757 = vor.u32 %v8756, %v8752
      %v8758 = vrot.slane %v8757, 4
      %v8760 = vshll.u32 %v8471, 16
      %v8762 = vrot.slane %v8760, 5
      %v8763 = vsel %vm3037, %v8758, %v8762
      %v8765 = vshrl.u32 %v8444, 16
      %v8767 = vrot.slane %v8765, 4
      %v8768 = vshll.u32 %v8444, 16
      %v8770 = vrot.slane %v8768, 5
      %v8771 = vor.u32 %v8767, %v8770
      %v8772 = vrot.slane %v8771, 4
      %v8774 = vshll.u32 %v8445, 16
      %v8776 = vrot.slane %v8774, 5
      %v8777 = vsel %vm3037, %v8772, %v8776
      %v8778 = vshrl.u32 %v8445, 16
      %v8780 = vrot.slane %v8778, 4
      %v8781 = vor.u32 %v8780, %v8776
      %v8782 = vrot.slane %v8781, 4
      %v8784 = vshll.u32 %v8472, 16
      %v8786 = vrot.slane %v8784, 5
      %v8787 = vsel %vm3037, %v8782, %v8786
      %v8789 = vshrl.u32 %v8446, 16
      %v8791 = vrot.slane %v8789, 4
      %v8792 = vshll.u32 %v8446, 16
      %v8794 = vrot.slane %v8792, 5
      %v8795 = vor.u32 %v8791, %v8794
      %v8796 = vrot.slane %v8795, 4
      %v8798 = vshll.u32 %v8447, 16
      %v8800 = vrot.slane %v8798, 5
      %v8801 = vsel %vm3037, %v8796, %v8800
      %v8802 = vshrl.u32 %v8447, 16
      %v8804 = vrot.slane %v8802, 4
      %v8805 = vor.u32 %v8804, %v8800
      %v8806 = vrot.slane %v8805, 4
      %v8808 = vshll.u32 %v8473, 16
      %v8810 = vrot.slane %v8808, 5
      %v8811 = vsel %vm3037, %v8806, %v8810
      %v8813 = vshrl.u32 %v8448, 16
      %v8815 = vrot.slane %v8813, 4
      %v8816 = vshll.u32 %v8448, 16
      %v8818 = vrot.slane %v8816, 5
      %v8819 = vor.u32 %v8815, %v8818
      %v8820 = vrot.slane %v8819, 4
      %v8822 = vshll.u32 %v8449, 16
      %v8824 = vrot.slane %v8822, 5
      %v8825 = vsel %vm3037, %v8820, %v8824
      %v8826 = vshrl.u32 %v8449, 16
      %v8828 = vrot.slane %v8826, 4
      %v8829 = vor.u32 %v8828, %v8824
      %v8830 = vrot.slane %v8829, 4
      %v8832 = vshll.u32 %v8474, 16
      %v8834 = vrot.slane %v8832, 5
      %v8835 = vsel %vm3037, %v8830, %v8834
      %v8837 = vshrl.u32 %v8450, 16
      %v8839 = vrot.slane %v8837, 4
      %v8840 = vshll.u32 %v8450, 16
      %v8842 = vrot.slane %v8840, 5
      %v8843 = vor.u32 %v8839, %v8842
      %v8844 = vrot.slane %v8843, 4
      %v8846 = vshll.u32 %v8451, 16
      %v8848 = vrot.slane %v8846, 5
      %v8849 = vsel %vm3037, %v8844, %v8848
      %v8850 = vshrl.u32 %v8451, 16
      %v8852 = vrot.slane %v8850, 4
      %v8853 = vor.u32 %v8852, %v8848
      %v8854 = vrot.slane %v8853, 4
      %v8856 = vshll.u32 %v8475, 16
      %v8858 = vrot.slane %v8856, 5
      %v8859 = vsel %vm3037, %v8854, %v8858
      %s8860 = scalar_lea.vmem %s6, 32
      %v8861 = vld [vmem:[%s8860] sm:$0xf]
      %v8862 = vld [vmem:[%s8860 + $0x4] sm:$0xf]
      %v8863 = vld [vmem:[%s8860 + $0x8] sm:$0xf]
      %v8864 = vld [vmem:[%s8860 + $0xc] sm:$0xf]
      %v8865 = vld [vmem:[%s8860 + $0x10] sm:$0xf]
      %v8866 = vld [vmem:[%s8860 + $0x14] sm:$0xf]
      %v8867 = vld [vmem:[%s8860 + $0x18] sm:$0xf]
      %v8868 = vld [vmem:[%s8860 + $0x1c] sm:$0xf]
      %v8877 = vunpack.c.l.b16 %v8861
      %v8878 = vunpack.c.l.b16 %v8862
      %v8879 = vunpack.c.l.b16 %v8863
      %v8880 = vunpack.c.l.b16 %v8864
      %v8881 = vunpack.c.l.b16 %v8865
      %v8882 = vunpack.c.l.b16 %v8866
      %v8883 = vunpack.c.l.b16 %v8867
      %v8884 = vunpack.c.l.b16 %v8868
      %v8885 = vpack.c.b16 %v8878, %v8877
      %v8886 = vpack.c.b16 %v8880, %v8879
      %v8887 = vpack.c.b16 %v8882, %v8881
      %v8888 = vpack.c.b16 %v8884, %v8883
      %v8889 = vunpack.c.l.b16 %v8489
      %v8890 = vunpack.c.l.b16 %v8499
      %v8891 = vunpack.c.l.b16 %v8513
      %v8892 = vunpack.c.l.b16 %v8523
      %v8893 = vunpack.c.l.b16 %v8537
      %v8894 = vunpack.c.l.b16 %v8547
      %v8895 = vunpack.c.l.b16 %v8561
      %v8896 = vunpack.c.l.b16 %v8571
      %v8897 = vunpack.c.l.b16 %v8585
      %v8898 = vunpack.c.l.b16 %v8595
      %v8899 = vunpack.c.l.b16 %v8609
      %v8900 = vunpack.c.l.b16 %v8619
      %v8901 = vunpack.c.l.b16 %v8633
      %v8902 = vunpack.c.l.b16 %v8643
      %v8903 = vunpack.c.l.b16 %v8657
      %v8904 = vunpack.c.l.b16 %v8667
      %v8905 = vunpack.c.l.b16 %v8681
      %v8906 = vunpack.c.l.b16 %v8691
      %v8907 = vunpack.c.l.b16 %v8705
      %v8908 = vunpack.c.l.b16 %v8715
      %v8909 = vunpack.c.l.b16 %v8729
      %v8910 = vunpack.c.l.b16 %v8739
      %v8911 = vunpack.c.l.b16 %v8753
      %v8912 = vunpack.c.l.b16 %v8763
      %v8913 = vunpack.c.l.b16 %v8777
      %v8914 = vunpack.c.l.b16 %v8787
      %v8915 = vunpack.c.l.b16 %v8801
      %v8916 = vunpack.c.l.b16 %v8811
      %v8917 = vunpack.c.l.b16 %v8825
      %v8918 = vunpack.c.l.b16 %v8835
      %v8919 = vunpack.c.l.b16 %v8849
      %v8920 = vunpack.c.l.b16 %v8859
      %v8921 = vpack.c.b16 %v8890, %v8889
      %v8922 = vpack.c.b16 %v8892, %v8891
      %v8923 = vpack.c.b16 %v8894, %v8893
      %v8924 = vpack.c.b16 %v8896, %v8895
      %v8925 = vpack.c.b16 %v8898, %v8897
      %v8926 = vpack.c.b16 %v8900, %v8899
      %v8927 = vpack.c.b16 %v8902, %v8901
      %v8928 = vpack.c.b16 %v8904, %v8903
      %v8929 = vpack.c.b16 %v8906, %v8905
      %v8930 = vpack.c.b16 %v8908, %v8907
      %v8931 = vpack.c.b16 %v8910, %v8909
      %v8932 = vpack.c.b16 %v8912, %v8911
      %v8933 = vpack.c.b16 %v8914, %v8913
      %v8934 = vpack.c.b16 %v8916, %v8915
      %v8935 = vpack.c.b16 %v8918, %v8917
      %v8936 = vpack.c.b16 %v8920, %v8919
      %vm8937 = vcmask 523264
      %v8939 = vsel %vm8937, %v8885, 0
      %v8942 = vsel %vm8937, %v8886, 0
      %v8945 = vsel %vm8937, %v8887, 0
      %v8948 = vsel %vm8937, %v8888, 0
      %v8951 = vsel %vm8937, %v8921, 0
      %v8954 = vsel %vm8937, %v8922, 0
      %v8957 = vsel %vm8937, %v8923, 0
      %v8960 = vsel %vm8937, %v8924, 0
      %v8963 = vsel %vm8937, %v8925, 0
      %v8966 = vsel %vm8937, %v8926, 0
      %v8969 = vsel %vm8937, %v8927, 0
      %v8972 = vsel %vm8937, %v8928, 0
      %v8975 = vsel %vm8937, %v8929, 0
      %v8978 = vsel %vm8937, %v8930, 0
      %v8981 = vsel %vm8937, %v8931, 0
      %v8984 = vsel %vm8937, %v8932, 0
      %v8987 = vsel %vm8937, %v8933, 0
      %v8990 = vsel %vm8937, %v8934, 0
      %v8993 = vsel %vm8937, %v8935, 0
      %v8996 = vsel %vm8937, %v8936, 0
      %8998 = vmatprep.subr.bf16.mxu0 0
      %8999 = vmatpush1.bf16.xpose.msra.mxu0 %v8972
      %9000 = vmatprep.subr.bf16.mxu0 0
      %9001 = vmatpush1.bf16.xpose.msra.mxu0 %v8969
      %9002 = vmatprep.subr.bf16.mxu0 0
      %9003 = vmatpush1.bf16.xpose.msra.mxu0 %v8966
      %9004 = vmatprep.subr.bf16.mxu0 0
      %9005 = vmatpush1.bf16.xpose.msra.mxu0 %v8963
      %9006 = vmatprep.subr.bf16.mxu0 0
      %9007 = vmatpush1.bf16.xpose.msra.mxu0 %v8960
      %9008 = vmatprep.subr.bf16.mxu0 0
      %9009 = vmatpush1.bf16.xpose.msra.mxu0 %v8957
      %9010 = vmatprep.subr.bf16.mxu0 0
      %9011 = vmatpush1.bf16.xpose.msra.mxu0 %v8954
      %9012 = vmatprep.subr.bf16.mxu0 0
      %9013 = vmatpush1.bf16.xpose.msra.mxu0 %v8951
      %9014 = vmatprep.subr.bf16.mxu0 0
      %9015 = vmatpush2.bf16.xpose.msra.mxu0 %v8996
      %9016 = vmatprep.subr.bf16.mxu0 0
      %9017 = vmatpush2.bf16.xpose.msra.mxu0 %v8993
      %9018 = vmatprep.subr.bf16.mxu0 0
      %9019 = vmatpush2.bf16.xpose.msra.mxu0 %v8990
      %9020 = vmatprep.subr.bf16.mxu0 0
      %9021 = vmatpush2.bf16.xpose.msra.mxu0 %v8987
      %9022 = vmatprep.subr.bf16.mxu0 0
      %9023 = vmatpush2.bf16.xpose.msra.mxu0 %v8984
      %9024 = vmatprep.subr.bf16.mxu0 0
      %9025 = vmatpush2.bf16.xpose.msra.mxu0 %v8981
      %9026 = vmatprep.subr.bf16.mxu0 0
      %9027 = vmatpush2.bf16.xpose.msra.mxu0 %v8978
      %9028 = vmatprep.subr.bf16.mxu0 0
      %9029 = vmatpush2.bf16.xpose.msra.mxu0 %v8975
      %9030 = vmatprep.mubr.bf16.mxu0 0
      %9031 = vmatmul.mubr.bf16.gmra.mxu0 %v8939
      %v9032 = vpop.f32.mrf.mxu0
      %v9033 = vadd.f32 0.0, %v9032
      %v9034 = vpop.f32.mrf.mxu0
      %v9035 = vadd.f32 0.0, %v9034
      %v9036 = vpop.f32.mrf.mxu0
      %v9037 = vadd.f32 0.0, %v9036
      %v9038 = vpop.f32.mrf.mxu0
      %v9039 = vadd.f32 0.0, %v9038
      %9040 = vmatprep.mubr.bf16.mxu0 0
      %9041 = vmatmul.mubr.bf16.gmra.mxu0 %v8942
      %v9042 = vpop.f32.mrf.mxu0
      %v9043 = vadd.f32 0.0, %v9042
      %v9044 = vpop.f32.mrf.mxu0
      %v9045 = vadd.f32 0.0, %v9044
      %v9046 = vpop.f32.mrf.mxu0
      %v9047 = vadd.f32 0.0, %v9046
      %v9048 = vpop.f32.mrf.mxu0
      %v9049 = vadd.f32 0.0, %v9048
      %9050 = vmatprep.mubr.bf16.mxu0 0
      %9051 = vmatmul.mubr.bf16.gmra.mxu0 %v8945
      %v9052 = vpop.f32.mrf.mxu0
      %v9053 = vadd.f32 0.0, %v9052
      %v9054 = vpop.f32.mrf.mxu0
      %v9055 = vadd.f32 0.0, %v9054
      %v9056 = vpop.f32.mrf.mxu0
      %v9057 = vadd.f32 0.0, %v9056
      %v9058 = vpop.f32.mrf.mxu0
      %v9059 = vadd.f32 0.0, %v9058
      %9060 = vmatprep.mubr.bf16.mxu0 0
      %9061 = vmatmul.mubr.bf16.gmra.mxu0 %v8948
      %v9062 = vpop.f32.mrf.mxu0
      %v9063 = vadd.f32 0.0, %v9062
      %v9064 = vpop.f32.mrf.mxu0
      %v9065 = vadd.f32 0.0, %v9064
      %v9066 = vpop.f32.mrf.mxu0
      %v9067 = vadd.f32 0.0, %v9066
      %v9068 = vpop.f32.mrf.mxu0
      %v9069 = vadd.f32 0.0, %v9068
      %9070 = vdwg.mxu0
      %v9079 = vunpack.c.l.b16 %v8452
      %v9080 = vunpack.c.l.b16 %v8453
      %v9081 = vunpack.c.l.b16 %v8454
      %v9082 = vunpack.c.l.b16 %v8455
      %v9083 = vunpack.c.l.b16 %v8456
      %v9084 = vunpack.c.l.b16 %v8457
      %v9085 = vunpack.c.l.b16 %v8458
      %v9086 = vunpack.c.l.b16 %v8459
      %v9087 = vpack.c.b16 %v9080, %v9079
      %v9088 = vpack.c.b16 %v9082, %v9081
      %v9089 = vpack.c.b16 %v9084, %v9083
      %v9090 = vpack.c.b16 %v9086, %v9085
      %v9123 = vunpack.c.l.b16 %v8420
      %v9124 = vunpack.c.l.b16 %v8421
      %v9125 = vunpack.c.l.b16 %v8422
      %v9126 = vunpack.c.l.b16 %v8423
      %v9127 = vunpack.c.l.b16 %v8424
      %v9128 = vunpack.c.l.b16 %v8425
      %v9129 = vunpack.c.l.b16 %v8426
      %v9130 = vunpack.c.l.b16 %v8427
      %v9131 = vunpack.c.l.b16 %v8428
      %v9132 = vunpack.c.l.b16 %v8429
      %v9133 = vunpack.c.l.b16 %v8430
      %v9134 = vunpack.c.l.b16 %v8431
      %v9135 = vunpack.c.l.b16 %v8432
      %v9136 = vunpack.c.l.b16 %v8433
      %v9137 = vunpack.c.l.b16 %v8434
      %v9138 = vunpack.c.l.b16 %v8435
      %v9139 = vunpack.c.l.b16 %v8436
      %v9140 = vunpack.c.l.b16 %v8437
      %v9141 = vunpack.c.l.b16 %v8438
      %v9142 = vunpack.c.l.b16 %v8439
      %v9143 = vunpack.c.l.b16 %v8440
      %v9144 = vunpack.c.l.b16 %v8441
      %v9145 = vunpack.c.l.b16 %v8442
      %v9146 = vunpack.c.l.b16 %v8443
      %v9147 = vunpack.c.l.b16 %v8444
      %v9148 = vunpack.c.l.b16 %v8445
      %v9149 = vunpack.c.l.b16 %v8446
      %v9150 = vunpack.c.l.b16 %v8447
      %v9151 = vunpack.c.l.b16 %v8448
      %v9152 = vunpack.c.l.b16 %v8449
      %v9153 = vunpack.c.l.b16 %v8450
      %v9154 = vunpack.c.l.b16 %v8451
      %v9155 = vpack.c.b16 %v9124, %v9123
      %v9156 = vpack.c.b16 %v9126, %v9125
      %v9157 = vpack.c.b16 %v9128, %v9127
      %v9158 = vpack.c.b16 %v9130, %v9129
      %v9159 = vpack.c.b16 %v9132, %v9131
      %v9160 = vpack.c.b16 %v9134, %v9133
      %v9161 = vpack.c.b16 %v9136, %v9135
      %v9162 = vpack.c.b16 %v9138, %v9137
      %v9163 = vpack.c.b16 %v9140, %v9139
      %v9164 = vpack.c.b16 %v9142, %v9141
      %v9165 = vpack.c.b16 %v9144, %v9143
      %v9166 = vpack.c.b16 %v9146, %v9145
      %v9167 = vpack.c.b16 %v9148, %v9147
      %v9168 = vpack.c.b16 %v9150, %v9149
      %v9169 = vpack.c.b16 %v9152, %v9151
      %v9170 = vpack.c.b16 %v9154, %v9153
      %v9172 = vsel %vm8937, %v9087, 0
      %v9175 = vsel %vm8937, %v9088, 0
      %v9178 = vsel %vm8937, %v9089, 0
      %v9181 = vsel %vm8937, %v9090, 0
      %v9184 = vsel %vm8937, %v9155, 0
      %v9187 = vsel %vm8937, %v9156, 0
      %v9190 = vsel %vm8937, %v9157, 0
      %v9193 = vsel %vm8937, %v9158, 0
      %v9196 = vsel %vm8937, %v9159, 0
      %v9199 = vsel %vm8937, %v9160, 0
      %v9202 = vsel %vm8937, %v9161, 0
      %v9205 = vsel %vm8937, %v9162, 0
      %v9208 = vsel %vm8937, %v9163, 0
      %v9211 = vsel %vm8937, %v9164, 0
      %v9214 = vsel %vm8937, %v9165, 0
      %v9217 = vsel %vm8937, %v9166, 0
      %v9220 = vsel %vm8937, %v9167, 0
      %v9223 = vsel %vm8937, %v9168, 0
      %v9226 = vsel %vm8937, %v9169, 0
      %v9229 = vsel %vm8937, %v9170, 0
      %9231 = vmatprep.subr.bf16.mxu0 0
      %9232 = vmatpush1.bf16.xpose.msra.mxu0 %v9205
      %9233 = vmatprep.subr.bf16.mxu0 0
      %9234 = vmatpush1.bf16.xpose.msra.mxu0 %v9202
      %9235 = vmatprep.subr.bf16.mxu0 0
      %9236 = vmatpush1.bf16.xpose.msra.mxu0 %v9199
      %9237 = vmatprep.subr.bf16.mxu0 0
      %9238 = vmatpush1.bf16.xpose.msra.mxu0 %v9196
      %9239 = vmatprep.subr.bf16.mxu0 0
      %9240 = vmatpush1.bf16.xpose.msra.mxu0 %v9193
      %9241 = vmatprep.subr.bf16.mxu0 0
      %9242 = vmatpush1.bf16.xpose.msra.mxu0 %v9190
      %9243 = vmatprep.subr.bf16.mxu0 0
      %9244 = vmatpush1.bf16.xpose.msra.mxu0 %v9187
      %9245 = vmatprep.subr.bf16.mxu0 0
      %9246 = vmatpush1.bf16.xpose.msra.mxu0 %v9184
      %9247 = vmatprep.subr.bf16.mxu0 0
      %9248 = vmatpush2.bf16.xpose.msra.mxu0 %v9229
      %9249 = vmatprep.subr.bf16.mxu0 0
      %9250 = vmatpush2.bf16.xpose.msra.mxu0 %v9226
      %9251 = vmatprep.subr.bf16.mxu0 0
      %9252 = vmatpush2.bf16.xpose.msra.mxu0 %v9223
      %9253 = vmatprep.subr.bf16.mxu0 0
      %9254 = vmatpush2.bf16.xpose.msra.mxu0 %v9220
      %9255 = vmatprep.subr.bf16.mxu0 0
      %9256 = vmatpush2.bf16.xpose.msra.mxu0 %v9217
      %9257 = vmatprep.subr.bf16.mxu0 0
      %9258 = vmatpush2.bf16.xpose.msra.mxu0 %v9214
      %9259 = vmatprep.subr.bf16.mxu0 0
      %9260 = vmatpush2.bf16.xpose.msra.mxu0 %v9211
      %9261 = vmatprep.subr.bf16.mxu0 0
      %9262 = vmatpush2.bf16.xpose.msra.mxu0 %v9208
      %9263 = vmatprep.mubr.bf16.mxu0 0
      %9264 = vmatmul.mubr.bf16.gmra.mxu0 %v9172
      %v9265 = vpop.f32.mrf.mxu0
      %v9266 = vadd.f32 %v9033, %v9265
      %v9267 = vpop.f32.mrf.mxu0
      %v9268 = vadd.f32 %v9035, %v9267
      %v9269 = vpop.f32.mrf.mxu0
      %v9270 = vadd.f32 %v9037, %v9269
      %v9271 = vpop.f32.mrf.mxu0
      %v9272 = vadd.f32 %v9039, %v9271
      %9273 = vmatprep.mubr.bf16.mxu0 0
      %9274 = vmatmul.mubr.bf16.gmra.mxu0 %v9175
      %v9275 = vpop.f32.mrf.mxu0
      %v9276 = vadd.f32 %v9043, %v9275
      %v9277 = vpop.f32.mrf.mxu0
      %v9278 = vadd.f32 %v9045, %v9277
      %v9279 = vpop.f32.mrf.mxu0
      %v9280 = vadd.f32 %v9047, %v9279
      %v9281 = vpop.f32.mrf.mxu0
      %v9282 = vadd.f32 %v9049, %v9281
      %9283 = vmatprep.mubr.bf16.mxu0 0
      %9284 = vmatmul.mubr.bf16.gmra.mxu0 %v9178
      %v9285 = vpop.f32.mrf.mxu0
      %v9286 = vadd.f32 %v9053, %v9285
      %v9287 = vpop.f32.mrf.mxu0
      %v9288 = vadd.f32 %v9055, %v9287
      %v9289 = vpop.f32.mrf.mxu0
      %v9290 = vadd.f32 %v9057, %v9289
      %v9291 = vpop.f32.mrf.mxu0
      %v9292 = vadd.f32 %v9059, %v9291
      %9293 = vmatprep.mubr.bf16.mxu0 0
      %9294 = vmatmul.mubr.bf16.gmra.mxu0 %v9181
      %v9295 = vpop.f32.mrf.mxu0
      %v9296 = vadd.f32 %v9063, %v9295
      %v9297 = vpop.f32.mrf.mxu0
      %v9298 = vadd.f32 %v9065, %v9297
      %v9299 = vpop.f32.mrf.mxu0
      %v9300 = vadd.f32 %v9067, %v9299
      %v9301 = vpop.f32.mrf.mxu0
      %v9302 = vadd.f32 %v9069, %v9301
      %9303 = vdwg.mxu0
      %v9304 = vld [vmem:[#allocation3] sm:$0xe]
      %v9305 = vld [vmem:[#allocation3 + $0xc] sm:$0xe]
      %v9306 = vld [vmem:[#allocation3 + $0x18] sm:$0xe]
      %v9307 = vld [vmem:[#allocation3 + $0x24] sm:$0xe]
      %v9308 = vld [vmem:[#allocation3 + $0x30] sm:$0xe]
      %v9309 = vld [vmem:[#allocation3 + $0x3c] sm:$0xe]
      %v9310 = vld [vmem:[#allocation3 + $0x48] sm:$0xe]
      %v9311 = vld [vmem:[#allocation3 + $0x54] sm:$0xe]
      %v9312 = vld [vmem:[#allocation3 + $0x60] sm:$0xe]
      %v9313 = vld [vmem:[#allocation3 + $0x6c] sm:$0xe]
      %v9314 = vld [vmem:[#allocation3 + $0x78] sm:$0xe]
      %v9315 = vld [vmem:[#allocation3 + $0x84] sm:$0xe]
      %v9316 = vld [vmem:[#allocation3 + $0x90] sm:$0xe]
      %v9317 = vld [vmem:[#allocation3 + $0x9c] sm:$0xe]
      %v9318 = vld [vmem:[#allocation3 + $0xa8] sm:$0xe]
      %v9319 = vld [vmem:[#allocation3 + $0xb4] sm:$0xe]
      %v9352 = vrot.slane %v9304, 5
      %v9353 = vrot.slane %v9352, 4
      %v9354 = vrot.slane %v8421, 5
      %v9355 = vsel %vm4067, %v9353, %v9354
      %v9356 = vrot.slane %v9354, 4
      %v9357 = vrot.slane %v8460, 5
      %v9358 = vsel %vm4067, %v9356, %v9357
      %v9359 = vrot.slane %v9305, 5
      %v9360 = vrot.slane %v9359, 4
      %v9361 = vrot.slane %v8423, 5
      %v9362 = vsel %vm4067, %v9360, %v9361
      %v9363 = vrot.slane %v9361, 4
      %v9364 = vrot.slane %v8461, 5
      %v9365 = vsel %vm4067, %v9363, %v9364
      %v9366 = vrot.slane %v9306, 5
      %v9367 = vrot.slane %v9366, 4
      %v9368 = vrot.slane %v8425, 5
      %v9369 = vsel %vm4067, %v9367, %v9368
      %v9370 = vrot.slane %v9368, 4
      %v9371 = vrot.slane %v8462, 5
      %v9372 = vsel %vm4067, %v9370, %v9371
      %v9373 = vrot.slane %v9307, 5
      %v9374 = vrot.slane %v9373, 4
      %v9375 = vrot.slane %v8427, 5
      %v9376 = vsel %vm4067, %v9374, %v9375
      %v9377 = vrot.slane %v9375, 4
      %v9378 = vrot.slane %v8463, 5
      %v9379 = vsel %vm4067, %v9377, %v9378
      %v9380 = vrot.slane %v9308, 5
      %v9381 = vrot.slane %v9380, 4
      %v9382 = vrot.slane %v8429, 5
      %v9383 = vsel %vm4067, %v9381, %v9382
      %v9384 = vrot.slane %v9382, 4
      %v9385 = vrot.slane %v8464, 5
      %v9386 = vsel %vm4067, %v9384, %v9385
      %v9387 = vrot.slane %v9309, 5
      %v9388 = vrot.slane %v9387, 4
      %v9389 = vrot.slane %v8431, 5
      %v9390 = vsel %vm4067, %v9388, %v9389
      %v9391 = vrot.slane %v9389, 4
      %v9392 = vrot.slane %v8465, 5
      %v9393 = vsel %vm4067, %v9391, %v9392
      %v9394 = vrot.slane %v9310, 5
      %v9395 = vrot.slane %v9394, 4
      %v9396 = vrot.slane %v8433, 5
      %v9397 = vsel %vm4067, %v9395, %v9396
      %v9398 = vrot.slane %v9396, 4
      %v9399 = vrot.slane %v8466, 5
      %v9400 = vsel %vm4067, %v9398, %v9399
      %v9401 = vrot.slane %v9311, 5
      %v9402 = vrot.slane %v9401, 4
      %v9403 = vrot.slane %v8435, 5
      %v9404 = vsel %vm4067, %v9402, %v9403
      %v9405 = vrot.slane %v9403, 4
      %v9406 = vrot.slane %v8467, 5
      %v9407 = vsel %vm4067, %v9405, %v9406
      %v9408 = vrot.slane %v9312, 5
      %v9409 = vrot.slane %v9408, 4
      %v9410 = vrot.slane %v8437, 5
      %v9411 = vsel %vm4067, %v9409, %v9410
      %v9412 = vrot.slane %v9410, 4
      %v9413 = vrot.slane %v8468, 5
      %v9414 = vsel %vm4067, %v9412, %v9413
      %v9415 = vrot.slane %v9313, 5
      %v9416 = vrot.slane %v9415, 4
      %v9417 = vrot.slane %v8439, 5
      %v9418 = vsel %vm4067, %v9416, %v9417
      %v9419 = vrot.slane %v9417, 4
      %v9420 = vrot.slane %v8469, 5
      %v9421 = vsel %vm4067, %v9419, %v9420
      %v9422 = vrot.slane %v9314, 5
      %v9423 = vrot.slane %v9422, 4
      %v9424 = vrot.slane %v8441, 5
      %v9425 = vsel %vm4067, %v9423, %v9424
      %v9426 = vrot.slane %v9424, 4
      %v9427 = vrot.slane %v8470, 5
      %v9428 = vsel %vm4067, %v9426, %v9427
      %v9429 = vrot.slane %v9315, 5
      %v9430 = vrot.slane %v9429, 4
      %v9431 = vrot.slane %v8443, 5
      %v9432 = vsel %vm4067, %v9430, %v9431
      %v9433 = vrot.slane %v9431, 4
      %v9434 = vrot.slane %v8471, 5
      %v9435 = vsel %vm4067, %v9433, %v9434
      %v9436 = vrot.slane %v9316, 5
      %v9437 = vrot.slane %v9436, 4
      %v9438 = vrot.slane %v8445, 5
      %v9439 = vsel %vm4067, %v9437, %v9438
      %v9440 = vrot.slane %v9438, 4
      %v9441 = vrot.slane %v8472, 5
      %v9442 = vsel %vm4067, %v9440, %v9441
      %v9443 = vrot.slane %v9317, 5
      %v9444 = vrot.slane %v9443, 4
      %v9445 = vrot.slane %v8447, 5
      %v9446 = vsel %vm4067, %v9444, %v9445
      %v9447 = vrot.slane %v9445, 4
      %v9448 = vrot.slane %v8473, 5
      %v9449 = vsel %vm4067, %v9447, %v9448
      %v9450 = vrot.slane %v9318, 5
      %v9451 = vrot.slane %v9450, 4
      %v9452 = vrot.slane %v8449, 5
      %v9453 = vsel %vm4067, %v9451, %v9452
      %v9454 = vrot.slane %v9452, 4
      %v9455 = vrot.slane %v8474, 5
      %v9456 = vsel %vm4067, %v9454, %v9455
      %v9457 = vrot.slane %v9319, 5
      %v9458 = vrot.slane %v9457, 4
      %v9459 = vrot.slane %v8451, 5
      %v9460 = vsel %vm4067, %v9458, %v9459
      %v9461 = vrot.slane %v9459, 4
      %v9462 = vrot.slane %v8475, 5
      %v9463 = vsel %vm4067, %v9461, %v9462
      %s9464 = scalar_lea.vmem %s6, 64
      %v9465 = vld [vmem:[%s9464] sm:$0xf]
      %v9466 = vld [vmem:[%s9464 + $0x4] sm:$0xf]
      %v9467 = vld [vmem:[%s9464 + $0x8] sm:$0xf]
      %v9468 = vld [vmem:[%s9464 + $0xc] sm:$0xf]
      %v9469 = vld [vmem:[%s9464 + $0x10] sm:$0xf]
      %v9470 = vld [vmem:[%s9464 + $0x14] sm:$0xf]
      %v9471 = vld [vmem:[%s9464 + $0x18] sm:$0xf]
      %v9472 = vld [vmem:[%s9464 + $0x1c] sm:$0xf]
      %v9481 = vunpack.c.l.b16 %v9465
      %v9482 = vunpack.c.l.b16 %v9466
      %v9483 = vunpack.c.l.b16 %v9467
      %v9484 = vunpack.c.l.b16 %v9468
      %v9485 = vunpack.c.l.b16 %v9469
      %v9486 = vunpack.c.l.b16 %v9470
      %v9487 = vunpack.c.l.b16 %v9471
      %v9488 = vunpack.c.l.b16 %v9472
      %v9489 = vpack.c.b16 %v9482, %v9481
      %v9490 = vpack.c.b16 %v9484, %v9483
      %v9491 = vpack.c.b16 %v9486, %v9485
      %v9492 = vpack.c.b16 %v9488, %v9487
      %v9493 = vunpack.c.l.b16 %v9355
      %v9494 = vunpack.c.l.b16 %v9358
      %v9495 = vunpack.c.l.b16 %v9362
      %v9496 = vunpack.c.l.b16 %v9365
      %v9497 = vunpack.c.l.b16 %v9369
      %v9498 = vunpack.c.l.b16 %v9372
      %v9499 = vunpack.c.l.b16 %v9376
      %v9500 = vunpack.c.l.b16 %v9379
      %v9501 = vunpack.c.l.b16 %v9383
      %v9502 = vunpack.c.l.b16 %v9386
      %v9503 = vunpack.c.l.b16 %v9390
      %v9504 = vunpack.c.l.b16 %v9393
      %v9505 = vunpack.c.l.b16 %v9397
      %v9506 = vunpack.c.l.b16 %v9400
      %v9507 = vunpack.c.l.b16 %v9404
      %v9508 = vunpack.c.l.b16 %v9407
      %v9509 = vunpack.c.l.b16 %v9411
      %v9510 = vunpack.c.l.b16 %v9414
      %v9511 = vunpack.c.l.b16 %v9418
      %v9512 = vunpack.c.l.b16 %v9421
      %v9513 = vunpack.c.l.b16 %v9425
      %v9514 = vunpack.c.l.b16 %v9428
      %v9515 = vunpack.c.l.b16 %v9432
      %v9516 = vunpack.c.l.b16 %v9435
      %v9517 = vunpack.c.l.b16 %v9439
      %v9518 = vunpack.c.l.b16 %v9442
      %v9519 = vunpack.c.l.b16 %v9446
      %v9520 = vunpack.c.l.b16 %v9449
      %v9521 = vunpack.c.l.b16 %v9453
      %v9522 = vunpack.c.l.b16 %v9456
      %v9523 = vunpack.c.l.b16 %v9460
      %v9524 = vunpack.c.l.b16 %v9463
      %v9525 = vpack.c.b16 %v9494, %v9493
      %v9526 = vpack.c.b16 %v9496, %v9495
      %v9527 = vpack.c.b16 %v9498, %v9497
      %v9528 = vpack.c.b16 %v9500, %v9499
      %v9529 = vpack.c.b16 %v9502, %v9501
      %v9530 = vpack.c.b16 %v9504, %v9503
      %v9531 = vpack.c.b16 %v9506, %v9505
      %v9532 = vpack.c.b16 %v9508, %v9507
      %v9533 = vpack.c.b16 %v9510, %v9509
      %v9534 = vpack.c.b16 %v9512, %v9511
      %v9535 = vpack.c.b16 %v9514, %v9513
      %v9536 = vpack.c.b16 %v9516, %v9515
      %v9537 = vpack.c.b16 %v9518, %v9517
      %v9538 = vpack.c.b16 %v9520, %v9519
      %v9539 = vpack.c.b16 %v9522, %v9521
      %v9540 = vpack.c.b16 %v9524, %v9523
      %v9542 = vsel %vm8937, %v9489, 0
      %v9545 = vsel %vm8937, %v9490, 0
      %v9548 = vsel %vm8937, %v9491, 0
      %v9551 = vsel %vm8937, %v9492, 0
      %v9554 = vsel %vm8937, %v9525, 0
      %v9557 = vsel %vm8937, %v9526, 0
      %v9560 = vsel %vm8937, %v9527, 0
      %v9563 = vsel %vm8937, %v9528, 0
      %v9566 = vsel %vm8937, %v9529, 0
      %v9569 = vsel %vm8937, %v9530, 0
      %v9572 = vsel %vm8937, %v9531, 0
      %v9575 = vsel %vm8937, %v9532, 0
      %v9578 = vsel %vm8937, %v9533, 0
      %v9581 = vsel %vm8937, %v9534, 0
      %v9584 = vsel %vm8937, %v9535, 0
      %v9587 = vsel %vm8937, %v9536, 0
      %v9590 = vsel %vm8937, %v9537, 0
      %v9593 = vsel %vm8937, %v9538, 0
      %v9596 = vsel %vm8937, %v9539, 0
      %v9599 = vsel %vm8937, %v9540, 0
      %9601 = vmatprep.subr.bf16.mxu0 0
      %9602 = vmatpush1.bf16.xpose.msra.mxu0 %v9575
      %9603 = vmatprep.subr.bf16.mxu0 0
      %9604 = vmatpush1.bf16.xpose.msra.mxu0 %v9572
      %9605 = vmatprep.subr.bf16.mxu0 0
      %9606 = vmatpush1.bf16.xpose.msra.mxu0 %v9569
      %9607 = vmatprep.subr.bf16.mxu0 0
      %9608 = vmatpush1.bf16.xpose.msra.mxu0 %v9566
      %9609 = vmatprep.subr.bf16.mxu0 0
      %9610 = vmatpush1.bf16.xpose.msra.mxu0 %v9563
      %9611 = vmatprep.subr.bf16.mxu0 0
      %9612 = vmatpush1.bf16.xpose.msra.mxu0 %v9560
      %9613 = vmatprep.subr.bf16.mxu0 0
      %9614 = vmatpush1.bf16.xpose.msra.mxu0 %v9557
      %9615 = vmatprep.subr.bf16.mxu0 0
      %9616 = vmatpush1.bf16.xpose.msra.mxu0 %v9554
      %9617 = vmatprep.subr.bf16.mxu0 0
      %9618 = vmatpush2.bf16.xpose.msra.mxu0 %v9599
      %9619 = vmatprep.subr.bf16.mxu0 0
      %9620 = vmatpush2.bf16.xpose.msra.mxu0 %v9596
      %9621 = vmatprep.subr.bf16.mxu0 0
      %9622 = vmatpush2.bf16.xpose.msra.mxu0 %v9593
      %9623 = vmatprep.subr.bf16.mxu0 0
      %9624 = vmatpush2.bf16.xpose.msra.mxu0 %v9590
      %9625 = vmatprep.subr.bf16.mxu0 0
      %9626 = vmatpush2.bf16.xpose.msra.mxu0 %v9587
      %9627 = vmatprep.subr.bf16.mxu0 0
      %9628 = vmatpush2.bf16.xpose.msra.mxu0 %v9584
      %9629 = vmatprep.subr.bf16.mxu0 0
      %9630 = vmatpush2.bf16.xpose.msra.mxu0 %v9581
      %9631 = vmatprep.subr.bf16.mxu0 0
      %9632 = vmatpush2.bf16.xpose.msra.mxu0 %v9578
      %9633 = vmatprep.mubr.bf16.mxu0 0
      %9634 = vmatmul.mubr.bf16.gmra.mxu0 %v9542
      %v9635 = vpop.f32.mrf.mxu0
      %v9636 = vadd.f32 0.0, %v9635
      %v9637 = vpop.f32.mrf.mxu0
      %v9638 = vadd.f32 0.0, %v9637
      %v9639 = vpop.f32.mrf.mxu0
      %v9640 = vadd.f32 0.0, %v9639
      %v9641 = vpop.f32.mrf.mxu0
      %v9642 = vadd.f32 0.0, %v9641
      %9643 = vmatprep.mubr.bf16.mxu0 0
      %9644 = vmatmul.mubr.bf16.gmra.mxu0 %v9545
      %v9645 = vpop.f32.mrf.mxu0
      %v9646 = vadd.f32 0.0, %v9645
      %v9647 = vpop.f32.mrf.mxu0
      %v9648 = vadd.f32 0.0, %v9647
      %v9649 = vpop.f32.mrf.mxu0
      %v9650 = vadd.f32 0.0, %v9649
      %v9651 = vpop.f32.mrf.mxu0
      %v9652 = vadd.f32 0.0, %v9651
      %9653 = vmatprep.mubr.bf16.mxu0 0
      %9654 = vmatmul.mubr.bf16.gmra.mxu0 %v9548
      %v9655 = vpop.f32.mrf.mxu0
      %v9656 = vadd.f32 0.0, %v9655
      %v9657 = vpop.f32.mrf.mxu0
      %v9658 = vadd.f32 0.0, %v9657
      %v9659 = vpop.f32.mrf.mxu0
      %v9660 = vadd.f32 0.0, %v9659
      %v9661 = vpop.f32.mrf.mxu0
      %v9662 = vadd.f32 0.0, %v9661
      %9663 = vmatprep.mubr.bf16.mxu0 0
      %9664 = vmatmul.mubr.bf16.gmra.mxu0 %v9551
      %v9665 = vpop.f32.mrf.mxu0
      %v9666 = vadd.f32 0.0, %v9665
      %v9667 = vpop.f32.mrf.mxu0
      %v9668 = vadd.f32 0.0, %v9667
      %v9669 = vpop.f32.mrf.mxu0
      %v9670 = vadd.f32 0.0, %v9669
      %v9671 = vpop.f32.mrf.mxu0
      %v9672 = vadd.f32 0.0, %v9671
      %9673 = vdwg.mxu0
      %v9674 = vadd.f32 %v9266, %v9636
      %v9675 = vadd.f32 %v9268, %v9638
      %v9676 = vadd.f32 %v9270, %v9640
      %v9677 = vadd.f32 %v9272, %v9642
      %v9678 = vadd.f32 %v9276, %v9646
      %v9679 = vadd.f32 %v9278, %v9648
      %v9680 = vadd.f32 %v9280, %v9650
      %v9681 = vadd.f32 %v9282, %v9652
      %v9682 = vadd.f32 %v9286, %v9656
      %v9683 = vadd.f32 %v9288, %v9658
      %v9684 = vadd.f32 %v9290, %v9660
      %v9685 = vadd.f32 %v9292, %v9662
      %v9686 = vadd.f32 %v9296, %v9666
      %v9687 = vadd.f32 %v9298, %v9668
      %v9688 = vadd.f32 %v9300, %v9670
      %v9689 = vadd.f32 %v9302, %v9672
      %v9690 = vld [vmem:[%s8305] sm:$0xf]
      %v9691 = vld [vmem:[%s8305 + $0x4] sm:$0xf]
      %v9692 = vld [vmem:[%s8305 + $0xc] sm:$0xf]
      %v9693 = vld [vmem:[%s8305 + $0x10] sm:$0xf]
      %v9694 = vld [vmem:[%s8305 + $0x18] sm:$0xf]
      %v9695 = vld [vmem:[%s8305 + $0x1c] sm:$0xf]
      %v9696 = vld [vmem:[%s8305 + $0x24] sm:$0xf]
      %v9697 = vld [vmem:[%s8305 + $0x28] sm:$0xf]
      %v9698 = vld [vmem:[%s8305 + $0x30] sm:$0xf]
      %v9699 = vld [vmem:[%s8305 + $0x34] sm:$0xf]
      %v9700 = vld [vmem:[%s8305 + $0x3c] sm:$0xf]
      %v9701 = vld [vmem:[%s8305 + $0x40] sm:$0xf]
      %v9702 = vld [vmem:[%s8305 + $0x48] sm:$0xf]
      %v9703 = vld [vmem:[%s8305 + $0x4c] sm:$0xf]
      %v9704 = vld [vmem:[%s8305 + $0x54] sm:$0xf]
      %v9705 = vld [vmem:[%s8305 + $0x58] sm:$0xf]
      %v9706 = vld [vmem:[%s8305 + $0x60] sm:$0xf]
      %v9707 = vld [vmem:[%s8305 + $0x64] sm:$0xf]
      %v9708 = vld [vmem:[%s8305 + $0x6c] sm:$0xf]
      %v9709 = vld [vmem:[%s8305 + $0x70] sm:$0xf]
      %v9710 = vld [vmem:[%s8305 + $0x78] sm:$0xf]
      %v9711 = vld [vmem:[%s8305 + $0x7c] sm:$0xf]
      %v9712 = vld [vmem:[%s8305 + $0x84] sm:$0xf]
      %v9713 = vld [vmem:[%s8305 + $0x88] sm:$0xf]
      %v9714 = vld [vmem:[%s8305 + $0x90] sm:$0xf]
      %v9715 = vld [vmem:[%s8305 + $0x94] sm:$0xf]
      %v9716 = vld [vmem:[%s8305 + $0x9c] sm:$0xf]
      %v9717 = vld [vmem:[%s8305 + $0xa0] sm:$0xf]
      %v9718 = vld [vmem:[%s8305 + $0xa8] sm:$0xf]
      %v9719 = vld [vmem:[%s8305 + $0xac] sm:$0xf]
      %v9720 = vld [vmem:[%s8305 + $0xb4] sm:$0xf]
      %v9721 = vld [vmem:[%s8305 + $0xb8] sm:$0xf]
      %s9722 = scalar_lea.vmem %s6, 96
      %v9723 = vld [vmem:[%s9722] sm:$0xf]
      %v9724 = vld [vmem:[%s9722 + $0x4] sm:$0xf]
      %v9725 = vld [vmem:[%s9722 + $0x8] sm:$0xf]
      %v9726 = vld [vmem:[%s9722 + $0xc] sm:$0xf]
      %v9727 = vld [vmem:[%s9722 + $0x10] sm:$0xf]
      %v9728 = vld [vmem:[%s9722 + $0x14] sm:$0xf]
      %v9729 = vld [vmem:[%s9722 + $0x18] sm:$0xf]
      %v9730 = vld [vmem:[%s9722 + $0x1c] sm:$0xf]
      %v9739 = vunpack.c.l.b16 %v9723
      %v9740 = vunpack.c.l.b16 %v9724
      %v9741 = vunpack.c.l.b16 %v9725
      %v9742 = vunpack.c.l.b16 %v9726
      %v9743 = vunpack.c.l.b16 %v9727
      %v9744 = vunpack.c.l.b16 %v9728
      %v9745 = vunpack.c.l.b16 %v9729
      %v9746 = vunpack.c.l.b16 %v9730
      %v9747 = vpack.c.b16 %v9740, %v9739
      %v9748 = vpack.c.b16 %v9742, %v9741
      %v9749 = vpack.c.b16 %v9744, %v9743
      %v9750 = vpack.c.b16 %v9746, %v9745
      %v9783 = vunpack.c.l.b16 %v9690
      %v9784 = vunpack.c.l.b16 %v9691
      %v9785 = vunpack.c.l.b16 %v9692
      %v9786 = vunpack.c.l.b16 %v9693
      %v9787 = vunpack.c.l.b16 %v9694
      %v9788 = vunpack.c.l.b16 %v9695
      %v9789 = vunpack.c.l.b16 %v9696
      %v9790 = vunpack.c.l.b16 %v9697
      %v9791 = vunpack.c.l.b16 %v9698
      %v9792 = vunpack.c.l.b16 %v9699
      %v9793 = vunpack.c.l.b16 %v9700
      %v9794 = vunpack.c.l.b16 %v9701
      %v9795 = vunpack.c.l.b16 %v9702
      %v9796 = vunpack.c.l.b16 %v9703
      %v9797 = vunpack.c.l.b16 %v9704
      %v9798 = vunpack.c.l.b16 %v9705
      %v9799 = vunpack.c.l.b16 %v9706
      %v9800 = vunpack.c.l.b16 %v9707
      %v9801 = vunpack.c.l.b16 %v9708
      %v9802 = vunpack.c.l.b16 %v9709
      %v9803 = vunpack.c.l.b16 %v9710
      %v9804 = vunpack.c.l.b16 %v9711
      %v9805 = vunpack.c.l.b16 %v9712
      %v9806 = vunpack.c.l.b16 %v9713
      %v9807 = vunpack.c.l.b16 %v9714
      %v9808 = vunpack.c.l.b16 %v9715
      %v9809 = vunpack.c.l.b16 %v9716
      %v9810 = vunpack.c.l.b16 %v9717
      %v9811 = vunpack.c.l.b16 %v9718
      %v9812 = vunpack.c.l.b16 %v9719
      %v9813 = vunpack.c.l.b16 %v9720
      %v9814 = vunpack.c.l.b16 %v9721
      %v9815 = vpack.c.b16 %v9784, %v9783
      %v9816 = vpack.c.b16 %v9786, %v9785
      %v9817 = vpack.c.b16 %v9788, %v9787
      %v9818 = vpack.c.b16 %v9790, %v9789
      %v9819 = vpack.c.b16 %v9792, %v9791
      %v9820 = vpack.c.b16 %v9794, %v9793
      %v9821 = vpack.c.b16 %v9796, %v9795
      %v9822 = vpack.c.b16 %v9798, %v9797
      %v9823 = vpack.c.b16 %v9800, %v9799
      %v9824 = vpack.c.b16 %v9802, %v9801
      %v9825 = vpack.c.b16 %v9804, %v9803
      %v9826 = vpack.c.b16 %v9806, %v9805
      %v9827 = vpack.c.b16 %v9808, %v9807
      %v9828 = vpack.c.b16 %v9810, %v9809
      %v9829 = vpack.c.b16 %v9812, %v9811
      %v9830 = vpack.c.b16 %v9814, %v9813
      %v9832 = vsel %vm8937, %v9747, 0
      %v9835 = vsel %vm8937, %v9748, 0
      %v9838 = vsel %vm8937, %v9749, 0
      %v9841 = vsel %vm8937, %v9750, 0
      %v9844 = vsel %vm8937, %v9815, 0
      %v9847 = vsel %vm8937, %v9816, 0
      %v9850 = vsel %vm8937, %v9817, 0
      %v9853 = vsel %vm8937, %v9818, 0
      %v9856 = vsel %vm8937, %v9819, 0
      %v9859 = vsel %vm8937, %v9820, 0
      %v9862 = vsel %vm8937, %v9821, 0
      %v9865 = vsel %vm8937, %v9822, 0
      %v9868 = vsel %vm8937, %v9823, 0
      %v9871 = vsel %vm8937, %v9824, 0
      %v9874 = vsel %vm8937, %v9825, 0
      %v9877 = vsel %vm8937, %v9826, 0
      %v9880 = vsel %vm8937, %v9827, 0
      %v9883 = vsel %vm8937, %v9828, 0
      %v9886 = vsel %vm8937, %v9829, 0
      %v9889 = vsel %vm8937, %v9830, 0
      %9891 = vmatprep.subr.bf16.mxu0 0
      %9892 = vmatpush1.bf16.xpose.msra.mxu0 %v9865
      %9893 = vmatprep.subr.bf16.mxu0 0
      %9894 = vmatpush1.bf16.xpose.msra.mxu0 %v9862
      %9895 = vmatprep.subr.bf16.mxu0 0
      %9896 = vmatpush1.bf16.xpose.msra.mxu0 %v9859
      %9897 = vmatprep.subr.bf16.mxu0 0
      %9898 = vmatpush1.bf16.xpose.msra.mxu0 %v9856
      %9899 = vmatprep.subr.bf16.mxu0 0
      %9900 = vmatpush1.bf16.xpose.msra.mxu0 %v9853
      %9901 = vmatprep.subr.bf16.mxu0 0
      %9902 = vmatpush1.bf16.xpose.msra.mxu0 %v9850
      %9903 = vmatprep.subr.bf16.mxu0 0
      %9904 = vmatpush1.bf16.xpose.msra.mxu0 %v9847
      %9905 = vmatprep.subr.bf16.mxu0 0
      %9906 = vmatpush1.bf16.xpose.msra.mxu0 %v9844
      %9907 = vmatprep.subr.bf16.mxu0 0
      %9908 = vmatpush2.bf16.xpose.msra.mxu0 %v9889
      %9909 = vmatprep.subr.bf16.mxu0 0
      %9910 = vmatpush2.bf16.xpose.msra.mxu0 %v9886
      %9911 = vmatprep.subr.bf16.mxu0 0
      %9912 = vmatpush2.bf16.xpose.msra.mxu0 %v9883
      %9913 = vmatprep.subr.bf16.mxu0 0
      %9914 = vmatpush2.bf16.xpose.msra.mxu0 %v9880
      %9915 = vmatprep.subr.bf16.mxu0 0
      %9916 = vmatpush2.bf16.xpose.msra.mxu0 %v9877
      %9917 = vmatprep.subr.bf16.mxu0 0
      %9918 = vmatpush2.bf16.xpose.msra.mxu0 %v9874
      %9919 = vmatprep.subr.bf16.mxu0 0
      %9920 = vmatpush2.bf16.xpose.msra.mxu0 %v9871
      %9921 = vmatprep.subr.bf16.mxu0 0
      %9922 = vmatpush2.bf16.xpose.msra.mxu0 %v9868
      %9923 = vmatprep.mubr.bf16.mxu0 0
      %9924 = vmatmul.mubr.bf16.gmra.mxu0 %v9832
      %v9925 = vpop.f32.mrf.mxu0
      %v9926 = vadd.f32 0.0, %v9925
      %v9927 = vpop.f32.mrf.mxu0
      %v9928 = vadd.f32 0.0, %v9927
      %v9929 = vpop.f32.mrf.mxu0
      %v9930 = vadd.f32 0.0, %v9929
      %v9931 = vpop.f32.mrf.mxu0
      %v9932 = vadd.f32 0.0, %v9931
      %9933 = vmatprep.mubr.bf16.mxu0 0
      %9934 = vmatmul.mubr.bf16.gmra.mxu0 %v9835
      %v9935 = vpop.f32.mrf.mxu0
      %v9936 = vadd.f32 0.0, %v9935
      %v9937 = vpop.f32.mrf.mxu0
      %v9938 = vadd.f32 0.0, %v9937
      %v9939 = vpop.f32.mrf.mxu0
      %v9940 = vadd.f32 0.0, %v9939
      %v9941 = vpop.f32.mrf.mxu0
      %v9942 = vadd.f32 0.0, %v9941
      %9943 = vmatprep.mubr.bf16.mxu0 0
      %9944 = vmatmul.mubr.bf16.gmra.mxu0 %v9838
      %v9945 = vpop.f32.mrf.mxu0
      %v9946 = vadd.f32 0.0, %v9945
      %v9947 = vpop.f32.mrf.mxu0
      %v9948 = vadd.f32 0.0, %v9947
      %v9949 = vpop.f32.mrf.mxu0
      %v9950 = vadd.f32 0.0, %v9949
      %v9951 = vpop.f32.mrf.mxu0
      %v9952 = vadd.f32 0.0, %v9951
      %9953 = vmatprep.mubr.bf16.mxu0 0
      %9954 = vmatmul.mubr.bf16.gmra.mxu0 %v9841
      %v9955 = vpop.f32.mrf.mxu0
      %v9956 = vadd.f32 0.0, %v9955
      %v9957 = vpop.f32.mrf.mxu0
      %v9958 = vadd.f32 0.0, %v9957
      %v9959 = vpop.f32.mrf.mxu0
      %v9960 = vadd.f32 0.0, %v9959
      %v9961 = vpop.f32.mrf.mxu0
      %v9962 = vadd.f32 0.0, %v9961
      %9963 = vdwg.mxu0
      %v9964 = vadd.f32 %v9674, %v9926
      %v9965 = vadd.f32 %v9675, %v9928
      %v9966 = vadd.f32 %v9676, %v9930
      %v9967 = vadd.f32 %v9677, %v9932
      %v9968 = vadd.f32 %v9678, %v9936
      %v9969 = vadd.f32 %v9679, %v9938
      %v9970 = vadd.f32 %v9680, %v9940
      %v9971 = vadd.f32 %v9681, %v9942
      %v9972 = vadd.f32 %v9682, %v9946
      %v9973 = vadd.f32 %v9683, %v9948
      %v9974 = vadd.f32 %v9684, %v9950
      %v9975 = vadd.f32 %v9685, %v9952
      %v9976 = vadd.f32 %v9686, %v9956
      %v9977 = vadd.f32 %v9687, %v9958
      %v9978 = vadd.f32 %v9688, %v9960
      %v9979 = vadd.f32 %v9689, %v9962
      %v9980 = vld [vmem:[%s8305] sm:$0xf]
      %v9981 = vld [vmem:[%s8305 + $0x4] sm:$0xf]
      %v9982 = vld [vmem:[%s8305 + $0x8] sm:$0x1]
      %v9983 = vld [vmem:[%s8305 + $0xc] sm:$0xf]
      %v9984 = vld [vmem:[%s8305 + $0x10] sm:$0xf]
      %v9985 = vld [vmem:[%s8305 + $0x14] sm:$0x1]
      %v9986 = vld [vmem:[%s8305 + $0x18] sm:$0xf]
      %v9987 = vld [vmem:[%s8305 + $0x1c] sm:$0xf]
      %v9988 = vld [vmem:[%s8305 + $0x20] sm:$0x1]
      %v9989 = vld [vmem:[%s8305 + $0x24] sm:$0xf]
      %v9990 = vld [vmem:[%s8305 + $0x28] sm:$0xf]
      %v9991 = vld [vmem:[%s8305 + $0x2c] sm:$0x1]
      %v9992 = vld [vmem:[%s8305 + $0x30] sm:$0xf]
      %v9993 = vld [vmem:[%s8305 + $0x34] sm:$0xf]
      %v9994 = vld [vmem:[%s8305 + $0x38] sm:$0x1]
      %v9995 = vld [vmem:[%s8305 + $0x3c] sm:$0xf]
      %v9996 = vld [vmem:[%s8305 + $0x40] sm:$0xf]
      %v9997 = vld [vmem:[%s8305 + $0x44] sm:$0x1]
      %v9998 = vld [vmem:[%s8305 + $0x48] sm:$0xf]
      %v9999 = vld [vmem:[%s8305 + $0x4c] sm:$0xf]
      %v10000 = vld [vmem:[%s8305 + $0x50] sm:$0x1]
      %v10001 = vld [vmem:[%s8305 + $0x54] sm:$0xf]
      %v10002 = vld [vmem:[%s8305 + $0x58] sm:$0xf]
      %v10003 = vld [vmem:[%s8305 + $0x5c] sm:$0x1]
      %v10004 = vld [vmem:[%s8305 + $0x60] sm:$0xf]
      %v10005 = vld [vmem:[%s8305 + $0x64] sm:$0xf]
      %v10006 = vld [vmem:[%s8305 + $0x68] sm:$0x1]
      %v10007 = vld [vmem:[%s8305 + $0x6c] sm:$0xf]
      %v10008 = vld [vmem:[%s8305 + $0x70] sm:$0xf]
      %v10009 = vld [vmem:[%s8305 + $0x74] sm:$0x1]
      %v10010 = vld [vmem:[%s8305 + $0x78] sm:$0xf]
      %v10011 = vld [vmem:[%s8305 + $0x7c] sm:$0xf]
      %v10012 = vld [vmem:[%s8305 + $0x80] sm:$0x1]
      %v10013 = vld [vmem:[%s8305 + $0x84] sm:$0xf]
      %v10014 = vld [vmem:[%s8305 + $0x88] sm:$0xf]
      %v10015 = vld [vmem:[%s8305 + $0x8c] sm:$0x1]
      %v10016 = vld [vmem:[%s8305 + $0x90] sm:$0xf]
      %v10017 = vld [vmem:[%s8305 + $0x94] sm:$0xf]
      %v10018 = vld [vmem:[%s8305 + $0x98] sm:$0x1]
      %v10019 = vld [vmem:[%s8305 + $0x9c] sm:$0xf]
      %v10020 = vld [vmem:[%s8305 + $0xa0] sm:$0xf]
      %v10021 = vld [vmem:[%s8305 + $0xa4] sm:$0x1]
      %v10022 = vld [vmem:[%s8305 + $0xa8] sm:$0xf]
      %v10023 = vld [vmem:[%s8305 + $0xac] sm:$0xf]
      %v10024 = vld [vmem:[%s8305 + $0xb0] sm:$0x1]
      %v10025 = vld [vmem:[%s8305 + $0xb4] sm:$0xf]
      %v10026 = vld [vmem:[%s8305 + $0xb8] sm:$0xf]
      %v10027 = vld [vmem:[%s8305 + $0xbc] sm:$0x1]
      %v10029 = vshrl.u32 %v9980, 16
      %v10031 = vrot.slane %v10029, 4
      %v10032 = vshll.u32 %v9980, 16
      %v10034 = vrot.slane %v10032, 5
      %v10035 = vor.u32 %v10031, %v10034
      %v10036 = vrot.slane %v10035, 4
      %v10038 = vshll.u32 %v9981, 16
      %v10040 = vrot.slane %v10038, 5
      %v10041 = vsel %vm3037, %v10036, %v10040
      %v10042 = vshrl.u32 %v9981, 16
      %v10044 = vrot.slane %v10042, 4
      %v10045 = vor.u32 %v10044, %v10040
      %v10046 = vrot.slane %v10045, 4
      %v10048 = vshll.u32 %v9982, 16
      %v10050 = vrot.slane %v10048, 5
      %v10051 = vsel %vm3037, %v10046, %v10050
      %v10053 = vshrl.u32 %v9983, 16
      %v10055 = vrot.slane %v10053, 4
      %v10056 = vshll.u32 %v9983, 16
      %v10058 = vrot.slane %v10056, 5
      %v10059 = vor.u32 %v10055, %v10058
      %v10060 = vrot.slane %v10059, 4
      %v10062 = vshll.u32 %v9984, 16
      %v10064 = vrot.slane %v10062, 5
      %v10065 = vsel %vm3037, %v10060, %v10064
      %v10066 = vshrl.u32 %v9984, 16
      %v10068 = vrot.slane %v10066, 4
      %v10069 = vor.u32 %v10068, %v10064
      %v10070 = vrot.slane %v10069, 4
      %v10072 = vshll.u32 %v9985, 16
      %v10074 = vrot.slane %v10072, 5
      %v10075 = vsel %vm3037, %v10070, %v10074
      %v10077 = vshrl.u32 %v9986, 16
      %v10079 = vrot.slane %v10077, 4
      %v10080 = vshll.u32 %v9986, 16
      %v10082 = vrot.slane %v10080, 5
      %v10083 = vor.u32 %v10079, %v10082
      %v10084 = vrot.slane %v10083, 4
      %v10086 = vshll.u32 %v9987, 16
      %v10088 = vrot.slane %v10086, 5
      %v10089 = vsel %vm3037, %v10084, %v10088
      %v10090 = vshrl.u32 %v9987, 16
      %v10092 = vrot.slane %v10090, 4
      %v10093 = vor.u32 %v10092, %v10088
      %v10094 = vrot.slane %v10093, 4
      %v10096 = vshll.u32 %v9988, 16
      %v10098 = vrot.slane %v10096, 5
      %v10099 = vsel %vm3037, %v10094, %v10098
      %v10101 = vshrl.u32 %v9989, 16
      %v10103 = vrot.slane %v10101, 4
      %v10104 = vshll.u32 %v9989, 16
      %v10106 = vrot.slane %v10104, 5
      %v10107 = vor.u32 %v10103, %v10106
      %v10108 = vrot.slane %v10107, 4
      %v10110 = vshll.u32 %v9990, 16
      %v10112 = vrot.slane %v10110, 5
      %v10113 = vsel %vm3037, %v10108, %v10112
      %v10114 = vshrl.u32 %v9990, 16
      %v10116 = vrot.slane %v10114, 4
      %v10117 = vor.u32 %v10116, %v10112
      %v10118 = vrot.slane %v10117, 4
      %v10120 = vshll.u32 %v9991, 16
      %v10122 = vrot.slane %v10120, 5
      %v10123 = vsel %vm3037, %v10118, %v10122
      %v10125 = vshrl.u32 %v9992, 16
      %v10127 = vrot.slane %v10125, 4
      %v10128 = vshll.u32 %v9992, 16
      %v10130 = vrot.slane %v10128, 5
      %v10131 = vor.u32 %v10127, %v10130
      %v10132 = vrot.slane %v10131, 4
      %v10134 = vshll.u32 %v9993, 16
      %v10136 = vrot.slane %v10134, 5
      %v10137 = vsel %vm3037, %v10132, %v10136
      %v10138 = vshrl.u32 %v9993, 16
      %v10140 = vrot.slane %v10138, 4
      %v10141 = vor.u32 %v10140, %v10136
      %v10142 = vrot.slane %v10141, 4
      %v10144 = vshll.u32 %v9994, 16
      %v10146 = vrot.slane %v10144, 5
      %v10147 = vsel %vm3037, %v10142, %v10146
      %v10149 = vshrl.u32 %v9995, 16
      %v10151 = vrot.slane %v10149, 4
      %v10152 = vshll.u32 %v9995, 16
      %v10154 = vrot.slane %v10152, 5
      %v10155 = vor.u32 %v10151, %v10154
      %v10156 = vrot.slane %v10155, 4
      %v10158 = vshll.u32 %v9996, 16
      %v10160 = vrot.slane %v10158, 5
      %v10161 = vsel %vm3037, %v10156, %v10160
      %v10162 = vshrl.u32 %v9996, 16
      %v10164 = vrot.slane %v10162, 4
      %v10165 = vor.u32 %v10164, %v10160
      %v10166 = vrot.slane %v10165, 4
      %v10168 = vshll.u32 %v9997, 16
      %v10170 = vrot.slane %v10168, 5
      %v10171 = vsel %vm3037, %v10166, %v10170
      %v10173 = vshrl.u32 %v9998, 16
      %v10175 = vrot.slane %v10173, 4
      %v10176 = vshll.u32 %v9998, 16
      %v10178 = vrot.slane %v10176, 5
      %v10179 = vor.u32 %v10175, %v10178
      %v10180 = vrot.slane %v10179, 4
      %v10182 = vshll.u32 %v9999, 16
      %v10184 = vrot.slane %v10182, 5
      %v10185 = vsel %vm3037, %v10180, %v10184
      %v10186 = vshrl.u32 %v9999, 16
      %v10188 = vrot.slane %v10186, 4
      %v10189 = vor.u32 %v10188, %v10184
      %v10190 = vrot.slane %v10189, 4
      %v10192 = vshll.u32 %v10000, 16
      %v10194 = vrot.slane %v10192, 5
      %v10195 = vsel %vm3037, %v10190, %v10194
      %v10197 = vshrl.u32 %v10001, 16
      %v10199 = vrot.slane %v10197, 4
      %v10200 = vshll.u32 %v10001, 16
      %v10202 = vrot.slane %v10200, 5
      %v10203 = vor.u32 %v10199, %v10202
      %v10204 = vrot.slane %v10203, 4
      %v10206 = vshll.u32 %v10002, 16
      %v10208 = vrot.slane %v10206, 5
      %v10209 = vsel %vm3037, %v10204, %v10208
      %v10210 = vshrl.u32 %v10002, 16
      %v10212 = vrot.slane %v10210, 4
      %v10213 = vor.u32 %v10212, %v10208
      %v10214 = vrot.slane %v10213, 4
      %v10216 = vshll.u32 %v10003, 16
      %v10218 = vrot.slane %v10216, 5
      %v10219 = vsel %vm3037, %v10214, %v10218
      %v10221 = vshrl.u32 %v10004, 16
      %v10223 = vrot.slane %v10221, 4
      %v10224 = vshll.u32 %v10004, 16
      %v10226 = vrot.slane %v10224, 5
      %v10227 = vor.u32 %v10223, %v10226
      %v10228 = vrot.slane %v10227, 4
      %v10230 = vshll.u32 %v10005, 16
      %v10232 = vrot.slane %v10230, 5
      %v10233 = vsel %vm3037, %v10228, %v10232
      %v10234 = vshrl.u32 %v10005, 16
      %v10236 = vrot.slane %v10234, 4
      %v10237 = vor.u32 %v10236, %v10232
      %v10238 = vrot.slane %v10237, 4
      %v10240 = vshll.u32 %v10006, 16
      %v10242 = vrot.slane %v10240, 5
      %v10243 = vsel %vm3037, %v10238, %v10242
      %v10245 = vshrl.u32 %v10007, 16
      %v10247 = vrot.slane %v10245, 4
      %v10248 = vshll.u32 %v10007, 16
      %v10250 = vrot.slane %v10248, 5
      %v10251 = vor.u32 %v10247, %v10250
      %v10252 = vrot.slane %v10251, 4
      %v10254 = vshll.u32 %v10008, 16
      %v10256 = vrot.slane %v10254, 5
      %v10257 = vsel %vm3037, %v10252, %v10256
      %v10258 = vshrl.u32 %v10008, 16
      %v10260 = vrot.slane %v10258, 4
      %v10261 = vor.u32 %v10260, %v10256
      %v10262 = vrot.slane %v10261, 4
      %v10264 = vshll.u32 %v10009, 16
      %v10266 = vrot.slane %v10264, 5
      %v10267 = vsel %vm3037, %v10262, %v10266
      %v10269 = vshrl.u32 %v10010, 16
      %v10271 = vrot.slane %v10269, 4
      %v10272 = vshll.u32 %v10010, 16
      %v10274 = vrot.slane %v10272, 5
      %v10275 = vor.u32 %v10271, %v10274
      %v10276 = vrot.slane %v10275, 4
      %v10278 = vshll.u32 %v10011, 16
      %v10280 = vrot.slane %v10278, 5
      %v10281 = vsel %vm3037, %v10276, %v10280
      %v10282 = vshrl.u32 %v10011, 16
      %v10284 = vrot.slane %v10282, 4
      %v10285 = vor.u32 %v10284, %v10280
      %v10286 = vrot.slane %v10285, 4
      %v10288 = vshll.u32 %v10012, 16
      %v10290 = vrot.slane %v10288, 5
      %v10291 = vsel %vm3037, %v10286, %v10290
      %v10293 = vshrl.u32 %v10013, 16
      %v10295 = vrot.slane %v10293, 4
      %v10296 = vshll.u32 %v10013, 16
      %v10298 = vrot.slane %v10296, 5
      %v10299 = vor.u32 %v10295, %v10298
      %v10300 = vrot.slane %v10299, 4
      %v10302 = vshll.u32 %v10014, 16
      %v10304 = vrot.slane %v10302, 5
      %v10305 = vsel %vm3037, %v10300, %v10304
      %v10306 = vshrl.u32 %v10014, 16
      %v10308 = vrot.slane %v10306, 4
      %v10309 = vor.u32 %v10308, %v10304
      %v10310 = vrot.slane %v10309, 4
      %v10312 = vshll.u32 %v10015, 16
      %v10314 = vrot.slane %v10312, 5
      %v10315 = vsel %vm3037, %v10310, %v10314
      %v10317 = vshrl.u32 %v10016, 16
      %v10319 = vrot.slane %v10317, 4
      %v10320 = vshll.u32 %v10016, 16
      %v10322 = vrot.slane %v10320, 5
      %v10323 = vor.u32 %v10319, %v10322
      %v10324 = vrot.slane %v10323, 4
      %v10326 = vshll.u32 %v10017, 16
      %v10328 = vrot.slane %v10326, 5
      %v10329 = vsel %vm3037, %v10324, %v10328
      %v10330 = vshrl.u32 %v10017, 16
      %v10332 = vrot.slane %v10330, 4
      %v10333 = vor.u32 %v10332, %v10328
      %v10334 = vrot.slane %v10333, 4
      %v10336 = vshll.u32 %v10018, 16
      %v10338 = vrot.slane %v10336, 5
      %v10339 = vsel %vm3037, %v10334, %v10338
      %v10341 = vshrl.u32 %v10019, 16
      %v10343 = vrot.slane %v10341, 4
      %v10344 = vshll.u32 %v10019, 16
      %v10346 = vrot.slane %v10344, 5
      %v10347 = vor.u32 %v10343, %v10346
      %v10348 = vrot.slane %v10347, 4
      %v10350 = vshll.u32 %v10020, 16
      %v10352 = vrot.slane %v10350, 5
      %v10353 = vsel %vm3037, %v10348, %v10352
      %v10354 = vshrl.u32 %v10020, 16
      %v10356 = vrot.slane %v10354, 4
      %v10357 = vor.u32 %v10356, %v10352
      %v10358 = vrot.slane %v10357, 4
      %v10360 = vshll.u32 %v10021, 16
      %v10362 = vrot.slane %v10360, 5
      %v10363 = vsel %vm3037, %v10358, %v10362
      %v10365 = vshrl.u32 %v10022, 16
      %v10367 = vrot.slane %v10365, 4
      %v10368 = vshll.u32 %v10022, 16
      %v10370 = vrot.slane %v10368, 5
      %v10371 = vor.u32 %v10367, %v10370
      %v10372 = vrot.slane %v10371, 4
      %v10374 = vshll.u32 %v10023, 16
      %v10376 = vrot.slane %v10374, 5
      %v10377 = vsel %vm3037, %v10372, %v10376
      %v10378 = vshrl.u32 %v10023, 16
      %v10380 = vrot.slane %v10378, 4
      %v10381 = vor.u32 %v10380, %v10376
      %v10382 = vrot.slane %v10381, 4
      %v10384 = vshll.u32 %v10024, 16
      %v10386 = vrot.slane %v10384, 5
      %v10387 = vsel %vm3037, %v10382, %v10386
      %v10389 = vshrl.u32 %v10025, 16
      %v10391 = vrot.slane %v10389, 4
      %v10392 = vshll.u32 %v10025, 16
      %v10394 = vrot.slane %v10392, 5
      %v10395 = vor.u32 %v10391, %v10394
      %v10396 = vrot.slane %v10395, 4
      %v10398 = vshll.u32 %v10026, 16
      %v10400 = vrot.slane %v10398, 5
      %v10401 = vsel %vm3037, %v10396, %v10400
      %v10402 = vshrl.u32 %v10026, 16
      %v10404 = vrot.slane %v10402, 4
      %v10405 = vor.u32 %v10404, %v10400
      %v10406 = vrot.slane %v10405, 4
      %v10408 = vshll.u32 %v10027, 16
      %v10410 = vrot.slane %v10408, 5
      %v10411 = vsel %vm3037, %v10406, %v10410
      %s10412 = scalar_lea.vmem %s6, 128
      %v10413 = vld [vmem:[%s10412] sm:$0xf]
      %v10414 = vld [vmem:[%s10412 + $0x4] sm:$0xf]
      %v10415 = vld [vmem:[%s10412 + $0x8] sm:$0xf]
      %v10416 = vld [vmem:[%s10412 + $0xc] sm:$0xf]
      %v10417 = vld [vmem:[%s10412 + $0x10] sm:$0xf]
      %v10418 = vld [vmem:[%s10412 + $0x14] sm:$0xf]
      %v10419 = vld [vmem:[%s10412 + $0x18] sm:$0xf]
      %v10420 = vld [vmem:[%s10412 + $0x1c] sm:$0xf]
      %v10429 = vunpack.c.l.b16 %v10413
      %v10430 = vunpack.c.l.b16 %v10414
      %v10431 = vunpack.c.l.b16 %v10415
      %v10432 = vunpack.c.l.b16 %v10416
      %v10433 = vunpack.c.l.b16 %v10417
      %v10434 = vunpack.c.l.b16 %v10418
      %v10435 = vunpack.c.l.b16 %v10419
      %v10436 = vunpack.c.l.b16 %v10420
      %v10437 = vpack.c.b16 %v10430, %v10429
      %v10438 = vpack.c.b16 %v10432, %v10431
      %v10439 = vpack.c.b16 %v10434, %v10433
      %v10440 = vpack.c.b16 %v10436, %v10435
      %v10441 = vunpack.c.l.b16 %v10041
      %v10442 = vunpack.c.l.b16 %v10051
      %v10443 = vunpack.c.l.b16 %v10065
      %v10444 = vunpack.c.l.b16 %v10075
      %v10445 = vunpack.c.l.b16 %v10089
      %v10446 = vunpack.c.l.b16 %v10099
      %v10447 = vunpack.c.l.b16 %v10113
      %v10448 = vunpack.c.l.b16 %v10123
      %v10449 = vunpack.c.l.b16 %v10137
      %v10450 = vunpack.c.l.b16 %v10147
      %v10451 = vunpack.c.l.b16 %v10161
      %v10452 = vunpack.c.l.b16 %v10171
      %v10453 = vunpack.c.l.b16 %v10185
      %v10454 = vunpack.c.l.b16 %v10195
      %v10455 = vunpack.c.l.b16 %v10209
      %v10456 = vunpack.c.l.b16 %v10219
      %v10457 = vunpack.c.l.b16 %v10233
      %v10458 = vunpack.c.l.b16 %v10243
      %v10459 = vunpack.c.l.b16 %v10257
      %v10460 = vunpack.c.l.b16 %v10267
      %v10461 = vunpack.c.l.b16 %v10281
      %v10462 = vunpack.c.l.b16 %v10291
      %v10463 = vunpack.c.l.b16 %v10305
      %v10464 = vunpack.c.l.b16 %v10315
      %v10465 = vunpack.c.l.b16 %v10329
      %v10466 = vunpack.c.l.b16 %v10339
      %v10467 = vunpack.c.l.b16 %v10353
      %v10468 = vunpack.c.l.b16 %v10363
      %v10469 = vunpack.c.l.b16 %v10377
      %v10470 = vunpack.c.l.b16 %v10387
      %v10471 = vunpack.c.l.b16 %v10401
      %v10472 = vunpack.c.l.b16 %v10411
      %v10473 = vpack.c.b16 %v10442, %v10441
      %v10474 = vpack.c.b16 %v10444, %v10443
      %v10475 = vpack.c.b16 %v10446, %v10445
      %v10476 = vpack.c.b16 %v10448, %v10447
      %v10477 = vpack.c.b16 %v10450, %v10449
      %v10478 = vpack.c.b16 %v10452, %v10451
      %v10479 = vpack.c.b16 %v10454, %v10453
      %v10480 = vpack.c.b16 %v10456, %v10455
      %v10481 = vpack.c.b16 %v10458, %v10457
      %v10482 = vpack.c.b16 %v10460, %v10459
      %v10483 = vpack.c.b16 %v10462, %v10461
      %v10484 = vpack.c.b16 %v10464, %v10463
      %v10485 = vpack.c.b16 %v10466, %v10465
      %v10486 = vpack.c.b16 %v10468, %v10467
      %v10487 = vpack.c.b16 %v10470, %v10469
      %v10488 = vpack.c.b16 %v10472, %v10471
      %v10490 = vsel %vm8937, %v10437, 0
      %v10493 = vsel %vm8937, %v10438, 0
      %v10496 = vsel %vm8937, %v10439, 0
      %v10499 = vsel %vm8937, %v10440, 0
      %v10502 = vsel %vm8937, %v10473, 0
      %v10505 = vsel %vm8937, %v10474, 0
      %v10508 = vsel %vm8937, %v10475, 0
      %v10511 = vsel %vm8937, %v10476, 0
      %v10514 = vsel %vm8937, %v10477, 0
      %v10517 = vsel %vm8937, %v10478, 0
      %v10520 = vsel %vm8937, %v10479, 0
      %v10523 = vsel %vm8937, %v10480, 0
      %v10526 = vsel %vm8937, %v10481, 0
      %v10529 = vsel %vm8937, %v10482, 0
      %v10532 = vsel %vm8937, %v10483, 0
      %v10535 = vsel %vm8937, %v10484, 0
      %v10538 = vsel %vm8937, %v10485, 0
      %v10541 = vsel %vm8937, %v10486, 0
      %v10544 = vsel %vm8937, %v10487, 0
      %v10547 = vsel %vm8937, %v10488, 0
      %10549 = vmatprep.subr.bf16.mxu0 0
      %10550 = vmatpush1.bf16.xpose.msra.mxu0 %v10523
      %10551 = vmatprep.subr.bf16.mxu0 0
      %10552 = vmatpush1.bf16.xpose.msra.mxu0 %v10520
      %10553 = vmatprep.subr.bf16.mxu0 0
      %10554 = vmatpush1.bf16.xpose.msra.mxu0 %v10517
      %10555 = vmatprep.subr.bf16.mxu0 0
      %10556 = vmatpush1.bf16.xpose.msra.mxu0 %v10514
      %10557 = vmatprep.subr.bf16.mxu0 0
      %10558 = vmatpush1.bf16.xpose.msra.mxu0 %v10511
      %10559 = vmatprep.subr.bf16.mxu0 0
      %10560 = vmatpush1.bf16.xpose.msra.mxu0 %v10508
      %10561 = vmatprep.subr.bf16.mxu0 0
      %10562 = vmatpush1.bf16.xpose.msra.mxu0 %v10505
      %10563 = vmatprep.subr.bf16.mxu0 0
      %10564 = vmatpush1.bf16.xpose.msra.mxu0 %v10502
      %10565 = vmatprep.subr.bf16.mxu0 0
      %10566 = vmatpush2.bf16.xpose.msra.mxu0 %v10547
      %10567 = vmatprep.subr.bf16.mxu0 0
      %10568 = vmatpush2.bf16.xpose.msra.mxu0 %v10544
      %10569 = vmatprep.subr.bf16.mxu0 0
      %10570 = vmatpush2.bf16.xpose.msra.mxu0 %v10541
      %10571 = vmatprep.subr.bf16.mxu0 0
      %10572 = vmatpush2.bf16.xpose.msra.mxu0 %v10538
      %10573 = vmatprep.subr.bf16.mxu0 0
      %10574 = vmatpush2.bf16.xpose.msra.mxu0 %v10535
      %10575 = vmatprep.subr.bf16.mxu0 0
      %10576 = vmatpush2.bf16.xpose.msra.mxu0 %v10532
      %10577 = vmatprep.subr.bf16.mxu0 0
      %10578 = vmatpush2.bf16.xpose.msra.mxu0 %v10529
      %10579 = vmatprep.subr.bf16.mxu0 0
      %10580 = vmatpush2.bf16.xpose.msra.mxu0 %v10526
      %10581 = vmatprep.mubr.bf16.mxu0 0
      %10582 = vmatmul.mubr.bf16.gmra.mxu0 %v10490
      %v10583 = vpop.f32.mrf.mxu0
      %v10584 = vadd.f32 0.0, %v10583
      %v10585 = vpop.f32.mrf.mxu0
      %v10586 = vadd.f32 0.0, %v10585
      %v10587 = vpop.f32.mrf.mxu0
      %v10588 = vadd.f32 0.0, %v10587
      %v10589 = vpop.f32.mrf.mxu0
      %v10590 = vadd.f32 0.0, %v10589
      %10591 = vmatprep.mubr.bf16.mxu0 0
      %10592 = vmatmul.mubr.bf16.gmra.mxu0 %v10493
      %v10593 = vpop.f32.mrf.mxu0
      %v10594 = vadd.f32 0.0, %v10593
      %v10595 = vpop.f32.mrf.mxu0
      %v10596 = vadd.f32 0.0, %v10595
      %v10597 = vpop.f32.mrf.mxu0
      %v10598 = vadd.f32 0.0, %v10597
      %v10599 = vpop.f32.mrf.mxu0
      %v10600 = vadd.f32 0.0, %v10599
      %10601 = vmatprep.mubr.bf16.mxu0 0
      %10602 = vmatmul.mubr.bf16.gmra.mxu0 %v10496
      %v10603 = vpop.f32.mrf.mxu0
      %v10604 = vadd.f32 0.0, %v10603
      %v10605 = vpop.f32.mrf.mxu0
      %v10606 = vadd.f32 0.0, %v10605
      %v10607 = vpop.f32.mrf.mxu0
      %v10608 = vadd.f32 0.0, %v10607
      %v10609 = vpop.f32.mrf.mxu0
      %v10610 = vadd.f32 0.0, %v10609
      %10611 = vmatprep.mubr.bf16.mxu0 0
      %10612 = vmatmul.mubr.bf16.gmra.mxu0 %v10499
      %v10613 = vpop.f32.mrf.mxu0
      %v10614 = vadd.f32 0.0, %v10613
      %v10615 = vpop.f32.mrf.mxu0
      %v10616 = vadd.f32 0.0, %v10615
      %v10617 = vpop.f32.mrf.mxu0
      %v10618 = vadd.f32 0.0, %v10617
      %v10619 = vpop.f32.mrf.mxu0
      %v10620 = vadd.f32 0.0, %v10619
      %10621 = vdwg.mxu0
      %v10622 = vadd.f32 %v9964, %v10584
      %v10623 = vadd.f32 %v9965, %v10586
      %v10624 = vadd.f32 %v9966, %v10588
      %v10625 = vadd.f32 %v9967, %v10590
      %v10626 = vadd.f32 %v9968, %v10594
      %v10627 = vadd.f32 %v9969, %v10596
      %v10628 = vadd.f32 %v9970, %v10598
      %v10629 = vadd.f32 %v9971, %v10600
      %v10630 = vadd.f32 %v9972, %v10604
      %v10631 = vadd.f32 %v9973, %v10606
      %v10632 = vadd.f32 %v9974, %v10608
      %v10633 = vadd.f32 %v9975, %v10610
      %v10634 = vadd.f32 %v9976, %v10614
      %v10635 = vadd.f32 %v9977, %v10616
      %v10636 = vadd.f32 %v9978, %v10618
      %v10637 = vadd.f32 %v9979, %v10620
      %v10638 = vld [vmem:[%s8305] sm:$0xe]
      %v10639 = vld [vmem:[%s8305 + $0xc] sm:$0xe]
      %v10640 = vld [vmem:[%s8305 + $0x18] sm:$0xe]
      %v10641 = vld [vmem:[%s8305 + $0x24] sm:$0xe]
      %v10642 = vld [vmem:[%s8305 + $0x30] sm:$0xe]
      %v10643 = vld [vmem:[%s8305 + $0x3c] sm:$0xe]
      %v10644 = vld [vmem:[%s8305 + $0x48] sm:$0xe]
      %v10645 = vld [vmem:[%s8305 + $0x54] sm:$0xe]
      %v10646 = vld [vmem:[%s8305 + $0x60] sm:$0xe]
      %v10647 = vld [vmem:[%s8305 + $0x6c] sm:$0xe]
      %v10648 = vld [vmem:[%s8305 + $0x78] sm:$0xe]
      %v10649 = vld [vmem:[%s8305 + $0x84] sm:$0xe]
      %v10650 = vld [vmem:[%s8305 + $0x90] sm:$0xe]
      %v10651 = vld [vmem:[%s8305 + $0x9c] sm:$0xe]
      %v10652 = vld [vmem:[%s8305 + $0xa8] sm:$0xe]
      %v10653 = vld [vmem:[%s8305 + $0xb4] sm:$0xe]
      %v10702 = vrot.slane %v10638, 5
      %v10703 = vrot.slane %v10702, 4
      %v10704 = vrot.slane %v9981, 5
      %v10705 = vsel %vm4067, %v10703, %v10704
      %v10706 = vrot.slane %v10704, 4
      %v10707 = vrot.slane %v9982, 5
      %v10708 = vsel %vm4067, %v10706, %v10707
      %v10709 = vrot.slane %v10639, 5
      %v10710 = vrot.slane %v10709, 4
      %v10711 = vrot.slane %v9984, 5
      %v10712 = vsel %vm4067, %v10710, %v10711
      %v10713 = vrot.slane %v10711, 4
      %v10714 = vrot.slane %v9985, 5
      %v10715 = vsel %vm4067, %v10713, %v10714
      %v10716 = vrot.slane %v10640, 5
      %v10717 = vrot.slane %v10716, 4
      %v10718 = vrot.slane %v9987, 5
      %v10719 = vsel %vm4067, %v10717, %v10718
      %v10720 = vrot.slane %v10718, 4
      %v10721 = vrot.slane %v9988, 5
      %v10722 = vsel %vm4067, %v10720, %v10721
      %v10723 = vrot.slane %v10641, 5
      %v10724 = vrot.slane %v10723, 4
      %v10725 = vrot.slane %v9990, 5
      %v10726 = vsel %vm4067, %v10724, %v10725
      %v10727 = vrot.slane %v10725, 4
      %v10728 = vrot.slane %v9991, 5
      %v10729 = vsel %vm4067, %v10727, %v10728
      %v10730 = vrot.slane %v10642, 5
      %v10731 = vrot.slane %v10730, 4
      %v10732 = vrot.slane %v9993, 5
      %v10733 = vsel %vm4067, %v10731, %v10732
      %v10734 = vrot.slane %v10732, 4
      %v10735 = vrot.slane %v9994, 5
      %v10736 = vsel %vm4067, %v10734, %v10735
      %v10737 = vrot.slane %v10643, 5
      %v10738 = vrot.slane %v10737, 4
      %v10739 = vrot.slane %v9996, 5
      %v10740 = vsel %vm4067, %v10738, %v10739
      %v10741 = vrot.slane %v10739, 4
      %v10742 = vrot.slane %v9997, 5
      %v10743 = vsel %vm4067, %v10741, %v10742
      %v10744 = vrot.slane %v10644, 5
      %v10745 = vrot.slane %v10744, 4
      %v10746 = vrot.slane %v9999, 5
      %v10747 = vsel %vm4067, %v10745, %v10746
      %v10748 = vrot.slane %v10746, 4
      %v10749 = vrot.slane %v10000, 5
      %v10750 = vsel %vm4067, %v10748, %v10749
      %v10751 = vrot.slane %v10645, 5
      %v10752 = vrot.slane %v10751, 4
      %v10753 = vrot.slane %v10002, 5
      %v10754 = vsel %vm4067, %v10752, %v10753
      %v10755 = vrot.slane %v10753, 4
      %v10756 = vrot.slane %v10003, 5
      %v10757 = vsel %vm4067, %v10755, %v10756
      %v10758 = vrot.slane %v10646, 5
      %v10759 = vrot.slane %v10758, 4
      %v10760 = vrot.slane %v10005, 5
      %v10761 = vsel %vm4067, %v10759, %v10760
      %v10762 = vrot.slane %v10760, 4
      %v10763 = vrot.slane %v10006, 5
      %v10764 = vsel %vm4067, %v10762, %v10763
      %v10765 = vrot.slane %v10647, 5
      %v10766 = vrot.slane %v10765, 4
      %v10767 = vrot.slane %v10008, 5
      %v10768 = vsel %vm4067, %v10766, %v10767
      %v10769 = vrot.slane %v10767, 4
      %v10770 = vrot.slane %v10009, 5
      %v10771 = vsel %vm4067, %v10769, %v10770
      %v10772 = vrot.slane %v10648, 5
      %v10773 = vrot.slane %v10772, 4
      %v10774 = vrot.slane %v10011, 5
      %v10775 = vsel %vm4067, %v10773, %v10774
      %v10776 = vrot.slane %v10774, 4
      %v10777 = vrot.slane %v10012, 5
      %v10778 = vsel %vm4067, %v10776, %v10777
      %v10779 = vrot.slane %v10649, 5
      %v10780 = vrot.slane %v10779, 4
      %v10781 = vrot.slane %v10014, 5
      %v10782 = vsel %vm4067, %v10780, %v10781
      %v10783 = vrot.slane %v10781, 4
      %v10784 = vrot.slane %v10015, 5
      %v10785 = vsel %vm4067, %v10783, %v10784
      %v10786 = vrot.slane %v10650, 5
      %v10787 = vrot.slane %v10786, 4
      %v10788 = vrot.slane %v10017, 5
      %v10789 = vsel %vm4067, %v10787, %v10788
      %v10790 = vrot.slane %v10788, 4
      %v10791 = vrot.slane %v10018, 5
      %v10792 = vsel %vm4067, %v10790, %v10791
      %v10793 = vrot.slane %v10651, 5
      %v10794 = vrot.slane %v10793, 4
      %v10795 = vrot.slane %v10020, 5
      %v10796 = vsel %vm4067, %v10794, %v10795
      %v10797 = vrot.slane %v10795, 4
      %v10798 = vrot.slane %v10021, 5
      %v10799 = vsel %vm4067, %v10797, %v10798
      %v10800 = vrot.slane %v10652, 5
      %v10801 = vrot.slane %v10800, 4
      %v10802 = vrot.slane %v10023, 5
      %v10803 = vsel %vm4067, %v10801, %v10802
      %v10804 = vrot.slane %v10802, 4
      %v10805 = vrot.slane %v10024, 5
      %v10806 = vsel %vm4067, %v10804, %v10805
      %v10807 = vrot.slane %v10653, 5
      %v10808 = vrot.slane %v10807, 4
      %v10809 = vrot.slane %v10026, 5
      %v10810 = vsel %vm4067, %v10808, %v10809
      %v10811 = vrot.slane %v10809, 4
      %v10812 = vrot.slane %v10027, 5
      %v10813 = vsel %vm4067, %v10811, %v10812
      %s10814 = scalar_lea.vmem %s6, 160
      %v10815 = vld [vmem:[%s10814] sm:$0xf]
      %v10816 = vld [vmem:[%s10814 + $0x4] sm:$0xf]
      %v10817 = vld [vmem:[%s10814 + $0x8] sm:$0xf]
      %v10818 = vld [vmem:[%s10814 + $0xc] sm:$0xf]
      %v10819 = vld [vmem:[%s10814 + $0x10] sm:$0xf]
      %v10820 = vld [vmem:[%s10814 + $0x14] sm:$0xf]
      %v10821 = vld [vmem:[%s10814 + $0x18] sm:$0xf]
      %v10822 = vld [vmem:[%s10814 + $0x1c] sm:$0xf]
      %v10831 = vunpack.c.l.b16 %v10815
      %v10832 = vunpack.c.l.b16 %v10816
      %v10833 = vunpack.c.l.b16 %v10817
      %v10834 = vunpack.c.l.b16 %v10818
      %v10835 = vunpack.c.l.b16 %v10819
      %v10836 = vunpack.c.l.b16 %v10820
      %v10837 = vunpack.c.l.b16 %v10821
      %v10838 = vunpack.c.l.b16 %v10822
      %v10839 = vpack.c.b16 %v10832, %v10831
      %v10840 = vpack.c.b16 %v10834, %v10833
      %v10841 = vpack.c.b16 %v10836, %v10835
      %v10842 = vpack.c.b16 %v10838, %v10837
      %v10843 = vunpack.c.l.b16 %v10705
      %v10844 = vunpack.c.l.b16 %v10708
      %v10845 = vunpack.c.l.b16 %v10712
      %v10846 = vunpack.c.l.b16 %v10715
      %v10847 = vunpack.c.l.b16 %v10719
      %v10848 = vunpack.c.l.b16 %v10722
      %v10849 = vunpack.c.l.b16 %v10726
      %v10850 = vunpack.c.l.b16 %v10729
      %v10851 = vunpack.c.l.b16 %v10733
      %v10852 = vunpack.c.l.b16 %v10736
      %v10853 = vunpack.c.l.b16 %v10740
      %v10854 = vunpack.c.l.b16 %v10743
      %v10855 = vunpack.c.l.b16 %v10747
      %v10856 = vunpack.c.l.b16 %v10750
      %v10857 = vunpack.c.l.b16 %v10754
      %v10858 = vunpack.c.l.b16 %v10757
      %v10859 = vunpack.c.l.b16 %v10761
      %v10860 = vunpack.c.l.b16 %v10764
      %v10861 = vunpack.c.l.b16 %v10768
      %v10862 = vunpack.c.l.b16 %v10771
      %v10863 = vunpack.c.l.b16 %v10775
      %v10864 = vunpack.c.l.b16 %v10778
      %v10865 = vunpack.c.l.b16 %v10782
      %v10866 = vunpack.c.l.b16 %v10785
      %v10867 = vunpack.c.l.b16 %v10789
      %v10868 = vunpack.c.l.b16 %v10792
      %v10869 = vunpack.c.l.b16 %v10796
      %v10870 = vunpack.c.l.b16 %v10799
      %v10871 = vunpack.c.l.b16 %v10803
      %v10872 = vunpack.c.l.b16 %v10806
      %v10873 = vunpack.c.l.b16 %v10810
      %v10874 = vunpack.c.l.b16 %v10813
      %v10875 = vpack.c.b16 %v10844, %v10843
      %v10876 = vpack.c.b16 %v10846, %v10845
      %v10877 = vpack.c.b16 %v10848, %v10847
      %v10878 = vpack.c.b16 %v10850, %v10849
      %v10879 = vpack.c.b16 %v10852, %v10851
      %v10880 = vpack.c.b16 %v10854, %v10853
      %v10881 = vpack.c.b16 %v10856, %v10855
      %v10882 = vpack.c.b16 %v10858, %v10857
      %v10883 = vpack.c.b16 %v10860, %v10859
      %v10884 = vpack.c.b16 %v10862, %v10861
      %v10885 = vpack.c.b16 %v10864, %v10863
      %v10886 = vpack.c.b16 %v10866, %v10865
      %v10887 = vpack.c.b16 %v10868, %v10867
      %v10888 = vpack.c.b16 %v10870, %v10869
      %v10889 = vpack.c.b16 %v10872, %v10871
      %v10890 = vpack.c.b16 %v10874, %v10873
      %v10892 = vsel %vm8937, %v10839, 0
      %v10895 = vsel %vm8937, %v10840, 0
      %v10898 = vsel %vm8937, %v10841, 0
      %v10901 = vsel %vm8937, %v10842, 0
      %v10904 = vsel %vm8937, %v10875, 0
      %v10907 = vsel %vm8937, %v10876, 0
      %v10910 = vsel %vm8937, %v10877, 0
      %v10913 = vsel %vm8937, %v10878, 0
      %v10916 = vsel %vm8937, %v10879, 0
      %v10919 = vsel %vm8937, %v10880, 0
      %v10922 = vsel %vm8937, %v10881, 0
      %v10925 = vsel %vm8937, %v10882, 0
      %v10928 = vsel %vm8937, %v10883, 0
      %v10931 = vsel %vm8937, %v10884, 0
      %v10934 = vsel %vm8937, %v10885, 0
      %v10937 = vsel %vm8937, %v10886, 0
      %v10940 = vsel %vm8937, %v10887, 0
      %v10943 = vsel %vm8937, %v10888, 0
      %v10946 = vsel %vm8937, %v10889, 0
      %v10949 = vsel %vm8937, %v10890, 0
      %10951 = vmatprep.subr.bf16.mxu0 0
      %10952 = vmatpush1.bf16.xpose.msra.mxu0 %v10925
      %10953 = vmatprep.subr.bf16.mxu0 0
      %10954 = vmatpush1.bf16.xpose.msra.mxu0 %v10922
      %10955 = vmatprep.subr.bf16.mxu0 0
      %10956 = vmatpush1.bf16.xpose.msra.mxu0 %v10919
      %10957 = vmatprep.subr.bf16.mxu0 0
      %10958 = vmatpush1.bf16.xpose.msra.mxu0 %v10916
      %10959 = vmatprep.subr.bf16.mxu0 0
      %10960 = vmatpush1.bf16.xpose.msra.mxu0 %v10913
      %10961 = vmatprep.subr.bf16.mxu0 0
      %10962 = vmatpush1.bf16.xpose.msra.mxu0 %v10910
      %10963 = vmatprep.subr.bf16.mxu0 0
      %10964 = vmatpush1.bf16.xpose.msra.mxu0 %v10907
      %10965 = vmatprep.subr.bf16.mxu0 0
      %10966 = vmatpush1.bf16.xpose.msra.mxu0 %v10904
      %10967 = vmatprep.subr.bf16.mxu0 0
      %10968 = vmatpush2.bf16.xpose.msra.mxu0 %v10949
      %10969 = vmatprep.subr.bf16.mxu0 0
      %10970 = vmatpush2.bf16.xpose.msra.mxu0 %v10946
      %10971 = vmatprep.subr.bf16.mxu0 0
      %10972 = vmatpush2.bf16.xpose.msra.mxu0 %v10943
      %10973 = vmatprep.subr.bf16.mxu0 0
      %10974 = vmatpush2.bf16.xpose.msra.mxu0 %v10940
      %10975 = vmatprep.subr.bf16.mxu0 0
      %10976 = vmatpush2.bf16.xpose.msra.mxu0 %v10937
      %10977 = vmatprep.subr.bf16.mxu0 0
      %10978 = vmatpush2.bf16.xpose.msra.mxu0 %v10934
      %10979 = vmatprep.subr.bf16.mxu0 0
      %10980 = vmatpush2.bf16.xpose.msra.mxu0 %v10931
      %10981 = vmatprep.subr.bf16.mxu0 0
      %10982 = vmatpush2.bf16.xpose.msra.mxu0 %v10928
      %10983 = vmatprep.mubr.bf16.mxu0 0
      %10984 = vmatmul.mubr.bf16.gmra.mxu0 %v10892
      %v10985 = vpop.f32.mrf.mxu0
      %v10986 = vadd.f32 0.0, %v10985
      %v10987 = vpop.f32.mrf.mxu0
      %v10988 = vadd.f32 0.0, %v10987
      %v10989 = vpop.f32.mrf.mxu0
      %v10990 = vadd.f32 0.0, %v10989
      %v10991 = vpop.f32.mrf.mxu0
      %v10992 = vadd.f32 0.0, %v10991
      %10993 = vmatprep.mubr.bf16.mxu0 0
      %10994 = vmatmul.mubr.bf16.gmra.mxu0 %v10895
      %v10995 = vpop.f32.mrf.mxu0
      %v10996 = vadd.f32 0.0, %v10995
      %v10997 = vpop.f32.mrf.mxu0
      %v10998 = vadd.f32 0.0, %v10997
      %v10999 = vpop.f32.mrf.mxu0
      %v11000 = vadd.f32 0.0, %v10999
      %v11001 = vpop.f32.mrf.mxu0
      %v11002 = vadd.f32 0.0, %v11001
      %11003 = vmatprep.mubr.bf16.mxu0 0
      %11004 = vmatmul.mubr.bf16.gmra.mxu0 %v10898
      %v11005 = vpop.f32.mrf.mxu0
      %v11006 = vadd.f32 0.0, %v11005
      %v11007 = vpop.f32.mrf.mxu0
      %v11008 = vadd.f32 0.0, %v11007
      %v11009 = vpop.f32.mrf.mxu0
      %v11010 = vadd.f32 0.0, %v11009
      %v11011 = vpop.f32.mrf.mxu0
      %v11012 = vadd.f32 0.0, %v11011
      %11013 = vmatprep.mubr.bf16.mxu0 0
      %11014 = vmatmul.mubr.bf16.gmra.mxu0 %v10901
      %v11015 = vpop.f32.mrf.mxu0
      %v11016 = vadd.f32 0.0, %v11015
      %v11017 = vpop.f32.mrf.mxu0
      %v11018 = vadd.f32 0.0, %v11017
      %v11019 = vpop.f32.mrf.mxu0
      %v11020 = vadd.f32 0.0, %v11019
      %v11021 = vpop.f32.mrf.mxu0
      %v11022 = vadd.f32 0.0, %v11021
      %11023 = vdwg.mxu0
      %v11024 = vadd.f32 %v10622, %v10986
      %v11025 = vadd.f32 %v10623, %v10988
      %v11026 = vadd.f32 %v10624, %v10990
      %v11027 = vadd.f32 %v10625, %v10992
      %v11028 = vadd.f32 %v10626, %v10996
      %v11029 = vadd.f32 %v10627, %v10998
      %v11030 = vadd.f32 %v10628, %v11000
      %v11031 = vadd.f32 %v10629, %v11002
      %v11032 = vadd.f32 %v10630, %v11006
      %v11033 = vadd.f32 %v10631, %v11008
      %v11034 = vadd.f32 %v10632, %v11010
      %v11035 = vadd.f32 %v10633, %v11012
      %v11036 = vadd.f32 %v10634, %v11016
      %v11037 = vadd.f32 %v10635, %v11018
      %v11038 = vadd.f32 %v10636, %v11020
      %v11039 = vadd.f32 %v10637, %v11022
      %s11040 = scalar_lea.vmem [#allocation3], 24
      %v11041 = vld [vmem:[%s11040] sm:$0xf]
      %v11042 = vld [vmem:[%s11040 + $0x4] sm:$0xf]
      %v11043 = vld [vmem:[%s11040 + $0xc] sm:$0xf]
      %v11044 = vld [vmem:[%s11040 + $0x10] sm:$0xf]
      %v11045 = vld [vmem:[%s11040 + $0x18] sm:$0xf]
      %v11046 = vld [vmem:[%s11040 + $0x1c] sm:$0xf]
      %v11047 = vld [vmem:[%s11040 + $0x24] sm:$0xf]
      %v11048 = vld [vmem:[%s11040 + $0x28] sm:$0xf]
      %v11049 = vld [vmem:[%s11040 + $0x30] sm:$0xf]
      %v11050 = vld [vmem:[%s11040 + $0x34] sm:$0xf]
      %v11051 = vld [vmem:[%s11040 + $0x3c] sm:$0xf]
      %v11052 = vld [vmem:[%s11040 + $0x40] sm:$0xf]
      %v11053 = vld [vmem:[%s11040 + $0x48] sm:$0xf]
      %v11054 = vld [vmem:[%s11040 + $0x4c] sm:$0xf]
      %v11055 = vld [vmem:[%s11040 + $0x54] sm:$0xf]
      %v11056 = vld [vmem:[%s11040 + $0x58] sm:$0xf]
      %v11057 = vld [vmem:[%s11040 + $0x60] sm:$0xf]
      %v11058 = vld [vmem:[%s11040 + $0x64] sm:$0xf]
      %v11059 = vld [vmem:[%s11040 + $0x6c] sm:$0xf]
      %v11060 = vld [vmem:[%s11040 + $0x70] sm:$0xf]
      %v11061 = vld [vmem:[%s11040 + $0x78] sm:$0xf]
      %v11062 = vld [vmem:[%s11040 + $0x7c] sm:$0xf]
      %v11063 = vld [vmem:[%s11040 + $0x84] sm:$0xf]
      %v11064 = vld [vmem:[%s11040 + $0x88] sm:$0xf]
      %v11065 = vld [vmem:[%s11040 + $0x90] sm:$0xf]
      %v11066 = vld [vmem:[%s11040 + $0x94] sm:$0xf]
      %v11067 = vld [vmem:[%s11040 + $0x9c] sm:$0xf]
      %v11068 = vld [vmem:[%s11040 + $0xa0] sm:$0xf]
      %v11069 = vld [vmem:[%s11040 + $0xa8] sm:$0xf]
      %v11070 = vld [vmem:[%s11040 + $0xac] sm:$0xf]
      %v11071 = vld [vmem:[%s11040 + $0xb4] sm:$0xf]
      %v11072 = vld [vmem:[%s11040 + $0xb8] sm:$0xf]
      %s11073 = scalar_lea.vmem %s6, 192
      %v11074 = vld [vmem:[%s11073] sm:$0xf]
      %v11075 = vld [vmem:[%s11073 + $0x4] sm:$0xf]
      %v11076 = vld [vmem:[%s11073 + $0x8] sm:$0xf]
      %v11077 = vld [vmem:[%s11073 + $0xc] sm:$0xf]
      %v11078 = vld [vmem:[%s11073 + $0x10] sm:$0xf]
      %v11079 = vld [vmem:[%s11073 + $0x14] sm:$0xf]
      %v11080 = vld [vmem:[%s11073 + $0x18] sm:$0xf]
      %v11081 = vld [vmem:[%s11073 + $0x1c] sm:$0xf]
      %v11090 = vunpack.c.l.b16 %v11074
      %v11091 = vunpack.c.l.b16 %v11075
      %v11092 = vunpack.c.l.b16 %v11076
      %v11093 = vunpack.c.l.b16 %v11077
      %v11094 = vunpack.c.l.b16 %v11078
      %v11095 = vunpack.c.l.b16 %v11079
      %v11096 = vunpack.c.l.b16 %v11080
      %v11097 = vunpack.c.l.b16 %v11081
      %v11098 = vpack.c.b16 %v11091, %v11090
      %v11099 = vpack.c.b16 %v11093, %v11092
      %v11100 = vpack.c.b16 %v11095, %v11094
      %v11101 = vpack.c.b16 %v11097, %v11096
      %v11134 = vunpack.c.l.b16 %v11041
      %v11135 = vunpack.c.l.b16 %v11042
      %v11136 = vunpack.c.l.b16 %v11043
      %v11137 = vunpack.c.l.b16 %v11044
      %v11138 = vunpack.c.l.b16 %v11045
      %v11139 = vunpack.c.l.b16 %v11046
      %v11140 = vunpack.c.l.b16 %v11047
      %v11141 = vunpack.c.l.b16 %v11048
      %v11142 = vunpack.c.l.b16 %v11049
      %v11143 = vunpack.c.l.b16 %v11050
      %v11144 = vunpack.c.l.b16 %v11051
      %v11145 = vunpack.c.l.b16 %v11052
      %v11146 = vunpack.c.l.b16 %v11053
      %v11147 = vunpack.c.l.b16 %v11054
      %v11148 = vunpack.c.l.b16 %v11055
      %v11149 = vunpack.c.l.b16 %v11056
      %v11150 = vunpack.c.l.b16 %v11057
      %v11151 = vunpack.c.l.b16 %v11058
      %v11152 = vunpack.c.l.b16 %v11059
      %v11153 = vunpack.c.l.b16 %v11060
      %v11154 = vunpack.c.l.b16 %v11061
      %v11155 = vunpack.c.l.b16 %v11062
      %v11156 = vunpack.c.l.b16 %v11063
      %v11157 = vunpack.c.l.b16 %v11064
      %v11158 = vunpack.c.l.b16 %v11065
      %v11159 = vunpack.c.l.b16 %v11066
      %v11160 = vunpack.c.l.b16 %v11067
      %v11161 = vunpack.c.l.b16 %v11068
      %v11162 = vunpack.c.l.b16 %v11069
      %v11163 = vunpack.c.l.b16 %v11070
      %v11164 = vunpack.c.l.b16 %v11071
      %v11165 = vunpack.c.l.b16 %v11072
      %v11166 = vpack.c.b16 %v11135, %v11134
      %v11167 = vpack.c.b16 %v11137, %v11136
      %v11168 = vpack.c.b16 %v11139, %v11138
      %v11169 = vpack.c.b16 %v11141, %v11140
      %v11170 = vpack.c.b16 %v11143, %v11142
      %v11171 = vpack.c.b16 %v11145, %v11144
      %v11172 = vpack.c.b16 %v11147, %v11146
      %v11173 = vpack.c.b16 %v11149, %v11148
      %v11174 = vpack.c.b16 %v11151, %v11150
      %v11175 = vpack.c.b16 %v11153, %v11152
      %v11176 = vpack.c.b16 %v11155, %v11154
      %v11177 = vpack.c.b16 %v11157, %v11156
      %v11178 = vpack.c.b16 %v11159, %v11158
      %v11179 = vpack.c.b16 %v11161, %v11160
      %v11180 = vpack.c.b16 %v11163, %v11162
      %v11181 = vpack.c.b16 %v11165, %v11164
      %v11183 = vsel %vm8937, %v11098, 0
      %v11186 = vsel %vm8937, %v11099, 0
      %v11189 = vsel %vm8937, %v11100, 0
      %v11192 = vsel %vm8937, %v11101, 0
      %v11195 = vsel %vm8937, %v11166, 0
      %v11198 = vsel %vm8937, %v11167, 0
      %v11201 = vsel %vm8937, %v11168, 0
      %v11204 = vsel %vm8937, %v11169, 0
      %v11207 = vsel %vm8937, %v11170, 0
      %v11210 = vsel %vm8937, %v11171, 0
      %v11213 = vsel %vm8937, %v11172, 0
      %v11216 = vsel %vm8937, %v11173, 0
      %v11219 = vsel %vm8937, %v11174, 0
      %v11222 = vsel %vm8937, %v11175, 0
      %v11225 = vsel %vm8937, %v11176, 0
      %v11228 = vsel %vm8937, %v11177, 0
      %v11231 = vsel %vm8937, %v11178, 0
      %v11234 = vsel %vm8937, %v11179, 0
      %v11237 = vsel %vm8937, %v11180, 0
      %v11240 = vsel %vm8937, %v11181, 0
      %11242 = vmatprep.subr.bf16.mxu0 0
      %11243 = vmatpush1.bf16.xpose.msra.mxu0 %v11216
      %11244 = vmatprep.subr.bf16.mxu0 0
      %11245 = vmatpush1.bf16.xpose.msra.mxu0 %v11213
      %11246 = vmatprep.subr.bf16.mxu0 0
      %11247 = vmatpush1.bf16.xpose.msra.mxu0 %v11210
      %11248 = vmatprep.subr.bf16.mxu0 0
      %11249 = vmatpush1.bf16.xpose.msra.mxu0 %v11207
      %11250 = vmatprep.subr.bf16.mxu0 0
      %11251 = vmatpush1.bf16.xpose.msra.mxu0 %v11204
      %11252 = vmatprep.subr.bf16.mxu0 0
      %11253 = vmatpush1.bf16.xpose.msra.mxu0 %v11201
      %11254 = vmatprep.subr.bf16.mxu0 0
      %11255 = vmatpush1.bf16.xpose.msra.mxu0 %v11198
      %11256 = vmatprep.subr.bf16.mxu0 0
      %11257 = vmatpush1.bf16.xpose.msra.mxu0 %v11195
      %11258 = vmatprep.subr.bf16.mxu0 0
      %11259 = vmatpush2.bf16.xpose.msra.mxu0 %v11240
      %11260 = vmatprep.subr.bf16.mxu0 0
      %11261 = vmatpush2.bf16.xpose.msra.mxu0 %v11237
      %11262 = vmatprep.subr.bf16.mxu0 0
      %11263 = vmatpush2.bf16.xpose.msra.mxu0 %v11234
      %11264 = vmatprep.subr.bf16.mxu0 0
      %11265 = vmatpush2.bf16.xpose.msra.mxu0 %v11231
      %11266 = vmatprep.subr.bf16.mxu0 0
      %11267 = vmatpush2.bf16.xpose.msra.mxu0 %v11228
      %11268 = vmatprep.subr.bf16.mxu0 0
      %11269 = vmatpush2.bf16.xpose.msra.mxu0 %v11225
      %11270 = vmatprep.subr.bf16.mxu0 0
      %11271 = vmatpush2.bf16.xpose.msra.mxu0 %v11222
      %11272 = vmatprep.subr.bf16.mxu0 0
      %11273 = vmatpush2.bf16.xpose.msra.mxu0 %v11219
      %11274 = vmatprep.mubr.bf16.mxu0 0
      %11275 = vmatmul.mubr.bf16.gmra.mxu0 %v11183
      %v11276 = vpop.f32.mrf.mxu0
      %v11277 = vadd.f32 0.0, %v11276
      %v11278 = vpop.f32.mrf.mxu0
      %v11279 = vadd.f32 0.0, %v11278
      %v11280 = vpop.f32.mrf.mxu0
      %v11281 = vadd.f32 0.0, %v11280
      %v11282 = vpop.f32.mrf.mxu0
      %v11283 = vadd.f32 0.0, %v11282
      %11284 = vmatprep.mubr.bf16.mxu0 0
      %11285 = vmatmul.mubr.bf16.gmra.mxu0 %v11186
      %v11286 = vpop.f32.mrf.mxu0
      %v11287 = vadd.f32 0.0, %v11286
      %v11288 = vpop.f32.mrf.mxu0
      %v11289 = vadd.f32 0.0, %v11288
      %v11290 = vpop.f32.mrf.mxu0
      %v11291 = vadd.f32 0.0, %v11290
      %v11292 = vpop.f32.mrf.mxu0
      %v11293 = vadd.f32 0.0, %v11292
      %11294 = vmatprep.mubr.bf16.mxu0 0
      %11295 = vmatmul.mubr.bf16.gmra.mxu0 %v11189
      %v11296 = vpop.f32.mrf.mxu0
      %v11297 = vadd.f32 0.0, %v11296
      %v11298 = vpop.f32.mrf.mxu0
      %v11299 = vadd.f32 0.0, %v11298
      %v11300 = vpop.f32.mrf.mxu0
      %v11301 = vadd.f32 0.0, %v11300
      %v11302 = vpop.f32.mrf.mxu0
      %v11303 = vadd.f32 0.0, %v11302
      %11304 = vmatprep.mubr.bf16.mxu0 0
      %11305 = vmatmul.mubr.bf16.gmra.mxu0 %v11192
      %v11306 = vpop.f32.mrf.mxu0
      %v11307 = vadd.f32 0.0, %v11306
      %v11308 = vpop.f32.mrf.mxu0
      %v11309 = vadd.f32 0.0, %v11308
      %v11310 = vpop.f32.mrf.mxu0
      %v11311 = vadd.f32 0.0, %v11310
      %v11312 = vpop.f32.mrf.mxu0
      %v11313 = vadd.f32 0.0, %v11312
      %11314 = vdwg.mxu0
      %v11315 = vadd.f32 %v11024, %v11277
      %v11316 = vadd.f32 %v11025, %v11279
      %v11317 = vadd.f32 %v11026, %v11281
      %v11318 = vadd.f32 %v11027, %v11283
      %v11319 = vadd.f32 %v11028, %v11287
      %v11320 = vadd.f32 %v11029, %v11289
      %v11321 = vadd.f32 %v11030, %v11291
      %v11322 = vadd.f32 %v11031, %v11293
      %v11323 = vadd.f32 %v11032, %v11297
      %v11324 = vadd.f32 %v11033, %v11299
      %v11325 = vadd.f32 %v11034, %v11301
      %v11326 = vadd.f32 %v11035, %v11303
      %v11327 = vadd.f32 %v11036, %v11307
      %v11328 = vadd.f32 %v11037, %v11309
      %v11329 = vadd.f32 %v11038, %v11311
      %v11330 = vadd.f32 %v11039, %v11313
      %v11331 = vld [vmem:[%s11040] sm:$0xf]
      %v11332 = vld [vmem:[%s11040 + $0x4] sm:$0xf]
      %v11333 = vld [vmem:[%s11040 + $0x8] sm:$0x1]
      %v11334 = vld [vmem:[%s11040 + $0xc] sm:$0xf]
      %v11335 = vld [vmem:[%s11040 + $0x10] sm:$0xf]
      %v11336 = vld [vmem:[%s11040 + $0x14] sm:$0x1]
      %v11337 = vld [vmem:[%s11040 + $0x18] sm:$0xf]
      %v11338 = vld [vmem:[%s11040 + $0x1c] sm:$0xf]
      %v11339 = vld [vmem:[%s11040 + $0x20] sm:$0x1]
      %v11340 = vld [vmem:[%s11040 + $0x24] sm:$0xf]
      %v11341 = vld [vmem:[%s11040 + $0x28] sm:$0xf]
      %v11342 = vld [vmem:[%s11040 + $0x2c] sm:$0x1]
      %v11343 = vld [vmem:[%s11040 + $0x30] sm:$0xf]
      %v11344 = vld [vmem:[%s11040 + $0x34] sm:$0xf]
      %v11345 = vld [vmem:[%s11040 + $0x38] sm:$0x1]
      %v11346 = vld [vmem:[%s11040 + $0x3c] sm:$0xf]
      %v11347 = vld [vmem:[%s11040 + $0x40] sm:$0xf]
      %v11348 = vld [vmem:[%s11040 + $0x44] sm:$0x1]
      %v11349 = vld [vmem:[%s11040 + $0x48] sm:$0xf]
      %v11350 = vld [vmem:[%s11040 + $0x4c] sm:$0xf]
      %v11351 = vld [vmem:[%s11040 + $0x50] sm:$0x1]
      %v11352 = vld [vmem:[%s11040 + $0x54] sm:$0xf]
      %v11353 = vld [vmem:[%s11040 + $0x58] sm:$0xf]
      %v11354 = vld [vmem:[%s11040 + $0x5c] sm:$0x1]
      %v11355 = vld [vmem:[%s11040 + $0x60] sm:$0xf]
      %v11356 = vld [vmem:[%s11040 + $0x64] sm:$0xf]
      %v11357 = vld [vmem:[%s11040 + $0x68] sm:$0x1]
      %v11358 = vld [vmem:[%s11040 + $0x6c] sm:$0xf]
      %v11359 = vld [vmem:[%s11040 + $0x70] sm:$0xf]
      %v11360 = vld [vmem:[%s11040 + $0x74] sm:$0x1]
      %v11361 = vld [vmem:[%s11040 + $0x78] sm:$0xf]
      %v11362 = vld [vmem:[%s11040 + $0x7c] sm:$0xf]
      %v11363 = vld [vmem:[%s11040 + $0x80] sm:$0x1]
      %v11364 = vld [vmem:[%s11040 + $0x84] sm:$0xf]
      %v11365 = vld [vmem:[%s11040 + $0x88] sm:$0xf]
      %v11366 = vld [vmem:[%s11040 + $0x8c] sm:$0x1]
      %v11367 = vld [vmem:[%s11040 + $0x90] sm:$0xf]
      %v11368 = vld [vmem:[%s11040 + $0x94] sm:$0xf]
      %v11369 = vld [vmem:[%s11040 + $0x98] sm:$0x1]
      %v11370 = vld [vmem:[%s11040 + $0x9c] sm:$0xf]
      %v11371 = vld [vmem:[%s11040 + $0xa0] sm:$0xf]
      %v11372 = vld [vmem:[%s11040 + $0xa4] sm:$0x1]
      %v11373 = vld [vmem:[%s11040 + $0xa8] sm:$0xf]
      %v11374 = vld [vmem:[%s11040 + $0xac] sm:$0xf]
      %v11375 = vld [vmem:[%s11040 + $0xb0] sm:$0x1]
      %v11376 = vld [vmem:[%s11040 + $0xb4] sm:$0xf]
      %v11377 = vld [vmem:[%s11040 + $0xb8] sm:$0xf]
      %v11378 = vld [vmem:[%s11040 + $0xbc] sm:$0x1]
      %v11380 = vshrl.u32 %v11331, 16
      %v11382 = vrot.slane %v11380, 4
      %v11383 = vshll.u32 %v11331, 16
      %v11385 = vrot.slane %v11383, 5
      %v11386 = vor.u32 %v11382, %v11385
      %v11387 = vrot.slane %v11386, 4
      %v11389 = vshll.u32 %v11332, 16
      %v11391 = vrot.slane %v11389, 5
      %v11392 = vsel %vm3037, %v11387, %v11391
      %v11393 = vshrl.u32 %v11332, 16
      %v11395 = vrot.slane %v11393, 4
      %v11396 = vor.u32 %v11395, %v11391
      %v11397 = vrot.slane %v11396, 4
      %v11399 = vshll.u32 %v11333, 16
      %v11401 = vrot.slane %v11399, 5
      %v11402 = vsel %vm3037, %v11397, %v11401
      %v11404 = vshrl.u32 %v11334, 16
      %v11406 = vrot.slane %v11404, 4
      %v11407 = vshll.u32 %v11334, 16
      %v11409 = vrot.slane %v11407, 5
      %v11410 = vor.u32 %v11406, %v11409
      %v11411 = vrot.slane %v11410, 4
      %v11413 = vshll.u32 %v11335, 16
      %v11415 = vrot.slane %v11413, 5
      %v11416 = vsel %vm3037, %v11411, %v11415
      %v11417 = vshrl.u32 %v11335, 16
      %v11419 = vrot.slane %v11417, 4
      %v11420 = vor.u32 %v11419, %v11415
      %v11421 = vrot.slane %v11420, 4
      %v11423 = vshll.u32 %v11336, 16
      %v11425 = vrot.slane %v11423, 5
      %v11426 = vsel %vm3037, %v11421, %v11425
      %v11428 = vshrl.u32 %v11337, 16
      %v11430 = vrot.slane %v11428, 4
      %v11431 = vshll.u32 %v11337, 16
      %v11433 = vrot.slane %v11431, 5
      %v11434 = vor.u32 %v11430, %v11433
      %v11435 = vrot.slane %v11434, 4
      %v11437 = vshll.u32 %v11338, 16
      %v11439 = vrot.slane %v11437, 5
      %v11440 = vsel %vm3037, %v11435, %v11439
      %v11441 = vshrl.u32 %v11338, 16
      %v11443 = vrot.slane %v11441, 4
      %v11444 = vor.u32 %v11443, %v11439
      %v11445 = vrot.slane %v11444, 4
      %v11447 = vshll.u32 %v11339, 16
      %v11449 = vrot.slane %v11447, 5
      %v11450 = vsel %vm3037, %v11445, %v11449
      %v11452 = vshrl.u32 %v11340, 16
      %v11454 = vrot.slane %v11452, 4
      %v11455 = vshll.u32 %v11340, 16
      %v11457 = vrot.slane %v11455, 5
      %v11458 = vor.u32 %v11454, %v11457
      %v11459 = vrot.slane %v11458, 4
      %v11461 = vshll.u32 %v11341, 16
      %v11463 = vrot.slane %v11461, 5
      %v11464 = vsel %vm3037, %v11459, %v11463
      %v11465 = vshrl.u32 %v11341, 16
      %v11467 = vrot.slane %v11465, 4
      %v11468 = vor.u32 %v11467, %v11463
      %v11469 = vrot.slane %v11468, 4
      %v11471 = vshll.u32 %v11342, 16
      %v11473 = vrot.slane %v11471, 5
      %v11474 = vsel %vm3037, %v11469, %v11473
      %v11476 = vshrl.u32 %v11343, 16
      %v11478 = vrot.slane %v11476, 4
      %v11479 = vshll.u32 %v11343, 16
      %v11481 = vrot.slane %v11479, 5
      %v11482 = vor.u32 %v11478, %v11481
      %v11483 = vrot.slane %v11482, 4
      %v11485 = vshll.u32 %v11344, 16
      %v11487 = vrot.slane %v11485, 5
      %v11488 = vsel %vm3037, %v11483, %v11487
      %v11489 = vshrl.u32 %v11344, 16
      %v11491 = vrot.slane %v11489, 4
      %v11492 = vor.u32 %v11491, %v11487
      %v11493 = vrot.slane %v11492, 4
      %v11495 = vshll.u32 %v11345, 16
      %v11497 = vrot.slane %v11495, 5
      %v11498 = vsel %vm3037, %v11493, %v11497
      %v11500 = vshrl.u32 %v11346, 16
      %v11502 = vrot.slane %v11500, 4
      %v11503 = vshll.u32 %v11346, 16
      %v11505 = vrot.slane %v11503, 5
      %v11506 = vor.u32 %v11502, %v11505
      %v11507 = vrot.slane %v11506, 4
      %v11509 = vshll.u32 %v11347, 16
      %v11511 = vrot.slane %v11509, 5
      %v11512 = vsel %vm3037, %v11507, %v11511
      %v11513 = vshrl.u32 %v11347, 16
      %v11515 = vrot.slane %v11513, 4
      %v11516 = vor.u32 %v11515, %v11511
      %v11517 = vrot.slane %v11516, 4
      %v11519 = vshll.u32 %v11348, 16
      %v11521 = vrot.slane %v11519, 5
      %v11522 = vsel %vm3037, %v11517, %v11521
      %v11524 = vshrl.u32 %v11349, 16
      %v11526 = vrot.slane %v11524, 4
      %v11527 = vshll.u32 %v11349, 16
      %v11529 = vrot.slane %v11527, 5
      %v11530 = vor.u32 %v11526, %v11529
      %v11531 = vrot.slane %v11530, 4
      %v11533 = vshll.u32 %v11350, 16
      %v11535 = vrot.slane %v11533, 5
      %v11536 = vsel %vm3037, %v11531, %v11535
      %v11537 = vshrl.u32 %v11350, 16
      %v11539 = vrot.slane %v11537, 4
      %v11540 = vor.u32 %v11539, %v11535
      %v11541 = vrot.slane %v11540, 4
      %v11543 = vshll.u32 %v11351, 16
      %v11545 = vrot.slane %v11543, 5
      %v11546 = vsel %vm3037, %v11541, %v11545
      %v11548 = vshrl.u32 %v11352, 16
      %v11550 = vrot.slane %v11548, 4
      %v11551 = vshll.u32 %v11352, 16
      %v11553 = vrot.slane %v11551, 5
      %v11554 = vor.u32 %v11550, %v11553
      %v11555 = vrot.slane %v11554, 4
      %v11557 = vshll.u32 %v11353, 16
      %v11559 = vrot.slane %v11557, 5
      %v11560 = vsel %vm3037, %v11555, %v11559
      %v11561 = vshrl.u32 %v11353, 16
      %v11563 = vrot.slane %v11561, 4
      %v11564 = vor.u32 %v11563, %v11559
      %v11565 = vrot.slane %v11564, 4
      %v11567 = vshll.u32 %v11354, 16
      %v11569 = vrot.slane %v11567, 5
      %v11570 = vsel %vm3037, %v11565, %v11569
      %v11572 = vshrl.u32 %v11355, 16
      %v11574 = vrot.slane %v11572, 4
      %v11575 = vshll.u32 %v11355, 16
      %v11577 = vrot.slane %v11575, 5
      %v11578 = vor.u32 %v11574, %v11577
      %v11579 = vrot.slane %v11578, 4
      %v11581 = vshll.u32 %v11356, 16
      %v11583 = vrot.slane %v11581, 5
      %v11584 = vsel %vm3037, %v11579, %v11583
      %v11585 = vshrl.u32 %v11356, 16
      %v11587 = vrot.slane %v11585, 4
      %v11588 = vor.u32 %v11587, %v11583
      %v11589 = vrot.slane %v11588, 4
      %v11591 = vshll.u32 %v11357, 16
      %v11593 = vrot.slane %v11591, 5
      %v11594 = vsel %vm3037, %v11589, %v11593
      %v11596 = vshrl.u32 %v11358, 16
      %v11598 = vrot.slane %v11596, 4
      %v11599 = vshll.u32 %v11358, 16
      %v11601 = vrot.slane %v11599, 5
      %v11602 = vor.u32 %v11598, %v11601
      %v11603 = vrot.slane %v11602, 4
      %v11605 = vshll.u32 %v11359, 16
      %v11607 = vrot.slane %v11605, 5
      %v11608 = vsel %vm3037, %v11603, %v11607
      %v11609 = vshrl.u32 %v11359, 16
      %v11611 = vrot.slane %v11609, 4
      %v11612 = vor.u32 %v11611, %v11607
      %v11613 = vrot.slane %v11612, 4
      %v11615 = vshll.u32 %v11360, 16
      %v11617 = vrot.slane %v11615, 5
      %v11618 = vsel %vm3037, %v11613, %v11617
      %v11620 = vshrl.u32 %v11361, 16
      %v11622 = vrot.slane %v11620, 4
      %v11623 = vshll.u32 %v11361, 16
      %v11625 = vrot.slane %v11623, 5
      %v11626 = vor.u32 %v11622, %v11625
      %v11627 = vrot.slane %v11626, 4
      %v11629 = vshll.u32 %v11362, 16
      %v11631 = vrot.slane %v11629, 5
      %v11632 = vsel %vm3037, %v11627, %v11631
      %v11633 = vshrl.u32 %v11362, 16
      %v11635 = vrot.slane %v11633, 4
      %v11636 = vor.u32 %v11635, %v11631
      %v11637 = vrot.slane %v11636, 4
      %v11639 = vshll.u32 %v11363, 16
      %v11641 = vrot.slane %v11639, 5
      %v11642 = vsel %vm3037, %v11637, %v11641
      %v11644 = vshrl.u32 %v11364, 16
      %v11646 = vrot.slane %v11644, 4
      %v11647 = vshll.u32 %v11364, 16
      %v11649 = vrot.slane %v11647, 5
      %v11650 = vor.u32 %v11646, %v11649
      %v11651 = vrot.slane %v11650, 4
      %v11653 = vshll.u32 %v11365, 16
      %v11655 = vrot.slane %v11653, 5
      %v11656 = vsel %vm3037, %v11651, %v11655
      %v11657 = vshrl.u32 %v11365, 16
      %v11659 = vrot.slane %v11657, 4
      %v11660 = vor.u32 %v11659, %v11655
      %v11661 = vrot.slane %v11660, 4
      %v11663 = vshll.u32 %v11366, 16
      %v11665 = vrot.slane %v11663, 5
      %v11666 = vsel %vm3037, %v11661, %v11665
      %v11668 = vshrl.u32 %v11367, 16
      %v11670 = vrot.slane %v11668, 4
      %v11671 = vshll.u32 %v11367, 16
      %v11673 = vrot.slane %v11671, 5
      %v11674 = vor.u32 %v11670, %v11673
      %v11675 = vrot.slane %v11674, 4
      %v11677 = vshll.u32 %v11368, 16
      %v11679 = vrot.slane %v11677, 5
      %v11680 = vsel %vm3037, %v11675, %v11679
      %v11681 = vshrl.u32 %v11368, 16
      %v11683 = vrot.slane %v11681, 4
      %v11684 = vor.u32 %v11683, %v11679
      %v11685 = vrot.slane %v11684, 4
      %v11687 = vshll.u32 %v11369, 16
      %v11689 = vrot.slane %v11687, 5
      %v11690 = vsel %vm3037, %v11685, %v11689
      %v11692 = vshrl.u32 %v11370, 16
      %v11694 = vrot.slane %v11692, 4
      %v11695 = vshll.u32 %v11370, 16
      %v11697 = vrot.slane %v11695, 5
      %v11698 = vor.u32 %v11694, %v11697
      %v11699 = vrot.slane %v11698, 4
      %v11701 = vshll.u32 %v11371, 16
      %v11703 = vrot.slane %v11701, 5
      %v11704 = vsel %vm3037, %v11699, %v11703
      %v11705 = vshrl.u32 %v11371, 16
      %v11707 = vrot.slane %v11705, 4
      %v11708 = vor.u32 %v11707, %v11703
      %v11709 = vrot.slane %v11708, 4
      %v11711 = vshll.u32 %v11372, 16
      %v11713 = vrot.slane %v11711, 5
      %v11714 = vsel %vm3037, %v11709, %v11713
      %v11716 = vshrl.u32 %v11373, 16
      %v11718 = vrot.slane %v11716, 4
      %v11719 = vshll.u32 %v11373, 16
      %v11721 = vrot.slane %v11719, 5
      %v11722 = vor.u32 %v11718, %v11721
      %v11723 = vrot.slane %v11722, 4
      %v11725 = vshll.u32 %v11374, 16
      %v11727 = vrot.slane %v11725, 5
      %v11728 = vsel %vm3037, %v11723, %v11727
      %v11729 = vshrl.u32 %v11374, 16
      %v11731 = vrot.slane %v11729, 4
      %v11732 = vor.u32 %v11731, %v11727
      %v11733 = vrot.slane %v11732, 4
      %v11735 = vshll.u32 %v11375, 16
      %v11737 = vrot.slane %v11735, 5
      %v11738 = vsel %vm3037, %v11733, %v11737
      %v11740 = vshrl.u32 %v11376, 16
      %v11742 = vrot.slane %v11740, 4
      %v11743 = vshll.u32 %v11376, 16
      %v11745 = vrot.slane %v11743, 5
      %v11746 = vor.u32 %v11742, %v11745
      %v11747 = vrot.slane %v11746, 4
      %v11749 = vshll.u32 %v11377, 16
      %v11751 = vrot.slane %v11749, 5
      %v11752 = vsel %vm3037, %v11747, %v11751
      %v11753 = vshrl.u32 %v11377, 16
      %v11755 = vrot.slane %v11753, 4
      %v11756 = vor.u32 %v11755, %v11751
      %v11757 = vrot.slane %v11756, 4
      %v11759 = vshll.u32 %v11378, 16
      %v11761 = vrot.slane %v11759, 5
      %v11762 = vsel %vm3037, %v11757, %v11761
      %s11763 = scalar_lea.vmem %s6, 224
      %v11764 = vld [vmem:[%s11763] sm:$0xf]
      %v11765 = vld [vmem:[%s11763 + $0x4] sm:$0xf]
      %v11766 = vld [vmem:[%s11763 + $0x8] sm:$0xf]
      %v11767 = vld [vmem:[%s11763 + $0xc] sm:$0xf]
      %v11768 = vld [vmem:[%s11763 + $0x10] sm:$0xf]
      %v11769 = vld [vmem:[%s11763 + $0x14] sm:$0xf]
      %v11770 = vld [vmem:[%s11763 + $0x18] sm:$0xf]
      %v11771 = vld [vmem:[%s11763 + $0x1c] sm:$0xf]
      %v11780 = vunpack.c.l.b16 %v11764
      %v11781 = vunpack.c.l.b16 %v11765
      %v11782 = vunpack.c.l.b16 %v11766
      %v11783 = vunpack.c.l.b16 %v11767
      %v11784 = vunpack.c.l.b16 %v11768
      %v11785 = vunpack.c.l.b16 %v11769
      %v11786 = vunpack.c.l.b16 %v11770
      %v11787 = vunpack.c.l.b16 %v11771
      %v11788 = vpack.c.b16 %v11781, %v11780
      %v11789 = vpack.c.b16 %v11783, %v11782
      %v11790 = vpack.c.b16 %v11785, %v11784
      %v11791 = vpack.c.b16 %v11787, %v11786
      %v11792 = vunpack.c.l.b16 %v11392
      %v11793 = vunpack.c.l.b16 %v11402
      %v11794 = vunpack.c.l.b16 %v11416
      %v11795 = vunpack.c.l.b16 %v11426
      %v11796 = vunpack.c.l.b16 %v11440
      %v11797 = vunpack.c.l.b16 %v11450
      %v11798 = vunpack.c.l.b16 %v11464
      %v11799 = vunpack.c.l.b16 %v11474
      %v11800 = vunpack.c.l.b16 %v11488
      %v11801 = vunpack.c.l.b16 %v11498
      %v11802 = vunpack.c.l.b16 %v11512
      %v11803 = vunpack.c.l.b16 %v11522
      %v11804 = vunpack.c.l.b16 %v11536
      %v11805 = vunpack.c.l.b16 %v11546
      %v11806 = vunpack.c.l.b16 %v11560
      %v11807 = vunpack.c.l.b16 %v11570
      %v11808 = vunpack.c.l.b16 %v11584
      %v11809 = vunpack.c.l.b16 %v11594
      %v11810 = vunpack.c.l.b16 %v11608
      %v11811 = vunpack.c.l.b16 %v11618
      %v11812 = vunpack.c.l.b16 %v11632
      %v11813 = vunpack.c.l.b16 %v11642
      %v11814 = vunpack.c.l.b16 %v11656
      %v11815 = vunpack.c.l.b16 %v11666
      %v11816 = vunpack.c.l.b16 %v11680
      %v11817 = vunpack.c.l.b16 %v11690
      %v11818 = vunpack.c.l.b16 %v11704
      %v11819 = vunpack.c.l.b16 %v11714
      %v11820 = vunpack.c.l.b16 %v11728
      %v11821 = vunpack.c.l.b16 %v11738
      %v11822 = vunpack.c.l.b16 %v11752
      %v11823 = vunpack.c.l.b16 %v11762
      %v11824 = vpack.c.b16 %v11793, %v11792
      %v11825 = vpack.c.b16 %v11795, %v11794
      %v11826 = vpack.c.b16 %v11797, %v11796
      %v11827 = vpack.c.b16 %v11799, %v11798
      %v11828 = vpack.c.b16 %v11801, %v11800
      %v11829 = vpack.c.b16 %v11803, %v11802
      %v11830 = vpack.c.b16 %v11805, %v11804
      %v11831 = vpack.c.b16 %v11807, %v11806
      %v11832 = vpack.c.b16 %v11809, %v11808
      %v11833 = vpack.c.b16 %v11811, %v11810
      %v11834 = vpack.c.b16 %v11813, %v11812
      %v11835 = vpack.c.b16 %v11815, %v11814
      %v11836 = vpack.c.b16 %v11817, %v11816
      %v11837 = vpack.c.b16 %v11819, %v11818
      %v11838 = vpack.c.b16 %v11821, %v11820
      %v11839 = vpack.c.b16 %v11823, %v11822
      %v11841 = vsel %vm8937, %v11788, 0
      %v11844 = vsel %vm8937, %v11789, 0
      %v11847 = vsel %vm8937, %v11790, 0
      %v11850 = vsel %vm8937, %v11791, 0
      %v11853 = vsel %vm8937, %v11824, 0
      %v11856 = vsel %vm8937, %v11825, 0
      %v11859 = vsel %vm8937, %v11826, 0
      %v11862 = vsel %vm8937, %v11827, 0
      %v11865 = vsel %vm8937, %v11828, 0
      %v11868 = vsel %vm8937, %v11829, 0
      %v11871 = vsel %vm8937, %v11830, 0
      %v11874 = vsel %vm8937, %v11831, 0
      %v11877 = vsel %vm8937, %v11832, 0
      %v11880 = vsel %vm8937, %v11833, 0
      %v11883 = vsel %vm8937, %v11834, 0
      %v11886 = vsel %vm8937, %v11835, 0
      %v11889 = vsel %vm8937, %v11836, 0
      %v11892 = vsel %vm8937, %v11837, 0
      %v11895 = vsel %vm8937, %v11838, 0
      %v11898 = vsel %vm8937, %v11839, 0
      %11900 = vmatprep.subr.bf16.mxu0 0
      %11901 = vmatpush1.bf16.xpose.msra.mxu0 %v11874
      %11902 = vmatprep.subr.bf16.mxu0 0
      %11903 = vmatpush1.bf16.xpose.msra.mxu0 %v11871
      %11904 = vmatprep.subr.bf16.mxu0 0
      %11905 = vmatpush1.bf16.xpose.msra.mxu0 %v11868
      %11906 = vmatprep.subr.bf16.mxu0 0
      %11907 = vmatpush1.bf16.xpose.msra.mxu0 %v11865
      %11908 = vmatprep.subr.bf16.mxu0 0
      %11909 = vmatpush1.bf16.xpose.msra.mxu0 %v11862
      %11910 = vmatprep.subr.bf16.mxu0 0
      %11911 = vmatpush1.bf16.xpose.msra.mxu0 %v11859
      %11912 = vmatprep.subr.bf16.mxu0 0
      %11913 = vmatpush1.bf16.xpose.msra.mxu0 %v11856
      %11914 = vmatprep.subr.bf16.mxu0 0
      %11915 = vmatpush1.bf16.xpose.msra.mxu0 %v11853
      %11916 = vmatprep.subr.bf16.mxu0 0
      %11917 = vmatpush2.bf16.xpose.msra.mxu0 %v11898
      %11918 = vmatprep.subr.bf16.mxu0 0
      %11919 = vmatpush2.bf16.xpose.msra.mxu0 %v11895
      %11920 = vmatprep.subr.bf16.mxu0 0
      %11921 = vmatpush2.bf16.xpose.msra.mxu0 %v11892
      %11922 = vmatprep.subr.bf16.mxu0 0
      %11923 = vmatpush2.bf16.xpose.msra.mxu0 %v11889
      %11924 = vmatprep.subr.bf16.mxu0 0
      %11925 = vmatpush2.bf16.xpose.msra.mxu0 %v11886
      %11926 = vmatprep.subr.bf16.mxu0 0
      %11927 = vmatpush2.bf16.xpose.msra.mxu0 %v11883
      %11928 = vmatprep.subr.bf16.mxu0 0
      %11929 = vmatpush2.bf16.xpose.msra.mxu0 %v11880
      %11930 = vmatprep.subr.bf16.mxu0 0
      %11931 = vmatpush2.bf16.xpose.msra.mxu0 %v11877
      %11932 = vmatprep.mubr.bf16.mxu0 0
      %11933 = vmatmul.mubr.bf16.gmra.mxu0 %v11841
      %v11934 = vpop.f32.mrf.mxu0
      %v11935 = vadd.f32 0.0, %v11934
      %v11936 = vpop.f32.mrf.mxu0
      %v11937 = vadd.f32 0.0, %v11936
      %v11938 = vpop.f32.mrf.mxu0
      %v11939 = vadd.f32 0.0, %v11938
      %v11940 = vpop.f32.mrf.mxu0
      %v11941 = vadd.f32 0.0, %v11940
      %11942 = vmatprep.mubr.bf16.mxu0 0
      %11943 = vmatmul.mubr.bf16.gmra.mxu0 %v11844
      %v11944 = vpop.f32.mrf.mxu0
      %v11945 = vadd.f32 0.0, %v11944
      %v11946 = vpop.f32.mrf.mxu0
      %v11947 = vadd.f32 0.0, %v11946
      %v11948 = vpop.f32.mrf.mxu0
      %v11949 = vadd.f32 0.0, %v11948
      %v11950 = vpop.f32.mrf.mxu0
      %v11951 = vadd.f32 0.0, %v11950
      %11952 = vmatprep.mubr.bf16.mxu0 0
      %11953 = vmatmul.mubr.bf16.gmra.mxu0 %v11847
      %v11954 = vpop.f32.mrf.mxu0
      %v11955 = vadd.f32 0.0, %v11954
      %v11956 = vpop.f32.mrf.mxu0
      %v11957 = vadd.f32 0.0, %v11956
      %v11958 = vpop.f32.mrf.mxu0
      %v11959 = vadd.f32 0.0, %v11958
      %v11960 = vpop.f32.mrf.mxu0
      %v11961 = vadd.f32 0.0, %v11960
      %11962 = vmatprep.mubr.bf16.mxu0 0
      %11963 = vmatmul.mubr.bf16.gmra.mxu0 %v11850
      %v11964 = vpop.f32.mrf.mxu0
      %v11965 = vadd.f32 0.0, %v11964
      %v11966 = vpop.f32.mrf.mxu0
      %v11967 = vadd.f32 0.0, %v11966
      %v11968 = vpop.f32.mrf.mxu0
      %v11969 = vadd.f32 0.0, %v11968
      %v11970 = vpop.f32.mrf.mxu0
      %v11971 = vadd.f32 0.0, %v11970
      %11972 = vdwg.mxu0
      %v11973 = vadd.f32 %v11315, %v11935
      %v11974 = vadd.f32 %v11316, %v11937
      %v11975 = vadd.f32 %v11317, %v11939
      %v11976 = vadd.f32 %v11318, %v11941
      %v11977 = vadd.f32 %v11319, %v11945
      %v11978 = vadd.f32 %v11320, %v11947
      %v11979 = vadd.f32 %v11321, %v11949
      %v11980 = vadd.f32 %v11322, %v11951
      %v11981 = vadd.f32 %v11323, %v11955
      %v11982 = vadd.f32 %v11324, %v11957
      %v11983 = vadd.f32 %v11325, %v11959
      %v11984 = vadd.f32 %v11326, %v11961
      %v11985 = vadd.f32 %v11327, %v11965
      %v11986 = vadd.f32 %v11328, %v11967
      %v11987 = vadd.f32 %v11329, %v11969
      %v11988 = vadd.f32 %v11330, %v11971
      %v11989 = vld [vmem:[%s11040] sm:$0xe]
      %v11990 = vld [vmem:[%s11040 + $0xc] sm:$0xe]
      %v11991 = vld [vmem:[%s11040 + $0x18] sm:$0xe]
      %v11992 = vld [vmem:[%s11040 + $0x24] sm:$0xe]
      %v11993 = vld [vmem:[%s11040 + $0x30] sm:$0xe]
      %v11994 = vld [vmem:[%s11040 + $0x3c] sm:$0xe]
      %v11995 = vld [vmem:[%s11040 + $0x48] sm:$0xe]
      %v11996 = vld [vmem:[%s11040 + $0x54] sm:$0xe]
      %v11997 = vld [vmem:[%s11040 + $0x60] sm:$0xe]
      %v11998 = vld [vmem:[%s11040 + $0x6c] sm:$0xe]
      %v11999 = vld [vmem:[%s11040 + $0x78] sm:$0xe]
      %v12000 = vld [vmem:[%s11040 + $0x84] sm:$0xe]
      %v12001 = vld [vmem:[%s11040 + $0x90] sm:$0xe]
      %v12002 = vld [vmem:[%s11040 + $0x9c] sm:$0xe]
      %v12003 = vld [vmem:[%s11040 + $0xa8] sm:$0xe]
      %v12004 = vld [vmem:[%s11040 + $0xb4] sm:$0xe]
      %v12053 = vrot.slane %v11989, 5
      %v12054 = vrot.slane %v12053, 4
      %v12055 = vrot.slane %v11332, 5
      %v12056 = vsel %vm4067, %v12054, %v12055
      %v12057 = vrot.slane %v12055, 4
      %v12058 = vrot.slane %v11333, 5
      %v12059 = vsel %vm4067, %v12057, %v12058
      %v12060 = vrot.slane %v11990, 5
      %v12061 = vrot.slane %v12060, 4
      %v12062 = vrot.slane %v11335, 5
      %v12063 = vsel %vm4067, %v12061, %v12062
      %v12064 = vrot.slane %v12062, 4
      %v12065 = vrot.slane %v11336, 5
      %v12066 = vsel %vm4067, %v12064, %v12065
      %v12067 = vrot.slane %v11991, 5
      %v12068 = vrot.slane %v12067, 4
      %v12069 = vrot.slane %v11338, 5
      %v12070 = vsel %vm4067, %v12068, %v12069
      %v12071 = vrot.slane %v12069, 4
      %v12072 = vrot.slane %v11339, 5
      %v12073 = vsel %vm4067, %v12071, %v12072
      %v12074 = vrot.slane %v11992, 5
      %v12075 = vrot.slane %v12074, 4
      %v12076 = vrot.slane %v11341, 5
      %v12077 = vsel %vm4067, %v12075, %v12076
      %v12078 = vrot.slane %v12076, 4
      %v12079 = vrot.slane %v11342, 5
      %v12080 = vsel %vm4067, %v12078, %v12079
      %v12081 = vrot.slane %v11993, 5
      %v12082 = vrot.slane %v12081, 4
      %v12083 = vrot.slane %v11344, 5
      %v12084 = vsel %vm4067, %v12082, %v12083
      %v12085 = vrot.slane %v12083, 4
      %v12086 = vrot.slane %v11345, 5
      %v12087 = vsel %vm4067, %v12085, %v12086
      %v12088 = vrot.slane %v11994, 5
      %v12089 = vrot.slane %v12088, 4
      %v12090 = vrot.slane %v11347, 5
      %v12091 = vsel %vm4067, %v12089, %v12090
      %v12092 = vrot.slane %v12090, 4
      %v12093 = vrot.slane %v11348, 5
      %v12094 = vsel %vm4067, %v12092, %v12093
      %v12095 = vrot.slane %v11995, 5
      %v12096 = vrot.slane %v12095, 4
      %v12097 = vrot.slane %v11350, 5
      %v12098 = vsel %vm4067, %v12096, %v12097
      %v12099 = vrot.slane %v12097, 4
      %v12100 = vrot.slane %v11351, 5
      %v12101 = vsel %vm4067, %v12099, %v12100
      %v12102 = vrot.slane %v11996, 5
      %v12103 = vrot.slane %v12102, 4
      %v12104 = vrot.slane %v11353, 5
      %v12105 = vsel %vm4067, %v12103, %v12104
      %v12106 = vrot.slane %v12104, 4
      %v12107 = vrot.slane %v11354, 5
      %v12108 = vsel %vm4067, %v12106, %v12107
      %v12109 = vrot.slane %v11997, 5
      %v12110 = vrot.slane %v12109, 4
      %v12111 = vrot.slane %v11356, 5
      %v12112 = vsel %vm4067, %v12110, %v12111
      %v12113 = vrot.slane %v12111, 4
      %v12114 = vrot.slane %v11357, 5
      %v12115 = vsel %vm4067, %v12113, %v12114
      %v12116 = vrot.slane %v11998, 5
      %v12117 = vrot.slane %v12116, 4
      %v12118 = vrot.slane %v11359, 5
      %v12119 = vsel %vm4067, %v12117, %v12118
      %v12120 = vrot.slane %v12118, 4
      %v12121 = vrot.slane %v11360, 5
      %v12122 = vsel %vm4067, %v12120, %v12121
      %v12123 = vrot.slane %v11999, 5
      %v12124 = vrot.slane %v12123, 4
      %v12125 = vrot.slane %v11362, 5
      %v12126 = vsel %vm4067, %v12124, %v12125
      %v12127 = vrot.slane %v12125, 4
      %v12128 = vrot.slane %v11363, 5
      %v12129 = vsel %vm4067, %v12127, %v12128
      %v12130 = vrot.slane %v12000, 5
      %v12131 = vrot.slane %v12130, 4
      %v12132 = vrot.slane %v11365, 5
      %v12133 = vsel %vm4067, %v12131, %v12132
      %v12134 = vrot.slane %v12132, 4
      %v12135 = vrot.slane %v11366, 5
      %v12136 = vsel %vm4067, %v12134, %v12135
      %v12137 = vrot.slane %v12001, 5
      %v12138 = vrot.slane %v12137, 4
      %v12139 = vrot.slane %v11368, 5
      %v12140 = vsel %vm4067, %v12138, %v12139
      %v12141 = vrot.slane %v12139, 4
      %v12142 = vrot.slane %v11369, 5
      %v12143 = vsel %vm4067, %v12141, %v12142
      %v12144 = vrot.slane %v12002, 5
      %v12145 = vrot.slane %v12144, 4
      %v12146 = vrot.slane %v11371, 5
      %v12147 = vsel %vm4067, %v12145, %v12146
      %v12148 = vrot.slane %v12146, 4
      %v12149 = vrot.slane %v11372, 5
      %v12150 = vsel %vm4067, %v12148, %v12149
      %v12151 = vrot.slane %v12003, 5
      %v12152 = vrot.slane %v12151, 4
      %v12153 = vrot.slane %v11374, 5
      %v12154 = vsel %vm4067, %v12152, %v12153
      %v12155 = vrot.slane %v12153, 4
      %v12156 = vrot.slane %v11375, 5
      %v12157 = vsel %vm4067, %v12155, %v12156
      %v12158 = vrot.slane %v12004, 5
      %v12159 = vrot.slane %v12158, 4
      %v12160 = vrot.slane %v11377, 5
      %v12161 = vsel %vm4067, %v12159, %v12160
      %v12162 = vrot.slane %v12160, 4
      %v12163 = vrot.slane %v11378, 5
      %v12164 = vsel %vm4067, %v12162, %v12163
      %s12165 = scalar_lea.vmem %s6, 256
      %v12166 = vld [vmem:[%s12165] sm:$0xf]
      %v12167 = vld [vmem:[%s12165 + $0x4] sm:$0xf]
      %v12168 = vld [vmem:[%s12165 + $0x8] sm:$0xf]
      %v12169 = vld [vmem:[%s12165 + $0xc] sm:$0xf]
      %v12170 = vld [vmem:[%s12165 + $0x10] sm:$0xf]
      %v12171 = vld [vmem:[%s12165 + $0x14] sm:$0xf]
      %v12172 = vld [vmem:[%s12165 + $0x18] sm:$0xf]
      %v12173 = vld [vmem:[%s12165 + $0x1c] sm:$0xf]
      %v12182 = vunpack.c.l.b16 %v12166
      %v12183 = vunpack.c.l.b16 %v12167
      %v12184 = vunpack.c.l.b16 %v12168
      %v12185 = vunpack.c.l.b16 %v12169
      %v12186 = vunpack.c.l.b16 %v12170
      %v12187 = vunpack.c.l.b16 %v12171
      %v12188 = vunpack.c.l.b16 %v12172
      %v12189 = vunpack.c.l.b16 %v12173
      %v12190 = vpack.c.b16 %v12183, %v12182
      %v12191 = vpack.c.b16 %v12185, %v12184
      %v12192 = vpack.c.b16 %v12187, %v12186
      %v12193 = vpack.c.b16 %v12189, %v12188
      %v12194 = vunpack.c.l.b16 %v12056
      %v12195 = vunpack.c.l.b16 %v12059
      %v12196 = vunpack.c.l.b16 %v12063
      %v12197 = vunpack.c.l.b16 %v12066
      %v12198 = vunpack.c.l.b16 %v12070
      %v12199 = vunpack.c.l.b16 %v12073
      %v12200 = vunpack.c.l.b16 %v12077
      %v12201 = vunpack.c.l.b16 %v12080
      %v12202 = vunpack.c.l.b16 %v12084
      %v12203 = vunpack.c.l.b16 %v12087
      %v12204 = vunpack.c.l.b16 %v12091
      %v12205 = vunpack.c.l.b16 %v12094
      %v12206 = vunpack.c.l.b16 %v12098
      %v12207 = vunpack.c.l.b16 %v12101
      %v12208 = vunpack.c.l.b16 %v12105
      %v12209 = vunpack.c.l.b16 %v12108
      %v12210 = vunpack.c.l.b16 %v12112
      %v12211 = vunpack.c.l.b16 %v12115
      %v12212 = vunpack.c.l.b16 %v12119
      %v12213 = vunpack.c.l.b16 %v12122
      %v12214 = vunpack.c.l.b16 %v12126
      %v12215 = vunpack.c.l.b16 %v12129
      %v12216 = vunpack.c.l.b16 %v12133
      %v12217 = vunpack.c.l.b16 %v12136
      %v12218 = vunpack.c.l.b16 %v12140
      %v12219 = vunpack.c.l.b16 %v12143
      %v12220 = vunpack.c.l.b16 %v12147
      %v12221 = vunpack.c.l.b16 %v12150
      %v12222 = vunpack.c.l.b16 %v12154
      %v12223 = vunpack.c.l.b16 %v12157
      %v12224 = vunpack.c.l.b16 %v12161
      %v12225 = vunpack.c.l.b16 %v12164
      %v12226 = vpack.c.b16 %v12195, %v12194
      %v12227 = vpack.c.b16 %v12197, %v12196
      %v12228 = vpack.c.b16 %v12199, %v12198
      %v12229 = vpack.c.b16 %v12201, %v12200
      %v12230 = vpack.c.b16 %v12203, %v12202
      %v12231 = vpack.c.b16 %v12205, %v12204
      %v12232 = vpack.c.b16 %v12207, %v12206
      %v12233 = vpack.c.b16 %v12209, %v12208
      %v12234 = vpack.c.b16 %v12211, %v12210
      %v12235 = vpack.c.b16 %v12213, %v12212
      %v12236 = vpack.c.b16 %v12215, %v12214
      %v12237 = vpack.c.b16 %v12217, %v12216
      %v12238 = vpack.c.b16 %v12219, %v12218
      %v12239 = vpack.c.b16 %v12221, %v12220
      %v12240 = vpack.c.b16 %v12223, %v12222
      %v12241 = vpack.c.b16 %v12225, %v12224
      %v12243 = vsel %vm8937, %v12190, 0
      %v12246 = vsel %vm8937, %v12191, 0
      %v12249 = vsel %vm8937, %v12192, 0
      %v12252 = vsel %vm8937, %v12193, 0
      %v12255 = vsel %vm8937, %v12226, 0
      %v12258 = vsel %vm8937, %v12227, 0
      %v12261 = vsel %vm8937, %v12228, 0
      %v12264 = vsel %vm8937, %v12229, 0
      %v12267 = vsel %vm8937, %v12230, 0
      %v12270 = vsel %vm8937, %v12231, 0
      %v12273 = vsel %vm8937, %v12232, 0
      %v12276 = vsel %vm8937, %v12233, 0
      %v12279 = vsel %vm8937, %v12234, 0
      %v12282 = vsel %vm8937, %v12235, 0
      %v12285 = vsel %vm8937, %v12236, 0
      %v12288 = vsel %vm8937, %v12237, 0
      %v12291 = vsel %vm8937, %v12238, 0
      %v12294 = vsel %vm8937, %v12239, 0
      %v12297 = vsel %vm8937, %v12240, 0
      %v12300 = vsel %vm8937, %v12241, 0
      %12302 = vmatprep.subr.bf16.mxu0 0
      %12303 = vmatpush1.bf16.xpose.msra.mxu0 %v12276
      %12304 = vmatprep.subr.bf16.mxu0 0
      %12305 = vmatpush1.bf16.xpose.msra.mxu0 %v12273
      %12306 = vmatprep.subr.bf16.mxu0 0
      %12307 = vmatpush1.bf16.xpose.msra.mxu0 %v12270
      %12308 = vmatprep.subr.bf16.mxu0 0
      %12309 = vmatpush1.bf16.xpose.msra.mxu0 %v12267
      %12310 = vmatprep.subr.bf16.mxu0 0
      %12311 = vmatpush1.bf16.xpose.msra.mxu0 %v12264
      %12312 = vmatprep.subr.bf16.mxu0 0
      %12313 = vmatpush1.bf16.xpose.msra.mxu0 %v12261
      %12314 = vmatprep.subr.bf16.mxu0 0
      %12315 = vmatpush1.bf16.xpose.msra.mxu0 %v12258
      %12316 = vmatprep.subr.bf16.mxu0 0
      %12317 = vmatpush1.bf16.xpose.msra.mxu0 %v12255
      %12318 = vmatprep.subr.bf16.mxu0 0
      %12319 = vmatpush2.bf16.xpose.msra.mxu0 %v12300
      %12320 = vmatprep.subr.bf16.mxu0 0
      %12321 = vmatpush2.bf16.xpose.msra.mxu0 %v12297
      %12322 = vmatprep.subr.bf16.mxu0 0
      %12323 = vmatpush2.bf16.xpose.msra.mxu0 %v12294
      %12324 = vmatprep.subr.bf16.mxu0 0
      %12325 = vmatpush2.bf16.xpose.msra.mxu0 %v12291
      %12326 = vmatprep.subr.bf16.mxu0 0
      %12327 = vmatpush2.bf16.xpose.msra.mxu0 %v12288
      %12328 = vmatprep.subr.bf16.mxu0 0
      %12329 = vmatpush2.bf16.xpose.msra.mxu0 %v12285
      %12330 = vmatprep.subr.bf16.mxu0 0
      %12331 = vmatpush2.bf16.xpose.msra.mxu0 %v12282
      %12332 = vmatprep.subr.bf16.mxu0 0
      %12333 = vmatpush2.bf16.xpose.msra.mxu0 %v12279
      %12334 = vmatprep.mubr.bf16.mxu0 0
      %12335 = vmatmul.mubr.bf16.gmra.mxu0 %v12243
      %v12336 = vpop.f32.mrf.mxu0
      %v12337 = vadd.f32 0.0, %v12336
      %v12338 = vpop.f32.mrf.mxu0
      %v12339 = vadd.f32 0.0, %v12338
      %v12340 = vpop.f32.mrf.mxu0
      %v12341 = vadd.f32 0.0, %v12340
      %v12342 = vpop.f32.mrf.mxu0
      %v12343 = vadd.f32 0.0, %v12342
      %12344 = vmatprep.mubr.bf16.mxu0 0
      %12345 = vmatmul.mubr.bf16.gmra.mxu0 %v12246
      %v12346 = vpop.f32.mrf.mxu0
      %v12347 = vadd.f32 0.0, %v12346
      %v12348 = vpop.f32.mrf.mxu0
      %v12349 = vadd.f32 0.0, %v12348
      %v12350 = vpop.f32.mrf.mxu0
      %v12351 = vadd.f32 0.0, %v12350
      %v12352 = vpop.f32.mrf.mxu0
      %v12353 = vadd.f32 0.0, %v12352
      %12354 = vmatprep.mubr.bf16.mxu0 0
      %12355 = vmatmul.mubr.bf16.gmra.mxu0 %v12249
      %v12356 = vpop.f32.mrf.mxu0
      %v12357 = vadd.f32 0.0, %v12356
      %v12358 = vpop.f32.mrf.mxu0
      %v12359 = vadd.f32 0.0, %v12358
      %v12360 = vpop.f32.mrf.mxu0
      %v12361 = vadd.f32 0.0, %v12360
      %v12362 = vpop.f32.mrf.mxu0
      %v12363 = vadd.f32 0.0, %v12362
      %12364 = vmatprep.mubr.bf16.mxu0 0
      %12365 = vmatmul.mubr.bf16.gmra.mxu0 %v12252
      %v12366 = vpop.f32.mrf.mxu0
      %v12367 = vadd.f32 0.0, %v12366
      %v12368 = vpop.f32.mrf.mxu0
      %v12369 = vadd.f32 0.0, %v12368
      %v12370 = vpop.f32.mrf.mxu0
      %v12371 = vadd.f32 0.0, %v12370
      %v12372 = vpop.f32.mrf.mxu0
      %v12373 = vadd.f32 0.0, %v12372
      %12374 = vdwg.mxu0
      %v12375 = vadd.f32 %v11973, %v12337
      %v12376 = vadd.f32 %v11974, %v12339
      %v12377 = vadd.f32 %v11975, %v12341
      %v12378 = vadd.f32 %v11976, %v12343
      %v12379 = vadd.f32 %v11977, %v12347
      %v12380 = vadd.f32 %v11978, %v12349
      %v12381 = vadd.f32 %v11979, %v12351
      %v12382 = vadd.f32 %v11980, %v12353
      %v12383 = vadd.f32 %v11981, %v12357
      %v12384 = vadd.f32 %v11982, %v12359
      %v12385 = vadd.f32 %v11983, %v12361
      %v12386 = vadd.f32 %v11984, %v12363
      %v12387 = vadd.f32 %v11985, %v12367
      %v12388 = vadd.f32 %v11986, %v12369
      %v12389 = vadd.f32 %v11987, %v12371
      %v12390 = vadd.f32 %v11988, %v12373
      %v12391 = vld [vmem:[%s7] sm:$0xff]
      %v12392 = vld [vmem:[%s7 + $0x8] sm:$0xff]
      %v12393 = vld [vmem:[%s7 + $0x10] sm:$0xff]
      %v12394 = vld [vmem:[%s7 + $0x18] sm:$0xff]
      %v12395 = vld [vmem:[%s7 + $0x20] sm:$0xff]
      %v12396 = vld [vmem:[%s7 + $0x28] sm:$0xff]
      %v12397 = vld [vmem:[%s7 + $0x30] sm:$0xff]
      %v12398 = vld [vmem:[%s7 + $0x38] sm:$0xff]
      %12400 = vset.pattern.permute.xlu0 0
      %12401 = vperm.xlu0 %12400, %v12391
      %v12402 = vpop.permute.xlu0 %12401
      %12405 = vset.pattern.permute.xlu0 0
      %12406 = vperm.xlu0 %12405, %v12392
      %v12407 = vpop.permute.xlu0 %12406
      %12410 = vset.pattern.permute.xlu0 0
      %12411 = vperm.xlu0 %12410, %v12393
      %v12412 = vpop.permute.xlu0 %12411
      %12415 = vset.pattern.permute.xlu0 0
      %12416 = vperm.xlu0 %12415, %v12394
      %v12417 = vpop.permute.xlu0 %12416
      %12420 = vset.pattern.permute.xlu0 0
      %12421 = vperm.xlu0 %12420, %v12395
      %v12422 = vpop.permute.xlu0 %12421
      %12425 = vset.pattern.permute.xlu0 0
      %12426 = vperm.xlu0 %12425, %v12396
      %v12427 = vpop.permute.xlu0 %12426
      %12430 = vset.pattern.permute.xlu0 0
      %12431 = vperm.xlu0 %12430, %v12397
      %v12432 = vpop.permute.xlu0 %12431
      %12435 = vset.pattern.permute.xlu0 0
      %12436 = vperm.xlu0 %12435, %v12398
      %v12437 = vpop.permute.xlu0 %12436
      %v12439 = vmul.f32 %v12375, %v12402
      %v12440 = vmul.f32 %v12376, %v12402
      %v12441 = vmul.f32 %v12377, %v12407
      %v12442 = vmul.f32 %v12378, %v12407
      %v12443 = vmul.f32 %v12379, %v12412
      %v12444 = vmul.f32 %v12380, %v12412
      %v12445 = vmul.f32 %v12381, %v12417
      %v12446 = vmul.f32 %v12382, %v12417
      %v12447 = vmul.f32 %v12383, %v12422
      %v12448 = vmul.f32 %v12384, %v12422
      %v12449 = vmul.f32 %v12385, %v12427
      %v12450 = vmul.f32 %v12386, %v12427
      %v12451 = vmul.f32 %v12387, %v12432
      %v12452 = vmul.f32 %v12388, %v12432
      %v12453 = vmul.f32 %v12389, %v12437
      %v12454 = vmul.f32 %v12390, %v12437
      %v12455 = vld [vmem:[%s8] sm:$0xff]
      %v12456 = vld [vmem:[%s8 + $0x8] sm:$0xff]
      %v12457 = vld [vmem:[%s8 + $0x10] sm:$0xff]
      %v12458 = vld [vmem:[%s8 + $0x18] sm:$0xff]
      %v12459 = vld [vmem:[%s8 + $0x20] sm:$0xff]
      %v12460 = vld [vmem:[%s8 + $0x28] sm:$0xff]
      %v12461 = vld [vmem:[%s8 + $0x30] sm:$0xff]
      %v12462 = vld [vmem:[%s8 + $0x38] sm:$0xff]
      %12464 = vset.pattern.permute.xlu0 0
      %12465 = vperm.xlu0 %12464, %v12455
      %v12466 = vpop.permute.xlu0 %12465
      %12469 = vset.pattern.permute.xlu0 0
      %12470 = vperm.xlu0 %12469, %v12456
      %v12471 = vpop.permute.xlu0 %12470
      %12474 = vset.pattern.permute.xlu0 0
      %12475 = vperm.xlu0 %12474, %v12457
      %v12476 = vpop.permute.xlu0 %12475
      %12479 = vset.pattern.permute.xlu0 0
      %12480 = vperm.xlu0 %12479, %v12458
      %v12481 = vpop.permute.xlu0 %12480
      %12484 = vset.pattern.permute.xlu0 0
      %12485 = vperm.xlu0 %12484, %v12459
      %v12486 = vpop.permute.xlu0 %12485
      %12489 = vset.pattern.permute.xlu0 0
      %12490 = vperm.xlu0 %12489, %v12460
      %v12491 = vpop.permute.xlu0 %12490
      %12494 = vset.pattern.permute.xlu0 0
      %12495 = vperm.xlu0 %12494, %v12461
      %v12496 = vpop.permute.xlu0 %12495
      %12499 = vset.pattern.permute.xlu0 0
      %12500 = vperm.xlu0 %12499, %v12462
      %v12501 = vpop.permute.xlu0 %12500
      %v12503 = vadd.f32 %v12439, %v12466
      %v12504 = vadd.f32 %v12440, %v12466
      %v12505 = vadd.f32 %v12441, %v12471
      %v12506 = vadd.f32 %v12442, %v12471
      %v12507 = vadd.f32 %v12443, %v12476
      %v12508 = vadd.f32 %v12444, %v12476
      %v12509 = vadd.f32 %v12445, %v12481
      %v12510 = vadd.f32 %v12446, %v12481
      %v12511 = vadd.f32 %v12447, %v12486
      %v12512 = vadd.f32 %v12448, %v12486
      %v12513 = vadd.f32 %v12449, %v12491
      %v12514 = vadd.f32 %v12450, %v12491
      %v12515 = vadd.f32 %v12451, %v12496
      %v12516 = vadd.f32 %v12452, %v12496
      %v12517 = vadd.f32 %v12453, %v12501
      %v12518 = vadd.f32 %v12454, %v12501
      %v12519 = vmax.f32 %v12503, 0.0
      %v12520 = vmax.f32 %v12504, 0.0
      %v12521 = vmax.f32 %v12505, 0.0
      %v12522 = vmax.f32 %v12506, 0.0
      %v12523 = vmax.f32 %v12507, 0.0
      %v12524 = vmax.f32 %v12508, 0.0
      %v12525 = vmax.f32 %v12509, 0.0
      %v12526 = vmax.f32 %v12510, 0.0
      %v12527 = vmax.f32 %v12511, 0.0
      %v12528 = vmax.f32 %v12512, 0.0
      %v12529 = vmax.f32 %v12513, 0.0
      %v12530 = vmax.f32 %v12514, 0.0
      %v12531 = vmax.f32 %v12515, 0.0
      %v12532 = vmax.f32 %v12516, 0.0
      %v12533 = vmax.f32 %v12517, 0.0
      %v12534 = vmax.f32 %v12518, 0.0
      %12535 = vst [vmem:[%s332] sm:$0xff] %v12519
      %12536 = vst [vmem:[%s332 + $0x8] sm:$0xff] %v12520
      %12537 = vst [vmem:[%s332 + $0x10] sm:$0xff] %v12521
      %12538 = vst [vmem:[%s332 + $0x18] sm:$0xff] %v12522
      %12539 = vst [vmem:[%s332 + $0x20] sm:$0xff] %v12523
      %12540 = vst [vmem:[%s332 + $0x28] sm:$0xff] %v12524
      %12541 = vst [vmem:[%s332 + $0x30] sm:$0xff] %v12525
      %12542 = vst [vmem:[%s332 + $0x38] sm:$0xff] %v12526
      %12543 = vst [vmem:[%s332 + $0x40] sm:$0xff] %v12527
      %12544 = vst [vmem:[%s332 + $0x48] sm:$0xff] %v12528
      %12545 = vst [vmem:[%s332 + $0x50] sm:$0xff] %v12529
      %12546 = vst [vmem:[%s332 + $0x58] sm:$0xff] %v12530
      %12547 = vst [vmem:[%s332 + $0x60] sm:$0xff] %v12531
      %12548 = vst [vmem:[%s332 + $0x68] sm:$0xff] %v12532
      %12549 = vst [vmem:[%s332 + $0x70] sm:$0xff] %v12533
      %12550 = vst [vmem:[%s332 + $0x78] sm:$0xff] %v12534
      %p12551 = scmp.lt.s32.totalorder %s20, 3
      %s12552 = scalar_select %p12551, %s20, 3
      %s12553 = smul.addr %s12552, 16
      %s12554 = smul.addr %s12553, 8
      %s12555 = scalar_lea.vmem %s9, %s12554
      // Predicated region
      $region57: #{up_block_forward.1} parent=55 // pred_check
        %p12556 = pneg %p232
      $region58: #{up_block_forward.1} parent=55 // pred_check_branch
        %12558 = sbr.rel (%p12556) target = $region60
      $region59: #{up_block_forward.1} parent=55 // pred_region
        _
      $region60: #{up_block_forward.1} parent=55 // pred_fallthru
        _
    $region56: #{up_block_forward.1} parent=5 // pred_fallthru
      _
    %p12559 = scmp.le.s32.totalorder 2, %s15
    // Predicated region
    $region61: #{up_block_forward.1} parent=5 // pred_check
      %p12560 = pneg %p12559
    $region62: #{up_block_forward.1} parent=5 // pred_check_branch
      %12562 = sbr.rel (%p12560) target = $region64
    $region63: #{up_block_forward.1} parent=5 // pred_region
      %s12563 = ssub.s32 %s15, 2
      // Predicated region
      $region65: #{up_block_forward.1} parent=63 // pred_check
        %p12564 = pneg %p238
      $region66: #{up_block_forward.1} parent=63 // pred_check_branch
        %12566 = sbr.rel (%p12564) target = $region68
      $region67: #{up_block_forward.1} parent=63 // pred_region
        %p12567 = scmp.lt.s32.totalorder %s21, 3
        %s12568 = scalar_select %p12567, %s21, 3
        %s12569 = smul.addr %s12568, 16
        %s12570 = smul.addr %s12569, 8
        %s12571 = scalar_lea.vmem %s9, %s12570
      $region68: #{up_block_forward.1} parent=63 // pred_fallthru
        _
    $region64: #{up_block_forward.1} parent=5 // pred_fallthru
      _
  $region6: #{up_block_forward.1} parent=0 // loop_footer
    %s19 = sadd.s32 1, %s15
  $region7: #{up_block_forward.1} parent=0 // loop_footer_branch
    %14 = sbr.rel target = $region3
  $region8: #{up_block_forward.1} parent=0 // loop_exit
    _

</llo_original>
